<compile_context>
chip_gen: v7x
topology: tpu7x:2x2x1
jax: 0.10.0
libtpu: 0.0.40
codegen_flags: <defaults>
</compile_context>

<pallas_src>
import numpy as np
import jax
import jax.numpy as jnp
from jax.experimental import pallas as pl
from jax.experimental.pallas import tpu as pltpu


# --------------------------- static shape derivation ---------------------------

_CONV1_K = 80
_CONV1_STRIDE = 16
_CONV1_TAPS = _CONV1_K // _CONV1_STRIDE          # 5 taps of width 16


def m5_dims(L, n_channel=32):
    """Per-layer static sizes: list of (ntaps, Lc, Lu, Lp, c_out)."""
    assert L % _CONV1_STRIDE == 0, "input length must be a multiple of 16"
    rows = L // _CONV1_STRIDE
    c_outs = (n_channel, n_channel, 2 * n_channel, 2 * n_channel)
    ntaps = (_CONV1_TAPS, 3, 3, 3)
    dims = []
    L_in = rows
    for i in range(4):
        Lc = L_in - ntaps[i] + 1                 # conv output length
        assert Lc >= 4, "input too short for M5"
        Lp = Lc // 4                             # MaxPool1d(4) output length (floor)
        Lu = Lc - 3                              # length of contiguous 4-way max
        dims.append((ntaps[i], Lc, Lu, Lp, c_outs[i]))
        L_in = Lp
    return rows, dims


# ------------------------------ fused Pallas kernel ----------------------------

def _make_m5_kernel(dims):
    n_layers = len(dims)

    def kernel(*refs):
        x_ref = refs[0]                                  # (rows, 16) waveform rows
        lrefs = refs[1:1 + 4 * n_layers]                 # per layer: w, scale, shift, sel
        fcw_ref = refs[1 + 4 * n_layers]                 # (C_last, n_output)
        fcb_ref = refs[2 + 4 * n_layers]                 # (1, n_output)
        o_ref = refs[3 + 4 * n_layers]                   # (1, n_output)
        scratch = refs[4 + 4 * n_layers:]
        y_refs = scratch[:n_layers]                      # pre-pool activations
        h_refs = scratch[n_layers:]                      # pooled activations (layers 1..3)

        f32 = jnp.float32
        h_val = None
        for li, (ntaps, Lc, Lu, Lp, c_out) in enumerate(dims):
            w_ref, scale_ref, shift_ref, sel_ref = lrefs[4 * li:4 * li + 4]
            src = x_ref if li == 0 else h_refs[li - 1]

            # Conv1d as `ntaps` accumulated MXU matmuls over shifted VMEM windows.
            acc = jnp.dot(src[0:Lc, :], w_ref[0], preferred_element_type=f32)
            for t in range(1, ntaps):
                acc = acc + jnp.dot(src[t:t + Lc, :], w_ref[t],
                                    preferred_element_type=f32)

            # Folded eval-mode BatchNorm (+conv bias) + ReLU epilogue.
            y_refs[li][...] = jnp.maximum(acc * scale_ref[...] + shift_ref[...], 0.0)
            yr = y_refs[li]

            # MaxPool1d(4): contiguous running 4-max over shifted windows, then
            # a stride-4 row selection done as a 0/1 matmul on the MXU.
            u = jnp.maximum(jnp.maximum(yr[0:Lu, :], yr[1:Lu + 1, :]),
                            jnp.maximum(yr[2:Lu + 2, :], yr[3:Lu + 3, :]))
            h_val = jnp.dot(sel_ref[...], u, preferred_element_type=f32)   # (Lp, c_out)
            if li + 1 < n_layers:
                h_refs[li][...] = h_val

        # F.avg_pool1d(x, x.shape[-1]): global mean over the remaining time axis.
        g = jnp.mean(h_val, axis=0, keepdims=True)                         # (1, C)

        # Linear + log_softmax (max-stabilized).
        logits = jnp.dot(g, fcw_ref[...], preferred_element_type=f32) + fcb_ref[...]
        z = logits - jnp.max(logits, axis=-1, keepdims=True)
        o_ref[...] = z - jnp.log(jnp.sum(jnp.exp(z), axis=-1, keepdims=True))

    return kernel


# --------------------------- one-time parameter prep ---------------------------

def prepare_params(params, L, eps=1e-5):
    """Precompute (outside the inference path): conv weights in matmul-tap layout,
    folded BN scale/shift, stride-4 pool-selection matrices and the transposed FC."""
    n_channel = params["conv1"][0].shape[0]
    _, dims = m5_dims(L, n_channel)
    layers = []
    for i, (ntaps, Lc, Lu, Lp, c_out) in enumerate(dims):
        w, b = params[f"conv{i + 1}"]
        gamma, beta, mean, var = params[f"bn{i + 1}"]
        c_o, c_i, k = w.shape
        # torch (C_out, C_in, k) -> im2col matmul layout (k*C_in, C_out) -> taps.
        wt = jnp.transpose(w, (2, 1, 0)).reshape(k * c_i, c_o)
        wt = wt.reshape(ntaps, (k * c_i) // ntaps, c_o)
        # Eval-mode BatchNorm folded with the conv bias into a per-channel affine.
        scale = gamma / jnp.sqrt(var + eps)
        shift = (b - mean) * scale + beta
        # Stride-4 row-selection matrix for MaxPool1d(4): sel[t, 4t] = 1.
        sel = (jnp.arange(Lu)[None, :] == 4 * jnp.arange(Lp)[:, None]).astype(jnp.float32)
        layers.append((wt, scale.reshape(1, c_o), shift.reshape(1, c_o), sel))
    return {"layers": layers,
            "fc_w": jnp.asarray(params["fc_w"]).T,          # (2*n_channel, n_output)
            "fc_b": jnp.asarray(params["fc_b"]).reshape(1, -1)}


# ---------------------------------- forward ------------------------------------

def m5_forward(x_ncl, prep):
    # x_ncl: (B, 1, L) like PyTorch; returns (B, 1, n_output) log-probs.
    B, c_in, L = x_ncl.shape
    # TODO(synk): generalize the conv1 row-view trick to n_input > 1 (module default is 1).
    assert c_in == 1, "this kernel implements the module default n_input=1"
    n_channel = prep["layers"][0][0].shape[-1]
    n_output = prep["fc_b"].shape[-1]
    rows, dims = m5_dims(L, n_channel)

    # Channels-last, stride-16 row view: waveform sample 16*r + m -> x_rows[b, r, m].
    x_rows = x_ncl[:, 0, :].reshape(B, rows, _CONV1_STRIDE).astype(jnp.float32)

    inputs = [x_rows]
    in_specs = [pl.BlockSpec((None, rows, _CONV1_STRIDE), lambda b: (b, 0, 0))]
    for (wt, scale, shift, sel) in prep["layers"]:
        inputs += [wt, scale, shift, sel]
        in_specs += [
            pl.BlockSpec(wt.shape, lambda b: (0, 0, 0)),
            pl.BlockSpec(scale.shape, lambda b: (0, 0)),
            pl.BlockSpec(shift.shape, lambda b: (0, 0)),
            pl.BlockSpec(sel.shape, lambda b: (0, 0)),
        ]
    inputs += [prep["fc_w"], prep["fc_b"]]
    in_specs += [pl.BlockSpec(prep["fc_w"].shape, lambda b: (0, 0)),
                 pl.BlockSpec(prep["fc_b"].shape, lambda b: (0, 0))]

    scratch = [pltpu.VMEM((Lc, c), jnp.float32) for (_, Lc, _, _, c) in dims]       # y
    scratch += [pltpu.VMEM((Lp, c), jnp.float32) for (_, _, _, Lp, c) in dims[:-1]]  # pooled

    return pl.pallas_call(
        _make_m5_kernel(dims),
        out_shape=jax.ShapeDtypeStruct((B, 1, n_output), jnp.float32),
        grid_spec=pltpu.PrefetchScalarGridSpec(
            num_scalar_prefetch=0,
            grid=(B,),
            in_specs=in_specs,
            out_specs=pl.BlockSpec((None, 1, n_output), lambda b: (b, 0, 0)),
            scratch_shapes=scratch,
        ),
        compiler_params=pltpu.CompilerParams(
            dimension_semantics=("parallel",)),
    )(*inputs)


# -------------------------- pure-JAX reference (check) --------------------------

def m5_reference(x_ncl, params):
    x = jnp.transpose(x_ncl, (0, 2, 1)).astype(jnp.float32)     # (B, L, C)
    B = x.shape[0]
    strides = (16, 1, 1, 1)
    for i in range(4):
        w, b = params[f"conv{i + 1}"]
        gamma, beta, mean, var = params[f"bn{i + 1}"]
        c_out, c_in, k = w.shape
        L = x.shape[1]
        L_out = (L - k) // strides[i] + 1
        idx = jnp.arange(L_out)[:, None] * strides[i] + jnp.arange(k)[None, :]
        x_col = x[:, idx, :].reshape(B * L_out, k * c_in)
        w2 = jnp.transpose(w, (2, 1, 0)).reshape(k * c_in, c_out)
        y = x_col @ w2 + b
        y = (y - mean) / jnp.sqrt(var + 1e-5) * gamma + beta
        y = jnp.maximum(y, 0.0).reshape(B, L_out, c_out)
        L_p = L_out // 4
        x = y[:, :L_p * 4, :].reshape(B, L_p, 4, c_out).max(axis=2)
    x = x.mean(axis=1)
    logits = x @ params["fc_w"].T + params["fc_b"]
    return jax.nn.log_softmax(logits, axis=-1)[:, None, :]


# ------------------------------- parameter init ---------------------------------

def init_params(key, n_input=1, n_output=35, n_channel=32):
    def conv_init(k, c_out, c_in, ksz):
        kw, kb = jax.random.split(k)
        bound = 1.0 / np.sqrt(c_in * ksz)
        w = jax.random.uniform(kw, (c_out, c_in, ksz), jnp.float32, -bound, bound)
        b = jax.random.uniform(kb, (c_out,), jnp.float32, -bound, bound)
        return w, b

    def bn_init(k, c):
        k1, k2, k3, k4 = jax.random.split(k, 4)
        gamma = 1.0 + 0.1 * jax.random.normal(k1, (c,), jnp.float32)
        beta = 0.1 * jax.random.normal(k2, (c,), jnp.float32)
        mean = 0.05 * jax.random.normal(k3, (c,), jnp.float32)
        var = 0.5 + 0.25 * jnp.abs(jax.random.normal(k4, (c,), jnp.float32))
        return gamma, beta, mean, var

    keys = jax.random.split(key, 10)
    params = {}
    cfgs = [(n_channel, n_input, 80), (n_channel, n_channel, 3),
            (2 * n_channel, n_channel, 3), (2 * n_channel, 2 * n_channel, 3)]
    for i, (co, ci, k) in enumerate(cfgs):
        params[f"conv{i + 1}"] = conv_init(keys[2 * i], co, ci, k)
        params[f"bn{i + 1}"] = bn_init(keys[2 * i + 1], co)
    kfw, kfb = jax.random.split(keys[8])
    bound = 1.0 / np.sqrt(2 * n_channel)
    params["fc_w"] = jax.random.uniform(kfw, (n_output, 2 * n_channel),
                                        jnp.float32, -bound, bound)
    params["fc_b"] = jax.random.uniform(kfb, (n_output,), jnp.float32,
                                        -bound, bound)
    return params


# ----------------------------------- main ----------------------------------------

if __name__ == "__main__":
    # Smallest "natural" input for this model: 8 kHz, 1-second waveform
    # (kernel=80/stride=16 plus four /4 pools need L >= ~6.8k samples).
    B, C_IN, L = 2, 1, 8000
    x = jax.random.normal(jax.random.PRNGKey(0), (B, C_IN, L), jnp.float32)
    params = init_params(jax.random.PRNGKey(42))

    prep = prepare_params(params, L)          # one-time weight prep, off the hot path
    fwd = jax.jit(m5_forward)

    out = jax.block_until_ready(fwd(x, prep))
    assert out.shape == (B, 1, 35), out.shape

    ref = jax.block_until_ready(jax.jit(m5_reference)(x, params))
    np.testing.assert_allclose(np.asarray(out), np.asarray(ref),
                               atol=5e-3, rtol=5e-3)

    print("KERNEL_OK")
</pallas_src>

<mosaic_0001>
module attributes {stable_mosaic.version = 11 : i64} {
  func.func @kernel(%arg0: i32, %arg1: memref<1x500x16xf32, #tpu.memory_space<vmem>>, %arg2: memref<5x16x32xf32, #tpu.memory_space<vmem>>, %arg3: memref<1x32xf32, #tpu.memory_space<vmem>>, %arg4: memref<1x32xf32, #tpu.memory_space<vmem>>, %arg5: memref<124x493xf32, #tpu.memory_space<vmem>>, %arg6: memref<3x32x32xf32, #tpu.memory_space<vmem>>, %arg7: memref<1x32xf32, #tpu.memory_space<vmem>>, %arg8: memref<1x32xf32, #tpu.memory_space<vmem>>, %arg9: memref<30x119xf32, #tpu.memory_space<vmem>>, %arg10: memref<3x32x64xf32, #tpu.memory_space<vmem>>, %arg11: memref<1x64xf32, #tpu.memory_space<vmem>>, %arg12: memref<1x64xf32, #tpu.memory_space<vmem>>, %arg13: memref<7x25xf32, #tpu.memory_space<vmem>>, %arg14: memref<3x64x64xf32, #tpu.memory_space<vmem>>, %arg15: memref<1x64xf32, #tpu.memory_space<vmem>>, %arg16: memref<1x64xf32, #tpu.memory_space<vmem>>, %arg17: memref<1x2xf32, #tpu.memory_space<vmem>>, %arg18: memref<64x35xf32, #tpu.memory_space<vmem>>, %arg19: memref<1x35xf32, #tpu.memory_space<vmem>>, %arg20: memref<1x1x35xf32, #tpu.memory_space<vmem>>, %arg21: memref<496x32xf32, #tpu.memory_space<vmem>>, %arg22: memref<122x32xf32, #tpu.memory_space<vmem>>, %arg23: memref<28x64xf32, #tpu.memory_space<vmem>>, %arg24: memref<5x64xf32, #tpu.memory_space<vmem>>, %arg25: memref<124x32xf32, #tpu.memory_space<vmem>>, %arg26: memref<30x32xf32, #tpu.memory_space<vmem>>, %arg27: memref<7x64xf32, #tpu.memory_space<vmem>>) attributes {dimension_semantics = [#tpu.dimension_semantics<parallel>], iteration_bounds = array<i64: 2>, scalar_prefetch = 0 : i64, scratch_operands = 7 : i64, tpu.core_type = #tpu.core_type<tc>, window_params = [{transform_indices = @transform_0, window_bounds = array<i64: 1, 500, 16>}, {pipeline_mode = #tpu.pipeline_mode<synchronous>, transform_indices = @transform_1, window_bounds = array<i64: 5, 16, 32>}, {pipeline_mode = #tpu.pipeline_mode<synchronous>, transform_indices = @transform_2, window_bounds = array<i64: 1, 32>}, {pipeline_mode = #tpu.pipeline_mode<synchronous>, transform_indices = @transform_3, window_bounds = array<i64: 1, 32>}, {pipeline_mode = #tpu.pipeline_mode<synchronous>, transform_indices = @transform_4, window_bounds = array<i64: 124, 493>}, {pipeline_mode = #tpu.pipeline_mode<synchronous>, transform_indices = @transform_5, window_bounds = array<i64: 3, 32, 32>}, {pipeline_mode = #tpu.pipeline_mode<synchronous>, transform_indices = @transform_6, window_bounds = array<i64: 1, 32>}, {pipeline_mode = #tpu.pipeline_mode<synchronous>, transform_indices = @transform_7, window_bounds = array<i64: 1, 32>}, {pipeline_mode = #tpu.pipeline_mode<synchronous>, transform_indices = @transform_8, window_bounds = array<i64: 30, 119>}, {pipeline_mode = #tpu.pipeline_mode<synchronous>, transform_indices = @transform_9, window_bounds = array<i64: 3, 32, 64>}, {pipeline_mode = #tpu.pipeline_mode<synchronous>, transform_indices = @transform_10, window_bounds = array<i64: 1, 64>}, {pipeline_mode = #tpu.pipeline_mode<synchronous>, transform_indices = @transform_11, window_bounds = array<i64: 1, 64>}, {pipeline_mode = #tpu.pipeline_mode<synchronous>, transform_indices = @transform_12, window_bounds = array<i64: 7, 25>}, {pipeline_mode = #tpu.pipeline_mode<synchronous>, transform_indices = @transform_13, window_bounds = array<i64: 3, 64, 64>}, {pipeline_mode = #tpu.pipeline_mode<synchronous>, transform_indices = @transform_14, window_bounds = array<i64: 1, 64>}, {pipeline_mode = #tpu.pipeline_mode<synchronous>, transform_indices = @transform_15, window_bounds = array<i64: 1, 64>}, {pipeline_mode = #tpu.pipeline_mode<synchronous>, transform_indices = @transform_16, window_bounds = array<i64: 1, 2>}, {pipeline_mode = #tpu.pipeline_mode<synchronous>, transform_indices = @transform_17, window_bounds = array<i64: 64, 35>}, {pipeline_mode = #tpu.pipeline_mode<synchronous>, transform_indices = @transform_18, window_bounds = array<i64: 1, 35>}, {transform_indices = @transform_19, window_bounds = array<i64: 1, 1, 35>}]} {
    %c0 = arith.constant 0 : index
    %c0_0 = arith.constant 0 : index
    %c0_1 = arith.constant 0 : index
    %0 = vector.load %arg1[%c0, %c0_0, %c0_1] : memref<1x500x16xf32, #tpu.memory_space<vmem>>, vector<1x496x16xf32>
    %1 = vector.shape_cast %0 : vector<1x496x16xf32> to vector<496x16xf32>
    %c0_2 = arith.constant 0 : index
    %c0_3 = arith.constant 0 : index
    %c0_4 = arith.constant 0 : index
    %2 = vector.load %arg2[%c0_2, %c0_3, %c0_4] : memref<5x16x32xf32, #tpu.memory_space<vmem>>, vector<1x16x32xf32>
    %3 = vector.shape_cast %2 : vector<1x16x32xf32> to vector<16x32xf32>
    %cst = arith.constant dense<0.000000e+00> : vector<496x32xf32>
    %4 = tpu.matmul %1, %3, %cst {dimension_numbers = #tpu.dot_dimension_numbers<[1], [0], [0], [1], [0, 0, 1, 1], [], []>} : vector<496x16xf32>, vector<16x32xf32>, vector<496x32xf32> -> vector<496x32xf32>
    %c0_5 = arith.constant 0 : index
    %c1 = arith.constant 1 : index
    %c0_6 = arith.constant 0 : index
    %5 = vector.load %arg1[%c0_5, %c1, %c0_6] : memref<1x500x16xf32, #tpu.memory_space<vmem>>, vector<1x496x16xf32>
    %6 = vector.shape_cast %5 : vector<1x496x16xf32> to vector<496x16xf32>
    %c1_7 = arith.constant 1 : index
    %c0_8 = arith.constant 0 : index
    %c0_9 = arith.constant 0 : index
    %7 = vector.load %arg2[%c1_7, %c0_8, %c0_9] : memref<5x16x32xf32, #tpu.memory_space<vmem>>, vector<1x16x32xf32>
    %8 = vector.shape_cast %7 : vector<1x16x32xf32> to vector<16x32xf32>
    %cst_10 = arith.constant dense<0.000000e+00> : vector<496x32xf32>
    %9 = tpu.matmul %6, %8, %cst_10 {dimension_numbers = #tpu.dot_dimension_numbers<[1], [0], [0], [1], [0, 0, 1, 1], [], []>} : vector<496x16xf32>, vector<16x32xf32>, vector<496x32xf32> -> vector<496x32xf32>
    %10 = arith.addf %4, %9 : vector<496x32xf32>
    %c0_11 = arith.constant 0 : index
    %c2 = arith.constant 2 : index
    %c0_12 = arith.constant 0 : index
    %11 = vector.load %arg1[%c0_11, %c2, %c0_12] : memref<1x500x16xf32, #tpu.memory_space<vmem>>, vector<1x496x16xf32>
    %12 = vector.shape_cast %11 : vector<1x496x16xf32> to vector<496x16xf32>
    %c2_13 = arith.constant 2 : index
    %c0_14 = arith.constant 0 : index
    %c0_15 = arith.constant 0 : index
    %13 = vector.load %arg2[%c2_13, %c0_14, %c0_15] : memref<5x16x32xf32, #tpu.memory_space<vmem>>, vector<1x16x32xf32>
    %14 = vector.shape_cast %13 : vector<1x16x32xf32> to vector<16x32xf32>
    %cst_16 = arith.constant dense<0.000000e+00> : vector<496x32xf32>
    %15 = tpu.matmul %12, %14, %cst_16 {dimension_numbers = #tpu.dot_dimension_numbers<[1], [0], [0], [1], [0, 0, 1, 1], [], []>} : vector<496x16xf32>, vector<16x32xf32>, vector<496x32xf32> -> vector<496x32xf32>
    %16 = arith.addf %10, %15 : vector<496x32xf32>
    %c0_17 = arith.constant 0 : index
    %c3 = arith.constant 3 : index
    %c0_18 = arith.constant 0 : index
    %17 = vector.load %arg1[%c0_17, %c3, %c0_18] : memref<1x500x16xf32, #tpu.memory_space<vmem>>, vector<1x496x16xf32>
    %18 = vector.shape_cast %17 : vector<1x496x16xf32> to vector<496x16xf32>
    %c3_19 = arith.constant 3 : index
    %c0_20 = arith.constant 0 : index
    %c0_21 = arith.constant 0 : index
    %19 = vector.load %arg2[%c3_19, %c0_20, %c0_21] : memref<5x16x32xf32, #tpu.memory_space<vmem>>, vector<1x16x32xf32>
    %20 = vector.shape_cast %19 : vector<1x16x32xf32> to vector<16x32xf32>
    %cst_22 = arith.constant dense<0.000000e+00> : vector<496x32xf32>
    %21 = tpu.matmul %18, %20, %cst_22 {dimension_numbers = #tpu.dot_dimension_numbers<[1], [0], [0], [1], [0, 0, 1, 1], [], []>} : vector<496x16xf32>, vector<16x32xf32>, vector<496x32xf32> -> vector<496x32xf32>
    %22 = arith.addf %16, %21 : vector<496x32xf32>
    %c0_23 = arith.constant 0 : index
    %c4 = arith.constant 4 : index
    %c0_24 = arith.constant 0 : index
    %23 = vector.load %arg1[%c0_23, %c4, %c0_24] : memref<1x500x16xf32, #tpu.memory_space<vmem>>, vector<1x496x16xf32>
    %24 = vector.shape_cast %23 : vector<1x496x16xf32> to vector<496x16xf32>
    %c4_25 = arith.constant 4 : index
    %c0_26 = arith.constant 0 : index
    %c0_27 = arith.constant 0 : index
    %25 = vector.load %arg2[%c4_25, %c0_26, %c0_27] : memref<5x16x32xf32, #tpu.memory_space<vmem>>, vector<1x16x32xf32>
    %26 = vector.shape_cast %25 : vector<1x16x32xf32> to vector<16x32xf32>
    %cst_28 = arith.constant dense<0.000000e+00> : vector<496x32xf32>
    %27 = tpu.matmul %24, %26, %cst_28 {dimension_numbers = #tpu.dot_dimension_numbers<[1], [0], [0], [1], [0, 0, 1, 1], [], []>} : vector<496x16xf32>, vector<16x32xf32>, vector<496x32xf32> -> vector<496x32xf32>
    %28 = arith.addf %22, %27 : vector<496x32xf32>
    %c0_29 = arith.constant 0 : index
    %c0_30 = arith.constant 0 : index
    %29 = vector.load %arg3[%c0_29, %c0_30] : memref<1x32xf32, #tpu.memory_space<vmem>>, vector<1x32xf32>
    %30 = vector.broadcast %29 : vector<1x32xf32> to vector<496x32xf32>
    %31 = arith.mulf %28, %30 : vector<496x32xf32>
    %c0_31 = arith.constant 0 : index
    %c0_32 = arith.constant 0 : index
    %32 = vector.load %arg4[%c0_31, %c0_32] : memref<1x32xf32, #tpu.memory_space<vmem>>, vector<1x32xf32>
    %33 = vector.broadcast %32 : vector<1x32xf32> to vector<496x32xf32>
    %34 = arith.addf %31, %33 : vector<496x32xf32>
    %cst_33 = arith.constant 0.000000e+00 : f32
    %35 = vector.broadcast %cst_33 : f32 to vector<496x32xf32>
    %36 = arith.maximumf %34, %35 : vector<496x32xf32>
    %c0_34 = arith.constant 0 : index
    %c0_35 = arith.constant 0 : index
    %37 = vector.load %arg21[%c0_34, %c0_35] : memref<496x32xf32, #tpu.memory_space<vmem>>, vector<496x32xf32>
    tpu.vector_store %arg21[%c0_34, %c0_35], %36 {strides = array<i32>} : memref<496x32xf32, #tpu.memory_space<vmem>>, vector<496x32xf32>,
    %c0_36 = arith.constant 0 : index
    %c0_37 = arith.constant 0 : index
    %38 = vector.load %arg21[%c0_36, %c0_37] : memref<496x32xf32, #tpu.memory_space<vmem>>, vector<493x32xf32>
    %c1_38 = arith.constant 1 : index
    %c0_39 = arith.constant 0 : index
    %39 = vector.load %arg21[%c1_38, %c0_39] : memref<496x32xf32, #tpu.memory_space<vmem>>, vector<493x32xf32>
    %40 = arith.maximumf %38, %39 : vector<493x32xf32>
    %c2_40 = arith.constant 2 : index
    %c0_41 = arith.constant 0 : index
    %41 = vector.load %arg21[%c2_40, %c0_41] : memref<496x32xf32, #tpu.memory_space<vmem>>, vector<493x32xf32>
    %c3_42 = arith.constant 3 : index
    %c0_43 = arith.constant 0 : index
    %42 = vector.load %arg21[%c3_42, %c0_43] : memref<496x32xf32, #tpu.memory_space<vmem>>, vector<493x32xf32>
    %43 = arith.maximumf %41, %42 : vector<493x32xf32>
    %44 = arith.maximumf %40, %43 : vector<493x32xf32>
    %c0_44 = arith.constant 0 : index
    %c0_45 = arith.constant 0 : index
    %45 = vector.load %arg5[%c0_44, %c0_45] : memref<124x493xf32, #tpu.memory_space<vmem>>, vector<124x493xf32>
    %cst_46 = arith.constant dense<0.000000e+00> : vector<124x32xf32>
    %46 = tpu.matmul %45, %44, %cst_46 {dimension_numbers = #tpu.dot_dimension_numbers<[1], [0], [0], [1], [0, 0, 1, 1], [], []>} : vector<124x493xf32>, vector<493x32xf32>, vector<124x32xf32> -> vector<124x32xf32>
    %c0_47 = arith.constant 0 : index
    %c0_48 = arith.constant 0 : index
    %47 = vector.load %arg25[%c0_47, %c0_48] : memref<124x32xf32, #tpu.memory_space<vmem>>, vector<124x32xf32>
    tpu.vector_store %arg25[%c0_47, %c0_48], %46 {strides = array<i32>} : memref<124x32xf32, #tpu.memory_space<vmem>>, vector<124x32xf32>,
    %c0_49 = arith.constant 0 : index
    %c0_50 = arith.constant 0 : index
    %48 = vector.load %arg25[%c0_49, %c0_50] : memref<124x32xf32, #tpu.memory_space<vmem>>, vector<122x32xf32>
    %c0_51 = arith.constant 0 : index
    %c0_52 = arith.constant 0 : index
    %c0_53 = arith.constant 0 : index
    %49 = vector.load %arg6[%c0_51, %c0_52, %c0_53] : memref<3x32x32xf32, #tpu.memory_space<vmem>>, vector<1x32x32xf32>
    %50 = vector.shape_cast %49 : vector<1x32x32xf32> to vector<32x32xf32>
    %cst_54 = arith.constant dense<0.000000e+00> : vector<122x32xf32>
    %51 = tpu.matmul %48, %50, %cst_54 {dimension_numbers = #tpu.dot_dimension_numbers<[1], [0], [0], [1], [0, 0, 1, 1], [], []>} : vector<122x32xf32>, vector<32x32xf32>, vector<122x32xf32> -> vector<122x32xf32>
    %c1_55 = arith.constant 1 : index
    %c0_56 = arith.constant 0 : index
    %52 = vector.load %arg25[%c1_55, %c0_56] : memref<124x32xf32, #tpu.memory_space<vmem>>, vector<122x32xf32>
    %c1_57 = arith.constant 1 : index
    %c0_58 = arith.constant 0 : index
    %c0_59 = arith.constant 0 : index
    %53 = vector.load %arg6[%c1_57, %c0_58, %c0_59] : memref<3x32x32xf32, #tpu.memory_space<vmem>>, vector<1x32x32xf32>
    %54 = vector.shape_cast %53 : vector<1x32x32xf32> to vector<32x32xf32>
    %cst_60 = arith.constant dense<0.000000e+00> : vector<122x32xf32>
    %55 = tpu.matmul %52, %54, %cst_60 {dimension_numbers = #tpu.dot_dimension_numbers<[1], [0], [0], [1], [0, 0, 1, 1], [], []>} : vector<122x32xf32>, vector<32x32xf32>, vector<122x32xf32> -> vector<122x32xf32>
    %56 = arith.addf %51, %55 : vector<122x32xf32>
    %c2_61 = arith.constant 2 : index
    %c0_62 = arith.constant 0 : index
    %57 = vector.load %arg25[%c2_61, %c0_62] : memref<124x32xf32, #tpu.memory_space<vmem>>, vector<122x32xf32>
    %c2_63 = arith.constant 2 : index
    %c0_64 = arith.constant 0 : index
    %c0_65 = arith.constant 0 : index
    %58 = vector.load %arg6[%c2_63, %c0_64, %c0_65] : memref<3x32x32xf32, #tpu.memory_space<vmem>>, vector<1x32x32xf32>
    %59 = vector.shape_cast %58 : vector<1x32x32xf32> to vector<32x32xf32>
    %cst_66 = arith.constant dense<0.000000e+00> : vector<122x32xf32>
    %60 = tpu.matmul %57, %59, %cst_66 {dimension_numbers = #tpu.dot_dimension_numbers<[1], [0], [0], [1], [0, 0, 1, 1], [], []>} : vector<122x32xf32>, vector<32x32xf32>, vector<122x32xf32> -> vector<122x32xf32>
    %61 = arith.addf %56, %60 : vector<122x32xf32>
    %c0_67 = arith.constant 0 : index
    %c0_68 = arith.constant 0 : index
    %62 = vector.load %arg7[%c0_67, %c0_68] : memref<1x32xf32, #tpu.memory_space<vmem>>, vector<1x32xf32>
    %63 = vector.broadcast %62 : vector<1x32xf32> to vector<122x32xf32>
    %64 = arith.mulf %61, %63 : vector<122x32xf32>
    %c0_69 = arith.constant 0 : index
    %c0_70 = arith.constant 0 : index
    %65 = vector.load %arg8[%c0_69, %c0_70] : memref<1x32xf32, #tpu.memory_space<vmem>>, vector<1x32xf32>
    %66 = vector.broadcast %65 : vector<1x32xf32> to vector<122x32xf32>
    %67 = arith.addf %64, %66 : vector<122x32xf32>
    %cst_71 = arith.constant 0.000000e+00 : f32
    %68 = vector.broadcast %cst_71 : f32 to vector<122x32xf32>
    %69 = arith.maximumf %67, %68 : vector<122x32xf32>
    %c0_72 = arith.constant 0 : index
    %c0_73 = arith.constant 0 : index
    %70 = vector.load %arg22[%c0_72, %c0_73] : memref<122x32xf32, #tpu.memory_space<vmem>>, vector<122x32xf32>
    tpu.vector_store %arg22[%c0_72, %c0_73], %69 {strides = array<i32>} : memref<122x32xf32, #tpu.memory_space<vmem>>, vector<122x32xf32>,
    %c0_74 = arith.constant 0 : index
    %c0_75 = arith.constant 0 : index
    %71 = vector.load %arg22[%c0_74, %c0_75] : memref<122x32xf32, #tpu.memory_space<vmem>>, vector<119x32xf32>
    %c1_76 = arith.constant 1 : index
    %c0_77 = arith.constant 0 : index
    %72 = vector.load %arg22[%c1_76, %c0_77] : memref<122x32xf32, #tpu.memory_space<vmem>>, vector<119x32xf32>
    %73 = arith.maximumf %71, %72 : vector<119x32xf32>
    %c2_78 = arith.constant 2 : index
    %c0_79 = arith.constant 0 : index
    %74 = vector.load %arg22[%c2_78, %c0_79] : memref<122x32xf32, #tpu.memory_space<vmem>>, vector<119x32xf32>
    %c3_80 = arith.constant 3 : index
    %c0_81 = arith.constant 0 : index
    %75 = vector.load %arg22[%c3_80, %c0_81] : memref<122x32xf32, #tpu.memory_space<vmem>>, vector<119x32xf32>
    %76 = arith.maximumf %74, %75 : vector<119x32xf32>
    %77 = arith.maximumf %73, %76 : vector<119x32xf32>
    %c0_82 = arith.constant 0 : index
    %c0_83 = arith.constant 0 : index
    %78 = vector.load %arg9[%c0_82, %c0_83] : memref<30x119xf32, #tpu.memory_space<vmem>>, vector<30x119xf32>
    %cst_84 = arith.constant dense<0.000000e+00> : vector<30x32xf32>
    %79 = tpu.matmul %78, %77, %cst_84 {dimension_numbers = #tpu.dot_dimension_numbers<[1], [0], [0], [1], [0, 0, 1, 1], [], []>} : vector<30x119xf32>, vector<119x32xf32>, vector<30x32xf32> -> vector<30x32xf32>
    %c0_85 = arith.constant 0 : index
    %c0_86 = arith.constant 0 : index
    %80 = vector.load %arg26[%c0_85, %c0_86] : memref<30x32xf32, #tpu.memory_space<vmem>>, vector<30x32xf32>
    tpu.vector_store %arg26[%c0_85, %c0_86], %79 {strides = array<i32>} : memref<30x32xf32, #tpu.memory_space<vmem>>, vector<30x32xf32>,
    %c0_87 = arith.constant 0 : index
    %c0_88 = arith.constant 0 : index
    %81 = vector.load %arg26[%c0_87, %c0_88] : memref<30x32xf32, #tpu.memory_space<vmem>>, vector<28x32xf32>
    %c0_89 = arith.constant 0 : index
    %c0_90 = arith.constant 0 : index
    %c0_91 = arith.constant 0 : index
    %82 = vector.load %arg10[%c0_89, %c0_90, %c0_91] : memref<3x32x64xf32, #tpu.memory_space<vmem>>, vector<1x32x64xf32>
    %83 = vector.shape_cast %82 : vector<1x32x64xf32> to vector<32x64xf32>
    %cst_92 = arith.constant dense<0.000000e+00> : vector<28x64xf32>
    %84 = tpu.matmul %81, %83, %cst_92 {dimension_numbers = #tpu.dot_dimension_numbers<[1], [0], [0], [1], [0, 0, 1, 1], [], []>} : vector<28x32xf32>, vector<32x64xf32>, vector<28x64xf32> -> vector<28x64xf32>
    %c1_93 = arith.constant 1 : index
    %c0_94 = arith.constant 0 : index
    %85 = vector.load %arg26[%c1_93, %c0_94] : memref<30x32xf32, #tpu.memory_space<vmem>>, vector<28x32xf32>
    %c1_95 = arith.constant 1 : index
    %c0_96 = arith.constant 0 : index
    %c0_97 = arith.constant 0 : index
    %86 = vector.load %arg10[%c1_95, %c0_96, %c0_97] : memref<3x32x64xf32, #tpu.memory_space<vmem>>, vector<1x32x64xf32>
    %87 = vector.shape_cast %86 : vector<1x32x64xf32> to vector<32x64xf32>
    %cst_98 = arith.constant dense<0.000000e+00> : vector<28x64xf32>
    %88 = tpu.matmul %85, %87, %cst_98 {dimension_numbers = #tpu.dot_dimension_numbers<[1], [0], [0], [1], [0, 0, 1, 1], [], []>} : vector<28x32xf32>, vector<32x64xf32>, vector<28x64xf32> -> vector<28x64xf32>
    %89 = arith.addf %84, %88 : vector<28x64xf32>
    %c2_99 = arith.constant 2 : index
    %c0_100 = arith.constant 0 : index
    %90 = vector.load %arg26[%c2_99, %c0_100] : memref<30x32xf32, #tpu.memory_space<vmem>>, vector<28x32xf32>
    %c2_101 = arith.constant 2 : index
    %c0_102 = arith.constant 0 : index
    %c0_103 = arith.constant 0 : index
    %91 = vector.load %arg10[%c2_101, %c0_102, %c0_103] : memref<3x32x64xf32, #tpu.memory_space<vmem>>, vector<1x32x64xf32>
    %92 = vector.shape_cast %91 : vector<1x32x64xf32> to vector<32x64xf32>
    %cst_104 = arith.constant dense<0.000000e+00> : vector<28x64xf32>
    %93 = tpu.matmul %90, %92, %cst_104 {dimension_numbers = #tpu.dot_dimension_numbers<[1], [0], [0], [1], [0, 0, 1, 1], [], []>} : vector<28x32xf32>, vector<32x64xf32>, vector<28x64xf32> -> vector<28x64xf32>
    %94 = arith.addf %89, %93 : vector<28x64xf32>
    %c0_105 = arith.constant 0 : index
    %c0_106 = arith.constant 0 : index
    %95 = vector.load %arg11[%c0_105, %c0_106] : memref<1x64xf32, #tpu.memory_space<vmem>>, vector<1x64xf32>
    %96 = vector.broadcast %95 : vector<1x64xf32> to vector<28x64xf32>
    %97 = arith.mulf %94, %96 : vector<28x64xf32>
    %c0_107 = arith.constant 0 : index
    %c0_108 = arith.constant 0 : index
    %98 = vector.load %arg12[%c0_107, %c0_108] : memref<1x64xf32, #tpu.memory_space<vmem>>, vector<1x64xf32>
    %99 = vector.broadcast %98 : vector<1x64xf32> to vector<28x64xf32>
    %100 = arith.addf %97, %99 : vector<28x64xf32>
    %cst_109 = arith.constant 0.000000e+00 : f32
    %101 = vector.broadcast %cst_109 : f32 to vector<28x64xf32>
    %102 = arith.maximumf %100, %101 : vector<28x64xf32>
    %c0_110 = arith.constant 0 : index
    %c0_111 = arith.constant 0 : index
    %103 = vector.load %arg23[%c0_110, %c0_111] : memref<28x64xf32, #tpu.memory_space<vmem>>, vector<28x64xf32>
    tpu.vector_store %arg23[%c0_110, %c0_111], %102 {strides = array<i32>} : memref<28x64xf32, #tpu.memory_space<vmem>>, vector<28x64xf32>,
    %c0_112 = arith.constant 0 : index
    %c0_113 = arith.constant 0 : index
    %104 = vector.load %arg23[%c0_112, %c0_113] : memref<28x64xf32, #tpu.memory_space<vmem>>, vector<25x64xf32>
    %c1_114 = arith.constant 1 : index
    %c0_115 = arith.constant 0 : index
    %105 = vector.load %arg23[%c1_114, %c0_115] : memref<28x64xf32, #tpu.memory_space<vmem>>, vector<25x64xf32>
    %106 = arith.maximumf %104, %105 : vector<25x64xf32>
    %c2_116 = arith.constant 2 : index
    %c0_117 = arith.constant 0 : index
    %107 = vector.load %arg23[%c2_116, %c0_117] : memref<28x64xf32, #tpu.memory_space<vmem>>, vector<25x64xf32>
    %c3_118 = arith.constant 3 : index
    %c0_119 = arith.constant 0 : index
    %108 = vector.load %arg23[%c3_118, %c0_119] : memref<28x64xf32, #tpu.memory_space<vmem>>, vector<25x64xf32>
    %109 = arith.maximumf %107, %108 : vector<25x64xf32>
    %110 = arith.maximumf %106, %109 : vector<25x64xf32>
    %c0_120 = arith.constant 0 : index
    %c0_121 = arith.constant 0 : index
    %111 = vector.load %arg13[%c0_120, %c0_121] : memref<7x25xf32, #tpu.memory_space<vmem>>, vector<7x25xf32>
    %cst_122 = arith.constant dense<0.000000e+00> : vector<7x64xf32>
    %112 = tpu.matmul %111, %110, %cst_122 {dimension_numbers = #tpu.dot_dimension_numbers<[1], [0], [0], [1], [0, 0, 1, 1], [], []>} : vector<7x25xf32>, vector<25x64xf32>, vector<7x64xf32> -> vector<7x64xf32>
    %c0_123 = arith.constant 0 : index
    %c0_124 = arith.constant 0 : index
    %113 = vector.load %arg27[%c0_123, %c0_124] : memref<7x64xf32, #tpu.memory_space<vmem>>, vector<7x64xf32>
    tpu.vector_store %arg27[%c0_123, %c0_124], %112 {strides = array<i32>} : memref<7x64xf32, #tpu.memory_space<vmem>>, vector<7x64xf32>,
    %c0_125 = arith.constant 0 : index
    %c0_126 = arith.constant 0 : index
    %114 = vector.load %arg27[%c0_125, %c0_126] : memref<7x64xf32, #tpu.memory_space<vmem>>, vector<5x64xf32>
    %c0_127 = arith.constant 0 : index
    %c0_128 = arith.constant 0 : index
    %c0_129 = arith.constant 0 : index
    %115 = vector.load %arg14[%c0_127, %c0_128, %c0_129] : memref<3x64x64xf32, #tpu.memory_space<vmem>>, vector<1x64x64xf32>
    %116 = vector.shape_cast %115 : vector<1x64x64xf32> to vector<64x64xf32>
    %cst_130 = arith.constant dense<0.000000e+00> : vector<5x64xf32>
    %117 = tpu.matmul %114, %116, %cst_130 {dimension_numbers = #tpu.dot_dimension_numbers<[1], [0], [0], [1], [0, 0, 1, 1], [], []>} : vector<5x64xf32>, vector<64x64xf32>, vector<5x64xf32> -> vector<5x64xf32>
    %c1_131 = arith.constant 1 : index
    %c0_132 = arith.constant 0 : index
    %118 = vector.load %arg27[%c1_131, %c0_132] : memref<7x64xf32, #tpu.memory_space<vmem>>, vector<5x64xf32>
    %c1_133 = arith.constant 1 : index
    %c0_134 = arith.constant 0 : index
    %c0_135 = arith.constant 0 : index
    %119 = vector.load %arg14[%c1_133, %c0_134, %c0_135] : memref<3x64x64xf32, #tpu.memory_space<vmem>>, vector<1x64x64xf32>
    %120 = vector.shape_cast %119 : vector<1x64x64xf32> to vector<64x64xf32>
    %cst_136 = arith.constant dense<0.000000e+00> : vector<5x64xf32>
    %121 = tpu.matmul %118, %120, %cst_136 {dimension_numbers = #tpu.dot_dimension_numbers<[1], [0], [0], [1], [0, 0, 1, 1], [], []>} : vector<5x64xf32>, vector<64x64xf32>, vector<5x64xf32> -> vector<5x64xf32>
    %122 = arith.addf %117, %121 : vector<5x64xf32>
    %c2_137 = arith.constant 2 : index
    %c0_138 = arith.constant 0 : index
    %123 = vector.load %arg27[%c2_137, %c0_138] : memref<7x64xf32, #tpu.memory_space<vmem>>, vector<5x64xf32>
    %c2_139 = arith.constant 2 : index
    %c0_140 = arith.constant 0 : index
    %c0_141 = arith.constant 0 : index
    %124 = vector.load %arg14[%c2_139, %c0_140, %c0_141] : memref<3x64x64xf32, #tpu.memory_space<vmem>>, vector<1x64x64xf32>
    %125 = vector.shape_cast %124 : vector<1x64x64xf32> to vector<64x64xf32>
    %cst_142 = arith.constant dense<0.000000e+00> : vector<5x64xf32>
    %126 = tpu.matmul %123, %125, %cst_142 {dimension_numbers = #tpu.dot_dimension_numbers<[1], [0], [0], [1], [0, 0, 1, 1], [], []>} : vector<5x64xf32>, vector<64x64xf32>, vector<5x64xf32> -> vector<5x64xf32>
    %127 = arith.addf %122, %126 : vector<5x64xf32>
    %c0_143 = arith.constant 0 : index
    %c0_144 = arith.constant 0 : index
    %128 = vector.load %arg15[%c0_143, %c0_144] : memref<1x64xf32, #tpu.memory_space<vmem>>, vector<1x64xf32>
    %129 = vector.broadcast %128 : vector<1x64xf32> to vector<5x64xf32>
    %130 = arith.mulf %127, %129 : vector<5x64xf32>
    %c0_145 = arith.constant 0 : index
    %c0_146 = arith.constant 0 : index
    %131 = vector.load %arg16[%c0_145, %c0_146] : memref<1x64xf32, #tpu.memory_space<vmem>>, vector<1x64xf32>
    %132 = vector.broadcast %131 : vector<1x64xf32> to vector<5x64xf32>
    %133 = arith.addf %130, %132 : vector<5x64xf32>
    %cst_147 = arith.constant 0.000000e+00 : f32
    %134 = vector.broadcast %cst_147 : f32 to vector<5x64xf32>
    %135 = arith.maximumf %133, %134 : vector<5x64xf32>
    %c0_148 = arith.constant 0 : index
    %c0_149 = arith.constant 0 : index
    %136 = vector.load %arg24[%c0_148, %c0_149] : memref<5x64xf32, #tpu.memory_space<vmem>>, vector<5x64xf32>
    tpu.vector_store %arg24[%c0_148, %c0_149], %135 {strides = array<i32>} : memref<5x64xf32, #tpu.memory_space<vmem>>, vector<5x64xf32>,
    %c0_150 = arith.constant 0 : index
    %c0_151 = arith.constant 0 : index
    %137 = vector.load %arg24[%c0_150, %c0_151] : memref<5x64xf32, #tpu.memory_space<vmem>>, vector<2x64xf32>
    %c1_152 = arith.constant 1 : index
    %c0_153 = arith.constant 0 : index
    %138 = vector.load %arg24[%c1_152, %c0_153] : memref<5x64xf32, #tpu.memory_space<vmem>>, vector<2x64xf32>
    %139 = arith.maximumf %137, %138 : vector<2x64xf32>
    %c2_154 = arith.constant 2 : index
    %c0_155 = arith.constant 0 : index
    %140 = vector.load %arg24[%c2_154, %c0_155] : memref<5x64xf32, #tpu.memory_space<vmem>>, vector<2x64xf32>
    %c3_156 = arith.constant 3 : index
    %c0_157 = arith.constant 0 : index
    %141 = vector.load %arg24[%c3_156, %c0_157] : memref<5x64xf32, #tpu.memory_space<vmem>>, vector<2x64xf32>
    %142 = arith.maximumf %140, %141 : vector<2x64xf32>
    %143 = arith.maximumf %139, %142 : vector<2x64xf32>
    %c0_158 = arith.constant 0 : index
    %c0_159 = arith.constant 0 : index
    %144 = vector.load %arg17[%c0_158, %c0_159] : memref<1x2xf32, #tpu.memory_space<vmem>>, vector<1x2xf32>
    %cst_160 = arith.constant dense<0.000000e+00> : vector<1x64xf32>
    %145 = tpu.matmul %144, %143, %cst_160 {dimension_numbers = #tpu.dot_dimension_numbers<[1], [0], [0], [1], [0, 0, 1, 1], [], []>} : vector<1x2xf32>, vector<2x64xf32>, vector<1x64xf32> -> vector<1x64xf32>
    %cst_161 = arith.constant dense<0.000000e+00> : vector<64xf32>
    %146 = vector.multi_reduction <add>, %145, %cst_161 [0] : vector<1x64xf32> to vector<64xf32>
    %147 = vector.shape_cast %146 : vector<64xf32> to vector<1x64xf32>
    %cst_162 = arith.constant 1.000000e+00 : f32
    %148 = vector.broadcast %cst_162 : f32 to vector<1x64xf32>
    %149 = arith.divf %147, %148 : vector<1x64xf32>
    %c0_163 = arith.constant 0 : index
    %c0_164 = arith.constant 0 : index
    %150 = vector.load %arg18[%c0_163, %c0_164] : memref<64x35xf32, #tpu.memory_space<vmem>>, vector<64x35xf32>
    %cst_165 = arith.constant dense<0.000000e+00> : vector<1x35xf32>
    %151 = tpu.matmul %149, %150, %cst_165 {dimension_numbers = #tpu.dot_dimension_numbers<[1], [0], [0], [1], [0, 0, 1, 1], [], []>} : vector<1x64xf32>, vector<64x35xf32>, vector<1x35xf32> -> vector<1x35xf32>
    %c0_166 = arith.constant 0 : index
    %c0_167 = arith.constant 0 : index
    %152 = vector.load %arg19[%c0_166, %c0_167] : memref<1x35xf32, #tpu.memory_space<vmem>>, vector<1x35xf32>
    %153 = arith.addf %151, %152 : vector<1x35xf32>
    %cst_168 = arith.constant dense<0xFF800000> : vector<1xf32>
    %154 = vector.multi_reduction <maximumf>, %153, %cst_168 [1] : vector<1x35xf32> to vector<1xf32>
    %155 = vector.shape_cast %154 : vector<1xf32> to vector<1x1xf32>
    %156 = vector.broadcast %155 : vector<1x1xf32> to vector<1x35xf32>
    %157 = arith.subf %153, %156 : vector<1x35xf32>
    %158 = math.exp %157 : vector<1x35xf32>
    %cst_169 = arith.constant dense<0.000000e+00> : vector<1xf32>
    %159 = vector.multi_reduction <add>, %158, %cst_169 [1] : vector<1x35xf32> to vector<1xf32>
    %160 = vector.shape_cast %159 : vector<1xf32> to vector<1x1xf32>
    %161 = math.log %160 : vector<1x1xf32>
    %162 = vector.broadcast %161 : vector<1x1xf32> to vector<1x35xf32>
    %163 = arith.subf %157, %162 : vector<1x35xf32>
    %c0_170 = arith.constant 0 : index
    %c0_171 = arith.constant 0 : index
    %c0_172 = arith.constant 0 : index
    %164 = vector.load %arg20[%c0_170, %c0_171, %c0_172] : memref<1x1x35xf32, #tpu.memory_space<vmem>>, vector<1x1x35xf32>
    %165 = vector.shape_cast %164 : vector<1x1x35xf32> to vector<1x35xf32>
    %166 = vector.shape_cast %163 : vector<1x35xf32> to vector<1x1x35xf32>
    tpu.vector_store %arg20[%c0_170, %c0_171, %c0_172], %166 {strides = array<i32>} : memref<1x1x35xf32, #tpu.memory_space<vmem>>, vector<1x1x35xf32>,
    return
  }
  func.func @transform_0(%arg0: i32) -> (i32, i32, i32) {
    %c0_i32 = arith.constant 0 : i32
    %c0_i32_0 = arith.constant 0 : i32
    %c0_i32_1 = arith.constant 0 : i32
    return %arg0, %c0_i32, %c0_i32_0 : i32, i32, i32
  }
  func.func @transform_1(%arg0: i32) -> (i32, i32, i32) {
    %c0_i32 = arith.constant 0 : i32
    %c0_i32_0 = arith.constant 0 : i32
    %c0_i32_1 = arith.constant 0 : i32
    %c0_i32_2 = arith.constant 0 : i32
    return %c0_i32, %c0_i32_0, %c0_i32_1 : i32, i32, i32
  }
  func.func @transform_2(%arg0: i32) -> (i32, i32) {
    %c0_i32 = arith.constant 0 : i32
    %c0_i32_0 = arith.constant 0 : i32
    %c0_i32_1 = arith.constant 0 : i32
    return %c0_i32, %c0_i32_0 : i32, i32
  }
  func.func @transform_3(%arg0: i32) -> (i32, i32) {
    %c0_i32 = arith.constant 0 : i32
    %c0_i32_0 = arith.constant 0 : i32
    %c0_i32_1 = arith.constant 0 : i32
    return %c0_i32, %c0_i32_0 : i32, i32
  }
  func.func @transform_4(%arg0: i32) -> (i32, i32) {
    %c0_i32 = arith.constant 0 : i32
    %c0_i32_0 = arith.constant 0 : i32
    %c0_i32_1 = arith.constant 0 : i32
    return %c0_i32, %c0_i32_0 : i32, i32
  }
  func.func @transform_5(%arg0: i32) -> (i32, i32, i32) {
    %c0_i32 = arith.constant 0 : i32
    %c0_i32_0 = arith.constant 0 : i32
    %c0_i32_1 = arith.constant 0 : i32
    %c0_i32_2 = arith.constant 0 : i32
    return %c0_i32, %c0_i32_0, %c0_i32_1 : i32, i32, i32
  }
  func.func @transform_6(%arg0: i32) -> (i32, i32) {
    %c0_i32 = arith.constant 0 : i32
    %c0_i32_0 = arith.constant 0 : i32
    %c0_i32_1 = arith.constant 0 : i32
    return %c0_i32, %c0_i32_0 : i32, i32
  }
  func.func @transform_7(%arg0: i32) -> (i32, i32) {
    %c0_i32 = arith.constant 0 : i32
    %c0_i32_0 = arith.constant 0 : i32
    %c0_i32_1 = arith.constant 0 : i32
    return %c0_i32, %c0_i32_0 : i32, i32
  }
  func.func @transform_8(%arg0: i32) -> (i32, i32) {
    %c0_i32 = arith.constant 0 : i32
    %c0_i32_0 = arith.constant 0 : i32
    %c0_i32_1 = arith.constant 0 : i32
    return %c0_i32, %c0_i32_0 : i32, i32
  }
  func.func @transform_9(%arg0: i32) -> (i32, i32, i32) {
    %c0_i32 = arith.constant 0 : i32
    %c0_i32_0 = arith.constant 0 : i32
    %c0_i32_1 = arith.constant 0 : i32
    %c0_i32_2 = arith.constant 0 : i32
    return %c0_i32, %c0_i32_0, %c0_i32_1 : i32, i32, i32
  }
  func.func @transform_10(%arg0: i32) -> (i32, i32) {
    %c0_i32 = arith.constant 0 : i32
    %c0_i32_0 = arith.constant 0 : i32
    %c0_i32_1 = arith.constant 0 : i32
    return %c0_i32, %c0_i32_0 : i32, i32
  }
  func.func @transform_11(%arg0: i32) -> (i32, i32) {
    %c0_i32 = arith.constant 0 : i32
    %c0_i32_0 = arith.constant 0 : i32
    %c0_i32_1 = arith.constant 0 : i32
    return %c0_i32, %c0_i32_0 : i32, i32
  }
  func.func @transform_12(%arg0: i32) -> (i32, i32) {
    %c0_i32 = arith.constant 0 : i32
    %c0_i32_0 = arith.constant 0 : i32
    %c0_i32_1 = arith.constant 0 : i32
    return %c0_i32, %c0_i32_0 : i32, i32
  }
  func.func @transform_13(%arg0: i32) -> (i32, i32, i32) {
    %c0_i32 = arith.constant 0 : i32
    %c0_i32_0 = arith.constant 0 : i32
    %c0_i32_1 = arith.constant 0 : i32
    %c0_i32_2 = arith.constant 0 : i32
    return %c0_i32, %c0_i32_0, %c0_i32_1 : i32, i32, i32
  }
  func.func @transform_14(%arg0: i32) -> (i32, i32) {
    %c0_i32 = arith.constant 0 : i32
    %c0_i32_0 = arith.constant 0 : i32
    %c0_i32_1 = arith.constant 0 : i32
    return %c0_i32, %c0_i32_0 : i32, i32
  }
  func.func @transform_15(%arg0: i32) -> (i32, i32) {
    %c0_i32 = arith.constant 0 : i32
    %c0_i32_0 = arith.constant 0 : i32
    %c0_i32_1 = arith.constant 0 : i32
    return %c0_i32, %c0_i32_0 : i32, i32
  }
  func.func @transform_16(%arg0: i32) -> (i32, i32) {
    %c0_i32 = arith.constant 0 : i32
    %c0_i32_0 = arith.constant 0 : i32
    %c0_i32_1 = arith.constant 0 : i32
    return %c0_i32, %c0_i32_0 : i32, i32
  }
  func.func @transform_17(%arg0: i32) -> (i32, i32) {
    %c0_i32 = arith.constant 0 : i32
    %c0_i32_0 = arith.constant 0 : i32
    %c0_i32_1 = arith.constant 0 : i32
    return %c0_i32, %c0_i32_0 : i32, i32
  }
  func.func @transform_18(%arg0: i32) -> (i32, i32) {
    %c0_i32 = arith.constant 0 : i32
    %c0_i32_0 = arith.constant 0 : i32
    %c0_i32_1 = arith.constant 0 : i32
    return %c0_i32, %c0_i32_0 : i32, i32
  }
  func.func @transform_19(%arg0: i32) -> (i32, i32, i32) {
    %c0_i32 = arith.constant 0 : i32
    %c0_i32_0 = arith.constant 0 : i32
    %c0_i32_1 = arith.constant 0 : i32
    return %arg0, %c0_i32, %c0_i32_0 : i32, i32, i32
  }
}

</mosaic_0001>

<llo_original>
// kernel: squeeze.1
$region0: #{squeeze.1}
  %s0 = inlined_call_operand.vmem [shape: f32[2,8000], index: 0, kind: input, shape index: {}]
  %s1 = inlined_call_operand.vmem [shape: f32[2,500,16], index: 1, kind: output, shape index: {}]
  $region1: #{squeeze.1} parent=0
    #allocation0 [shape = 'u8[258048]{0}', space=vmem, size = 0x3f000, scoped, tag = 'scoped mem for input reshape']
    %s3 = sshllo.u32 0, 2
    %s4 = smul.addr 2, 62
    %s5 = scalar_lea.vmem %s0, %s4
    %v6 = vld [vmem:[%s5] sm:%s3]
    %s7 = scalar_lea.vmem [#allocation0], 496
    %8 = vst [vmem:[%s7] sm:%s3] %v6
    %s9 = smul.addr 2, 61
    %s10 = scalar_lea.vmem %s0, %s9
    %v11 = vld [vmem:[%s10] sm:%s3]
    %s12 = scalar_lea.vmem [#allocation0], 488
    %13 = vst [vmem:[%s12] sm:%s3] %v11
    %s14 = smul.addr 2, 60
    %s15 = scalar_lea.vmem %s0, %s14
    %v16 = vld [vmem:[%s15] sm:%s3]
    %s17 = scalar_lea.vmem [#allocation0], 480
    %18 = vst [vmem:[%s17] sm:%s3] %v16
    %s19 = smul.addr 2, 59
    %s20 = scalar_lea.vmem %s0, %s19
    %v21 = vld [vmem:[%s20] sm:%s3]
    %s22 = scalar_lea.vmem [#allocation0], 472
    %23 = vst [vmem:[%s22] sm:%s3] %v21
    %s24 = smul.addr 2, 58
    %s25 = scalar_lea.vmem %s0, %s24
    %v26 = vld [vmem:[%s25] sm:%s3]
    %s27 = scalar_lea.vmem [#allocation0], 464
    %28 = vst [vmem:[%s27] sm:%s3] %v26
    %s29 = smul.addr 2, 57
    %s30 = scalar_lea.vmem %s0, %s29
    %v31 = vld [vmem:[%s30] sm:%s3]
    %s32 = scalar_lea.vmem [#allocation0], 456
    %33 = vst [vmem:[%s32] sm:%s3] %v31
    %s34 = smul.addr 2, 56
    %s35 = scalar_lea.vmem %s0, %s34
    %v36 = vld [vmem:[%s35] sm:%s3]
    %s37 = scalar_lea.vmem [#allocation0], 448
    %38 = vst [vmem:[%s37] sm:%s3] %v36
    %s39 = smul.addr 2, 55
    %s40 = scalar_lea.vmem %s0, %s39
    %v41 = vld [vmem:[%s40] sm:%s3]
    %s42 = scalar_lea.vmem [#allocation0], 440
    %43 = vst [vmem:[%s42] sm:%s3] %v41
    %s44 = smul.addr 2, 54
    %s45 = scalar_lea.vmem %s0, %s44
    %v46 = vld [vmem:[%s45] sm:%s3]
    %s47 = scalar_lea.vmem [#allocation0], 432
    %48 = vst [vmem:[%s47] sm:%s3] %v46
    %s49 = smul.addr 2, 53
    %s50 = scalar_lea.vmem %s0, %s49
    %v51 = vld [vmem:[%s50] sm:%s3]
    %s52 = scalar_lea.vmem [#allocation0], 424
    %53 = vst [vmem:[%s52] sm:%s3] %v51
    %s54 = smul.addr 2, 52
    %s55 = scalar_lea.vmem %s0, %s54
    %v56 = vld [vmem:[%s55] sm:%s3]
    %s57 = scalar_lea.vmem [#allocation0], 416
    %58 = vst [vmem:[%s57] sm:%s3] %v56
    %s59 = smul.addr 2, 51
    %s60 = scalar_lea.vmem %s0, %s59
    %v61 = vld [vmem:[%s60] sm:%s3]
    %s62 = scalar_lea.vmem [#allocation0], 408
    %63 = vst [vmem:[%s62] sm:%s3] %v61
    %s64 = smul.addr 2, 50
    %s65 = scalar_lea.vmem %s0, %s64
    %v66 = vld [vmem:[%s65] sm:%s3]
    %s67 = scalar_lea.vmem [#allocation0], 400
    %68 = vst [vmem:[%s67] sm:%s3] %v66
    %s69 = smul.addr 2, 49
    %s70 = scalar_lea.vmem %s0, %s69
    %v71 = vld [vmem:[%s70] sm:%s3]
    %s72 = scalar_lea.vmem [#allocation0], 392
    %73 = vst [vmem:[%s72] sm:%s3] %v71
    %s74 = smul.addr 2, 48
    %s75 = scalar_lea.vmem %s0, %s74
    %v76 = vld [vmem:[%s75] sm:%s3]
    %s77 = scalar_lea.vmem [#allocation0], 384
    %78 = vst [vmem:[%s77] sm:%s3] %v76
    %s79 = smul.addr 2, 47
    %s80 = scalar_lea.vmem %s0, %s79
    %v81 = vld [vmem:[%s80] sm:%s3]
    %s82 = scalar_lea.vmem [#allocation0], 376
    %83 = vst [vmem:[%s82] sm:%s3] %v81
    %s84 = smul.addr 2, 46
    %s85 = scalar_lea.vmem %s0, %s84
    %v86 = vld [vmem:[%s85] sm:%s3]
    %s87 = scalar_lea.vmem [#allocation0], 368
    %88 = vst [vmem:[%s87] sm:%s3] %v86
    %s89 = smul.addr 2, 45
    %s90 = scalar_lea.vmem %s0, %s89
    %v91 = vld [vmem:[%s90] sm:%s3]
    %s92 = scalar_lea.vmem [#allocation0], 360
    %93 = vst [vmem:[%s92] sm:%s3] %v91
    %s94 = smul.addr 2, 44
    %s95 = scalar_lea.vmem %s0, %s94
    %v96 = vld [vmem:[%s95] sm:%s3]
    %s97 = scalar_lea.vmem [#allocation0], 352
    %98 = vst [vmem:[%s97] sm:%s3] %v96
    %s99 = smul.addr 2, 43
    %s100 = scalar_lea.vmem %s0, %s99
    %v101 = vld [vmem:[%s100] sm:%s3]
    %s102 = scalar_lea.vmem [#allocation0], 344
    %103 = vst [vmem:[%s102] sm:%s3] %v101
    %s104 = smul.addr 2, 42
    %s105 = scalar_lea.vmem %s0, %s104
    %v106 = vld [vmem:[%s105] sm:%s3]
    %s107 = scalar_lea.vmem [#allocation0], 336
    %108 = vst [vmem:[%s107] sm:%s3] %v106
    %s109 = smul.addr 2, 41
    %s110 = scalar_lea.vmem %s0, %s109
    %v111 = vld [vmem:[%s110] sm:%s3]
    %s112 = scalar_lea.vmem [#allocation0], 328
    %113 = vst [vmem:[%s112] sm:%s3] %v111
    %s114 = smul.addr 2, 40
    %s115 = scalar_lea.vmem %s0, %s114
    %v116 = vld [vmem:[%s115] sm:%s3]
    %s117 = scalar_lea.vmem [#allocation0], 320
    %118 = vst [vmem:[%s117] sm:%s3] %v116
    %s119 = smul.addr 2, 39
    %s120 = scalar_lea.vmem %s0, %s119
    %v121 = vld [vmem:[%s120] sm:%s3]
    %s122 = scalar_lea.vmem [#allocation0], 312
    %123 = vst [vmem:[%s122] sm:%s3] %v121
    %s124 = smul.addr 2, 38
    %s125 = scalar_lea.vmem %s0, %s124
    %v126 = vld [vmem:[%s125] sm:%s3]
    %s127 = scalar_lea.vmem [#allocation0], 304
    %128 = vst [vmem:[%s127] sm:%s3] %v126
    %s129 = smul.addr 2, 37
    %s130 = scalar_lea.vmem %s0, %s129
    %v131 = vld [vmem:[%s130] sm:%s3]
    %s132 = scalar_lea.vmem [#allocation0], 296
    %133 = vst [vmem:[%s132] sm:%s3] %v131
    %s134 = smul.addr 2, 36
    %s135 = scalar_lea.vmem %s0, %s134
    %v136 = vld [vmem:[%s135] sm:%s3]
    %s137 = scalar_lea.vmem [#allocation0], 288
    %138 = vst [vmem:[%s137] sm:%s3] %v136
    %s139 = smul.addr 2, 35
    %s140 = scalar_lea.vmem %s0, %s139
    %v141 = vld [vmem:[%s140] sm:%s3]
    %s142 = scalar_lea.vmem [#allocation0], 280
    %143 = vst [vmem:[%s142] sm:%s3] %v141
    %s144 = smul.addr 2, 34
    %s145 = scalar_lea.vmem %s0, %s144
    %v146 = vld [vmem:[%s145] sm:%s3]
    %s147 = scalar_lea.vmem [#allocation0], 272
    %148 = vst [vmem:[%s147] sm:%s3] %v146
    %s149 = smul.addr 2, 33
    %s150 = scalar_lea.vmem %s0, %s149
    %v151 = vld [vmem:[%s150] sm:%s3]
    %s152 = scalar_lea.vmem [#allocation0], 264
    %153 = vst [vmem:[%s152] sm:%s3] %v151
    %s154 = smul.addr 2, 32
    %s155 = scalar_lea.vmem %s0, %s154
    %v156 = vld [vmem:[%s155] sm:%s3]
    %s157 = scalar_lea.vmem [#allocation0], 256
    %158 = vst [vmem:[%s157] sm:%s3] %v156
    %s159 = smul.addr 2, 31
    %s160 = scalar_lea.vmem %s0, %s159
    %v161 = vld [vmem:[%s160] sm:%s3]
    %s162 = scalar_lea.vmem [#allocation0], 248
    %163 = vst [vmem:[%s162] sm:%s3] %v161
    %s164 = smul.addr 2, 30
    %s165 = scalar_lea.vmem %s0, %s164
    %v166 = vld [vmem:[%s165] sm:%s3]
    %s167 = scalar_lea.vmem [#allocation0], 240
    %168 = vst [vmem:[%s167] sm:%s3] %v166
    %s169 = smul.addr 2, 29
    %s170 = scalar_lea.vmem %s0, %s169
    %v171 = vld [vmem:[%s170] sm:%s3]
    %s172 = scalar_lea.vmem [#allocation0], 232
    %173 = vst [vmem:[%s172] sm:%s3] %v171
    %s174 = smul.addr 2, 28
    %s175 = scalar_lea.vmem %s0, %s174
    %v176 = vld [vmem:[%s175] sm:%s3]
    %s177 = scalar_lea.vmem [#allocation0], 224
    %178 = vst [vmem:[%s177] sm:%s3] %v176
    %s179 = smul.addr 2, 27
    %s180 = scalar_lea.vmem %s0, %s179
    %v181 = vld [vmem:[%s180] sm:%s3]
    %s182 = scalar_lea.vmem [#allocation0], 216
    %183 = vst [vmem:[%s182] sm:%s3] %v181
    %s184 = smul.addr 2, 26
    %s185 = scalar_lea.vmem %s0, %s184
    %v186 = vld [vmem:[%s185] sm:%s3]
    %s187 = scalar_lea.vmem [#allocation0], 208
    %188 = vst [vmem:[%s187] sm:%s3] %v186
    %s189 = smul.addr 2, 25
    %s190 = scalar_lea.vmem %s0, %s189
    %v191 = vld [vmem:[%s190] sm:%s3]
    %s192 = scalar_lea.vmem [#allocation0], 200
    %193 = vst [vmem:[%s192] sm:%s3] %v191
    %s194 = smul.addr 2, 24
    %s195 = scalar_lea.vmem %s0, %s194
    %v196 = vld [vmem:[%s195] sm:%s3]
    %s197 = scalar_lea.vmem [#allocation0], 192
    %198 = vst [vmem:[%s197] sm:%s3] %v196
    %s199 = smul.addr 2, 23
    %s200 = scalar_lea.vmem %s0, %s199
    %v201 = vld [vmem:[%s200] sm:%s3]
    %s202 = scalar_lea.vmem [#allocation0], 184
    %203 = vst [vmem:[%s202] sm:%s3] %v201
    %s204 = smul.addr 2, 22
    %s205 = scalar_lea.vmem %s0, %s204
    %v206 = vld [vmem:[%s205] sm:%s3]
    %s207 = scalar_lea.vmem [#allocation0], 176
    %208 = vst [vmem:[%s207] sm:%s3] %v206
    %s209 = smul.addr 2, 21
    %s210 = scalar_lea.vmem %s0, %s209
    %v211 = vld [vmem:[%s210] sm:%s3]
    %s212 = scalar_lea.vmem [#allocation0], 168
    %213 = vst [vmem:[%s212] sm:%s3] %v211
    %s214 = smul.addr 2, 20
    %s215 = scalar_lea.vmem %s0, %s214
    %v216 = vld [vmem:[%s215] sm:%s3]
    %s217 = scalar_lea.vmem [#allocation0], 160
    %218 = vst [vmem:[%s217] sm:%s3] %v216
    %s219 = smul.addr 2, 19
    %s220 = scalar_lea.vmem %s0, %s219
    %v221 = vld [vmem:[%s220] sm:%s3]
    %s222 = scalar_lea.vmem [#allocation0], 152
    %223 = vst [vmem:[%s222] sm:%s3] %v221
    %s224 = smul.addr 2, 18
    %s225 = scalar_lea.vmem %s0, %s224
    %v226 = vld [vmem:[%s225] sm:%s3]
    %s227 = scalar_lea.vmem [#allocation0], 144
    %228 = vst [vmem:[%s227] sm:%s3] %v226
    %s229 = smul.addr 2, 17
    %s230 = scalar_lea.vmem %s0, %s229
    %v231 = vld [vmem:[%s230] sm:%s3]
    %s232 = scalar_lea.vmem [#allocation0], 136
    %233 = vst [vmem:[%s232] sm:%s3] %v231
    %s234 = smul.addr 2, 16
    %s235 = scalar_lea.vmem %s0, %s234
    %v236 = vld [vmem:[%s235] sm:%s3]
    %s237 = scalar_lea.vmem [#allocation0], 128
    %238 = vst [vmem:[%s237] sm:%s3] %v236
    %s239 = smul.addr 2, 15
    %s240 = scalar_lea.vmem %s0, %s239
    %v241 = vld [vmem:[%s240] sm:%s3]
    %s242 = scalar_lea.vmem [#allocation0], 120
    %243 = vst [vmem:[%s242] sm:%s3] %v241
    %s244 = smul.addr 2, 14
    %s245 = scalar_lea.vmem %s0, %s244
    %v246 = vld [vmem:[%s245] sm:%s3]
    %s247 = scalar_lea.vmem [#allocation0], 112
    %248 = vst [vmem:[%s247] sm:%s3] %v246
    %s249 = smul.addr 2, 13
    %s250 = scalar_lea.vmem %s0, %s249
    %v251 = vld [vmem:[%s250] sm:%s3]
    %s252 = scalar_lea.vmem [#allocation0], 104
    %253 = vst [vmem:[%s252] sm:%s3] %v251
    %s254 = smul.addr 2, 12
    %s255 = scalar_lea.vmem %s0, %s254
    %v256 = vld [vmem:[%s255] sm:%s3]
    %s257 = scalar_lea.vmem [#allocation0], 96
    %258 = vst [vmem:[%s257] sm:%s3] %v256
    %s259 = smul.addr 2, 11
    %s260 = scalar_lea.vmem %s0, %s259
    %v261 = vld [vmem:[%s260] sm:%s3]
    %s262 = scalar_lea.vmem [#allocation0], 88
    %263 = vst [vmem:[%s262] sm:%s3] %v261
    %s264 = smul.addr 2, 10
    %s265 = scalar_lea.vmem %s0, %s264
    %v266 = vld [vmem:[%s265] sm:%s3]
    %s267 = scalar_lea.vmem [#allocation0], 80
    %268 = vst [vmem:[%s267] sm:%s3] %v266
    %s269 = smul.addr 2, 9
    %s270 = scalar_lea.vmem %s0, %s269
    %v271 = vld [vmem:[%s270] sm:%s3]
    %s272 = scalar_lea.vmem [#allocation0], 72
    %273 = vst [vmem:[%s272] sm:%s3] %v271
    %s274 = smul.addr 2, 8
    %s275 = scalar_lea.vmem %s0, %s274
    %v276 = vld [vmem:[%s275] sm:%s3]
    %s277 = scalar_lea.vmem [#allocation0], 64
    %278 = vst [vmem:[%s277] sm:%s3] %v276
    %s279 = smul.addr 2, 7
    %s280 = scalar_lea.vmem %s0, %s279
    %v281 = vld [vmem:[%s280] sm:%s3]
    %s282 = scalar_lea.vmem [#allocation0], 56
    %283 = vst [vmem:[%s282] sm:%s3] %v281
    %s284 = smul.addr 2, 6
    %s285 = scalar_lea.vmem %s0, %s284
    %v286 = vld [vmem:[%s285] sm:%s3]
    %s287 = scalar_lea.vmem [#allocation0], 48
    %288 = vst [vmem:[%s287] sm:%s3] %v286
    %s289 = smul.addr 2, 5
    %s290 = scalar_lea.vmem %s0, %s289
    %v291 = vld [vmem:[%s290] sm:%s3]
    %s292 = scalar_lea.vmem [#allocation0], 40
    %293 = vst [vmem:[%s292] sm:%s3] %v291
    %s294 = smul.addr 2, 4
    %s295 = scalar_lea.vmem %s0, %s294
    %v296 = vld [vmem:[%s295] sm:%s3]
    %s297 = scalar_lea.vmem [#allocation0], 32
    %298 = vst [vmem:[%s297] sm:%s3] %v296
    %s299 = smul.addr 2, 3
    %s300 = scalar_lea.vmem %s0, %s299
    %v301 = vld [vmem:[%s300] sm:%s3]
    %s302 = scalar_lea.vmem [#allocation0], 24
    %303 = vst [vmem:[%s302] sm:%s3] %v301
    %s304 = smul.addr 2, 2
    %s305 = scalar_lea.vmem %s0, %s304
    %v306 = vld [vmem:[%s305] sm:%s3]
    %s307 = scalar_lea.vmem [#allocation0], 16
    %308 = vst [vmem:[%s307] sm:%s3] %v306
    %s309 = scalar_lea.vmem %s0, 2
    %v310 = vld [vmem:[%s309] sm:%s3]
    %s311 = scalar_lea.vmem [#allocation0], 8
    %312 = vst [vmem:[%s311] sm:%s3] %v310
    %v313 = vld [vmem:[%s0] sm:%s3]
    %314 = vst [vmem:[#allocation0] sm:%s3] %v313
    %v315 = vld [vmem:[#allocation0] sm:$0x3]
    %vm316 = vcmask 130048
    %317 = vst.msk [vmem:[%s1] ss:$504 sm:$0x3] %vm316, %v315
    %s318 = scalar_lea.vmem [#allocation0], 8
    %v319 = vld [vmem:[%s318] sm:$0x3]
    %vm320 = vcmask 130048
    %s321 = scalar_lea.vmem %s1, 8
    %322 = vst.msk [vmem:[%s321] ss:$504 sm:$0x3] %vm320, %v319
    %s323 = scalar_lea.vmem [#allocation0], 16
    %v324 = vld [vmem:[%s323] sm:$0x3]
    %vm325 = vcmask 130048
    %s326 = scalar_lea.vmem %s1, 16
    %327 = vst.msk [vmem:[%s326] ss:$504 sm:$0x3] %vm325, %v324
    %s328 = scalar_lea.vmem [#allocation0], 24
    %v329 = vld [vmem:[%s328] sm:$0x3]
    %vm330 = vcmask 130048
    %s331 = scalar_lea.vmem %s1, 24
    %332 = vst.msk [vmem:[%s331] ss:$504 sm:$0x3] %vm330, %v329
    %s333 = scalar_lea.vmem [#allocation0], 32
    %v334 = vld [vmem:[%s333] sm:$0x3]
    %vm335 = vcmask 130048
    %s336 = scalar_lea.vmem %s1, 32
    %337 = vst.msk [vmem:[%s336] ss:$504 sm:$0x3] %vm335, %v334
    %s338 = scalar_lea.vmem [#allocation0], 40
    %v339 = vld [vmem:[%s338] sm:$0x3]
    %vm340 = vcmask 130048
    %s341 = scalar_lea.vmem %s1, 40
    %342 = vst.msk [vmem:[%s341] ss:$504 sm:$0x3] %vm340, %v339
    %s343 = scalar_lea.vmem [#allocation0], 48
    %v344 = vld [vmem:[%s343] sm:$0x3]
    %vm345 = vcmask 130048
    %s346 = scalar_lea.vmem %s1, 48
    %347 = vst.msk [vmem:[%s346] ss:$504 sm:$0x3] %vm345, %v344
    %s348 = scalar_lea.vmem [#allocation0], 56
    %v349 = vld [vmem:[%s348] sm:$0x3]
    %vm350 = vcmask 130048
    %s351 = scalar_lea.vmem %s1, 56
    %352 = vst.msk [vmem:[%s351] ss:$504 sm:$0x3] %vm350, %v349
    %s353 = scalar_lea.vmem [#allocation0], 64
    %v354 = vld [vmem:[%s353] sm:$0x3]
    %vm355 = vcmask 130048
    %s356 = scalar_lea.vmem %s1, 64
    %357 = vst.msk [vmem:[%s356] ss:$504 sm:$0x3] %vm355, %v354
    %s358 = scalar_lea.vmem [#allocation0], 72
    %v359 = vld [vmem:[%s358] sm:$0x3]
    %vm360 = vcmask 130048
    %s361 = scalar_lea.vmem %s1, 72
    %362 = vst.msk [vmem:[%s361] ss:$504 sm:$0x3] %vm360, %v359
    %s363 = scalar_lea.vmem [#allocation0], 80
    %v364 = vld [vmem:[%s363] sm:$0x3]
    %vm365 = vcmask 130048
    %s366 = scalar_lea.vmem %s1, 80
    %367 = vst.msk [vmem:[%s366] ss:$504 sm:$0x3] %vm365, %v364
    %s368 = scalar_lea.vmem [#allocation0], 88
    %v369 = vld [vmem:[%s368] sm:$0x3]
    %vm370 = vcmask 130048
    %s371 = scalar_lea.vmem %s1, 88
    %372 = vst.msk [vmem:[%s371] ss:$504 sm:$0x3] %vm370, %v369
    %s373 = scalar_lea.vmem [#allocation0], 96
    %v374 = vld [vmem:[%s373] sm:$0x3]
    %vm375 = vcmask 130048
    %s376 = scalar_lea.vmem %s1, 96
    %377 = vst.msk [vmem:[%s376] ss:$504 sm:$0x3] %vm375, %v374
    %s378 = scalar_lea.vmem [#allocation0], 104
    %v379 = vld [vmem:[%s378] sm:$0x3]
    %vm380 = vcmask 130048
    %s381 = scalar_lea.vmem %s1, 104
    %382 = vst.msk [vmem:[%s381] ss:$504 sm:$0x3] %vm380, %v379
    %s383 = scalar_lea.vmem [#allocation0], 112
    %v384 = vld [vmem:[%s383] sm:$0x3]
    %vm385 = vcmask 130048
    %s386 = scalar_lea.vmem %s1, 112
    %387 = vst.msk [vmem:[%s386] ss:$504 sm:$0x3] %vm385, %v384
    %s388 = scalar_lea.vmem [#allocation0], 120
    %v389 = vld [vmem:[%s388] sm:$0x3]
    %vm390 = vcmask 130048
    %s391 = scalar_lea.vmem %s1, 120
    %392 = vst.msk [vmem:[%s391] ss:$504 sm:$0x3] %vm390, %v389
    %s393 = scalar_lea.vmem [#allocation0], 128
    %v394 = vld [vmem:[%s393] sm:$0x3]
    %vm395 = vcmask 130048
    %s396 = scalar_lea.vmem %s1, 128
    %397 = vst.msk [vmem:[%s396] ss:$504 sm:$0x3] %vm395, %v394
    %s398 = scalar_lea.vmem [#allocation0], 136
    %v399 = vld [vmem:[%s398] sm:$0x3]
    %vm400 = vcmask 130048
    %s401 = scalar_lea.vmem %s1, 136
    %402 = vst.msk [vmem:[%s401] ss:$504 sm:$0x3] %vm400, %v399
    %s403 = scalar_lea.vmem [#allocation0], 144
    %v404 = vld [vmem:[%s403] sm:$0x3]
    %vm405 = vcmask 130048
    %s406 = scalar_lea.vmem %s1, 144
    %407 = vst.msk [vmem:[%s406] ss:$504 sm:$0x3] %vm405, %v404
    %s408 = scalar_lea.vmem [#allocation0], 152
    %v409 = vld [vmem:[%s408] sm:$0x3]
    %vm410 = vcmask 130048
    %s411 = scalar_lea.vmem %s1, 152
    %412 = vst.msk [vmem:[%s411] ss:$504 sm:$0x3] %vm410, %v409
    %s413 = scalar_lea.vmem [#allocation0], 160
    %v414 = vld [vmem:[%s413] sm:$0x3]
    %vm415 = vcmask 130048
    %s416 = scalar_lea.vmem %s1, 160
    %417 = vst.msk [vmem:[%s416] ss:$504 sm:$0x3] %vm415, %v414
    %s418 = scalar_lea.vmem [#allocation0], 168
    %v419 = vld [vmem:[%s418] sm:$0x3]
    %vm420 = vcmask 130048
    %s421 = scalar_lea.vmem %s1, 168
    %422 = vst.msk [vmem:[%s421] ss:$504 sm:$0x3] %vm420, %v419
    %s423 = scalar_lea.vmem [#allocation0], 176
    %v424 = vld [vmem:[%s423] sm:$0x3]
    %vm425 = vcmask 130048
    %s426 = scalar_lea.vmem %s1, 176
    %427 = vst.msk [vmem:[%s426] ss:$504 sm:$0x3] %vm425, %v424
    %s428 = scalar_lea.vmem [#allocation0], 184
    %v429 = vld [vmem:[%s428] sm:$0x3]
    %vm430 = vcmask 130048
    %s431 = scalar_lea.vmem %s1, 184
    %432 = vst.msk [vmem:[%s431] ss:$504 sm:$0x3] %vm430, %v429
    %s433 = scalar_lea.vmem [#allocation0], 192
    %v434 = vld [vmem:[%s433] sm:$0x3]
    %vm435 = vcmask 130048
    %s436 = scalar_lea.vmem %s1, 192
    %437 = vst.msk [vmem:[%s436] ss:$504 sm:$0x3] %vm435, %v434
    %s438 = scalar_lea.vmem [#allocation0], 200
    %v439 = vld [vmem:[%s438] sm:$0x3]
    %vm440 = vcmask 130048
    %s441 = scalar_lea.vmem %s1, 200
    %442 = vst.msk [vmem:[%s441] ss:$504 sm:$0x3] %vm440, %v439
    %s443 = scalar_lea.vmem [#allocation0], 208
    %v444 = vld [vmem:[%s443] sm:$0x3]
    %vm445 = vcmask 130048
    %s446 = scalar_lea.vmem %s1, 208
    %447 = vst.msk [vmem:[%s446] ss:$504 sm:$0x3] %vm445, %v444
    %s448 = scalar_lea.vmem [#allocation0], 216
    %v449 = vld [vmem:[%s448] sm:$0x3]
    %vm450 = vcmask 130048
    %s451 = scalar_lea.vmem %s1, 216
    %452 = vst.msk [vmem:[%s451] ss:$504 sm:$0x3] %vm450, %v449
    %s453 = scalar_lea.vmem [#allocation0], 224
    %v454 = vld [vmem:[%s453] sm:$0x3]
    %vm455 = vcmask 130048
    %s456 = scalar_lea.vmem %s1, 224
    %457 = vst.msk [vmem:[%s456] ss:$504 sm:$0x3] %vm455, %v454
    %s458 = scalar_lea.vmem [#allocation0], 232
    %v459 = vld [vmem:[%s458] sm:$0x3]
    %vm460 = vcmask 130048
    %s461 = scalar_lea.vmem %s1, 232
    %462 = vst.msk [vmem:[%s461] ss:$504 sm:$0x3] %vm460, %v459
    %s463 = scalar_lea.vmem [#allocation0], 240
    %v464 = vld [vmem:[%s463] sm:$0x3]
    %vm465 = vcmask 130048
    %s466 = scalar_lea.vmem %s1, 240
    %467 = vst.msk [vmem:[%s466] ss:$504 sm:$0x3] %vm465, %v464
    %s468 = scalar_lea.vmem [#allocation0], 248
    %v469 = vld [vmem:[%s468] sm:$0x3]
    %vm470 = vcmask 130048
    %s471 = scalar_lea.vmem %s1, 248
    %472 = vst.msk [vmem:[%s471] ss:$504 sm:$0x3] %vm470, %v469
    %s473 = scalar_lea.vmem [#allocation0], 256
    %v474 = vld [vmem:[%s473] sm:$0x3]
    %vm475 = vcmask 130048
    %s476 = scalar_lea.vmem %s1, 256
    %477 = vst.msk [vmem:[%s476] ss:$504 sm:$0x3] %vm475, %v474
    %s478 = scalar_lea.vmem [#allocation0], 264
    %v479 = vld [vmem:[%s478] sm:$0x3]
    %vm480 = vcmask 130048
    %s481 = scalar_lea.vmem %s1, 264
    %482 = vst.msk [vmem:[%s481] ss:$504 sm:$0x3] %vm480, %v479
    %s483 = scalar_lea.vmem [#allocation0], 272
    %v484 = vld [vmem:[%s483] sm:$0x3]
    %vm485 = vcmask 130048
    %s486 = scalar_lea.vmem %s1, 272
    %487 = vst.msk [vmem:[%s486] ss:$504 sm:$0x3] %vm485, %v484
    %s488 = scalar_lea.vmem [#allocation0], 280
    %v489 = vld [vmem:[%s488] sm:$0x3]
    %vm490 = vcmask 130048
    %s491 = scalar_lea.vmem %s1, 280
    %492 = vst.msk [vmem:[%s491] ss:$504 sm:$0x3] %vm490, %v489
    %s493 = scalar_lea.vmem [#allocation0], 288
    %v494 = vld [vmem:[%s493] sm:$0x3]
    %vm495 = vcmask 130048
    %s496 = scalar_lea.vmem %s1, 288
    %497 = vst.msk [vmem:[%s496] ss:$504 sm:$0x3] %vm495, %v494
    %s498 = scalar_lea.vmem [#allocation0], 296
    %v499 = vld [vmem:[%s498] sm:$0x3]
    %vm500 = vcmask 130048
    %s501 = scalar_lea.vmem %s1, 296
    %502 = vst.msk [vmem:[%s501] ss:$504 sm:$0x3] %vm500, %v499
    %s503 = scalar_lea.vmem [#allocation0], 304
    %v504 = vld [vmem:[%s503] sm:$0x3]
    %vm505 = vcmask 130048
    %s506 = scalar_lea.vmem %s1, 304
    %507 = vst.msk [vmem:[%s506] ss:$504 sm:$0x3] %vm505, %v504
    %s508 = scalar_lea.vmem [#allocation0], 312
    %v509 = vld [vmem:[%s508] sm:$0x3]
    %vm510 = vcmask 130048
    %s511 = scalar_lea.vmem %s1, 312
    %512 = vst.msk [vmem:[%s511] ss:$504 sm:$0x3] %vm510, %v509
    %s513 = scalar_lea.vmem [#allocation0], 320
    %v514 = vld [vmem:[%s513] sm:$0x3]
    %vm515 = vcmask 130048
    %s516 = scalar_lea.vmem %s1, 320
    %517 = vst.msk [vmem:[%s516] ss:$504 sm:$0x3] %vm515, %v514
    %s518 = scalar_lea.vmem [#allocation0], 328
    %v519 = vld [vmem:[%s518] sm:$0x3]
    %vm520 = vcmask 130048
    %s521 = scalar_lea.vmem %s1, 328
    %522 = vst.msk [vmem:[%s521] ss:$504 sm:$0x3] %vm520, %v519
    %s523 = scalar_lea.vmem [#allocation0], 336
    %v524 = vld [vmem:[%s523] sm:$0x3]
    %vm525 = vcmask 130048
    %s526 = scalar_lea.vmem %s1, 336
    %527 = vst.msk [vmem:[%s526] ss:$504 sm:$0x3] %vm525, %v524
    %s528 = scalar_lea.vmem [#allocation0], 344
    %v529 = vld [vmem:[%s528] sm:$0x3]
    %vm530 = vcmask 130048
    %s531 = scalar_lea.vmem %s1, 344
    %532 = vst.msk [vmem:[%s531] ss:$504 sm:$0x3] %vm530, %v529
    %s533 = scalar_lea.vmem [#allocation0], 352
    %v534 = vld [vmem:[%s533] sm:$0x3]
    %vm535 = vcmask 130048
    %s536 = scalar_lea.vmem %s1, 352
    %537 = vst.msk [vmem:[%s536] ss:$504 sm:$0x3] %vm535, %v534
    %s538 = scalar_lea.vmem [#allocation0], 360
    %v539 = vld [vmem:[%s538] sm:$0x3]
    %vm540 = vcmask 130048
    %s541 = scalar_lea.vmem %s1, 360
    %542 = vst.msk [vmem:[%s541] ss:$504 sm:$0x3] %vm540, %v539
    %s543 = scalar_lea.vmem [#allocation0], 368
    %v544 = vld [vmem:[%s543] sm:$0x3]
    %vm545 = vcmask 130048
    %s546 = scalar_lea.vmem %s1, 368
    %547 = vst.msk [vmem:[%s546] ss:$504 sm:$0x3] %vm545, %v544
    %s548 = scalar_lea.vmem [#allocation0], 376
    %v549 = vld [vmem:[%s548] sm:$0x3]
    %vm550 = vcmask 130048
    %s551 = scalar_lea.vmem %s1, 376
    %552 = vst.msk [vmem:[%s551] ss:$504 sm:$0x3] %vm550, %v549
    %s553 = scalar_lea.vmem [#allocation0], 384
    %v554 = vld [vmem:[%s553] sm:$0x3]
    %vm555 = vcmask 130048
    %s556 = scalar_lea.vmem %s1, 384
    %557 = vst.msk [vmem:[%s556] ss:$504 sm:$0x3] %vm555, %v554
    %s558 = scalar_lea.vmem [#allocation0], 392
    %v559 = vld [vmem:[%s558] sm:$0x3]
    %vm560 = vcmask 130048
    %s561 = scalar_lea.vmem %s1, 392
    %562 = vst.msk [vmem:[%s561] ss:$504 sm:$0x3] %vm560, %v559
    %s563 = scalar_lea.vmem [#allocation0], 400
    %v564 = vld [vmem:[%s563] sm:$0x3]
    %vm565 = vcmask 130048
    %s566 = scalar_lea.vmem %s1, 400
    %567 = vst.msk [vmem:[%s566] ss:$504 sm:$0x3] %vm565, %v564
    %s568 = scalar_lea.vmem [#allocation0], 408
    %v569 = vld [vmem:[%s568] sm:$0x3]
    %vm570 = vcmask 130048
    %s571 = scalar_lea.vmem %s1, 408
    %572 = vst.msk [vmem:[%s571] ss:$504 sm:$0x3] %vm570, %v569
    %s573 = scalar_lea.vmem [#allocation0], 416
    %v574 = vld [vmem:[%s573] sm:$0x3]
    %vm575 = vcmask 130048
    %s576 = scalar_lea.vmem %s1, 416
    %577 = vst.msk [vmem:[%s576] ss:$504 sm:$0x3] %vm575, %v574
    %s578 = scalar_lea.vmem [#allocation0], 424
    %v579 = vld [vmem:[%s578] sm:$0x3]
    %vm580 = vcmask 130048
    %s581 = scalar_lea.vmem %s1, 424
    %582 = vst.msk [vmem:[%s581] ss:$504 sm:$0x3] %vm580, %v579
    %s583 = scalar_lea.vmem [#allocation0], 432
    %v584 = vld [vmem:[%s583] sm:$0x3]
    %vm585 = vcmask 130048
    %s586 = scalar_lea.vmem %s1, 432
    %587 = vst.msk [vmem:[%s586] ss:$504 sm:$0x3] %vm585, %v584
    %s588 = scalar_lea.vmem [#allocation0], 440
    %v589 = vld [vmem:[%s588] sm:$0x3]
    %vm590 = vcmask 130048
    %s591 = scalar_lea.vmem %s1, 440
    %592 = vst.msk [vmem:[%s591] ss:$504 sm:$0x3] %vm590, %v589
    %s593 = scalar_lea.vmem [#allocation0], 448
    %v594 = vld [vmem:[%s593] sm:$0x3]
    %vm595 = vcmask 130048
    %s596 = scalar_lea.vmem %s1, 448
    %597 = vst.msk [vmem:[%s596] ss:$504 sm:$0x3] %vm595, %v594
    %s598 = scalar_lea.vmem [#allocation0], 456
    %v599 = vld [vmem:[%s598] sm:$0x3]
    %vm600 = vcmask 130048
    %s601 = scalar_lea.vmem %s1, 456
    %602 = vst.msk [vmem:[%s601] ss:$504 sm:$0x3] %vm600, %v599
    %s603 = scalar_lea.vmem [#allocation0], 464
    %v604 = vld [vmem:[%s603] sm:$0x3]
    %vm605 = vcmask 130048
    %s606 = scalar_lea.vmem %s1, 464
    %607 = vst.msk [vmem:[%s606] ss:$504 sm:$0x3] %vm605, %v604
    %s608 = scalar_lea.vmem [#allocation0], 472
    %v609 = vld [vmem:[%s608] sm:$0x3]
    %vm610 = vcmask 130048
    %s611 = scalar_lea.vmem %s1, 472
    %612 = vst.msk [vmem:[%s611] ss:$504 sm:$0x3] %vm610, %v609
    %s613 = scalar_lea.vmem [#allocation0], 480
    %v614 = vld [vmem:[%s613] sm:$0x3]
    %vm615 = vcmask 130048
    %s616 = scalar_lea.vmem %s1, 480
    %617 = vst.msk [vmem:[%s616] ss:$504 sm:$0x3] %vm615, %v614
    %s618 = scalar_lea.vmem [#allocation0], 488
    %v619 = vld [vmem:[%s618] sm:$0x3]
    %vm620 = vcmask 130048
    %s621 = scalar_lea.vmem %s1, 488
    %622 = vst.msk [vmem:[%s621] ss:$504 sm:$0x3] %vm620, %v619
    %s623 = scalar_lea.vmem [#allocation0], 496
    %v624 = vld [vmem:[%s623] sm:$0x3]
    %vm625 = vcmask 130048
    %s626 = scalar_lea.vmem %s1, 496
    %627 = vst.msk [vmem:[%s626] ss:$504 sm:$0x3] %vm625, %v624
    %v628 = vld [vmem:[#allocation0] ss:$8 sm:$0x7]
    %s629 = scalar_lea.vmem [#allocation0], 4294967273
    %v630 = vld [vmem:[%s629] ss:$8 sm:$0x78]
    %vm631 = vcmask 1046531
    %v632 = vsel %vm631, %v630, %v628
    %s633 = scalar_lea.vmem [#allocation0], 17
    %v634 = vld [vmem:[%s633] sm:$0x80]
    %vm635 = vcmask 1047559
    %v636 = vsel %vm635, %v634, %v632
    %637 = vrot.lane.b32.xlu0 %v636, 112
    %v638 = vpop.permute.xlu0 %637
    %vm639 = vcmask 130048
    %s640 = scalar_lea.vmem %s1, 1
    %641 = vst.msk [vmem:[%s640] ss:$8 sm:$0x7] %vm639, %v638
    %s642 = scalar_lea.vmem %s1, 481
    %643 = vst.msk [vmem:[%s642] ss:$8 sm:$0x78] %vm639, %v638
    %s644 = scalar_lea.vmem %s1, 18
    %645 = vst.msk [vmem:[%s644] sm:$0x80] %vm639, %v638
    %s646 = scalar_lea.vmem [#allocation0], 32
    %v647 = vld [vmem:[%s646] ss:$8 sm:$0x7]
    %s648 = scalar_lea.vmem [#allocation0], 9
    %v649 = vld [vmem:[%s648] ss:$8 sm:$0x78]
    %vm650 = vcmask 1046531
    %v651 = vsel %vm650, %v649, %v647
    %s652 = scalar_lea.vmem [#allocation0], 49
    %v653 = vld [vmem:[%s652] sm:$0x80]
    %vm654 = vcmask 1047559
    %v655 = vsel %vm654, %v653, %v651
    %656 = vrot.lane.b32.xlu0 %v655, 112
    %v657 = vpop.permute.xlu0 %656
    %vm658 = vcmask 130048
    %s659 = scalar_lea.vmem %s1, 33
    %660 = vst.msk [vmem:[%s659] ss:$8 sm:$0x7] %vm658, %v657
    %s661 = scalar_lea.vmem %s1, 513
    %662 = vst.msk [vmem:[%s661] ss:$8 sm:$0x78] %vm658, %v657
    %s663 = scalar_lea.vmem %s1, 50
    %664 = vst.msk [vmem:[%s663] sm:$0x80] %vm658, %v657
    %s665 = scalar_lea.vmem [#allocation0], 64
    %v666 = vld [vmem:[%s665] ss:$8 sm:$0x7]
    %s667 = scalar_lea.vmem [#allocation0], 41
    %v668 = vld [vmem:[%s667] ss:$8 sm:$0x78]
    %vm669 = vcmask 1046531
    %v670 = vsel %vm669, %v668, %v666
    %s671 = scalar_lea.vmem [#allocation0], 81
    %v672 = vld [vmem:[%s671] sm:$0x80]
    %vm673 = vcmask 1047559
    %v674 = vsel %vm673, %v672, %v670
    %675 = vrot.lane.b32.xlu0 %v674, 112
    %v676 = vpop.permute.xlu0 %675
    %vm677 = vcmask 130048
    %s678 = scalar_lea.vmem %s1, 65
    %679 = vst.msk [vmem:[%s678] ss:$8 sm:$0x7] %vm677, %v676
    %s680 = scalar_lea.vmem %s1, 545
    %681 = vst.msk [vmem:[%s680] ss:$8 sm:$0x78] %vm677, %v676
    %s682 = scalar_lea.vmem %s1, 82
    %683 = vst.msk [vmem:[%s682] sm:$0x80] %vm677, %v676
    %s684 = scalar_lea.vmem [#allocation0], 96
    %v685 = vld [vmem:[%s684] ss:$8 sm:$0x7]
    %s686 = scalar_lea.vmem [#allocation0], 73
    %v687 = vld [vmem:[%s686] ss:$8 sm:$0x78]
    %vm688 = vcmask 1046531
    %v689 = vsel %vm688, %v687, %v685
    %s690 = scalar_lea.vmem [#allocation0], 113
    %v691 = vld [vmem:[%s690] sm:$0x80]
    %vm692 = vcmask 1047559
    %v693 = vsel %vm692, %v691, %v689
    %694 = vrot.lane.b32.xlu0 %v693, 112
    %v695 = vpop.permute.xlu0 %694
    %vm696 = vcmask 130048
    %s697 = scalar_lea.vmem %s1, 97
    %698 = vst.msk [vmem:[%s697] ss:$8 sm:$0x7] %vm696, %v695
    %s699 = scalar_lea.vmem %s1, 577
    %700 = vst.msk [vmem:[%s699] ss:$8 sm:$0x78] %vm696, %v695
    %s701 = scalar_lea.vmem %s1, 114
    %702 = vst.msk [vmem:[%s701] sm:$0x80] %vm696, %v695
    %s703 = scalar_lea.vmem [#allocation0], 128
    %v704 = vld [vmem:[%s703] ss:$8 sm:$0x7]
    %s705 = scalar_lea.vmem [#allocation0], 105
    %v706 = vld [vmem:[%s705] ss:$8 sm:$0x78]
    %vm707 = vcmask 1046531
    %v708 = vsel %vm707, %v706, %v704
    %s709 = scalar_lea.vmem [#allocation0], 145
    %v710 = vld [vmem:[%s709] sm:$0x80]
    %vm711 = vcmask 1047559
    %v712 = vsel %vm711, %v710, %v708
    %713 = vrot.lane.b32.xlu0 %v712, 112
    %v714 = vpop.permute.xlu0 %713
    %vm715 = vcmask 130048
    %s716 = scalar_lea.vmem %s1, 129
    %717 = vst.msk [vmem:[%s716] ss:$8 sm:$0x7] %vm715, %v714
    %s718 = scalar_lea.vmem %s1, 609
    %719 = vst.msk [vmem:[%s718] ss:$8 sm:$0x78] %vm715, %v714
    %s720 = scalar_lea.vmem %s1, 146
    %721 = vst.msk [vmem:[%s720] sm:$0x80] %vm715, %v714
    %s722 = scalar_lea.vmem [#allocation0], 160
    %v723 = vld [vmem:[%s722] ss:$8 sm:$0x7]
    %s724 = scalar_lea.vmem [#allocation0], 137
    %v725 = vld [vmem:[%s724] ss:$8 sm:$0x78]
    %vm726 = vcmask 1046531
    %v727 = vsel %vm726, %v725, %v723
    %s728 = scalar_lea.vmem [#allocation0], 177
    %v729 = vld [vmem:[%s728] sm:$0x80]
    %vm730 = vcmask 1047559
    %v731 = vsel %vm730, %v729, %v727
    %732 = vrot.lane.b32.xlu0 %v731, 112
    %v733 = vpop.permute.xlu0 %732
    %vm734 = vcmask 130048
    %s735 = scalar_lea.vmem %s1, 161
    %736 = vst.msk [vmem:[%s735] ss:$8 sm:$0x7] %vm734, %v733
    %s737 = scalar_lea.vmem %s1, 641
    %738 = vst.msk [vmem:[%s737] ss:$8 sm:$0x78] %vm734, %v733
    %s739 = scalar_lea.vmem %s1, 178
    %740 = vst.msk [vmem:[%s739] sm:$0x80] %vm734, %v733
    %s741 = scalar_lea.vmem [#allocation0], 192
    %v742 = vld [vmem:[%s741] ss:$8 sm:$0x7]
    %s743 = scalar_lea.vmem [#allocation0], 169
    %v744 = vld [vmem:[%s743] ss:$8 sm:$0x78]
    %vm745 = vcmask 1046531
    %v746 = vsel %vm745, %v744, %v742
    %s747 = scalar_lea.vmem [#allocation0], 209
    %v748 = vld [vmem:[%s747] sm:$0x80]
    %vm749 = vcmask 1047559
    %v750 = vsel %vm749, %v748, %v746
    %751 = vrot.lane.b32.xlu0 %v750, 112
    %v752 = vpop.permute.xlu0 %751
    %vm753 = vcmask 130048
    %s754 = scalar_lea.vmem %s1, 193
    %755 = vst.msk [vmem:[%s754] ss:$8 sm:$0x7] %vm753, %v752
    %s756 = scalar_lea.vmem %s1, 673
    %757 = vst.msk [vmem:[%s756] ss:$8 sm:$0x78] %vm753, %v752
    %s758 = scalar_lea.vmem %s1, 210
    %759 = vst.msk [vmem:[%s758] sm:$0x80] %vm753, %v752
    %s760 = scalar_lea.vmem [#allocation0], 224
    %v761 = vld [vmem:[%s760] ss:$8 sm:$0x7]
    %s762 = scalar_lea.vmem [#allocation0], 201
    %v763 = vld [vmem:[%s762] ss:$8 sm:$0x78]
    %vm764 = vcmask 1046531
    %v765 = vsel %vm764, %v763, %v761
    %s766 = scalar_lea.vmem [#allocation0], 241
    %v767 = vld [vmem:[%s766] sm:$0x80]
    %vm768 = vcmask 1047559
    %v769 = vsel %vm768, %v767, %v765
    %770 = vrot.lane.b32.xlu0 %v769, 112
    %v771 = vpop.permute.xlu0 %770
    %vm772 = vcmask 130048
    %s773 = scalar_lea.vmem %s1, 225
    %774 = vst.msk [vmem:[%s773] ss:$8 sm:$0x7] %vm772, %v771
    %s775 = scalar_lea.vmem %s1, 705
    %776 = vst.msk [vmem:[%s775] ss:$8 sm:$0x78] %vm772, %v771
    %s777 = scalar_lea.vmem %s1, 242
    %778 = vst.msk [vmem:[%s777] sm:$0x80] %vm772, %v771
    %s779 = scalar_lea.vmem [#allocation0], 256
    %v780 = vld [vmem:[%s779] ss:$8 sm:$0x7]
    %s781 = scalar_lea.vmem [#allocation0], 233
    %v782 = vld [vmem:[%s781] ss:$8 sm:$0x78]
    %vm783 = vcmask 1046531
    %v784 = vsel %vm783, %v782, %v780
    %s785 = scalar_lea.vmem [#allocation0], 273
    %v786 = vld [vmem:[%s785] sm:$0x80]
    %vm787 = vcmask 1047559
    %v788 = vsel %vm787, %v786, %v784
    %789 = vrot.lane.b32.xlu0 %v788, 112
    %v790 = vpop.permute.xlu0 %789
    %vm791 = vcmask 130048
    %s792 = scalar_lea.vmem %s1, 257
    %793 = vst.msk [vmem:[%s792] ss:$8 sm:$0x7] %vm791, %v790
    %s794 = scalar_lea.vmem %s1, 737
    %795 = vst.msk [vmem:[%s794] ss:$8 sm:$0x78] %vm791, %v790
    %s796 = scalar_lea.vmem %s1, 274
    %797 = vst.msk [vmem:[%s796] sm:$0x80] %vm791, %v790
    %s798 = scalar_lea.vmem [#allocation0], 288
    %v799 = vld [vmem:[%s798] ss:$8 sm:$0x7]
    %s800 = scalar_lea.vmem [#allocation0], 265
    %v801 = vld [vmem:[%s800] ss:$8 sm:$0x78]
    %vm802 = vcmask 1046531
    %v803 = vsel %vm802, %v801, %v799
    %s804 = scalar_lea.vmem [#allocation0], 305
    %v805 = vld [vmem:[%s804] sm:$0x80]
    %vm806 = vcmask 1047559
    %v807 = vsel %vm806, %v805, %v803
    %808 = vrot.lane.b32.xlu0 %v807, 112
    %v809 = vpop.permute.xlu0 %808
    %vm810 = vcmask 130048
    %s811 = scalar_lea.vmem %s1, 289
    %812 = vst.msk [vmem:[%s811] ss:$8 sm:$0x7] %vm810, %v809
    %s813 = scalar_lea.vmem %s1, 769
    %814 = vst.msk [vmem:[%s813] ss:$8 sm:$0x78] %vm810, %v809
    %s815 = scalar_lea.vmem %s1, 306
    %816 = vst.msk [vmem:[%s815] sm:$0x80] %vm810, %v809
    %s817 = scalar_lea.vmem [#allocation0], 320
    %v818 = vld [vmem:[%s817] ss:$8 sm:$0x7]
    %s819 = scalar_lea.vmem [#allocation0], 297
    %v820 = vld [vmem:[%s819] ss:$8 sm:$0x78]
    %vm821 = vcmask 1046531
    %v822 = vsel %vm821, %v820, %v818
    %s823 = scalar_lea.vmem [#allocation0], 337
    %v824 = vld [vmem:[%s823] sm:$0x80]
    %vm825 = vcmask 1047559
    %v826 = vsel %vm825, %v824, %v822
    %827 = vrot.lane.b32.xlu0 %v826, 112
    %v828 = vpop.permute.xlu0 %827
    %vm829 = vcmask 130048
    %s830 = scalar_lea.vmem %s1, 321
    %831 = vst.msk [vmem:[%s830] ss:$8 sm:$0x7] %vm829, %v828
    %s832 = scalar_lea.vmem %s1, 801
    %833 = vst.msk [vmem:[%s832] ss:$8 sm:$0x78] %vm829, %v828
    %s834 = scalar_lea.vmem %s1, 338
    %835 = vst.msk [vmem:[%s834] sm:$0x80] %vm829, %v828
    %s836 = scalar_lea.vmem [#allocation0], 352
    %v837 = vld [vmem:[%s836] ss:$8 sm:$0x7]
    %s838 = scalar_lea.vmem [#allocation0], 329
    %v839 = vld [vmem:[%s838] ss:$8 sm:$0x78]
    %vm840 = vcmask 1046531
    %v841 = vsel %vm840, %v839, %v837
    %s842 = scalar_lea.vmem [#allocation0], 369
    %v843 = vld [vmem:[%s842] sm:$0x80]
    %vm844 = vcmask 1047559
    %v845 = vsel %vm844, %v843, %v841
    %846 = vrot.lane.b32.xlu0 %v845, 112
    %v847 = vpop.permute.xlu0 %846
    %vm848 = vcmask 130048
    %s849 = scalar_lea.vmem %s1, 353
    %850 = vst.msk [vmem:[%s849] ss:$8 sm:$0x7] %vm848, %v847
    %s851 = scalar_lea.vmem %s1, 833
    %852 = vst.msk [vmem:[%s851] ss:$8 sm:$0x78] %vm848, %v847
    %s853 = scalar_lea.vmem %s1, 370
    %854 = vst.msk [vmem:[%s853] sm:$0x80] %vm848, %v847
    %s855 = scalar_lea.vmem [#allocation0], 384
    %v856 = vld [vmem:[%s855] ss:$8 sm:$0x7]
    %s857 = scalar_lea.vmem [#allocation0], 361
    %v858 = vld [vmem:[%s857] ss:$8 sm:$0x78]
    %vm859 = vcmask 1046531
    %v860 = vsel %vm859, %v858, %v856
    %s861 = scalar_lea.vmem [#allocation0], 401
    %v862 = vld [vmem:[%s861] sm:$0x80]
    %vm863 = vcmask 1047559
    %v864 = vsel %vm863, %v862, %v860
    %865 = vrot.lane.b32.xlu0 %v864, 112
    %v866 = vpop.permute.xlu0 %865
    %vm867 = vcmask 130048
    %s868 = scalar_lea.vmem %s1, 385
    %869 = vst.msk [vmem:[%s868] ss:$8 sm:$0x7] %vm867, %v866
    %s870 = scalar_lea.vmem %s1, 865
    %871 = vst.msk [vmem:[%s870] ss:$8 sm:$0x78] %vm867, %v866
    %s872 = scalar_lea.vmem %s1, 402
    %873 = vst.msk [vmem:[%s872] sm:$0x80] %vm867, %v866
    %s874 = scalar_lea.vmem [#allocation0], 416
    %v875 = vld [vmem:[%s874] ss:$8 sm:$0x7]
    %s876 = scalar_lea.vmem [#allocation0], 393
    %v877 = vld [vmem:[%s876] ss:$8 sm:$0x78]
    %vm878 = vcmask 1046531
    %v879 = vsel %vm878, %v877, %v875
    %s880 = scalar_lea.vmem [#allocation0], 433
    %v881 = vld [vmem:[%s880] sm:$0x80]
    %vm882 = vcmask 1047559
    %v883 = vsel %vm882, %v881, %v879
    %884 = vrot.lane.b32.xlu0 %v883, 112
    %v885 = vpop.permute.xlu0 %884
    %vm886 = vcmask 130048
    %s887 = scalar_lea.vmem %s1, 417
    %888 = vst.msk [vmem:[%s887] ss:$8 sm:$0x7] %vm886, %v885
    %s889 = scalar_lea.vmem %s1, 897
    %890 = vst.msk [vmem:[%s889] ss:$8 sm:$0x78] %vm886, %v885
    %s891 = scalar_lea.vmem %s1, 434
    %892 = vst.msk [vmem:[%s891] sm:$0x80] %vm886, %v885
    %s893 = scalar_lea.vmem [#allocation0], 448
    %v894 = vld [vmem:[%s893] ss:$8 sm:$0x7]
    %s895 = scalar_lea.vmem [#allocation0], 425
    %v896 = vld [vmem:[%s895] ss:$8 sm:$0x78]
    %vm897 = vcmask 1046531
    %v898 = vsel %vm897, %v896, %v894
    %s899 = scalar_lea.vmem [#allocation0], 465
    %v900 = vld [vmem:[%s899] sm:$0x80]
    %vm901 = vcmask 1047559
    %v902 = vsel %vm901, %v900, %v898
    %903 = vrot.lane.b32.xlu0 %v902, 112
    %v904 = vpop.permute.xlu0 %903
    %vm905 = vcmask 130048
    %s906 = scalar_lea.vmem %s1, 449
    %907 = vst.msk [vmem:[%s906] ss:$8 sm:$0x7] %vm905, %v904
    %s908 = scalar_lea.vmem %s1, 929
    %909 = vst.msk [vmem:[%s908] ss:$8 sm:$0x78] %vm905, %v904
    %s910 = scalar_lea.vmem %s1, 466
    %911 = vst.msk [vmem:[%s910] sm:$0x80] %vm905, %v904
    %s912 = scalar_lea.vmem [#allocation0], 480
    %v913 = vld [vmem:[%s912] ss:$8 sm:$0x7]
    %s914 = scalar_lea.vmem [#allocation0], 457
    %v915 = vld [vmem:[%s914] ss:$8 sm:$0x38]
    %vm916 = vcmask 1045507
    %v917 = vsel %vm916, %v915, %v913
    %918 = vrot.lane.b32.xlu0 %v917, 112
    %v919 = vpop.permute.xlu0 %918
    %vm920 = vcmask 130048
    %s921 = scalar_lea.vmem %s1, 481
    %922 = vst.msk [vmem:[%s921] ss:$8 sm:$0x7] %vm920, %v919
    %s923 = scalar_lea.vmem %s1, 961
    %924 = vst.msk [vmem:[%s923] ss:$8 sm:$0x38] %vm920, %v919
    %v925 = vld [vmem:[#allocation0] ss:$8 sm:$0x7]
    %s926 = scalar_lea.vmem [#allocation0], 4294967273
    %v927 = vld [vmem:[%s926] ss:$8 sm:$0x78]
    %vm928 = vcmask 1046531
    %v929 = vsel %vm928, %v927, %v925
    %s930 = scalar_lea.vmem [#allocation0], 17
    %v931 = vld [vmem:[%s930] sm:$0x80]
    %vm932 = vcmask 1047559
    %v933 = vsel %vm932, %v931, %v929
    %934 = vrot.lane.b32.xlu0 %v933, 96
    %v935 = vpop.permute.xlu0 %934
    %vm936 = vcmask 130048
    %s937 = scalar_lea.vmem %s1, 2
    %938 = vst.msk [vmem:[%s937] ss:$8 sm:$0x7] %vm936, %v935
    %s939 = scalar_lea.vmem %s1, 482
    %940 = vst.msk [vmem:[%s939] ss:$8 sm:$0x78] %vm936, %v935
    %s941 = scalar_lea.vmem %s1, 19
    %942 = vst.msk [vmem:[%s941] sm:$0x80] %vm936, %v935
    %s943 = scalar_lea.vmem [#allocation0], 32
    %v944 = vld [vmem:[%s943] ss:$8 sm:$0x7]
    %s945 = scalar_lea.vmem [#allocation0], 9
    %v946 = vld [vmem:[%s945] ss:$8 sm:$0x78]
    %vm947 = vcmask 1046531
    %v948 = vsel %vm947, %v946, %v944
    %s949 = scalar_lea.vmem [#allocation0], 49
    %v950 = vld [vmem:[%s949] sm:$0x80]
    %vm951 = vcmask 1047559
    %v952 = vsel %vm951, %v950, %v948
    %953 = vrot.lane.b32.xlu0 %v952, 96
    %v954 = vpop.permute.xlu0 %953
    %vm955 = vcmask 130048
    %s956 = scalar_lea.vmem %s1, 34
    %957 = vst.msk [vmem:[%s956] ss:$8 sm:$0x7] %vm955, %v954
    %s958 = scalar_lea.vmem %s1, 514
    %959 = vst.msk [vmem:[%s958] ss:$8 sm:$0x78] %vm955, %v954
    %s960 = scalar_lea.vmem %s1, 51
    %961 = vst.msk [vmem:[%s960] sm:$0x80] %vm955, %v954
    %s962 = scalar_lea.vmem [#allocation0], 64
    %v963 = vld [vmem:[%s962] ss:$8 sm:$0x7]
    %s964 = scalar_lea.vmem [#allocation0], 41
    %v965 = vld [vmem:[%s964] ss:$8 sm:$0x78]
    %vm966 = vcmask 1046531
    %v967 = vsel %vm966, %v965, %v963
    %s968 = scalar_lea.vmem [#allocation0], 81
    %v969 = vld [vmem:[%s968] sm:$0x80]
    %vm970 = vcmask 1047559
    %v971 = vsel %vm970, %v969, %v967
    %972 = vrot.lane.b32.xlu0 %v971, 96
    %v973 = vpop.permute.xlu0 %972
    %vm974 = vcmask 130048
    %s975 = scalar_lea.vmem %s1, 66
    %976 = vst.msk [vmem:[%s975] ss:$8 sm:$0x7] %vm974, %v973
    %s977 = scalar_lea.vmem %s1, 546
    %978 = vst.msk [vmem:[%s977] ss:$8 sm:$0x78] %vm974, %v973
    %s979 = scalar_lea.vmem %s1, 83
    %980 = vst.msk [vmem:[%s979] sm:$0x80] %vm974, %v973
    %s981 = scalar_lea.vmem [#allocation0], 96
    %v982 = vld [vmem:[%s981] ss:$8 sm:$0x7]
    %s983 = scalar_lea.vmem [#allocation0], 73
    %v984 = vld [vmem:[%s983] ss:$8 sm:$0x78]
    %vm985 = vcmask 1046531
    %v986 = vsel %vm985, %v984, %v982
    %s987 = scalar_lea.vmem [#allocation0], 113
    %v988 = vld [vmem:[%s987] sm:$0x80]
    %vm989 = vcmask 1047559
    %v990 = vsel %vm989, %v988, %v986
    %991 = vrot.lane.b32.xlu0 %v990, 96
    %v992 = vpop.permute.xlu0 %991
    %vm993 = vcmask 130048
    %s994 = scalar_lea.vmem %s1, 98
    %995 = vst.msk [vmem:[%s994] ss:$8 sm:$0x7] %vm993, %v992
    %s996 = scalar_lea.vmem %s1, 578
    %997 = vst.msk [vmem:[%s996] ss:$8 sm:$0x78] %vm993, %v992
    %s998 = scalar_lea.vmem %s1, 115
    %999 = vst.msk [vmem:[%s998] sm:$0x80] %vm993, %v992
    %s1000 = scalar_lea.vmem [#allocation0], 128
    %v1001 = vld [vmem:[%s1000] ss:$8 sm:$0x7]
    %s1002 = scalar_lea.vmem [#allocation0], 105
    %v1003 = vld [vmem:[%s1002] ss:$8 sm:$0x78]
    %vm1004 = vcmask 1046531
    %v1005 = vsel %vm1004, %v1003, %v1001
    %s1006 = scalar_lea.vmem [#allocation0], 145
    %v1007 = vld [vmem:[%s1006] sm:$0x80]
    %vm1008 = vcmask 1047559
    %v1009 = vsel %vm1008, %v1007, %v1005
    %1010 = vrot.lane.b32.xlu0 %v1009, 96
    %v1011 = vpop.permute.xlu0 %1010
    %vm1012 = vcmask 130048
    %s1013 = scalar_lea.vmem %s1, 130
    %1014 = vst.msk [vmem:[%s1013] ss:$8 sm:$0x7] %vm1012, %v1011
    %s1015 = scalar_lea.vmem %s1, 610
    %1016 = vst.msk [vmem:[%s1015] ss:$8 sm:$0x78] %vm1012, %v1011
    %s1017 = scalar_lea.vmem %s1, 147
    %1018 = vst.msk [vmem:[%s1017] sm:$0x80] %vm1012, %v1011
    %s1019 = scalar_lea.vmem [#allocation0], 160
    %v1020 = vld [vmem:[%s1019] ss:$8 sm:$0x7]
    %s1021 = scalar_lea.vmem [#allocation0], 137
    %v1022 = vld [vmem:[%s1021] ss:$8 sm:$0x78]
    %vm1023 = vcmask 1046531
    %v1024 = vsel %vm1023, %v1022, %v1020
    %s1025 = scalar_lea.vmem [#allocation0], 177
    %v1026 = vld [vmem:[%s1025] sm:$0x80]
    %vm1027 = vcmask 1047559
    %v1028 = vsel %vm1027, %v1026, %v1024
    %1029 = vrot.lane.b32.xlu0 %v1028, 96
    %v1030 = vpop.permute.xlu0 %1029
    %vm1031 = vcmask 130048
    %s1032 = scalar_lea.vmem %s1, 162
    %1033 = vst.msk [vmem:[%s1032] ss:$8 sm:$0x7] %vm1031, %v1030
    %s1034 = scalar_lea.vmem %s1, 642
    %1035 = vst.msk [vmem:[%s1034] ss:$8 sm:$0x78] %vm1031, %v1030
    %s1036 = scalar_lea.vmem %s1, 179
    %1037 = vst.msk [vmem:[%s1036] sm:$0x80] %vm1031, %v1030
    %s1038 = scalar_lea.vmem [#allocation0], 192
    %v1039 = vld [vmem:[%s1038] ss:$8 sm:$0x7]
    %s1040 = scalar_lea.vmem [#allocation0], 169
    %v1041 = vld [vmem:[%s1040] ss:$8 sm:$0x78]
    %vm1042 = vcmask 1046531
    %v1043 = vsel %vm1042, %v1041, %v1039
    %s1044 = scalar_lea.vmem [#allocation0], 209
    %v1045 = vld [vmem:[%s1044] sm:$0x80]
    %vm1046 = vcmask 1047559
    %v1047 = vsel %vm1046, %v1045, %v1043
    %1048 = vrot.lane.b32.xlu0 %v1047, 96
    %v1049 = vpop.permute.xlu0 %1048
    %vm1050 = vcmask 130048
    %s1051 = scalar_lea.vmem %s1, 194
    %1052 = vst.msk [vmem:[%s1051] ss:$8 sm:$0x7] %vm1050, %v1049
    %s1053 = scalar_lea.vmem %s1, 674
    %1054 = vst.msk [vmem:[%s1053] ss:$8 sm:$0x78] %vm1050, %v1049
    %s1055 = scalar_lea.vmem %s1, 211
    %1056 = vst.msk [vmem:[%s1055] sm:$0x80] %vm1050, %v1049
    %s1057 = scalar_lea.vmem [#allocation0], 224
    %v1058 = vld [vmem:[%s1057] ss:$8 sm:$0x7]
    %s1059 = scalar_lea.vmem [#allocation0], 201
    %v1060 = vld [vmem:[%s1059] ss:$8 sm:$0x78]
    %vm1061 = vcmask 1046531
    %v1062 = vsel %vm1061, %v1060, %v1058
    %s1063 = scalar_lea.vmem [#allocation0], 241
    %v1064 = vld [vmem:[%s1063] sm:$0x80]
    %vm1065 = vcmask 1047559
    %v1066 = vsel %vm1065, %v1064, %v1062
    %1067 = vrot.lane.b32.xlu0 %v1066, 96
    %v1068 = vpop.permute.xlu0 %1067
    %vm1069 = vcmask 130048
    %s1070 = scalar_lea.vmem %s1, 226
    %1071 = vst.msk [vmem:[%s1070] ss:$8 sm:$0x7] %vm1069, %v1068
    %s1072 = scalar_lea.vmem %s1, 706
    %1073 = vst.msk [vmem:[%s1072] ss:$8 sm:$0x78] %vm1069, %v1068
    %s1074 = scalar_lea.vmem %s1, 243
    %1075 = vst.msk [vmem:[%s1074] sm:$0x80] %vm1069, %v1068
    %s1076 = scalar_lea.vmem [#allocation0], 256
    %v1077 = vld [vmem:[%s1076] ss:$8 sm:$0x7]
    %s1078 = scalar_lea.vmem [#allocation0], 233
    %v1079 = vld [vmem:[%s1078] ss:$8 sm:$0x78]
    %vm1080 = vcmask 1046531
    %v1081 = vsel %vm1080, %v1079, %v1077
    %s1082 = scalar_lea.vmem [#allocation0], 273
    %v1083 = vld [vmem:[%s1082] sm:$0x80]
    %vm1084 = vcmask 1047559
    %v1085 = vsel %vm1084, %v1083, %v1081
    %1086 = vrot.lane.b32.xlu0 %v1085, 96
    %v1087 = vpop.permute.xlu0 %1086
    %vm1088 = vcmask 130048
    %s1089 = scalar_lea.vmem %s1, 258
    %1090 = vst.msk [vmem:[%s1089] ss:$8 sm:$0x7] %vm1088, %v1087
    %s1091 = scalar_lea.vmem %s1, 738
    %1092 = vst.msk [vmem:[%s1091] ss:$8 sm:$0x78] %vm1088, %v1087
    %s1093 = scalar_lea.vmem %s1, 275
    %1094 = vst.msk [vmem:[%s1093] sm:$0x80] %vm1088, %v1087
    %s1095 = scalar_lea.vmem [#allocation0], 288
    %v1096 = vld [vmem:[%s1095] ss:$8 sm:$0x7]
    %s1097 = scalar_lea.vmem [#allocation0], 265
    %v1098 = vld [vmem:[%s1097] ss:$8 sm:$0x78]
    %vm1099 = vcmask 1046531
    %v1100 = vsel %vm1099, %v1098, %v1096
    %s1101 = scalar_lea.vmem [#allocation0], 305
    %v1102 = vld [vmem:[%s1101] sm:$0x80]
    %vm1103 = vcmask 1047559
    %v1104 = vsel %vm1103, %v1102, %v1100
    %1105 = vrot.lane.b32.xlu0 %v1104, 96
    %v1106 = vpop.permute.xlu0 %1105
    %vm1107 = vcmask 130048
    %s1108 = scalar_lea.vmem %s1, 290
    %1109 = vst.msk [vmem:[%s1108] ss:$8 sm:$0x7] %vm1107, %v1106
    %s1110 = scalar_lea.vmem %s1, 770
    %1111 = vst.msk [vmem:[%s1110] ss:$8 sm:$0x78] %vm1107, %v1106
    %s1112 = scalar_lea.vmem %s1, 307
    %1113 = vst.msk [vmem:[%s1112] sm:$0x80] %vm1107, %v1106
    %s1114 = scalar_lea.vmem [#allocation0], 320
    %v1115 = vld [vmem:[%s1114] ss:$8 sm:$0x7]
    %s1116 = scalar_lea.vmem [#allocation0], 297
    %v1117 = vld [vmem:[%s1116] ss:$8 sm:$0x78]
    %vm1118 = vcmask 1046531
    %v1119 = vsel %vm1118, %v1117, %v1115
    %s1120 = scalar_lea.vmem [#allocation0], 337
    %v1121 = vld [vmem:[%s1120] sm:$0x80]
    %vm1122 = vcmask 1047559
    %v1123 = vsel %vm1122, %v1121, %v1119
    %1124 = vrot.lane.b32.xlu0 %v1123, 96
    %v1125 = vpop.permute.xlu0 %1124
    %vm1126 = vcmask 130048
    %s1127 = scalar_lea.vmem %s1, 322
    %1128 = vst.msk [vmem:[%s1127] ss:$8 sm:$0x7] %vm1126, %v1125
    %s1129 = scalar_lea.vmem %s1, 802
    %1130 = vst.msk [vmem:[%s1129] ss:$8 sm:$0x78] %vm1126, %v1125
    %s1131 = scalar_lea.vmem %s1, 339
    %1132 = vst.msk [vmem:[%s1131] sm:$0x80] %vm1126, %v1125
    %s1133 = scalar_lea.vmem [#allocation0], 352
    %v1134 = vld [vmem:[%s1133] ss:$8 sm:$0x7]
    %s1135 = scalar_lea.vmem [#allocation0], 329
    %v1136 = vld [vmem:[%s1135] ss:$8 sm:$0x78]
    %vm1137 = vcmask 1046531
    %v1138 = vsel %vm1137, %v1136, %v1134
    %s1139 = scalar_lea.vmem [#allocation0], 369
    %v1140 = vld [vmem:[%s1139] sm:$0x80]
    %vm1141 = vcmask 1047559
    %v1142 = vsel %vm1141, %v1140, %v1138
    %1143 = vrot.lane.b32.xlu0 %v1142, 96
    %v1144 = vpop.permute.xlu0 %1143
    %vm1145 = vcmask 130048
    %s1146 = scalar_lea.vmem %s1, 354
    %1147 = vst.msk [vmem:[%s1146] ss:$8 sm:$0x7] %vm1145, %v1144
    %s1148 = scalar_lea.vmem %s1, 834
    %1149 = vst.msk [vmem:[%s1148] ss:$8 sm:$0x78] %vm1145, %v1144
    %s1150 = scalar_lea.vmem %s1, 371
    %1151 = vst.msk [vmem:[%s1150] sm:$0x80] %vm1145, %v1144
    %s1152 = scalar_lea.vmem [#allocation0], 384
    %v1153 = vld [vmem:[%s1152] ss:$8 sm:$0x7]
    %s1154 = scalar_lea.vmem [#allocation0], 361
    %v1155 = vld [vmem:[%s1154] ss:$8 sm:$0x78]
    %vm1156 = vcmask 1046531
    %v1157 = vsel %vm1156, %v1155, %v1153
    %s1158 = scalar_lea.vmem [#allocation0], 401
    %v1159 = vld [vmem:[%s1158] sm:$0x80]
    %vm1160 = vcmask 1047559
    %v1161 = vsel %vm1160, %v1159, %v1157
    %1162 = vrot.lane.b32.xlu0 %v1161, 96
    %v1163 = vpop.permute.xlu0 %1162
    %vm1164 = vcmask 130048
    %s1165 = scalar_lea.vmem %s1, 386
    %1166 = vst.msk [vmem:[%s1165] ss:$8 sm:$0x7] %vm1164, %v1163
    %s1167 = scalar_lea.vmem %s1, 866
    %1168 = vst.msk [vmem:[%s1167] ss:$8 sm:$0x78] %vm1164, %v1163
    %s1169 = scalar_lea.vmem %s1, 403
    %1170 = vst.msk [vmem:[%s1169] sm:$0x80] %vm1164, %v1163
    %s1171 = scalar_lea.vmem [#allocation0], 416
    %v1172 = vld [vmem:[%s1171] ss:$8 sm:$0x7]
    %s1173 = scalar_lea.vmem [#allocation0], 393
    %v1174 = vld [vmem:[%s1173] ss:$8 sm:$0x78]
    %vm1175 = vcmask 1046531
    %v1176 = vsel %vm1175, %v1174, %v1172
    %s1177 = scalar_lea.vmem [#allocation0], 433
    %v1178 = vld [vmem:[%s1177] sm:$0x80]
    %vm1179 = vcmask 1047559
    %v1180 = vsel %vm1179, %v1178, %v1176
    %1181 = vrot.lane.b32.xlu0 %v1180, 96
    %v1182 = vpop.permute.xlu0 %1181
    %vm1183 = vcmask 130048
    %s1184 = scalar_lea.vmem %s1, 418
    %1185 = vst.msk [vmem:[%s1184] ss:$8 sm:$0x7] %vm1183, %v1182
    %s1186 = scalar_lea.vmem %s1, 898
    %1187 = vst.msk [vmem:[%s1186] ss:$8 sm:$0x78] %vm1183, %v1182
    %s1188 = scalar_lea.vmem %s1, 435
    %1189 = vst.msk [vmem:[%s1188] sm:$0x80] %vm1183, %v1182
    %s1190 = scalar_lea.vmem [#allocation0], 448
    %v1191 = vld [vmem:[%s1190] ss:$8 sm:$0x7]
    %s1192 = scalar_lea.vmem [#allocation0], 425
    %v1193 = vld [vmem:[%s1192] ss:$8 sm:$0x78]
    %vm1194 = vcmask 1046531
    %v1195 = vsel %vm1194, %v1193, %v1191
    %s1196 = scalar_lea.vmem [#allocation0], 465
    %v1197 = vld [vmem:[%s1196] sm:$0x80]
    %vm1198 = vcmask 1047559
    %v1199 = vsel %vm1198, %v1197, %v1195
    %1200 = vrot.lane.b32.xlu0 %v1199, 96
    %v1201 = vpop.permute.xlu0 %1200
    %vm1202 = vcmask 130048
    %s1203 = scalar_lea.vmem %s1, 450
    %1204 = vst.msk [vmem:[%s1203] ss:$8 sm:$0x7] %vm1202, %v1201
    %s1205 = scalar_lea.vmem %s1, 930
    %1206 = vst.msk [vmem:[%s1205] ss:$8 sm:$0x78] %vm1202, %v1201
    %s1207 = scalar_lea.vmem %s1, 467
    %1208 = vst.msk [vmem:[%s1207] sm:$0x80] %vm1202, %v1201
    %s1209 = scalar_lea.vmem [#allocation0], 480
    %v1210 = vld [vmem:[%s1209] ss:$8 sm:$0x7]
    %s1211 = scalar_lea.vmem [#allocation0], 457
    %v1212 = vld [vmem:[%s1211] ss:$8 sm:$0x38]
    %vm1213 = vcmask 1045507
    %v1214 = vsel %vm1213, %v1212, %v1210
    %1215 = vrot.lane.b32.xlu0 %v1214, 96
    %v1216 = vpop.permute.xlu0 %1215
    %vm1217 = vcmask 130048
    %s1218 = scalar_lea.vmem %s1, 482
    %1219 = vst.msk [vmem:[%s1218] ss:$8 sm:$0x7] %vm1217, %v1216
    %s1220 = scalar_lea.vmem %s1, 962
    %1221 = vst.msk [vmem:[%s1220] ss:$8 sm:$0x38] %vm1217, %v1216
    %v1222 = vld [vmem:[#allocation0] ss:$8 sm:$0x7]
    %s1223 = scalar_lea.vmem [#allocation0], 4294967273
    %v1224 = vld [vmem:[%s1223] ss:$8 sm:$0x78]
    %vm1225 = vcmask 1046531
    %v1226 = vsel %vm1225, %v1224, %v1222
    %s1227 = scalar_lea.vmem [#allocation0], 17
    %v1228 = vld [vmem:[%s1227] sm:$0x80]
    %vm1229 = vcmask 1047559
    %v1230 = vsel %vm1229, %v1228, %v1226
    %1231 = vrot.lane.b32.xlu0 %v1230, 80
    %v1232 = vpop.permute.xlu0 %1231
    %vm1233 = vcmask 130048
    %s1234 = scalar_lea.vmem %s1, 3
    %1235 = vst.msk [vmem:[%s1234] ss:$8 sm:$0x7] %vm1233, %v1232
    %s1236 = scalar_lea.vmem %s1, 483
    %1237 = vst.msk [vmem:[%s1236] ss:$8 sm:$0x78] %vm1233, %v1232
    %s1238 = scalar_lea.vmem %s1, 20
    %1239 = vst.msk [vmem:[%s1238] sm:$0x80] %vm1233, %v1232
    %s1240 = scalar_lea.vmem [#allocation0], 32
    %v1241 = vld [vmem:[%s1240] ss:$8 sm:$0x7]
    %s1242 = scalar_lea.vmem [#allocation0], 9
    %v1243 = vld [vmem:[%s1242] ss:$8 sm:$0x78]
    %vm1244 = vcmask 1046531
    %v1245 = vsel %vm1244, %v1243, %v1241
    %s1246 = scalar_lea.vmem [#allocation0], 49
    %v1247 = vld [vmem:[%s1246] sm:$0x80]
    %vm1248 = vcmask 1047559
    %v1249 = vsel %vm1248, %v1247, %v1245
    %1250 = vrot.lane.b32.xlu0 %v1249, 80
    %v1251 = vpop.permute.xlu0 %1250
    %vm1252 = vcmask 130048
    %s1253 = scalar_lea.vmem %s1, 35
    %1254 = vst.msk [vmem:[%s1253] ss:$8 sm:$0x7] %vm1252, %v1251
    %s1255 = scalar_lea.vmem %s1, 515
    %1256 = vst.msk [vmem:[%s1255] ss:$8 sm:$0x78] %vm1252, %v1251
    %s1257 = scalar_lea.vmem %s1, 52
    %1258 = vst.msk [vmem:[%s1257] sm:$0x80] %vm1252, %v1251
    %s1259 = scalar_lea.vmem [#allocation0], 64
    %v1260 = vld [vmem:[%s1259] ss:$8 sm:$0x7]
    %s1261 = scalar_lea.vmem [#allocation0], 41
    %v1262 = vld [vmem:[%s1261] ss:$8 sm:$0x78]
    %vm1263 = vcmask 1046531
    %v1264 = vsel %vm1263, %v1262, %v1260
    %s1265 = scalar_lea.vmem [#allocation0], 81
    %v1266 = vld [vmem:[%s1265] sm:$0x80]
    %vm1267 = vcmask 1047559
    %v1268 = vsel %vm1267, %v1266, %v1264
    %1269 = vrot.lane.b32.xlu0 %v1268, 80
    %v1270 = vpop.permute.xlu0 %1269
    %vm1271 = vcmask 130048
    %s1272 = scalar_lea.vmem %s1, 67
    %1273 = vst.msk [vmem:[%s1272] ss:$8 sm:$0x7] %vm1271, %v1270
    %s1274 = scalar_lea.vmem %s1, 547
    %1275 = vst.msk [vmem:[%s1274] ss:$8 sm:$0x78] %vm1271, %v1270
    %s1276 = scalar_lea.vmem %s1, 84
    %1277 = vst.msk [vmem:[%s1276] sm:$0x80] %vm1271, %v1270
    %s1278 = scalar_lea.vmem [#allocation0], 96
    %v1279 = vld [vmem:[%s1278] ss:$8 sm:$0x7]
    %s1280 = scalar_lea.vmem [#allocation0], 73
    %v1281 = vld [vmem:[%s1280] ss:$8 sm:$0x78]
    %vm1282 = vcmask 1046531
    %v1283 = vsel %vm1282, %v1281, %v1279
    %s1284 = scalar_lea.vmem [#allocation0], 113
    %v1285 = vld [vmem:[%s1284] sm:$0x80]
    %vm1286 = vcmask 1047559
    %v1287 = vsel %vm1286, %v1285, %v1283
    %1288 = vrot.lane.b32.xlu0 %v1287, 80
    %v1289 = vpop.permute.xlu0 %1288
    %vm1290 = vcmask 130048
    %s1291 = scalar_lea.vmem %s1, 99
    %1292 = vst.msk [vmem:[%s1291] ss:$8 sm:$0x7] %vm1290, %v1289
    %s1293 = scalar_lea.vmem %s1, 579
    %1294 = vst.msk [vmem:[%s1293] ss:$8 sm:$0x78] %vm1290, %v1289
    %s1295 = scalar_lea.vmem %s1, 116
    %1296 = vst.msk [vmem:[%s1295] sm:$0x80] %vm1290, %v1289
    %s1297 = scalar_lea.vmem [#allocation0], 128
    %v1298 = vld [vmem:[%s1297] ss:$8 sm:$0x7]
    %s1299 = scalar_lea.vmem [#allocation0], 105
    %v1300 = vld [vmem:[%s1299] ss:$8 sm:$0x78]
    %vm1301 = vcmask 1046531
    %v1302 = vsel %vm1301, %v1300, %v1298
    %s1303 = scalar_lea.vmem [#allocation0], 145
    %v1304 = vld [vmem:[%s1303] sm:$0x80]
    %vm1305 = vcmask 1047559
    %v1306 = vsel %vm1305, %v1304, %v1302
    %1307 = vrot.lane.b32.xlu0 %v1306, 80
    %v1308 = vpop.permute.xlu0 %1307
    %vm1309 = vcmask 130048
    %s1310 = scalar_lea.vmem %s1, 131
    %1311 = vst.msk [vmem:[%s1310] ss:$8 sm:$0x7] %vm1309, %v1308
    %s1312 = scalar_lea.vmem %s1, 611
    %1313 = vst.msk [vmem:[%s1312] ss:$8 sm:$0x78] %vm1309, %v1308
    %s1314 = scalar_lea.vmem %s1, 148
    %1315 = vst.msk [vmem:[%s1314] sm:$0x80] %vm1309, %v1308
    %s1316 = scalar_lea.vmem [#allocation0], 160
    %v1317 = vld [vmem:[%s1316] ss:$8 sm:$0x7]
    %s1318 = scalar_lea.vmem [#allocation0], 137
    %v1319 = vld [vmem:[%s1318] ss:$8 sm:$0x78]
    %vm1320 = vcmask 1046531
    %v1321 = vsel %vm1320, %v1319, %v1317
    %s1322 = scalar_lea.vmem [#allocation0], 177
    %v1323 = vld [vmem:[%s1322] sm:$0x80]
    %vm1324 = vcmask 1047559
    %v1325 = vsel %vm1324, %v1323, %v1321
    %1326 = vrot.lane.b32.xlu0 %v1325, 80
    %v1327 = vpop.permute.xlu0 %1326
    %vm1328 = vcmask 130048
    %s1329 = scalar_lea.vmem %s1, 163
    %1330 = vst.msk [vmem:[%s1329] ss:$8 sm:$0x7] %vm1328, %v1327
    %s1331 = scalar_lea.vmem %s1, 643
    %1332 = vst.msk [vmem:[%s1331] ss:$8 sm:$0x78] %vm1328, %v1327
    %s1333 = scalar_lea.vmem %s1, 180
    %1334 = vst.msk [vmem:[%s1333] sm:$0x80] %vm1328, %v1327
    %s1335 = scalar_lea.vmem [#allocation0], 192
    %v1336 = vld [vmem:[%s1335] ss:$8 sm:$0x7]
    %s1337 = scalar_lea.vmem [#allocation0], 169
    %v1338 = vld [vmem:[%s1337] ss:$8 sm:$0x78]
    %vm1339 = vcmask 1046531
    %v1340 = vsel %vm1339, %v1338, %v1336
    %s1341 = scalar_lea.vmem [#allocation0], 209
    %v1342 = vld [vmem:[%s1341] sm:$0x80]
    %vm1343 = vcmask 1047559
    %v1344 = vsel %vm1343, %v1342, %v1340
    %1345 = vrot.lane.b32.xlu0 %v1344, 80
    %v1346 = vpop.permute.xlu0 %1345
    %vm1347 = vcmask 130048
    %s1348 = scalar_lea.vmem %s1, 195
    %1349 = vst.msk [vmem:[%s1348] ss:$8 sm:$0x7] %vm1347, %v1346
    %s1350 = scalar_lea.vmem %s1, 675
    %1351 = vst.msk [vmem:[%s1350] ss:$8 sm:$0x78] %vm1347, %v1346
    %s1352 = scalar_lea.vmem %s1, 212
    %1353 = vst.msk [vmem:[%s1352] sm:$0x80] %vm1347, %v1346
    %s1354 = scalar_lea.vmem [#allocation0], 224
    %v1355 = vld [vmem:[%s1354] ss:$8 sm:$0x7]
    %s1356 = scalar_lea.vmem [#allocation0], 201
    %v1357 = vld [vmem:[%s1356] ss:$8 sm:$0x78]
    %vm1358 = vcmask 1046531
    %v1359 = vsel %vm1358, %v1357, %v1355
    %s1360 = scalar_lea.vmem [#allocation0], 241
    %v1361 = vld [vmem:[%s1360] sm:$0x80]
    %vm1362 = vcmask 1047559
    %v1363 = vsel %vm1362, %v1361, %v1359
    %1364 = vrot.lane.b32.xlu0 %v1363, 80
    %v1365 = vpop.permute.xlu0 %1364
    %vm1366 = vcmask 130048
    %s1367 = scalar_lea.vmem %s1, 227
    %1368 = vst.msk [vmem:[%s1367] ss:$8 sm:$0x7] %vm1366, %v1365
    %s1369 = scalar_lea.vmem %s1, 707
    %1370 = vst.msk [vmem:[%s1369] ss:$8 sm:$0x78] %vm1366, %v1365
    %s1371 = scalar_lea.vmem %s1, 244
    %1372 = vst.msk [vmem:[%s1371] sm:$0x80] %vm1366, %v1365
    %s1373 = scalar_lea.vmem [#allocation0], 256
    %v1374 = vld [vmem:[%s1373] ss:$8 sm:$0x7]
    %s1375 = scalar_lea.vmem [#allocation0], 233
    %v1376 = vld [vmem:[%s1375] ss:$8 sm:$0x78]
    %vm1377 = vcmask 1046531
    %v1378 = vsel %vm1377, %v1376, %v1374
    %s1379 = scalar_lea.vmem [#allocation0], 273
    %v1380 = vld [vmem:[%s1379] sm:$0x80]
    %vm1381 = vcmask 1047559
    %v1382 = vsel %vm1381, %v1380, %v1378
    %1383 = vrot.lane.b32.xlu0 %v1382, 80
    %v1384 = vpop.permute.xlu0 %1383
    %vm1385 = vcmask 130048
    %s1386 = scalar_lea.vmem %s1, 259
    %1387 = vst.msk [vmem:[%s1386] ss:$8 sm:$0x7] %vm1385, %v1384
    %s1388 = scalar_lea.vmem %s1, 739
    %1389 = vst.msk [vmem:[%s1388] ss:$8 sm:$0x78] %vm1385, %v1384
    %s1390 = scalar_lea.vmem %s1, 276
    %1391 = vst.msk [vmem:[%s1390] sm:$0x80] %vm1385, %v1384
    %s1392 = scalar_lea.vmem [#allocation0], 288
    %v1393 = vld [vmem:[%s1392] ss:$8 sm:$0x7]
    %s1394 = scalar_lea.vmem [#allocation0], 265
    %v1395 = vld [vmem:[%s1394] ss:$8 sm:$0x78]
    %vm1396 = vcmask 1046531
    %v1397 = vsel %vm1396, %v1395, %v1393
    %s1398 = scalar_lea.vmem [#allocation0], 305
    %v1399 = vld [vmem:[%s1398] sm:$0x80]
    %vm1400 = vcmask 1047559
    %v1401 = vsel %vm1400, %v1399, %v1397
    %1402 = vrot.lane.b32.xlu0 %v1401, 80
    %v1403 = vpop.permute.xlu0 %1402
    %vm1404 = vcmask 130048
    %s1405 = scalar_lea.vmem %s1, 291
    %1406 = vst.msk [vmem:[%s1405] ss:$8 sm:$0x7] %vm1404, %v1403
    %s1407 = scalar_lea.vmem %s1, 771
    %1408 = vst.msk [vmem:[%s1407] ss:$8 sm:$0x78] %vm1404, %v1403
    %s1409 = scalar_lea.vmem %s1, 308
    %1410 = vst.msk [vmem:[%s1409] sm:$0x80] %vm1404, %v1403
    %s1411 = scalar_lea.vmem [#allocation0], 320
    %v1412 = vld [vmem:[%s1411] ss:$8 sm:$0x7]
    %s1413 = scalar_lea.vmem [#allocation0], 297
    %v1414 = vld [vmem:[%s1413] ss:$8 sm:$0x78]
    %vm1415 = vcmask 1046531
    %v1416 = vsel %vm1415, %v1414, %v1412
    %s1417 = scalar_lea.vmem [#allocation0], 337
    %v1418 = vld [vmem:[%s1417] sm:$0x80]
    %vm1419 = vcmask 1047559
    %v1420 = vsel %vm1419, %v1418, %v1416
    %1421 = vrot.lane.b32.xlu0 %v1420, 80
    %v1422 = vpop.permute.xlu0 %1421
    %vm1423 = vcmask 130048
    %s1424 = scalar_lea.vmem %s1, 323
    %1425 = vst.msk [vmem:[%s1424] ss:$8 sm:$0x7] %vm1423, %v1422
    %s1426 = scalar_lea.vmem %s1, 803
    %1427 = vst.msk [vmem:[%s1426] ss:$8 sm:$0x78] %vm1423, %v1422
    %s1428 = scalar_lea.vmem %s1, 340
    %1429 = vst.msk [vmem:[%s1428] sm:$0x80] %vm1423, %v1422
    %s1430 = scalar_lea.vmem [#allocation0], 352
    %v1431 = vld [vmem:[%s1430] ss:$8 sm:$0x7]
    %s1432 = scalar_lea.vmem [#allocation0], 329
    %v1433 = vld [vmem:[%s1432] ss:$8 sm:$0x78]
    %vm1434 = vcmask 1046531
    %v1435 = vsel %vm1434, %v1433, %v1431
    %s1436 = scalar_lea.vmem [#allocation0], 369
    %v1437 = vld [vmem:[%s1436] sm:$0x80]
    %vm1438 = vcmask 1047559
    %v1439 = vsel %vm1438, %v1437, %v1435
    %1440 = vrot.lane.b32.xlu0 %v1439, 80
    %v1441 = vpop.permute.xlu0 %1440
    %vm1442 = vcmask 130048
    %s1443 = scalar_lea.vmem %s1, 355
    %1444 = vst.msk [vmem:[%s1443] ss:$8 sm:$0x7] %vm1442, %v1441
    %s1445 = scalar_lea.vmem %s1, 835
    %1446 = vst.msk [vmem:[%s1445] ss:$8 sm:$0x78] %vm1442, %v1441
    %s1447 = scalar_lea.vmem %s1, 372
    %1448 = vst.msk [vmem:[%s1447] sm:$0x80] %vm1442, %v1441
    %s1449 = scalar_lea.vmem [#allocation0], 384
    %v1450 = vld [vmem:[%s1449] ss:$8 sm:$0x7]
    %s1451 = scalar_lea.vmem [#allocation0], 361
    %v1452 = vld [vmem:[%s1451] ss:$8 sm:$0x78]
    %vm1453 = vcmask 1046531
    %v1454 = vsel %vm1453, %v1452, %v1450
    %s1455 = scalar_lea.vmem [#allocation0], 401
    %v1456 = vld [vmem:[%s1455] sm:$0x80]
    %vm1457 = vcmask 1047559
    %v1458 = vsel %vm1457, %v1456, %v1454
    %1459 = vrot.lane.b32.xlu0 %v1458, 80
    %v1460 = vpop.permute.xlu0 %1459
    %vm1461 = vcmask 130048
    %s1462 = scalar_lea.vmem %s1, 387
    %1463 = vst.msk [vmem:[%s1462] ss:$8 sm:$0x7] %vm1461, %v1460
    %s1464 = scalar_lea.vmem %s1, 867
    %1465 = vst.msk [vmem:[%s1464] ss:$8 sm:$0x78] %vm1461, %v1460
    %s1466 = scalar_lea.vmem %s1, 404
    %1467 = vst.msk [vmem:[%s1466] sm:$0x80] %vm1461, %v1460
    %s1468 = scalar_lea.vmem [#allocation0], 416
    %v1469 = vld [vmem:[%s1468] ss:$8 sm:$0x7]
    %s1470 = scalar_lea.vmem [#allocation0], 393
    %v1471 = vld [vmem:[%s1470] ss:$8 sm:$0x78]
    %vm1472 = vcmask 1046531
    %v1473 = vsel %vm1472, %v1471, %v1469
    %s1474 = scalar_lea.vmem [#allocation0], 433
    %v1475 = vld [vmem:[%s1474] sm:$0x80]
    %vm1476 = vcmask 1047559
    %v1477 = vsel %vm1476, %v1475, %v1473
    %1478 = vrot.lane.b32.xlu0 %v1477, 80
    %v1479 = vpop.permute.xlu0 %1478
    %vm1480 = vcmask 130048
    %s1481 = scalar_lea.vmem %s1, 419
    %1482 = vst.msk [vmem:[%s1481] ss:$8 sm:$0x7] %vm1480, %v1479
    %s1483 = scalar_lea.vmem %s1, 899
    %1484 = vst.msk [vmem:[%s1483] ss:$8 sm:$0x78] %vm1480, %v1479
    %s1485 = scalar_lea.vmem %s1, 436
    %1486 = vst.msk [vmem:[%s1485] sm:$0x80] %vm1480, %v1479
    %s1487 = scalar_lea.vmem [#allocation0], 448
    %v1488 = vld [vmem:[%s1487] ss:$8 sm:$0x7]
    %s1489 = scalar_lea.vmem [#allocation0], 425
    %v1490 = vld [vmem:[%s1489] ss:$8 sm:$0x78]
    %vm1491 = vcmask 1046531
    %v1492 = vsel %vm1491, %v1490, %v1488
    %s1493 = scalar_lea.vmem [#allocation0], 465
    %v1494 = vld [vmem:[%s1493] sm:$0x80]
    %vm1495 = vcmask 1047559
    %v1496 = vsel %vm1495, %v1494, %v1492
    %1497 = vrot.lane.b32.xlu0 %v1496, 80
    %v1498 = vpop.permute.xlu0 %1497
    %vm1499 = vcmask 130048
    %s1500 = scalar_lea.vmem %s1, 451
    %1501 = vst.msk [vmem:[%s1500] ss:$8 sm:$0x7] %vm1499, %v1498
    %s1502 = scalar_lea.vmem %s1, 931
    %1503 = vst.msk [vmem:[%s1502] ss:$8 sm:$0x78] %vm1499, %v1498
    %s1504 = scalar_lea.vmem %s1, 468
    %1505 = vst.msk [vmem:[%s1504] sm:$0x80] %vm1499, %v1498
    %s1506 = scalar_lea.vmem [#allocation0], 480
    %v1507 = vld [vmem:[%s1506] ss:$8 sm:$0x7]
    %s1508 = scalar_lea.vmem [#allocation0], 457
    %v1509 = vld [vmem:[%s1508] ss:$8 sm:$0x38]
    %vm1510 = vcmask 1045507
    %v1511 = vsel %vm1510, %v1509, %v1507
    %1512 = vrot.lane.b32.xlu0 %v1511, 80
    %v1513 = vpop.permute.xlu0 %1512
    %vm1514 = vcmask 130048
    %s1515 = scalar_lea.vmem %s1, 483
    %1516 = vst.msk [vmem:[%s1515] ss:$8 sm:$0x7] %vm1514, %v1513
    %s1517 = scalar_lea.vmem %s1, 963
    %1518 = vst.msk [vmem:[%s1517] ss:$8 sm:$0x38] %vm1514, %v1513
    %v1519 = vld [vmem:[#allocation0] ss:$8 sm:$0x7]
    %s1520 = scalar_lea.vmem [#allocation0], 4294967273
    %v1521 = vld [vmem:[%s1520] ss:$8 sm:$0x78]
    %vm1522 = vcmask 1046531
    %v1523 = vsel %vm1522, %v1521, %v1519
    %s1524 = scalar_lea.vmem [#allocation0], 17
    %v1525 = vld [vmem:[%s1524] sm:$0x80]
    %vm1526 = vcmask 1047559
    %v1527 = vsel %vm1526, %v1525, %v1523
    %1528 = vrot.lane.b32.xlu0 %v1527, 64
    %v1529 = vpop.permute.xlu0 %1528
    %vm1530 = vcmask 130048
    %s1531 = scalar_lea.vmem %s1, 4
    %1532 = vst.msk [vmem:[%s1531] ss:$8 sm:$0x7] %vm1530, %v1529
    %s1533 = scalar_lea.vmem %s1, 484
    %1534 = vst.msk [vmem:[%s1533] ss:$8 sm:$0x78] %vm1530, %v1529
    %s1535 = scalar_lea.vmem %s1, 21
    %1536 = vst.msk [vmem:[%s1535] sm:$0x80] %vm1530, %v1529
    %s1537 = scalar_lea.vmem [#allocation0], 32
    %v1538 = vld [vmem:[%s1537] ss:$8 sm:$0x7]
    %s1539 = scalar_lea.vmem [#allocation0], 9
    %v1540 = vld [vmem:[%s1539] ss:$8 sm:$0x78]
    %vm1541 = vcmask 1046531
    %v1542 = vsel %vm1541, %v1540, %v1538
    %s1543 = scalar_lea.vmem [#allocation0], 49
    %v1544 = vld [vmem:[%s1543] sm:$0x80]
    %vm1545 = vcmask 1047559
    %v1546 = vsel %vm1545, %v1544, %v1542
    %1547 = vrot.lane.b32.xlu0 %v1546, 64
    %v1548 = vpop.permute.xlu0 %1547
    %vm1549 = vcmask 130048
    %s1550 = scalar_lea.vmem %s1, 36
    %1551 = vst.msk [vmem:[%s1550] ss:$8 sm:$0x7] %vm1549, %v1548
    %s1552 = scalar_lea.vmem %s1, 516
    %1553 = vst.msk [vmem:[%s1552] ss:$8 sm:$0x78] %vm1549, %v1548
    %s1554 = scalar_lea.vmem %s1, 53
    %1555 = vst.msk [vmem:[%s1554] sm:$0x80] %vm1549, %v1548
    %s1556 = scalar_lea.vmem [#allocation0], 64
    %v1557 = vld [vmem:[%s1556] ss:$8 sm:$0x7]
    %s1558 = scalar_lea.vmem [#allocation0], 41
    %v1559 = vld [vmem:[%s1558] ss:$8 sm:$0x78]
    %vm1560 = vcmask 1046531
    %v1561 = vsel %vm1560, %v1559, %v1557
    %s1562 = scalar_lea.vmem [#allocation0], 81
    %v1563 = vld [vmem:[%s1562] sm:$0x80]
    %vm1564 = vcmask 1047559
    %v1565 = vsel %vm1564, %v1563, %v1561
    %1566 = vrot.lane.b32.xlu0 %v1565, 64
    %v1567 = vpop.permute.xlu0 %1566
    %vm1568 = vcmask 130048
    %s1569 = scalar_lea.vmem %s1, 68
    %1570 = vst.msk [vmem:[%s1569] ss:$8 sm:$0x7] %vm1568, %v1567
    %s1571 = scalar_lea.vmem %s1, 548
    %1572 = vst.msk [vmem:[%s1571] ss:$8 sm:$0x78] %vm1568, %v1567
    %s1573 = scalar_lea.vmem %s1, 85
    %1574 = vst.msk [vmem:[%s1573] sm:$0x80] %vm1568, %v1567
    %s1575 = scalar_lea.vmem [#allocation0], 96
    %v1576 = vld [vmem:[%s1575] ss:$8 sm:$0x7]
    %s1577 = scalar_lea.vmem [#allocation0], 73
    %v1578 = vld [vmem:[%s1577] ss:$8 sm:$0x78]
    %vm1579 = vcmask 1046531
    %v1580 = vsel %vm1579, %v1578, %v1576
    %s1581 = scalar_lea.vmem [#allocation0], 113
    %v1582 = vld [vmem:[%s1581] sm:$0x80]
    %vm1583 = vcmask 1047559
    %v1584 = vsel %vm1583, %v1582, %v1580
    %1585 = vrot.lane.b32.xlu0 %v1584, 64
    %v1586 = vpop.permute.xlu0 %1585
    %vm1587 = vcmask 130048
    %s1588 = scalar_lea.vmem %s1, 100
    %1589 = vst.msk [vmem:[%s1588] ss:$8 sm:$0x7] %vm1587, %v1586
    %s1590 = scalar_lea.vmem %s1, 580
    %1591 = vst.msk [vmem:[%s1590] ss:$8 sm:$0x78] %vm1587, %v1586
    %s1592 = scalar_lea.vmem %s1, 117
    %1593 = vst.msk [vmem:[%s1592] sm:$0x80] %vm1587, %v1586
    %s1594 = scalar_lea.vmem [#allocation0], 128
    %v1595 = vld [vmem:[%s1594] ss:$8 sm:$0x7]
    %s1596 = scalar_lea.vmem [#allocation0], 105
    %v1597 = vld [vmem:[%s1596] ss:$8 sm:$0x78]
    %vm1598 = vcmask 1046531
    %v1599 = vsel %vm1598, %v1597, %v1595
    %s1600 = scalar_lea.vmem [#allocation0], 145
    %v1601 = vld [vmem:[%s1600] sm:$0x80]
    %vm1602 = vcmask 1047559
    %v1603 = vsel %vm1602, %v1601, %v1599
    %1604 = vrot.lane.b32.xlu0 %v1603, 64
    %v1605 = vpop.permute.xlu0 %1604
    %vm1606 = vcmask 130048
    %s1607 = scalar_lea.vmem %s1, 132
    %1608 = vst.msk [vmem:[%s1607] ss:$8 sm:$0x7] %vm1606, %v1605
    %s1609 = scalar_lea.vmem %s1, 612
    %1610 = vst.msk [vmem:[%s1609] ss:$8 sm:$0x78] %vm1606, %v1605
    %s1611 = scalar_lea.vmem %s1, 149
    %1612 = vst.msk [vmem:[%s1611] sm:$0x80] %vm1606, %v1605
    %s1613 = scalar_lea.vmem [#allocation0], 160
    %v1614 = vld [vmem:[%s1613] ss:$8 sm:$0x7]
    %s1615 = scalar_lea.vmem [#allocation0], 137
    %v1616 = vld [vmem:[%s1615] ss:$8 sm:$0x78]
    %vm1617 = vcmask 1046531
    %v1618 = vsel %vm1617, %v1616, %v1614
    %s1619 = scalar_lea.vmem [#allocation0], 177
    %v1620 = vld [vmem:[%s1619] sm:$0x80]
    %vm1621 = vcmask 1047559
    %v1622 = vsel %vm1621, %v1620, %v1618
    %1623 = vrot.lane.b32.xlu0 %v1622, 64
    %v1624 = vpop.permute.xlu0 %1623
    %vm1625 = vcmask 130048
    %s1626 = scalar_lea.vmem %s1, 164
    %1627 = vst.msk [vmem:[%s1626] ss:$8 sm:$0x7] %vm1625, %v1624
    %s1628 = scalar_lea.vmem %s1, 644
    %1629 = vst.msk [vmem:[%s1628] ss:$8 sm:$0x78] %vm1625, %v1624
    %s1630 = scalar_lea.vmem %s1, 181
    %1631 = vst.msk [vmem:[%s1630] sm:$0x80] %vm1625, %v1624
    %s1632 = scalar_lea.vmem [#allocation0], 192
    %v1633 = vld [vmem:[%s1632] ss:$8 sm:$0x7]
    %s1634 = scalar_lea.vmem [#allocation0], 169
    %v1635 = vld [vmem:[%s1634] ss:$8 sm:$0x78]
    %vm1636 = vcmask 1046531
    %v1637 = vsel %vm1636, %v1635, %v1633
    %s1638 = scalar_lea.vmem [#allocation0], 209
    %v1639 = vld [vmem:[%s1638] sm:$0x80]
    %vm1640 = vcmask 1047559
    %v1641 = vsel %vm1640, %v1639, %v1637
    %1642 = vrot.lane.b32.xlu0 %v1641, 64
    %v1643 = vpop.permute.xlu0 %1642
    %vm1644 = vcmask 130048
    %s1645 = scalar_lea.vmem %s1, 196
    %1646 = vst.msk [vmem:[%s1645] ss:$8 sm:$0x7] %vm1644, %v1643
    %s1647 = scalar_lea.vmem %s1, 676
    %1648 = vst.msk [vmem:[%s1647] ss:$8 sm:$0x78] %vm1644, %v1643
    %s1649 = scalar_lea.vmem %s1, 213
    %1650 = vst.msk [vmem:[%s1649] sm:$0x80] %vm1644, %v1643
    %s1651 = scalar_lea.vmem [#allocation0], 224
    %v1652 = vld [vmem:[%s1651] ss:$8 sm:$0x7]
    %s1653 = scalar_lea.vmem [#allocation0], 201
    %v1654 = vld [vmem:[%s1653] ss:$8 sm:$0x78]
    %vm1655 = vcmask 1046531
    %v1656 = vsel %vm1655, %v1654, %v1652
    %s1657 = scalar_lea.vmem [#allocation0], 241
    %v1658 = vld [vmem:[%s1657] sm:$0x80]
    %vm1659 = vcmask 1047559
    %v1660 = vsel %vm1659, %v1658, %v1656
    %1661 = vrot.lane.b32.xlu0 %v1660, 64
    %v1662 = vpop.permute.xlu0 %1661
    %vm1663 = vcmask 130048
    %s1664 = scalar_lea.vmem %s1, 228
    %1665 = vst.msk [vmem:[%s1664] ss:$8 sm:$0x7] %vm1663, %v1662
    %s1666 = scalar_lea.vmem %s1, 708
    %1667 = vst.msk [vmem:[%s1666] ss:$8 sm:$0x78] %vm1663, %v1662
    %s1668 = scalar_lea.vmem %s1, 245
    %1669 = vst.msk [vmem:[%s1668] sm:$0x80] %vm1663, %v1662
    %s1670 = scalar_lea.vmem [#allocation0], 256
    %v1671 = vld [vmem:[%s1670] ss:$8 sm:$0x7]
    %s1672 = scalar_lea.vmem [#allocation0], 233
    %v1673 = vld [vmem:[%s1672] ss:$8 sm:$0x78]
    %vm1674 = vcmask 1046531
    %v1675 = vsel %vm1674, %v1673, %v1671
    %s1676 = scalar_lea.vmem [#allocation0], 273
    %v1677 = vld [vmem:[%s1676] sm:$0x80]
    %vm1678 = vcmask 1047559
    %v1679 = vsel %vm1678, %v1677, %v1675
    %1680 = vrot.lane.b32.xlu0 %v1679, 64
    %v1681 = vpop.permute.xlu0 %1680
    %vm1682 = vcmask 130048
    %s1683 = scalar_lea.vmem %s1, 260
    %1684 = vst.msk [vmem:[%s1683] ss:$8 sm:$0x7] %vm1682, %v1681
    %s1685 = scalar_lea.vmem %s1, 740
    %1686 = vst.msk [vmem:[%s1685] ss:$8 sm:$0x78] %vm1682, %v1681
    %s1687 = scalar_lea.vmem %s1, 277
    %1688 = vst.msk [vmem:[%s1687] sm:$0x80] %vm1682, %v1681
    %s1689 = scalar_lea.vmem [#allocation0], 288
    %v1690 = vld [vmem:[%s1689] ss:$8 sm:$0x7]
    %s1691 = scalar_lea.vmem [#allocation0], 265
    %v1692 = vld [vmem:[%s1691] ss:$8 sm:$0x78]
    %vm1693 = vcmask 1046531
    %v1694 = vsel %vm1693, %v1692, %v1690
    %s1695 = scalar_lea.vmem [#allocation0], 305
    %v1696 = vld [vmem:[%s1695] sm:$0x80]
    %vm1697 = vcmask 1047559
    %v1698 = vsel %vm1697, %v1696, %v1694
    %1699 = vrot.lane.b32.xlu0 %v1698, 64
    %v1700 = vpop.permute.xlu0 %1699
    %vm1701 = vcmask 130048
    %s1702 = scalar_lea.vmem %s1, 292
    %1703 = vst.msk [vmem:[%s1702] ss:$8 sm:$0x7] %vm1701, %v1700
    %s1704 = scalar_lea.vmem %s1, 772
    %1705 = vst.msk [vmem:[%s1704] ss:$8 sm:$0x78] %vm1701, %v1700
    %s1706 = scalar_lea.vmem %s1, 309
    %1707 = vst.msk [vmem:[%s1706] sm:$0x80] %vm1701, %v1700
    %s1708 = scalar_lea.vmem [#allocation0], 320
    %v1709 = vld [vmem:[%s1708] ss:$8 sm:$0x7]
    %s1710 = scalar_lea.vmem [#allocation0], 297
    %v1711 = vld [vmem:[%s1710] ss:$8 sm:$0x78]
    %vm1712 = vcmask 1046531
    %v1713 = vsel %vm1712, %v1711, %v1709
    %s1714 = scalar_lea.vmem [#allocation0], 337
    %v1715 = vld [vmem:[%s1714] sm:$0x80]
    %vm1716 = vcmask 1047559
    %v1717 = vsel %vm1716, %v1715, %v1713
    %1718 = vrot.lane.b32.xlu0 %v1717, 64
    %v1719 = vpop.permute.xlu0 %1718
    %vm1720 = vcmask 130048
    %s1721 = scalar_lea.vmem %s1, 324
    %1722 = vst.msk [vmem:[%s1721] ss:$8 sm:$0x7] %vm1720, %v1719
    %s1723 = scalar_lea.vmem %s1, 804
    %1724 = vst.msk [vmem:[%s1723] ss:$8 sm:$0x78] %vm1720, %v1719
    %s1725 = scalar_lea.vmem %s1, 341
    %1726 = vst.msk [vmem:[%s1725] sm:$0x80] %vm1720, %v1719
    %s1727 = scalar_lea.vmem [#allocation0], 352
    %v1728 = vld [vmem:[%s1727] ss:$8 sm:$0x7]
    %s1729 = scalar_lea.vmem [#allocation0], 329
    %v1730 = vld [vmem:[%s1729] ss:$8 sm:$0x78]
    %vm1731 = vcmask 1046531
    %v1732 = vsel %vm1731, %v1730, %v1728
    %s1733 = scalar_lea.vmem [#allocation0], 369
    %v1734 = vld [vmem:[%s1733] sm:$0x80]
    %vm1735 = vcmask 1047559
    %v1736 = vsel %vm1735, %v1734, %v1732
    %1737 = vrot.lane.b32.xlu0 %v1736, 64
    %v1738 = vpop.permute.xlu0 %1737
    %vm1739 = vcmask 130048
    %s1740 = scalar_lea.vmem %s1, 356
    %1741 = vst.msk [vmem:[%s1740] ss:$8 sm:$0x7] %vm1739, %v1738
    %s1742 = scalar_lea.vmem %s1, 836
    %1743 = vst.msk [vmem:[%s1742] ss:$8 sm:$0x78] %vm1739, %v1738
    %s1744 = scalar_lea.vmem %s1, 373
    %1745 = vst.msk [vmem:[%s1744] sm:$0x80] %vm1739, %v1738
    %s1746 = scalar_lea.vmem [#allocation0], 384
    %v1747 = vld [vmem:[%s1746] ss:$8 sm:$0x7]
    %s1748 = scalar_lea.vmem [#allocation0], 361
    %v1749 = vld [vmem:[%s1748] ss:$8 sm:$0x78]
    %vm1750 = vcmask 1046531
    %v1751 = vsel %vm1750, %v1749, %v1747
    %s1752 = scalar_lea.vmem [#allocation0], 401
    %v1753 = vld [vmem:[%s1752] sm:$0x80]
    %vm1754 = vcmask 1047559
    %v1755 = vsel %vm1754, %v1753, %v1751
    %1756 = vrot.lane.b32.xlu0 %v1755, 64
    %v1757 = vpop.permute.xlu0 %1756
    %vm1758 = vcmask 130048
    %s1759 = scalar_lea.vmem %s1, 388
    %1760 = vst.msk [vmem:[%s1759] ss:$8 sm:$0x7] %vm1758, %v1757
    %s1761 = scalar_lea.vmem %s1, 868
    %1762 = vst.msk [vmem:[%s1761] ss:$8 sm:$0x78] %vm1758, %v1757
    %s1763 = scalar_lea.vmem %s1, 405
    %1764 = vst.msk [vmem:[%s1763] sm:$0x80] %vm1758, %v1757
    %s1765 = scalar_lea.vmem [#allocation0], 416
    %v1766 = vld [vmem:[%s1765] ss:$8 sm:$0x7]
    %s1767 = scalar_lea.vmem [#allocation0], 393
    %v1768 = vld [vmem:[%s1767] ss:$8 sm:$0x78]
    %vm1769 = vcmask 1046531
    %v1770 = vsel %vm1769, %v1768, %v1766
    %s1771 = scalar_lea.vmem [#allocation0], 433
    %v1772 = vld [vmem:[%s1771] sm:$0x80]
    %vm1773 = vcmask 1047559
    %v1774 = vsel %vm1773, %v1772, %v1770
    %1775 = vrot.lane.b32.xlu0 %v1774, 64
    %v1776 = vpop.permute.xlu0 %1775
    %vm1777 = vcmask 130048
    %s1778 = scalar_lea.vmem %s1, 420
    %1779 = vst.msk [vmem:[%s1778] ss:$8 sm:$0x7] %vm1777, %v1776
    %s1780 = scalar_lea.vmem %s1, 900
    %1781 = vst.msk [vmem:[%s1780] ss:$8 sm:$0x78] %vm1777, %v1776
    %s1782 = scalar_lea.vmem %s1, 437
    %1783 = vst.msk [vmem:[%s1782] sm:$0x80] %vm1777, %v1776
    %s1784 = scalar_lea.vmem [#allocation0], 448
    %v1785 = vld [vmem:[%s1784] ss:$8 sm:$0x7]
    %s1786 = scalar_lea.vmem [#allocation0], 425
    %v1787 = vld [vmem:[%s1786] ss:$8 sm:$0x78]
    %vm1788 = vcmask 1046531
    %v1789 = vsel %vm1788, %v1787, %v1785
    %s1790 = scalar_lea.vmem [#allocation0], 465
    %v1791 = vld [vmem:[%s1790] sm:$0x80]
    %vm1792 = vcmask 1047559
    %v1793 = vsel %vm1792, %v1791, %v1789
    %1794 = vrot.lane.b32.xlu0 %v1793, 64
    %v1795 = vpop.permute.xlu0 %1794
    %vm1796 = vcmask 130048
    %s1797 = scalar_lea.vmem %s1, 452
    %1798 = vst.msk [vmem:[%s1797] ss:$8 sm:$0x7] %vm1796, %v1795
    %s1799 = scalar_lea.vmem %s1, 932
    %1800 = vst.msk [vmem:[%s1799] ss:$8 sm:$0x78] %vm1796, %v1795
    %s1801 = scalar_lea.vmem %s1, 469
    %1802 = vst.msk [vmem:[%s1801] sm:$0x80] %vm1796, %v1795
    %s1803 = scalar_lea.vmem [#allocation0], 480
    %v1804 = vld.sshfl [vmem:[%s1803] sm:$0xff pattern:$0x99999180]
    %1805 = vrot.lane.b32.xlu0 %v1804, 64
    %v1806 = vpop.permute.xlu0 %1805
    %vm1807 = vcmask 130048
    %s1808 = scalar_lea.vmem %s1, 484
    %1809 = vst.msk [vmem:[%s1808] ss:$8 sm:$0x3] %vm1807, %v1806
    %s1810 = scalar_lea.vmem %s1, 972
    %1811 = vst.msk [vmem:[%s1810] ss:$8 sm:$0xc] %vm1807, %v1806
    %v1812 = vld [vmem:[#allocation0] ss:$8 sm:$0x7]
    %s1813 = scalar_lea.vmem [#allocation0], 4294967273
    %v1814 = vld [vmem:[%s1813] ss:$8 sm:$0x78]
    %vm1815 = vcmask 1046531
    %v1816 = vsel %vm1815, %v1814, %v1812
    %s1817 = scalar_lea.vmem [#allocation0], 17
    %v1818 = vld [vmem:[%s1817] sm:$0x80]
    %vm1819 = vcmask 1047559
    %v1820 = vsel %vm1819, %v1818, %v1816
    %1821 = vrot.lane.b32.xlu0 %v1820, 48
    %v1822 = vpop.permute.xlu0 %1821
    %vm1823 = vcmask 130048
    %s1824 = scalar_lea.vmem %s1, 5
    %1825 = vst.msk [vmem:[%s1824] ss:$8 sm:$0x7] %vm1823, %v1822
    %s1826 = scalar_lea.vmem %s1, 485
    %1827 = vst.msk [vmem:[%s1826] ss:$8 sm:$0x78] %vm1823, %v1822
    %s1828 = scalar_lea.vmem %s1, 22
    %1829 = vst.msk [vmem:[%s1828] sm:$0x80] %vm1823, %v1822
    %s1830 = scalar_lea.vmem [#allocation0], 32
    %v1831 = vld [vmem:[%s1830] ss:$8 sm:$0x7]
    %s1832 = scalar_lea.vmem [#allocation0], 9
    %v1833 = vld [vmem:[%s1832] ss:$8 sm:$0x78]
    %vm1834 = vcmask 1046531
    %v1835 = vsel %vm1834, %v1833, %v1831
    %s1836 = scalar_lea.vmem [#allocation0], 49
    %v1837 = vld [vmem:[%s1836] sm:$0x80]
    %vm1838 = vcmask 1047559
    %v1839 = vsel %vm1838, %v1837, %v1835
    %1840 = vrot.lane.b32.xlu0 %v1839, 48
    %v1841 = vpop.permute.xlu0 %1840
    %vm1842 = vcmask 130048
    %s1843 = scalar_lea.vmem %s1, 37
    %1844 = vst.msk [vmem:[%s1843] ss:$8 sm:$0x7] %vm1842, %v1841
    %s1845 = scalar_lea.vmem %s1, 517
    %1846 = vst.msk [vmem:[%s1845] ss:$8 sm:$0x78] %vm1842, %v1841
    %s1847 = scalar_lea.vmem %s1, 54
    %1848 = vst.msk [vmem:[%s1847] sm:$0x80] %vm1842, %v1841
    %s1849 = scalar_lea.vmem [#allocation0], 64
    %v1850 = vld [vmem:[%s1849] ss:$8 sm:$0x7]
    %s1851 = scalar_lea.vmem [#allocation0], 41
    %v1852 = vld [vmem:[%s1851] ss:$8 sm:$0x78]
    %vm1853 = vcmask 1046531
    %v1854 = vsel %vm1853, %v1852, %v1850
    %s1855 = scalar_lea.vmem [#allocation0], 81
    %v1856 = vld [vmem:[%s1855] sm:$0x80]
    %vm1857 = vcmask 1047559
    %v1858 = vsel %vm1857, %v1856, %v1854
    %1859 = vrot.lane.b32.xlu0 %v1858, 48
    %v1860 = vpop.permute.xlu0 %1859
    %vm1861 = vcmask 130048
    %s1862 = scalar_lea.vmem %s1, 69
    %1863 = vst.msk [vmem:[%s1862] ss:$8 sm:$0x7] %vm1861, %v1860
    %s1864 = scalar_lea.vmem %s1, 549
    %1865 = vst.msk [vmem:[%s1864] ss:$8 sm:$0x78] %vm1861, %v1860
    %s1866 = scalar_lea.vmem %s1, 86
    %1867 = vst.msk [vmem:[%s1866] sm:$0x80] %vm1861, %v1860
    %s1868 = scalar_lea.vmem [#allocation0], 96
    %v1869 = vld [vmem:[%s1868] ss:$8 sm:$0x7]
    %s1870 = scalar_lea.vmem [#allocation0], 73
    %v1871 = vld [vmem:[%s1870] ss:$8 sm:$0x78]
    %vm1872 = vcmask 1046531
    %v1873 = vsel %vm1872, %v1871, %v1869
    %s1874 = scalar_lea.vmem [#allocation0], 113
    %v1875 = vld [vmem:[%s1874] sm:$0x80]
    %vm1876 = vcmask 1047559
    %v1877 = vsel %vm1876, %v1875, %v1873
    %1878 = vrot.lane.b32.xlu0 %v1877, 48
    %v1879 = vpop.permute.xlu0 %1878
    %vm1880 = vcmask 130048
    %s1881 = scalar_lea.vmem %s1, 101
    %1882 = vst.msk [vmem:[%s1881] ss:$8 sm:$0x7] %vm1880, %v1879
    %s1883 = scalar_lea.vmem %s1, 581
    %1884 = vst.msk [vmem:[%s1883] ss:$8 sm:$0x78] %vm1880, %v1879
    %s1885 = scalar_lea.vmem %s1, 118
    %1886 = vst.msk [vmem:[%s1885] sm:$0x80] %vm1880, %v1879
    %s1887 = scalar_lea.vmem [#allocation0], 128
    %v1888 = vld [vmem:[%s1887] ss:$8 sm:$0x7]
    %s1889 = scalar_lea.vmem [#allocation0], 105
    %v1890 = vld [vmem:[%s1889] ss:$8 sm:$0x78]
    %vm1891 = vcmask 1046531
    %v1892 = vsel %vm1891, %v1890, %v1888
    %s1893 = scalar_lea.vmem [#allocation0], 145
    %v1894 = vld [vmem:[%s1893] sm:$0x80]
    %vm1895 = vcmask 1047559
    %v1896 = vsel %vm1895, %v1894, %v1892
    %1897 = vrot.lane.b32.xlu0 %v1896, 48
    %v1898 = vpop.permute.xlu0 %1897
    %vm1899 = vcmask 130048
    %s1900 = scalar_lea.vmem %s1, 133
    %1901 = vst.msk [vmem:[%s1900] ss:$8 sm:$0x7] %vm1899, %v1898
    %s1902 = scalar_lea.vmem %s1, 613
    %1903 = vst.msk [vmem:[%s1902] ss:$8 sm:$0x78] %vm1899, %v1898
    %s1904 = scalar_lea.vmem %s1, 150
    %1905 = vst.msk [vmem:[%s1904] sm:$0x80] %vm1899, %v1898
    %s1906 = scalar_lea.vmem [#allocation0], 160
    %v1907 = vld [vmem:[%s1906] ss:$8 sm:$0x7]
    %s1908 = scalar_lea.vmem [#allocation0], 137
    %v1909 = vld [vmem:[%s1908] ss:$8 sm:$0x78]
    %vm1910 = vcmask 1046531
    %v1911 = vsel %vm1910, %v1909, %v1907
    %s1912 = scalar_lea.vmem [#allocation0], 177
    %v1913 = vld [vmem:[%s1912] sm:$0x80]
    %vm1914 = vcmask 1047559
    %v1915 = vsel %vm1914, %v1913, %v1911
    %1916 = vrot.lane.b32.xlu0 %v1915, 48
    %v1917 = vpop.permute.xlu0 %1916
    %vm1918 = vcmask 130048
    %s1919 = scalar_lea.vmem %s1, 165
    %1920 = vst.msk [vmem:[%s1919] ss:$8 sm:$0x7] %vm1918, %v1917
    %s1921 = scalar_lea.vmem %s1, 645
    %1922 = vst.msk [vmem:[%s1921] ss:$8 sm:$0x78] %vm1918, %v1917
    %s1923 = scalar_lea.vmem %s1, 182
    %1924 = vst.msk [vmem:[%s1923] sm:$0x80] %vm1918, %v1917
    %s1925 = scalar_lea.vmem [#allocation0], 192
    %v1926 = vld [vmem:[%s1925] ss:$8 sm:$0x7]
    %s1927 = scalar_lea.vmem [#allocation0], 169
    %v1928 = vld [vmem:[%s1927] ss:$8 sm:$0x78]
    %vm1929 = vcmask 1046531
    %v1930 = vsel %vm1929, %v1928, %v1926
    %s1931 = scalar_lea.vmem [#allocation0], 209
    %v1932 = vld [vmem:[%s1931] sm:$0x80]
    %vm1933 = vcmask 1047559
    %v1934 = vsel %vm1933, %v1932, %v1930
    %1935 = vrot.lane.b32.xlu0 %v1934, 48
    %v1936 = vpop.permute.xlu0 %1935
    %vm1937 = vcmask 130048
    %s1938 = scalar_lea.vmem %s1, 197
    %1939 = vst.msk [vmem:[%s1938] ss:$8 sm:$0x7] %vm1937, %v1936
    %s1940 = scalar_lea.vmem %s1, 677
    %1941 = vst.msk [vmem:[%s1940] ss:$8 sm:$0x78] %vm1937, %v1936
    %s1942 = scalar_lea.vmem %s1, 214
    %1943 = vst.msk [vmem:[%s1942] sm:$0x80] %vm1937, %v1936
    %s1944 = scalar_lea.vmem [#allocation0], 224
    %v1945 = vld [vmem:[%s1944] ss:$8 sm:$0x7]
    %s1946 = scalar_lea.vmem [#allocation0], 201
    %v1947 = vld [vmem:[%s1946] ss:$8 sm:$0x78]
    %vm1948 = vcmask 1046531
    %v1949 = vsel %vm1948, %v1947, %v1945
    %s1950 = scalar_lea.vmem [#allocation0], 241
    %v1951 = vld [vmem:[%s1950] sm:$0x80]
    %vm1952 = vcmask 1047559
    %v1953 = vsel %vm1952, %v1951, %v1949
    %1954 = vrot.lane.b32.xlu0 %v1953, 48
    %v1955 = vpop.permute.xlu0 %1954
    %vm1956 = vcmask 130048
    %s1957 = scalar_lea.vmem %s1, 229
    %1958 = vst.msk [vmem:[%s1957] ss:$8 sm:$0x7] %vm1956, %v1955
    %s1959 = scalar_lea.vmem %s1, 709
    %1960 = vst.msk [vmem:[%s1959] ss:$8 sm:$0x78] %vm1956, %v1955
    %s1961 = scalar_lea.vmem %s1, 246
    %1962 = vst.msk [vmem:[%s1961] sm:$0x80] %vm1956, %v1955
    %s1963 = scalar_lea.vmem [#allocation0], 256
    %v1964 = vld [vmem:[%s1963] ss:$8 sm:$0x7]
    %s1965 = scalar_lea.vmem [#allocation0], 233
    %v1966 = vld [vmem:[%s1965] ss:$8 sm:$0x78]
    %vm1967 = vcmask 1046531
    %v1968 = vsel %vm1967, %v1966, %v1964
    %s1969 = scalar_lea.vmem [#allocation0], 273
    %v1970 = vld [vmem:[%s1969] sm:$0x80]
    %vm1971 = vcmask 1047559
    %v1972 = vsel %vm1971, %v1970, %v1968
    %1973 = vrot.lane.b32.xlu0 %v1972, 48
    %v1974 = vpop.permute.xlu0 %1973
    %vm1975 = vcmask 130048
    %s1976 = scalar_lea.vmem %s1, 261
    %1977 = vst.msk [vmem:[%s1976] ss:$8 sm:$0x7] %vm1975, %v1974
    %s1978 = scalar_lea.vmem %s1, 741
    %1979 = vst.msk [vmem:[%s1978] ss:$8 sm:$0x78] %vm1975, %v1974
    %s1980 = scalar_lea.vmem %s1, 278
    %1981 = vst.msk [vmem:[%s1980] sm:$0x80] %vm1975, %v1974
    %s1982 = scalar_lea.vmem [#allocation0], 288
    %v1983 = vld [vmem:[%s1982] ss:$8 sm:$0x7]
    %s1984 = scalar_lea.vmem [#allocation0], 265
    %v1985 = vld [vmem:[%s1984] ss:$8 sm:$0x78]
    %vm1986 = vcmask 1046531
    %v1987 = vsel %vm1986, %v1985, %v1983
    %s1988 = scalar_lea.vmem [#allocation0], 305
    %v1989 = vld [vmem:[%s1988] sm:$0x80]
    %vm1990 = vcmask 1047559
    %v1991 = vsel %vm1990, %v1989, %v1987
    %1992 = vrot.lane.b32.xlu0 %v1991, 48
    %v1993 = vpop.permute.xlu0 %1992
    %vm1994 = vcmask 130048
    %s1995 = scalar_lea.vmem %s1, 293
    %1996 = vst.msk [vmem:[%s1995] ss:$8 sm:$0x7] %vm1994, %v1993
    %s1997 = scalar_lea.vmem %s1, 773
    %1998 = vst.msk [vmem:[%s1997] ss:$8 sm:$0x78] %vm1994, %v1993
    %s1999 = scalar_lea.vmem %s1, 310
    %2000 = vst.msk [vmem:[%s1999] sm:$0x80] %vm1994, %v1993
    %s2001 = scalar_lea.vmem [#allocation0], 320
    %v2002 = vld [vmem:[%s2001] ss:$8 sm:$0x7]
    %s2003 = scalar_lea.vmem [#allocation0], 297
    %v2004 = vld [vmem:[%s2003] ss:$8 sm:$0x78]
    %vm2005 = vcmask 1046531
    %v2006 = vsel %vm2005, %v2004, %v2002
    %s2007 = scalar_lea.vmem [#allocation0], 337
    %v2008 = vld [vmem:[%s2007] sm:$0x80]
    %vm2009 = vcmask 1047559
    %v2010 = vsel %vm2009, %v2008, %v2006
    %2011 = vrot.lane.b32.xlu0 %v2010, 48
    %v2012 = vpop.permute.xlu0 %2011
    %vm2013 = vcmask 130048
    %s2014 = scalar_lea.vmem %s1, 325
    %2015 = vst.msk [vmem:[%s2014] ss:$8 sm:$0x7] %vm2013, %v2012
    %s2016 = scalar_lea.vmem %s1, 805
    %2017 = vst.msk [vmem:[%s2016] ss:$8 sm:$0x78] %vm2013, %v2012
    %s2018 = scalar_lea.vmem %s1, 342
    %2019 = vst.msk [vmem:[%s2018] sm:$0x80] %vm2013, %v2012
    %s2020 = scalar_lea.vmem [#allocation0], 352
    %v2021 = vld [vmem:[%s2020] ss:$8 sm:$0x7]
    %s2022 = scalar_lea.vmem [#allocation0], 329
    %v2023 = vld [vmem:[%s2022] ss:$8 sm:$0x78]
    %vm2024 = vcmask 1046531
    %v2025 = vsel %vm2024, %v2023, %v2021
    %s2026 = scalar_lea.vmem [#allocation0], 369
    %v2027 = vld [vmem:[%s2026] sm:$0x80]
    %vm2028 = vcmask 1047559
    %v2029 = vsel %vm2028, %v2027, %v2025
    %2030 = vrot.lane.b32.xlu0 %v2029, 48
    %v2031 = vpop.permute.xlu0 %2030
    %vm2032 = vcmask 130048
    %s2033 = scalar_lea.vmem %s1, 357
    %2034 = vst.msk [vmem:[%s2033] ss:$8 sm:$0x7] %vm2032, %v2031
    %s2035 = scalar_lea.vmem %s1, 837
    %2036 = vst.msk [vmem:[%s2035] ss:$8 sm:$0x78] %vm2032, %v2031
    %s2037 = scalar_lea.vmem %s1, 374
    %2038 = vst.msk [vmem:[%s2037] sm:$0x80] %vm2032, %v2031
    %s2039 = scalar_lea.vmem [#allocation0], 384
    %v2040 = vld [vmem:[%s2039] ss:$8 sm:$0x7]
    %s2041 = scalar_lea.vmem [#allocation0], 361
    %v2042 = vld [vmem:[%s2041] ss:$8 sm:$0x78]
    %vm2043 = vcmask 1046531
    %v2044 = vsel %vm2043, %v2042, %v2040
    %s2045 = scalar_lea.vmem [#allocation0], 401
    %v2046 = vld [vmem:[%s2045] sm:$0x80]
    %vm2047 = vcmask 1047559
    %v2048 = vsel %vm2047, %v2046, %v2044
    %2049 = vrot.lane.b32.xlu0 %v2048, 48
    %v2050 = vpop.permute.xlu0 %2049
    %vm2051 = vcmask 130048
    %s2052 = scalar_lea.vmem %s1, 389
    %2053 = vst.msk [vmem:[%s2052] ss:$8 sm:$0x7] %vm2051, %v2050
    %s2054 = scalar_lea.vmem %s1, 869
    %2055 = vst.msk [vmem:[%s2054] ss:$8 sm:$0x78] %vm2051, %v2050
    %s2056 = scalar_lea.vmem %s1, 406
    %2057 = vst.msk [vmem:[%s2056] sm:$0x80] %vm2051, %v2050
    %s2058 = scalar_lea.vmem [#allocation0], 416
    %v2059 = vld [vmem:[%s2058] ss:$8 sm:$0x7]
    %s2060 = scalar_lea.vmem [#allocation0], 393
    %v2061 = vld [vmem:[%s2060] ss:$8 sm:$0x78]
    %vm2062 = vcmask 1046531
    %v2063 = vsel %vm2062, %v2061, %v2059
    %s2064 = scalar_lea.vmem [#allocation0], 433
    %v2065 = vld [vmem:[%s2064] sm:$0x80]
    %vm2066 = vcmask 1047559
    %v2067 = vsel %vm2066, %v2065, %v2063
    %2068 = vrot.lane.b32.xlu0 %v2067, 48
    %v2069 = vpop.permute.xlu0 %2068
    %vm2070 = vcmask 130048
    %s2071 = scalar_lea.vmem %s1, 421
    %2072 = vst.msk [vmem:[%s2071] ss:$8 sm:$0x7] %vm2070, %v2069
    %s2073 = scalar_lea.vmem %s1, 901
    %2074 = vst.msk [vmem:[%s2073] ss:$8 sm:$0x78] %vm2070, %v2069
    %s2075 = scalar_lea.vmem %s1, 438
    %2076 = vst.msk [vmem:[%s2075] sm:$0x80] %vm2070, %v2069
    %s2077 = scalar_lea.vmem [#allocation0], 448
    %v2078 = vld [vmem:[%s2077] ss:$8 sm:$0x7]
    %s2079 = scalar_lea.vmem [#allocation0], 425
    %v2080 = vld [vmem:[%s2079] ss:$8 sm:$0x78]
    %vm2081 = vcmask 1046531
    %v2082 = vsel %vm2081, %v2080, %v2078
    %s2083 = scalar_lea.vmem [#allocation0], 465
    %v2084 = vld [vmem:[%s2083] sm:$0x80]
    %vm2085 = vcmask 1047559
    %v2086 = vsel %vm2085, %v2084, %v2082
    %2087 = vrot.lane.b32.xlu0 %v2086, 48
    %v2088 = vpop.permute.xlu0 %2087
    %vm2089 = vcmask 130048
    %s2090 = scalar_lea.vmem %s1, 453
    %2091 = vst.msk [vmem:[%s2090] ss:$8 sm:$0x7] %vm2089, %v2088
    %s2092 = scalar_lea.vmem %s1, 933
    %2093 = vst.msk [vmem:[%s2092] ss:$8 sm:$0x78] %vm2089, %v2088
    %s2094 = scalar_lea.vmem %s1, 470
    %2095 = vst.msk [vmem:[%s2094] sm:$0x80] %vm2089, %v2088
    %s2096 = scalar_lea.vmem [#allocation0], 480
    %v2097 = vld.sshfl [vmem:[%s2096] sm:$0xff pattern:$0x99999180]
    %2098 = vrot.lane.b32.xlu0 %v2097, 48
    %v2099 = vpop.permute.xlu0 %2098
    %vm2100 = vcmask 130048
    %s2101 = scalar_lea.vmem %s1, 485
    %2102 = vst.msk [vmem:[%s2101] ss:$8 sm:$0x3] %vm2100, %v2099
    %s2103 = scalar_lea.vmem %s1, 973
    %2104 = vst.msk [vmem:[%s2103] ss:$8 sm:$0xc] %vm2100, %v2099
    %v2105 = vld [vmem:[#allocation0] ss:$8 sm:$0x7]
    %s2106 = scalar_lea.vmem [#allocation0], 4294967273
    %v2107 = vld [vmem:[%s2106] ss:$8 sm:$0x78]
    %vm2108 = vcmask 1046531
    %v2109 = vsel %vm2108, %v2107, %v2105
    %s2110 = scalar_lea.vmem [#allocation0], 17
    %v2111 = vld [vmem:[%s2110] sm:$0x80]
    %vm2112 = vcmask 1047559
    %v2113 = vsel %vm2112, %v2111, %v2109
    %2114 = vrot.lane.b32.xlu0 %v2113, 32
    %v2115 = vpop.permute.xlu0 %2114
    %vm2116 = vcmask 130048
    %s2117 = scalar_lea.vmem %s1, 6
    %2118 = vst.msk [vmem:[%s2117] ss:$8 sm:$0x7] %vm2116, %v2115
    %s2119 = scalar_lea.vmem %s1, 486
    %2120 = vst.msk [vmem:[%s2119] ss:$8 sm:$0x78] %vm2116, %v2115
    %s2121 = scalar_lea.vmem %s1, 23
    %2122 = vst.msk [vmem:[%s2121] sm:$0x80] %vm2116, %v2115
    %s2123 = scalar_lea.vmem [#allocation0], 32
    %v2124 = vld [vmem:[%s2123] ss:$8 sm:$0x7]
    %s2125 = scalar_lea.vmem [#allocation0], 9
    %v2126 = vld [vmem:[%s2125] ss:$8 sm:$0x78]
    %vm2127 = vcmask 1046531
    %v2128 = vsel %vm2127, %v2126, %v2124
    %s2129 = scalar_lea.vmem [#allocation0], 49
    %v2130 = vld [vmem:[%s2129] sm:$0x80]
    %vm2131 = vcmask 1047559
    %v2132 = vsel %vm2131, %v2130, %v2128
    %2133 = vrot.lane.b32.xlu0 %v2132, 32
    %v2134 = vpop.permute.xlu0 %2133
    %vm2135 = vcmask 130048
    %s2136 = scalar_lea.vmem %s1, 38
    %2137 = vst.msk [vmem:[%s2136] ss:$8 sm:$0x7] %vm2135, %v2134
    %s2138 = scalar_lea.vmem %s1, 518
    %2139 = vst.msk [vmem:[%s2138] ss:$8 sm:$0x78] %vm2135, %v2134
    %s2140 = scalar_lea.vmem %s1, 55
    %2141 = vst.msk [vmem:[%s2140] sm:$0x80] %vm2135, %v2134
    %s2142 = scalar_lea.vmem [#allocation0], 64
    %v2143 = vld [vmem:[%s2142] ss:$8 sm:$0x7]
    %s2144 = scalar_lea.vmem [#allocation0], 41
    %v2145 = vld [vmem:[%s2144] ss:$8 sm:$0x78]
    %vm2146 = vcmask 1046531
    %v2147 = vsel %vm2146, %v2145, %v2143
    %s2148 = scalar_lea.vmem [#allocation0], 81
    %v2149 = vld [vmem:[%s2148] sm:$0x80]
    %vm2150 = vcmask 1047559
    %v2151 = vsel %vm2150, %v2149, %v2147
    %2152 = vrot.lane.b32.xlu0 %v2151, 32
    %v2153 = vpop.permute.xlu0 %2152
    %vm2154 = vcmask 130048
    %s2155 = scalar_lea.vmem %s1, 70
    %2156 = vst.msk [vmem:[%s2155] ss:$8 sm:$0x7] %vm2154, %v2153
    %s2157 = scalar_lea.vmem %s1, 550
    %2158 = vst.msk [vmem:[%s2157] ss:$8 sm:$0x78] %vm2154, %v2153
    %s2159 = scalar_lea.vmem %s1, 87
    %2160 = vst.msk [vmem:[%s2159] sm:$0x80] %vm2154, %v2153
    %s2161 = scalar_lea.vmem [#allocation0], 96
    %v2162 = vld [vmem:[%s2161] ss:$8 sm:$0x7]
    %s2163 = scalar_lea.vmem [#allocation0], 73
    %v2164 = vld [vmem:[%s2163] ss:$8 sm:$0x78]
    %vm2165 = vcmask 1046531
    %v2166 = vsel %vm2165, %v2164, %v2162
    %s2167 = scalar_lea.vmem [#allocation0], 113
    %v2168 = vld [vmem:[%s2167] sm:$0x80]
    %vm2169 = vcmask 1047559
    %v2170 = vsel %vm2169, %v2168, %v2166
    %2171 = vrot.lane.b32.xlu0 %v2170, 32
    %v2172 = vpop.permute.xlu0 %2171
    %vm2173 = vcmask 130048
    %s2174 = scalar_lea.vmem %s1, 102
    %2175 = vst.msk [vmem:[%s2174] ss:$8 sm:$0x7] %vm2173, %v2172
    %s2176 = scalar_lea.vmem %s1, 582
    %2177 = vst.msk [vmem:[%s2176] ss:$8 sm:$0x78] %vm2173, %v2172
    %s2178 = scalar_lea.vmem %s1, 119
    %2179 = vst.msk [vmem:[%s2178] sm:$0x80] %vm2173, %v2172
    %s2180 = scalar_lea.vmem [#allocation0], 128
    %v2181 = vld [vmem:[%s2180] ss:$8 sm:$0x7]
    %s2182 = scalar_lea.vmem [#allocation0], 105
    %v2183 = vld [vmem:[%s2182] ss:$8 sm:$0x78]
    %vm2184 = vcmask 1046531
    %v2185 = vsel %vm2184, %v2183, %v2181
    %s2186 = scalar_lea.vmem [#allocation0], 145
    %v2187 = vld [vmem:[%s2186] sm:$0x80]
    %vm2188 = vcmask 1047559
    %v2189 = vsel %vm2188, %v2187, %v2185
    %2190 = vrot.lane.b32.xlu0 %v2189, 32
    %v2191 = vpop.permute.xlu0 %2190
    %vm2192 = vcmask 130048
    %s2193 = scalar_lea.vmem %s1, 134
    %2194 = vst.msk [vmem:[%s2193] ss:$8 sm:$0x7] %vm2192, %v2191
    %s2195 = scalar_lea.vmem %s1, 614
    %2196 = vst.msk [vmem:[%s2195] ss:$8 sm:$0x78] %vm2192, %v2191
    %s2197 = scalar_lea.vmem %s1, 151
    %2198 = vst.msk [vmem:[%s2197] sm:$0x80] %vm2192, %v2191
    %s2199 = scalar_lea.vmem [#allocation0], 160
    %v2200 = vld [vmem:[%s2199] ss:$8 sm:$0x7]
    %s2201 = scalar_lea.vmem [#allocation0], 137
    %v2202 = vld [vmem:[%s2201] ss:$8 sm:$0x78]
    %vm2203 = vcmask 1046531
    %v2204 = vsel %vm2203, %v2202, %v2200
    %s2205 = scalar_lea.vmem [#allocation0], 177
    %v2206 = vld [vmem:[%s2205] sm:$0x80]
    %vm2207 = vcmask 1047559
    %v2208 = vsel %vm2207, %v2206, %v2204
    %2209 = vrot.lane.b32.xlu0 %v2208, 32
    %v2210 = vpop.permute.xlu0 %2209
    %vm2211 = vcmask 130048
    %s2212 = scalar_lea.vmem %s1, 166
    %2213 = vst.msk [vmem:[%s2212] ss:$8 sm:$0x7] %vm2211, %v2210
    %s2214 = scalar_lea.vmem %s1, 646
    %2215 = vst.msk [vmem:[%s2214] ss:$8 sm:$0x78] %vm2211, %v2210
    %s2216 = scalar_lea.vmem %s1, 183
    %2217 = vst.msk [vmem:[%s2216] sm:$0x80] %vm2211, %v2210
    %s2218 = scalar_lea.vmem [#allocation0], 192
    %v2219 = vld [vmem:[%s2218] ss:$8 sm:$0x7]
    %s2220 = scalar_lea.vmem [#allocation0], 169
    %v2221 = vld [vmem:[%s2220] ss:$8 sm:$0x78]
    %vm2222 = vcmask 1046531
    %v2223 = vsel %vm2222, %v2221, %v2219
    %s2224 = scalar_lea.vmem [#allocation0], 209
    %v2225 = vld [vmem:[%s2224] sm:$0x80]
    %vm2226 = vcmask 1047559
    %v2227 = vsel %vm2226, %v2225, %v2223
    %2228 = vrot.lane.b32.xlu0 %v2227, 32
    %v2229 = vpop.permute.xlu0 %2228
    %vm2230 = vcmask 130048
    %s2231 = scalar_lea.vmem %s1, 198
    %2232 = vst.msk [vmem:[%s2231] ss:$8 sm:$0x7] %vm2230, %v2229
    %s2233 = scalar_lea.vmem %s1, 678
    %2234 = vst.msk [vmem:[%s2233] ss:$8 sm:$0x78] %vm2230, %v2229
    %s2235 = scalar_lea.vmem %s1, 215
    %2236 = vst.msk [vmem:[%s2235] sm:$0x80] %vm2230, %v2229
    %s2237 = scalar_lea.vmem [#allocation0], 224
    %v2238 = vld [vmem:[%s2237] ss:$8 sm:$0x7]
    %s2239 = scalar_lea.vmem [#allocation0], 201
    %v2240 = vld [vmem:[%s2239] ss:$8 sm:$0x78]
    %vm2241 = vcmask 1046531
    %v2242 = vsel %vm2241, %v2240, %v2238
    %s2243 = scalar_lea.vmem [#allocation0], 241
    %v2244 = vld [vmem:[%s2243] sm:$0x80]
    %vm2245 = vcmask 1047559
    %v2246 = vsel %vm2245, %v2244, %v2242
    %2247 = vrot.lane.b32.xlu0 %v2246, 32
    %v2248 = vpop.permute.xlu0 %2247
    %vm2249 = vcmask 130048
    %s2250 = scalar_lea.vmem %s1, 230
    %2251 = vst.msk [vmem:[%s2250] ss:$8 sm:$0x7] %vm2249, %v2248
    %s2252 = scalar_lea.vmem %s1, 710
    %2253 = vst.msk [vmem:[%s2252] ss:$8 sm:$0x78] %vm2249, %v2248
    %s2254 = scalar_lea.vmem %s1, 247
    %2255 = vst.msk [vmem:[%s2254] sm:$0x80] %vm2249, %v2248
    %s2256 = scalar_lea.vmem [#allocation0], 256
    %v2257 = vld [vmem:[%s2256] ss:$8 sm:$0x7]
    %s2258 = scalar_lea.vmem [#allocation0], 233
    %v2259 = vld [vmem:[%s2258] ss:$8 sm:$0x78]
    %vm2260 = vcmask 1046531
    %v2261 = vsel %vm2260, %v2259, %v2257
    %s2262 = scalar_lea.vmem [#allocation0], 273
    %v2263 = vld [vmem:[%s2262] sm:$0x80]
    %vm2264 = vcmask 1047559
    %v2265 = vsel %vm2264, %v2263, %v2261
    %2266 = vrot.lane.b32.xlu0 %v2265, 32
    %v2267 = vpop.permute.xlu0 %2266
    %vm2268 = vcmask 130048
    %s2269 = scalar_lea.vmem %s1, 262
    %2270 = vst.msk [vmem:[%s2269] ss:$8 sm:$0x7] %vm2268, %v2267
    %s2271 = scalar_lea.vmem %s1, 742
    %2272 = vst.msk [vmem:[%s2271] ss:$8 sm:$0x78] %vm2268, %v2267
    %s2273 = scalar_lea.vmem %s1, 279
    %2274 = vst.msk [vmem:[%s2273] sm:$0x80] %vm2268, %v2267
    %s2275 = scalar_lea.vmem [#allocation0], 288
    %v2276 = vld [vmem:[%s2275] ss:$8 sm:$0x7]
    %s2277 = scalar_lea.vmem [#allocation0], 265
    %v2278 = vld [vmem:[%s2277] ss:$8 sm:$0x78]
    %vm2279 = vcmask 1046531
    %v2280 = vsel %vm2279, %v2278, %v2276
    %s2281 = scalar_lea.vmem [#allocation0], 305
    %v2282 = vld [vmem:[%s2281] sm:$0x80]
    %vm2283 = vcmask 1047559
    %v2284 = vsel %vm2283, %v2282, %v2280
    %2285 = vrot.lane.b32.xlu0 %v2284, 32
    %v2286 = vpop.permute.xlu0 %2285
    %vm2287 = vcmask 130048
    %s2288 = scalar_lea.vmem %s1, 294
    %2289 = vst.msk [vmem:[%s2288] ss:$8 sm:$0x7] %vm2287, %v2286
    %s2290 = scalar_lea.vmem %s1, 774
    %2291 = vst.msk [vmem:[%s2290] ss:$8 sm:$0x78] %vm2287, %v2286
    %s2292 = scalar_lea.vmem %s1, 311
    %2293 = vst.msk [vmem:[%s2292] sm:$0x80] %vm2287, %v2286
    %s2294 = scalar_lea.vmem [#allocation0], 320
    %v2295 = vld [vmem:[%s2294] ss:$8 sm:$0x7]
    %s2296 = scalar_lea.vmem [#allocation0], 297
    %v2297 = vld [vmem:[%s2296] ss:$8 sm:$0x78]
    %vm2298 = vcmask 1046531
    %v2299 = vsel %vm2298, %v2297, %v2295
    %s2300 = scalar_lea.vmem [#allocation0], 337
    %v2301 = vld [vmem:[%s2300] sm:$0x80]
    %vm2302 = vcmask 1047559
    %v2303 = vsel %vm2302, %v2301, %v2299
    %2304 = vrot.lane.b32.xlu0 %v2303, 32
    %v2305 = vpop.permute.xlu0 %2304
    %vm2306 = vcmask 130048
    %s2307 = scalar_lea.vmem %s1, 326
    %2308 = vst.msk [vmem:[%s2307] ss:$8 sm:$0x7] %vm2306, %v2305
    %s2309 = scalar_lea.vmem %s1, 806
    %2310 = vst.msk [vmem:[%s2309] ss:$8 sm:$0x78] %vm2306, %v2305
    %s2311 = scalar_lea.vmem %s1, 343
    %2312 = vst.msk [vmem:[%s2311] sm:$0x80] %vm2306, %v2305
    %s2313 = scalar_lea.vmem [#allocation0], 352
    %v2314 = vld [vmem:[%s2313] ss:$8 sm:$0x7]
    %s2315 = scalar_lea.vmem [#allocation0], 329
    %v2316 = vld [vmem:[%s2315] ss:$8 sm:$0x78]
    %vm2317 = vcmask 1046531
    %v2318 = vsel %vm2317, %v2316, %v2314
    %s2319 = scalar_lea.vmem [#allocation0], 369
    %v2320 = vld [vmem:[%s2319] sm:$0x80]
    %vm2321 = vcmask 1047559
    %v2322 = vsel %vm2321, %v2320, %v2318
    %2323 = vrot.lane.b32.xlu0 %v2322, 32
    %v2324 = vpop.permute.xlu0 %2323
    %vm2325 = vcmask 130048
    %s2326 = scalar_lea.vmem %s1, 358
    %2327 = vst.msk [vmem:[%s2326] ss:$8 sm:$0x7] %vm2325, %v2324
    %s2328 = scalar_lea.vmem %s1, 838
    %2329 = vst.msk [vmem:[%s2328] ss:$8 sm:$0x78] %vm2325, %v2324
    %s2330 = scalar_lea.vmem %s1, 375
    %2331 = vst.msk [vmem:[%s2330] sm:$0x80] %vm2325, %v2324
    %s2332 = scalar_lea.vmem [#allocation0], 384
    %v2333 = vld [vmem:[%s2332] ss:$8 sm:$0x7]
    %s2334 = scalar_lea.vmem [#allocation0], 361
    %v2335 = vld [vmem:[%s2334] ss:$8 sm:$0x78]
    %vm2336 = vcmask 1046531
    %v2337 = vsel %vm2336, %v2335, %v2333
    %s2338 = scalar_lea.vmem [#allocation0], 401
    %v2339 = vld [vmem:[%s2338] sm:$0x80]
    %vm2340 = vcmask 1047559
    %v2341 = vsel %vm2340, %v2339, %v2337
    %2342 = vrot.lane.b32.xlu0 %v2341, 32
    %v2343 = vpop.permute.xlu0 %2342
    %vm2344 = vcmask 130048
    %s2345 = scalar_lea.vmem %s1, 390
    %2346 = vst.msk [vmem:[%s2345] ss:$8 sm:$0x7] %vm2344, %v2343
    %s2347 = scalar_lea.vmem %s1, 870
    %2348 = vst.msk [vmem:[%s2347] ss:$8 sm:$0x78] %vm2344, %v2343
    %s2349 = scalar_lea.vmem %s1, 407
    %2350 = vst.msk [vmem:[%s2349] sm:$0x80] %vm2344, %v2343
    %s2351 = scalar_lea.vmem [#allocation0], 416
    %v2352 = vld [vmem:[%s2351] ss:$8 sm:$0x7]
    %s2353 = scalar_lea.vmem [#allocation0], 393
    %v2354 = vld [vmem:[%s2353] ss:$8 sm:$0x78]
    %vm2355 = vcmask 1046531
    %v2356 = vsel %vm2355, %v2354, %v2352
    %s2357 = scalar_lea.vmem [#allocation0], 433
    %v2358 = vld [vmem:[%s2357] sm:$0x80]
    %vm2359 = vcmask 1047559
    %v2360 = vsel %vm2359, %v2358, %v2356
    %2361 = vrot.lane.b32.xlu0 %v2360, 32
    %v2362 = vpop.permute.xlu0 %2361
    %vm2363 = vcmask 130048
    %s2364 = scalar_lea.vmem %s1, 422
    %2365 = vst.msk [vmem:[%s2364] ss:$8 sm:$0x7] %vm2363, %v2362
    %s2366 = scalar_lea.vmem %s1, 902
    %2367 = vst.msk [vmem:[%s2366] ss:$8 sm:$0x78] %vm2363, %v2362
    %s2368 = scalar_lea.vmem %s1, 439
    %2369 = vst.msk [vmem:[%s2368] sm:$0x80] %vm2363, %v2362
    %s2370 = scalar_lea.vmem [#allocation0], 448
    %v2371 = vld [vmem:[%s2370] ss:$8 sm:$0x7]
    %s2372 = scalar_lea.vmem [#allocation0], 425
    %v2373 = vld [vmem:[%s2372] ss:$8 sm:$0x78]
    %vm2374 = vcmask 1046531
    %v2375 = vsel %vm2374, %v2373, %v2371
    %s2376 = scalar_lea.vmem [#allocation0], 465
    %v2377 = vld [vmem:[%s2376] sm:$0x80]
    %vm2378 = vcmask 1047559
    %v2379 = vsel %vm2378, %v2377, %v2375
    %2380 = vrot.lane.b32.xlu0 %v2379, 32
    %v2381 = vpop.permute.xlu0 %2380
    %vm2382 = vcmask 130048
    %s2383 = scalar_lea.vmem %s1, 454
    %2384 = vst.msk [vmem:[%s2383] ss:$8 sm:$0x7] %vm2382, %v2381
    %s2385 = scalar_lea.vmem %s1, 934
    %2386 = vst.msk [vmem:[%s2385] ss:$8 sm:$0x78] %vm2382, %v2381
    %s2387 = scalar_lea.vmem %s1, 471
    %2388 = vst.msk [vmem:[%s2387] sm:$0x80] %vm2382, %v2381
    %s2389 = scalar_lea.vmem [#allocation0], 480
    %v2390 = vld.sshfl [vmem:[%s2389] sm:$0xff pattern:$0x99999180]
    %2391 = vrot.lane.b32.xlu0 %v2390, 32
    %v2392 = vpop.permute.xlu0 %2391
    %vm2393 = vcmask 130048
    %s2394 = scalar_lea.vmem %s1, 486
    %2395 = vst.msk [vmem:[%s2394] ss:$8 sm:$0x3] %vm2393, %v2392
    %s2396 = scalar_lea.vmem %s1, 974
    %2397 = vst.msk [vmem:[%s2396] ss:$8 sm:$0xc] %vm2393, %v2392
    %v2398 = vld [vmem:[#allocation0] ss:$8 sm:$0x7]
    %s2399 = scalar_lea.vmem [#allocation0], 4294967273
    %v2400 = vld [vmem:[%s2399] ss:$8 sm:$0x78]
    %vm2401 = vcmask 1046531
    %v2402 = vsel %vm2401, %v2400, %v2398
    %s2403 = scalar_lea.vmem [#allocation0], 17
    %v2404 = vld [vmem:[%s2403] sm:$0x80]
    %vm2405 = vcmask 1047559
    %v2406 = vsel %vm2405, %v2404, %v2402
    %2407 = vrot.lane.b32.xlu0 %v2406, 16
    %v2408 = vpop.permute.xlu0 %2407
    %vm2409 = vcmask 130048
    %s2410 = scalar_lea.vmem %s1, 7
    %2411 = vst.msk [vmem:[%s2410] ss:$8 sm:$0x7] %vm2409, %v2408
    %s2412 = scalar_lea.vmem %s1, 487
    %2413 = vst.msk [vmem:[%s2412] ss:$8 sm:$0x78] %vm2409, %v2408
    %s2414 = scalar_lea.vmem %s1, 24
    %2415 = vst.msk [vmem:[%s2414] sm:$0x80] %vm2409, %v2408
    %s2416 = scalar_lea.vmem [#allocation0], 32
    %v2417 = vld [vmem:[%s2416] ss:$8 sm:$0x7]
    %s2418 = scalar_lea.vmem [#allocation0], 9
    %v2419 = vld [vmem:[%s2418] ss:$8 sm:$0x78]
    %vm2420 = vcmask 1046531
    %v2421 = vsel %vm2420, %v2419, %v2417
    %s2422 = scalar_lea.vmem [#allocation0], 49
    %v2423 = vld [vmem:[%s2422] sm:$0x80]
    %vm2424 = vcmask 1047559
    %v2425 = vsel %vm2424, %v2423, %v2421
    %2426 = vrot.lane.b32.xlu0 %v2425, 16
    %v2427 = vpop.permute.xlu0 %2426
    %vm2428 = vcmask 130048
    %s2429 = scalar_lea.vmem %s1, 39
    %2430 = vst.msk [vmem:[%s2429] ss:$8 sm:$0x7] %vm2428, %v2427
    %s2431 = scalar_lea.vmem %s1, 519
    %2432 = vst.msk [vmem:[%s2431] ss:$8 sm:$0x78] %vm2428, %v2427
    %s2433 = scalar_lea.vmem %s1, 56
    %2434 = vst.msk [vmem:[%s2433] sm:$0x80] %vm2428, %v2427
    %s2435 = scalar_lea.vmem [#allocation0], 64
    %v2436 = vld [vmem:[%s2435] ss:$8 sm:$0x7]
    %s2437 = scalar_lea.vmem [#allocation0], 41
    %v2438 = vld [vmem:[%s2437] ss:$8 sm:$0x78]
    %vm2439 = vcmask 1046531
    %v2440 = vsel %vm2439, %v2438, %v2436
    %s2441 = scalar_lea.vmem [#allocation0], 81
    %v2442 = vld [vmem:[%s2441] sm:$0x80]
    %vm2443 = vcmask 1047559
    %v2444 = vsel %vm2443, %v2442, %v2440
    %2445 = vrot.lane.b32.xlu0 %v2444, 16
    %v2446 = vpop.permute.xlu0 %2445
    %vm2447 = vcmask 130048
    %s2448 = scalar_lea.vmem %s1, 71
    %2449 = vst.msk [vmem:[%s2448] ss:$8 sm:$0x7] %vm2447, %v2446
    %s2450 = scalar_lea.vmem %s1, 551
    %2451 = vst.msk [vmem:[%s2450] ss:$8 sm:$0x78] %vm2447, %v2446
    %s2452 = scalar_lea.vmem %s1, 88
    %2453 = vst.msk [vmem:[%s2452] sm:$0x80] %vm2447, %v2446
    %s2454 = scalar_lea.vmem [#allocation0], 96
    %v2455 = vld [vmem:[%s2454] ss:$8 sm:$0x7]
    %s2456 = scalar_lea.vmem [#allocation0], 73
    %v2457 = vld [vmem:[%s2456] ss:$8 sm:$0x78]
    %vm2458 = vcmask 1046531
    %v2459 = vsel %vm2458, %v2457, %v2455
    %s2460 = scalar_lea.vmem [#allocation0], 113
    %v2461 = vld [vmem:[%s2460] sm:$0x80]
    %vm2462 = vcmask 1047559
    %v2463 = vsel %vm2462, %v2461, %v2459
    %2464 = vrot.lane.b32.xlu0 %v2463, 16
    %v2465 = vpop.permute.xlu0 %2464
    %vm2466 = vcmask 130048
    %s2467 = scalar_lea.vmem %s1, 103
    %2468 = vst.msk [vmem:[%s2467] ss:$8 sm:$0x7] %vm2466, %v2465
    %s2469 = scalar_lea.vmem %s1, 583
    %2470 = vst.msk [vmem:[%s2469] ss:$8 sm:$0x78] %vm2466, %v2465
    %s2471 = scalar_lea.vmem %s1, 120
    %2472 = vst.msk [vmem:[%s2471] sm:$0x80] %vm2466, %v2465
    %s2473 = scalar_lea.vmem [#allocation0], 128
    %v2474 = vld [vmem:[%s2473] ss:$8 sm:$0x7]
    %s2475 = scalar_lea.vmem [#allocation0], 105
    %v2476 = vld [vmem:[%s2475] ss:$8 sm:$0x78]
    %vm2477 = vcmask 1046531
    %v2478 = vsel %vm2477, %v2476, %v2474
    %s2479 = scalar_lea.vmem [#allocation0], 145
    %v2480 = vld [vmem:[%s2479] sm:$0x80]
    %vm2481 = vcmask 1047559
    %v2482 = vsel %vm2481, %v2480, %v2478
    %2483 = vrot.lane.b32.xlu0 %v2482, 16
    %v2484 = vpop.permute.xlu0 %2483
    %vm2485 = vcmask 130048
    %s2486 = scalar_lea.vmem %s1, 135
    %2487 = vst.msk [vmem:[%s2486] ss:$8 sm:$0x7] %vm2485, %v2484
    %s2488 = scalar_lea.vmem %s1, 615
    %2489 = vst.msk [vmem:[%s2488] ss:$8 sm:$0x78] %vm2485, %v2484
    %s2490 = scalar_lea.vmem %s1, 152
    %2491 = vst.msk [vmem:[%s2490] sm:$0x80] %vm2485, %v2484
    %s2492 = scalar_lea.vmem [#allocation0], 160
    %v2493 = vld [vmem:[%s2492] ss:$8 sm:$0x7]
    %s2494 = scalar_lea.vmem [#allocation0], 137
    %v2495 = vld [vmem:[%s2494] ss:$8 sm:$0x78]
    %vm2496 = vcmask 1046531
    %v2497 = vsel %vm2496, %v2495, %v2493
    %s2498 = scalar_lea.vmem [#allocation0], 177
    %v2499 = vld [vmem:[%s2498] sm:$0x80]
    %vm2500 = vcmask 1047559
    %v2501 = vsel %vm2500, %v2499, %v2497
    %2502 = vrot.lane.b32.xlu0 %v2501, 16
    %v2503 = vpop.permute.xlu0 %2502
    %vm2504 = vcmask 130048
    %s2505 = scalar_lea.vmem %s1, 167
    %2506 = vst.msk [vmem:[%s2505] ss:$8 sm:$0x7] %vm2504, %v2503
    %s2507 = scalar_lea.vmem %s1, 647
    %2508 = vst.msk [vmem:[%s2507] ss:$8 sm:$0x78] %vm2504, %v2503
    %s2509 = scalar_lea.vmem %s1, 184
    %2510 = vst.msk [vmem:[%s2509] sm:$0x80] %vm2504, %v2503
    %s2511 = scalar_lea.vmem [#allocation0], 192
    %v2512 = vld [vmem:[%s2511] ss:$8 sm:$0x7]
    %s2513 = scalar_lea.vmem [#allocation0], 169
    %v2514 = vld [vmem:[%s2513] ss:$8 sm:$0x78]
    %vm2515 = vcmask 1046531
    %v2516 = vsel %vm2515, %v2514, %v2512
    %s2517 = scalar_lea.vmem [#allocation0], 209
    %v2518 = vld [vmem:[%s2517] sm:$0x80]
    %vm2519 = vcmask 1047559
    %v2520 = vsel %vm2519, %v2518, %v2516
    %2521 = vrot.lane.b32.xlu0 %v2520, 16
    %v2522 = vpop.permute.xlu0 %2521
    %vm2523 = vcmask 130048
    %s2524 = scalar_lea.vmem %s1, 199
    %2525 = vst.msk [vmem:[%s2524] ss:$8 sm:$0x7] %vm2523, %v2522
    %s2526 = scalar_lea.vmem %s1, 679
    %2527 = vst.msk [vmem:[%s2526] ss:$8 sm:$0x78] %vm2523, %v2522
    %s2528 = scalar_lea.vmem %s1, 216
    %2529 = vst.msk [vmem:[%s2528] sm:$0x80] %vm2523, %v2522
    %s2530 = scalar_lea.vmem [#allocation0], 224
    %v2531 = vld [vmem:[%s2530] ss:$8 sm:$0x7]
    %s2532 = scalar_lea.vmem [#allocation0], 201
    %v2533 = vld [vmem:[%s2532] ss:$8 sm:$0x78]
    %vm2534 = vcmask 1046531
    %v2535 = vsel %vm2534, %v2533, %v2531
    %s2536 = scalar_lea.vmem [#allocation0], 241
    %v2537 = vld [vmem:[%s2536] sm:$0x80]
    %vm2538 = vcmask 1047559
    %v2539 = vsel %vm2538, %v2537, %v2535
    %2540 = vrot.lane.b32.xlu0 %v2539, 16
    %v2541 = vpop.permute.xlu0 %2540
    %vm2542 = vcmask 130048
    %s2543 = scalar_lea.vmem %s1, 231
    %2544 = vst.msk [vmem:[%s2543] ss:$8 sm:$0x7] %vm2542, %v2541
    %s2545 = scalar_lea.vmem %s1, 711
    %2546 = vst.msk [vmem:[%s2545] ss:$8 sm:$0x78] %vm2542, %v2541
    %s2547 = scalar_lea.vmem %s1, 248
    %2548 = vst.msk [vmem:[%s2547] sm:$0x80] %vm2542, %v2541
    %s2549 = scalar_lea.vmem [#allocation0], 256
    %v2550 = vld [vmem:[%s2549] ss:$8 sm:$0x7]
    %s2551 = scalar_lea.vmem [#allocation0], 233
    %v2552 = vld [vmem:[%s2551] ss:$8 sm:$0x78]
    %vm2553 = vcmask 1046531
    %v2554 = vsel %vm2553, %v2552, %v2550
    %s2555 = scalar_lea.vmem [#allocation0], 273
    %v2556 = vld [vmem:[%s2555] sm:$0x80]
    %vm2557 = vcmask 1047559
    %v2558 = vsel %vm2557, %v2556, %v2554
    %2559 = vrot.lane.b32.xlu0 %v2558, 16
    %v2560 = vpop.permute.xlu0 %2559
    %vm2561 = vcmask 130048
    %s2562 = scalar_lea.vmem %s1, 263
    %2563 = vst.msk [vmem:[%s2562] ss:$8 sm:$0x7] %vm2561, %v2560
    %s2564 = scalar_lea.vmem %s1, 743
    %2565 = vst.msk [vmem:[%s2564] ss:$8 sm:$0x78] %vm2561, %v2560
    %s2566 = scalar_lea.vmem %s1, 280
    %2567 = vst.msk [vmem:[%s2566] sm:$0x80] %vm2561, %v2560
    %s2568 = scalar_lea.vmem [#allocation0], 288
    %v2569 = vld [vmem:[%s2568] ss:$8 sm:$0x7]
    %s2570 = scalar_lea.vmem [#allocation0], 265
    %v2571 = vld [vmem:[%s2570] ss:$8 sm:$0x78]
    %vm2572 = vcmask 1046531
    %v2573 = vsel %vm2572, %v2571, %v2569
    %s2574 = scalar_lea.vmem [#allocation0], 305
    %v2575 = vld [vmem:[%s2574] sm:$0x80]
    %vm2576 = vcmask 1047559
    %v2577 = vsel %vm2576, %v2575, %v2573
    %2578 = vrot.lane.b32.xlu0 %v2577, 16
    %v2579 = vpop.permute.xlu0 %2578
    %vm2580 = vcmask 130048
    %s2581 = scalar_lea.vmem %s1, 295
    %2582 = vst.msk [vmem:[%s2581] ss:$8 sm:$0x7] %vm2580, %v2579
    %s2583 = scalar_lea.vmem %s1, 775
    %2584 = vst.msk [vmem:[%s2583] ss:$8 sm:$0x78] %vm2580, %v2579
    %s2585 = scalar_lea.vmem %s1, 312
    %2586 = vst.msk [vmem:[%s2585] sm:$0x80] %vm2580, %v2579
    %s2587 = scalar_lea.vmem [#allocation0], 320
    %v2588 = vld [vmem:[%s2587] ss:$8 sm:$0x7]
    %s2589 = scalar_lea.vmem [#allocation0], 297
    %v2590 = vld [vmem:[%s2589] ss:$8 sm:$0x78]
    %vm2591 = vcmask 1046531
    %v2592 = vsel %vm2591, %v2590, %v2588
    %s2593 = scalar_lea.vmem [#allocation0], 337
    %v2594 = vld [vmem:[%s2593] sm:$0x80]
    %vm2595 = vcmask 1047559
    %v2596 = vsel %vm2595, %v2594, %v2592
    %2597 = vrot.lane.b32.xlu0 %v2596, 16
    %v2598 = vpop.permute.xlu0 %2597
    %vm2599 = vcmask 130048
    %s2600 = scalar_lea.vmem %s1, 327
    %2601 = vst.msk [vmem:[%s2600] ss:$8 sm:$0x7] %vm2599, %v2598
    %s2602 = scalar_lea.vmem %s1, 807
    %2603 = vst.msk [vmem:[%s2602] ss:$8 sm:$0x78] %vm2599, %v2598
    %s2604 = scalar_lea.vmem %s1, 344
    %2605 = vst.msk [vmem:[%s2604] sm:$0x80] %vm2599, %v2598
    %s2606 = scalar_lea.vmem [#allocation0], 352
    %v2607 = vld [vmem:[%s2606] ss:$8 sm:$0x7]
    %s2608 = scalar_lea.vmem [#allocation0], 329
    %v2609 = vld [vmem:[%s2608] ss:$8 sm:$0x78]
    %vm2610 = vcmask 1046531
    %v2611 = vsel %vm2610, %v2609, %v2607
    %s2612 = scalar_lea.vmem [#allocation0], 369
    %v2613 = vld [vmem:[%s2612] sm:$0x80]
    %vm2614 = vcmask 1047559
    %v2615 = vsel %vm2614, %v2613, %v2611
    %2616 = vrot.lane.b32.xlu0 %v2615, 16
    %v2617 = vpop.permute.xlu0 %2616
    %vm2618 = vcmask 130048
    %s2619 = scalar_lea.vmem %s1, 359
    %2620 = vst.msk [vmem:[%s2619] ss:$8 sm:$0x7] %vm2618, %v2617
    %s2621 = scalar_lea.vmem %s1, 839
    %2622 = vst.msk [vmem:[%s2621] ss:$8 sm:$0x78] %vm2618, %v2617
    %s2623 = scalar_lea.vmem %s1, 376
    %2624 = vst.msk [vmem:[%s2623] sm:$0x80] %vm2618, %v2617
    %s2625 = scalar_lea.vmem [#allocation0], 384
    %v2626 = vld [vmem:[%s2625] ss:$8 sm:$0x7]
    %s2627 = scalar_lea.vmem [#allocation0], 361
    %v2628 = vld [vmem:[%s2627] ss:$8 sm:$0x78]
    %vm2629 = vcmask 1046531
    %v2630 = vsel %vm2629, %v2628, %v2626
    %s2631 = scalar_lea.vmem [#allocation0], 401
    %v2632 = vld [vmem:[%s2631] sm:$0x80]
    %vm2633 = vcmask 1047559
    %v2634 = vsel %vm2633, %v2632, %v2630
    %2635 = vrot.lane.b32.xlu0 %v2634, 16
    %v2636 = vpop.permute.xlu0 %2635
    %vm2637 = vcmask 130048
    %s2638 = scalar_lea.vmem %s1, 391
    %2639 = vst.msk [vmem:[%s2638] ss:$8 sm:$0x7] %vm2637, %v2636
    %s2640 = scalar_lea.vmem %s1, 871
    %2641 = vst.msk [vmem:[%s2640] ss:$8 sm:$0x78] %vm2637, %v2636
    %s2642 = scalar_lea.vmem %s1, 408
    %2643 = vst.msk [vmem:[%s2642] sm:$0x80] %vm2637, %v2636
    %s2644 = scalar_lea.vmem [#allocation0], 416
    %v2645 = vld [vmem:[%s2644] ss:$8 sm:$0x7]
    %s2646 = scalar_lea.vmem [#allocation0], 393
    %v2647 = vld [vmem:[%s2646] ss:$8 sm:$0x78]
    %vm2648 = vcmask 1046531
    %v2649 = vsel %vm2648, %v2647, %v2645
    %s2650 = scalar_lea.vmem [#allocation0], 433
    %v2651 = vld [vmem:[%s2650] sm:$0x80]
    %vm2652 = vcmask 1047559
    %v2653 = vsel %vm2652, %v2651, %v2649
    %2654 = vrot.lane.b32.xlu0 %v2653, 16
    %v2655 = vpop.permute.xlu0 %2654
    %vm2656 = vcmask 130048
    %s2657 = scalar_lea.vmem %s1, 423
    %2658 = vst.msk [vmem:[%s2657] ss:$8 sm:$0x7] %vm2656, %v2655
    %s2659 = scalar_lea.vmem %s1, 903
    %2660 = vst.msk [vmem:[%s2659] ss:$8 sm:$0x78] %vm2656, %v2655
    %s2661 = scalar_lea.vmem %s1, 440
    %2662 = vst.msk [vmem:[%s2661] sm:$0x80] %vm2656, %v2655
    %s2663 = scalar_lea.vmem [#allocation0], 448
    %v2664 = vld [vmem:[%s2663] ss:$8 sm:$0x7]
    %s2665 = scalar_lea.vmem [#allocation0], 425
    %v2666 = vld [vmem:[%s2665] ss:$8 sm:$0x78]
    %vm2667 = vcmask 1046531
    %v2668 = vsel %vm2667, %v2666, %v2664
    %s2669 = scalar_lea.vmem [#allocation0], 465
    %v2670 = vld [vmem:[%s2669] sm:$0x80]
    %vm2671 = vcmask 1047559
    %v2672 = vsel %vm2671, %v2670, %v2668
    %2673 = vrot.lane.b32.xlu0 %v2672, 16
    %v2674 = vpop.permute.xlu0 %2673
    %vm2675 = vcmask 130048
    %s2676 = scalar_lea.vmem %s1, 455
    %2677 = vst.msk [vmem:[%s2676] ss:$8 sm:$0x7] %vm2675, %v2674
    %s2678 = scalar_lea.vmem %s1, 935
    %2679 = vst.msk [vmem:[%s2678] ss:$8 sm:$0x78] %vm2675, %v2674
    %s2680 = scalar_lea.vmem %s1, 472
    %2681 = vst.msk [vmem:[%s2680] sm:$0x80] %vm2675, %v2674
    %s2682 = scalar_lea.vmem [#allocation0], 480
    %v2683 = vld.sshfl [vmem:[%s2682] sm:$0xff pattern:$0x99999180]
    %2684 = vrot.lane.b32.xlu0 %v2683, 16
    %v2685 = vpop.permute.xlu0 %2684
    %vm2686 = vcmask 130048
    %s2687 = scalar_lea.vmem %s1, 487
    %2688 = vst.msk [vmem:[%s2687] ss:$8 sm:$0x3] %vm2686, %v2685
    %s2689 = scalar_lea.vmem %s1, 975
    %2690 = vst.msk [vmem:[%s2689] ss:$8 sm:$0xc] %vm2686, %v2685

// kernel: m5_forward.1
$region0: #{m5_forward.1}
  #allocation0 [shape = 'u32[]', space=smem, size = 0x4, offset = 0x4, fixed_abs, tag = 'smem constant byte address 0x4 - core index']
  #allocation1 [shape = 'u32[144,128]{1,0:T(1,128)}', space=vmem, size = 0x12000, scoped, tag = 'internal scratch']
  #allocation2 [shape = 'f32[496,32]{1,0:T(8,128)}', space=vmem, size = 0x3e000, scoped, tag = 'scratch operand']
  #allocation3 [shape = 'f32[122,32]{1,0:T(8,128)}', space=vmem, size = 0x10000, scoped, tag = 'scratch operand']
  #allocation4 [shape = 'f32[28,64]{1,0:T(8,128)}', space=vmem, size = 0x4000, scoped, tag = 'scratch operand']
  #allocation5 [shape = 'f32[5,64]{1,0:T(8,128)}', space=vmem, size = 0x1000, scoped, tag = 'scratch operand']
  #allocation6 [shape = 'f32[124,32]{1,0:T(8,128)}', space=vmem, size = 0x10000, scoped, tag = 'scratch operand']
  #allocation7 [shape = 'f32[30,32]{1,0:T(8,128)}', space=vmem, size = 0x4000, scoped, tag = 'scratch operand']
  #allocation8 [shape = 'f32[7,64]{1,0:T(8,128)}', space=vmem, size = 0x1000, scoped, tag = 'scratch operand']
  %s0 = inlined_call_operand.vmem [shape: f32[2,500,16], index: 0, kind: input, shape index: {}]
  %s1 = inlined_call_operand.vmem [shape: f32[5,16,32], index: 1, kind: input, shape index: {}]
  %s2 = inlined_call_operand.vmem [shape: f32[1,32], index: 2, kind: input, shape index: {}]
  %s3 = inlined_call_operand.vmem [shape: f32[1,32], index: 3, kind: input, shape index: {}]
  %s4 = inlined_call_operand.vmem [shape: f32[124,493], index: 4, kind: input, shape index: {}]
  %s5 = inlined_call_operand.vmem [shape: f32[3,32,32], index: 5, kind: input, shape index: {}]
  %s6 = inlined_call_operand.vmem [shape: f32[1,32], index: 6, kind: input, shape index: {}]
  %s7 = inlined_call_operand.vmem [shape: f32[1,32], index: 7, kind: input, shape index: {}]
  %s8 = inlined_call_operand.vmem [shape: f32[30,119], index: 8, kind: input, shape index: {}]
  %s9 = inlined_call_operand.vmem [shape: f32[3,32,64], index: 9, kind: input, shape index: {}]
  %s10 = inlined_call_operand.vmem [shape: f32[1,64], index: 10, kind: input, shape index: {}]
  %s11 = inlined_call_operand.vmem [shape: f32[1,64], index: 11, kind: input, shape index: {}]
  %s12 = inlined_call_operand.vmem [shape: f32[7,25], index: 12, kind: input, shape index: {}]
  %s13 = inlined_call_operand.vmem [shape: f32[3,64,64], index: 13, kind: input, shape index: {}]
  %s14 = inlined_call_operand.vmem [shape: f32[1,64], index: 14, kind: input, shape index: {}]
  %s15 = inlined_call_operand.vmem [shape: f32[1,64], index: 15, kind: input, shape index: {}]
  %s16 = inlined_call_operand.vmem [shape: f32[1,2], index: 16, kind: input, shape index: {}]
  %s17 = inlined_call_operand.vmem [shape: f32[64,35], index: 17, kind: input, shape index: {}]
  %s18 = inlined_call_operand.vmem [shape: f32[1,35], index: 18, kind: input, shape index: {}]
  %s19 = inlined_call_operand.hbm [shape: f32[2,1,35], index: 19, kind: output, shape index: {}]
  %s20 = sld [smem:[#allocation0]]
  $region109: #{m5_forward.1} parent=0
    _
  %s22 = ssub.s32 1, %s20
  %s23 = scalar_select 0, %s22, %s20
  $region1: #{m5_forward.1} parent=0
    #allocation9 [shape = 'u8[1024]{0}', space=vmem, size = 0x400, scoped, tag = 'output window, operand 0']
    #allocation10 [shape = 's32[2]{0}', space=sflag, size = 0x8, scoped, tag = 'scoped memory for m5_forward.1']
    %24 = vsyncpa [#allocation10], 0
    %s25 = scalar_lea.sflag [#allocation10], 1
    %26 = vsyncpa %s25, 0
    loop: start=0, step=1, limit=4
    $region2: #{m5_forward.1} parent=1 // loop_pre_header
      _
    $region3: #{m5_forward.1} parent=1 // loop_header
      %s28 = sphi 0, %s32
      %p29 = scmp.ge.s32.totalorder %s28, 4
      %s38 = sphi 0, %s40
      %s41 = sphi 0, %s38
      %s42 = sphi 0, %s41
      %s58 = sphi 0, %s42
      %s62 = sphi 0, %s62
      %s64 = sphi 0, %s62
      %s65 = sphi 0, %s64
      %s79 = sphi 0, %s65
      %s83 = sphi 0, %s83
      %s85 = sphi 0, %s83
      %s86 = sphi 0, %s85
      %s100 = sphi 0, %s86
      %s104 = sphi 0, %s104
      %s106 = sphi 0, %s104
      %s107 = sphi 0, %s106
      %s121 = sphi 0, %s107
      %s125 = sphi 0, %s125
      %s127 = sphi 0, %s125
      %s128 = sphi 0, %s127
      %s142 = sphi 0, %s128
      %s146 = sphi 0, %s146
      %s148 = sphi 0, %s146
      %s149 = sphi 0, %s148
      %s163 = sphi 0, %s149
      %s167 = sphi 0, %s167
      %s169 = sphi 0, %s167
      %s170 = sphi 0, %s169
      %s184 = sphi 0, %s170
      %s188 = sphi 0, %s188
      %s190 = sphi 0, %s188
      %s191 = sphi 0, %s190
      %s205 = sphi 0, %s191
      %s209 = sphi 0, %s209
      %s211 = sphi 0, %s209
      %s212 = sphi 0, %s211
      %s226 = sphi 0, %s212
      %s230 = sphi 0, %s230
      %s232 = sphi 0, %s230
      %s233 = sphi 0, %s232
      %s247 = sphi 0, %s233
      %s251 = sphi 0, %s251
      %s253 = sphi 0, %s251
      %s254 = sphi 0, %s253
      %s268 = sphi 0, %s254
      %s272 = sphi 0, %s272
      %s274 = sphi 0, %s272
      %s275 = sphi 0, %s274
      %s289 = sphi 0, %s275
      %s293 = sphi 0, %s293
      %s295 = sphi 0, %s293
      %s296 = sphi 0, %s295
      %s310 = sphi 0, %s296
      %s314 = sphi 0, %s314
      %s316 = sphi 0, %s314
      %s317 = sphi 0, %s316
      %s331 = sphi 0, %s317
      %s335 = sphi 0, %s335
      %s337 = sphi 0, %s335
      %s338 = sphi 0, %s337
      %s352 = sphi 0, %s338
      %s356 = sphi 0, %s356
      %s358 = sphi 0, %s356
      %s359 = sphi 0, %s358
      %s373 = sphi 0, %s359
      %s377 = sphi 0, %s377
      %s379 = sphi 0, %s377
      %s380 = sphi 0, %s379
      %s394 = sphi 0, %s380
      %s398 = sphi 0, %s398
      %s400 = sphi 0, %s398
      %s401 = sphi 0, %s400
      %s415 = sphi 0, %s401
      %s419 = sphi 0, %s419
      %s421 = sphi 0, %s419
      %s422 = sphi 0, %s421
      %s436 = sphi 0, %s422
      %s442 = sphi 0, %s444
      %s445 = sphi 0, %s442
      %s446 = sphi 0, %s445
      %s462 = sphi 0, %s446
    $region4: #{m5_forward.1} parent=1 // loop_header_branch
      %31 = sbr.rel (%p29) target = $region8
    $region5: #{m5_forward.1} parent=1 // loop_body
      %s33 = ssub.s32 %s28, 1
      %s34 = ssub.s32 %s28, 2
      %s35 = sadd.s32 %s28, 1
      %s36 = ssub.s32 %s28, %s35
      %p37 = scmp.eq.s32.totalorder %s36, 0
      %s39 = sadd.s32 %s38, 1
      %s40 = scalar_select %p37, %s38, %s39
      %p43 = pneg %p37
      %p44 = scmp.eq.s32.totalorder %s28, 1
      %p45 = por %p43, %p44
      %p46 = scmp.ne.s32.totalorder %s38, %s41
      %p47 = scmp.eq.s32.totalorder %s28, 0
      %p48 = por %p46, %p47
      %p49 = scmp.ne.s32.totalorder %s38, %s41
      %p50 = scmp.eq.s32.totalorder %s33, 1
      %p51 = por %p49, %p50
      %p52 = scmp.ne.s32.totalorder %s41, %s42
      %p53 = scmp.eq.s32.totalorder %s33, 0
      %p54 = por %p52, %p53
      %p55 = scmp.ne.s32.totalorder %s41, %s42
      %p56 = scmp.eq.s32.totalorder %s34, 1
      %p57 = por %p55, %p56
      %p59 = scmp.ne.s32.totalorder %s42, %s58
      %p60 = scmp.eq.s32.totalorder %s34, 0
      %p61 = por %p59, %p60
      %s63 = sadd.s32 %s62, 1
      %p66 = scmp.eq.s32.totalorder %s28, 1
      %p67 = scmp.ne.s32.totalorder %s62, %s64
      %p68 = scmp.eq.s32.totalorder %s28, 0
      %p69 = por %p67, %p68
      %p70 = scmp.ne.s32.totalorder %s62, %s64
      %p71 = scmp.eq.s32.totalorder %s33, 1
      %p72 = por %p70, %p71
      %p73 = scmp.ne.s32.totalorder %s64, %s65
      %p74 = scmp.eq.s32.totalorder %s33, 0
      %p75 = por %p73, %p74
      %p76 = scmp.ne.s32.totalorder %s64, %s65
      %p77 = scmp.eq.s32.totalorder %s34, 1
      %p78 = por %p76, %p77
      %p80 = scmp.ne.s32.totalorder %s65, %s79
      %p81 = scmp.eq.s32.totalorder %s34, 0
      %p82 = por %p80, %p81
      %s84 = sadd.s32 %s83, 1
      %p87 = scmp.eq.s32.totalorder %s28, 1
      %p88 = scmp.ne.s32.totalorder %s83, %s85
      %p89 = scmp.eq.s32.totalorder %s28, 0
      %p90 = por %p88, %p89
      %p91 = scmp.ne.s32.totalorder %s83, %s85
      %p92 = scmp.eq.s32.totalorder %s33, 1
      %p93 = por %p91, %p92
      %p94 = scmp.ne.s32.totalorder %s85, %s86
      %p95 = scmp.eq.s32.totalorder %s33, 0
      %p96 = por %p94, %p95
      %p97 = scmp.ne.s32.totalorder %s85, %s86
      %p98 = scmp.eq.s32.totalorder %s34, 1
      %p99 = por %p97, %p98
      %p101 = scmp.ne.s32.totalorder %s86, %s100
      %p102 = scmp.eq.s32.totalorder %s34, 0
      %p103 = por %p101, %p102
      %s105 = sadd.s32 %s104, 1
      %p108 = scmp.eq.s32.totalorder %s28, 1
      %p109 = scmp.ne.s32.totalorder %s104, %s106
      %p110 = scmp.eq.s32.totalorder %s28, 0
      %p111 = por %p109, %p110
      %p112 = scmp.ne.s32.totalorder %s104, %s106
      %p113 = scmp.eq.s32.totalorder %s33, 1
      %p114 = por %p112, %p113
      %p115 = scmp.ne.s32.totalorder %s106, %s107
      %p116 = scmp.eq.s32.totalorder %s33, 0
      %p117 = por %p115, %p116
      %p118 = scmp.ne.s32.totalorder %s106, %s107
      %p119 = scmp.eq.s32.totalorder %s34, 1
      %p120 = por %p118, %p119
      %p122 = scmp.ne.s32.totalorder %s107, %s121
      %p123 = scmp.eq.s32.totalorder %s34, 0
      %p124 = por %p122, %p123
      %s126 = sadd.s32 %s125, 1
      %p129 = scmp.eq.s32.totalorder %s28, 1
      %p130 = scmp.ne.s32.totalorder %s125, %s127
      %p131 = scmp.eq.s32.totalorder %s28, 0
      %p132 = por %p130, %p131
      %p133 = scmp.ne.s32.totalorder %s125, %s127
      %p134 = scmp.eq.s32.totalorder %s33, 1
      %p135 = por %p133, %p134
      %p136 = scmp.ne.s32.totalorder %s127, %s128
      %p137 = scmp.eq.s32.totalorder %s33, 0
      %p138 = por %p136, %p137
      %p139 = scmp.ne.s32.totalorder %s127, %s128
      %p140 = scmp.eq.s32.totalorder %s34, 1
      %p141 = por %p139, %p140
      %p143 = scmp.ne.s32.totalorder %s128, %s142
      %p144 = scmp.eq.s32.totalorder %s34, 0
      %p145 = por %p143, %p144
      %s147 = sadd.s32 %s146, 1
      %p150 = scmp.eq.s32.totalorder %s28, 1
      %p151 = scmp.ne.s32.totalorder %s146, %s148
      %p152 = scmp.eq.s32.totalorder %s28, 0
      %p153 = por %p151, %p152
      %p154 = scmp.ne.s32.totalorder %s146, %s148
      %p155 = scmp.eq.s32.totalorder %s33, 1
      %p156 = por %p154, %p155
      %p157 = scmp.ne.s32.totalorder %s148, %s149
      %p158 = scmp.eq.s32.totalorder %s33, 0
      %p159 = por %p157, %p158
      %p160 = scmp.ne.s32.totalorder %s148, %s149
      %p161 = scmp.eq.s32.totalorder %s34, 1
      %p162 = por %p160, %p161
      %p164 = scmp.ne.s32.totalorder %s149, %s163
      %p165 = scmp.eq.s32.totalorder %s34, 0
      %p166 = por %p164, %p165
      %s168 = sadd.s32 %s167, 1
      %p171 = scmp.eq.s32.totalorder %s28, 1
      %p172 = scmp.ne.s32.totalorder %s167, %s169
      %p173 = scmp.eq.s32.totalorder %s28, 0
      %p174 = por %p172, %p173
      %p175 = scmp.ne.s32.totalorder %s167, %s169
      %p176 = scmp.eq.s32.totalorder %s33, 1
      %p177 = por %p175, %p176
      %p178 = scmp.ne.s32.totalorder %s169, %s170
      %p179 = scmp.eq.s32.totalorder %s33, 0
      %p180 = por %p178, %p179
      %p181 = scmp.ne.s32.totalorder %s169, %s170
      %p182 = scmp.eq.s32.totalorder %s34, 1
      %p183 = por %p181, %p182
      %p185 = scmp.ne.s32.totalorder %s170, %s184
      %p186 = scmp.eq.s32.totalorder %s34, 0
      %p187 = por %p185, %p186
      %s189 = sadd.s32 %s188, 1
      %p192 = scmp.eq.s32.totalorder %s28, 1
      %p193 = scmp.ne.s32.totalorder %s188, %s190
      %p194 = scmp.eq.s32.totalorder %s28, 0
      %p195 = por %p193, %p194
      %p196 = scmp.ne.s32.totalorder %s188, %s190
      %p197 = scmp.eq.s32.totalorder %s33, 1
      %p198 = por %p196, %p197
      %p199 = scmp.ne.s32.totalorder %s190, %s191
      %p200 = scmp.eq.s32.totalorder %s33, 0
      %p201 = por %p199, %p200
      %p202 = scmp.ne.s32.totalorder %s190, %s191
      %p203 = scmp.eq.s32.totalorder %s34, 1
      %p204 = por %p202, %p203
      %p206 = scmp.ne.s32.totalorder %s191, %s205
      %p207 = scmp.eq.s32.totalorder %s34, 0
      %p208 = por %p206, %p207
      %s210 = sadd.s32 %s209, 1
      %p213 = scmp.eq.s32.totalorder %s28, 1
      %p214 = scmp.ne.s32.totalorder %s209, %s211
      %p215 = scmp.eq.s32.totalorder %s28, 0
      %p216 = por %p214, %p215
      %p217 = scmp.ne.s32.totalorder %s209, %s211
      %p218 = scmp.eq.s32.totalorder %s33, 1
      %p219 = por %p217, %p218
      %p220 = scmp.ne.s32.totalorder %s211, %s212
      %p221 = scmp.eq.s32.totalorder %s33, 0
      %p222 = por %p220, %p221
      %p223 = scmp.ne.s32.totalorder %s211, %s212
      %p224 = scmp.eq.s32.totalorder %s34, 1
      %p225 = por %p223, %p224
      %p227 = scmp.ne.s32.totalorder %s212, %s226
      %p228 = scmp.eq.s32.totalorder %s34, 0
      %p229 = por %p227, %p228
      %s231 = sadd.s32 %s230, 1
      %p234 = scmp.eq.s32.totalorder %s28, 1
      %p235 = scmp.ne.s32.totalorder %s230, %s232
      %p236 = scmp.eq.s32.totalorder %s28, 0
      %p237 = por %p235, %p236
      %p238 = scmp.ne.s32.totalorder %s230, %s232
      %p239 = scmp.eq.s32.totalorder %s33, 1
      %p240 = por %p238, %p239
      %p241 = scmp.ne.s32.totalorder %s232, %s233
      %p242 = scmp.eq.s32.totalorder %s33, 0
      %p243 = por %p241, %p242
      %p244 = scmp.ne.s32.totalorder %s232, %s233
      %p245 = scmp.eq.s32.totalorder %s34, 1
      %p246 = por %p244, %p245
      %p248 = scmp.ne.s32.totalorder %s233, %s247
      %p249 = scmp.eq.s32.totalorder %s34, 0
      %p250 = por %p248, %p249
      %s252 = sadd.s32 %s251, 1
      %p255 = scmp.eq.s32.totalorder %s28, 1
      %p256 = scmp.ne.s32.totalorder %s251, %s253
      %p257 = scmp.eq.s32.totalorder %s28, 0
      %p258 = por %p256, %p257
      %p259 = scmp.ne.s32.totalorder %s251, %s253
      %p260 = scmp.eq.s32.totalorder %s33, 1
      %p261 = por %p259, %p260
      %p262 = scmp.ne.s32.totalorder %s253, %s254
      %p263 = scmp.eq.s32.totalorder %s33, 0
      %p264 = por %p262, %p263
      %p265 = scmp.ne.s32.totalorder %s253, %s254
      %p266 = scmp.eq.s32.totalorder %s34, 1
      %p267 = por %p265, %p266
      %p269 = scmp.ne.s32.totalorder %s254, %s268
      %p270 = scmp.eq.s32.totalorder %s34, 0
      %p271 = por %p269, %p270
      %s273 = sadd.s32 %s272, 1
      %p276 = scmp.eq.s32.totalorder %s28, 1
      %p277 = scmp.ne.s32.totalorder %s272, %s274
      %p278 = scmp.eq.s32.totalorder %s28, 0
      %p279 = por %p277, %p278
      %p280 = scmp.ne.s32.totalorder %s272, %s274
      %p281 = scmp.eq.s32.totalorder %s33, 1
      %p282 = por %p280, %p281
      %p283 = scmp.ne.s32.totalorder %s274, %s275
      %p284 = scmp.eq.s32.totalorder %s33, 0
      %p285 = por %p283, %p284
      %p286 = scmp.ne.s32.totalorder %s274, %s275
      %p287 = scmp.eq.s32.totalorder %s34, 1
      %p288 = por %p286, %p287
      %p290 = scmp.ne.s32.totalorder %s275, %s289
      %p291 = scmp.eq.s32.totalorder %s34, 0
      %p292 = por %p290, %p291
      %s294 = sadd.s32 %s293, 1
      %p297 = scmp.eq.s32.totalorder %s28, 1
      %p298 = scmp.ne.s32.totalorder %s293, %s295
      %p299 = scmp.eq.s32.totalorder %s28, 0
      %p300 = por %p298, %p299
      %p301 = scmp.ne.s32.totalorder %s293, %s295
      %p302 = scmp.eq.s32.totalorder %s33, 1
      %p303 = por %p301, %p302
      %p304 = scmp.ne.s32.totalorder %s295, %s296
      %p305 = scmp.eq.s32.totalorder %s33, 0
      %p306 = por %p304, %p305
      %p307 = scmp.ne.s32.totalorder %s295, %s296
      %p308 = scmp.eq.s32.totalorder %s34, 1
      %p309 = por %p307, %p308
      %p311 = scmp.ne.s32.totalorder %s296, %s310
      %p312 = scmp.eq.s32.totalorder %s34, 0
      %p313 = por %p311, %p312
      %s315 = sadd.s32 %s314, 1
      %p318 = scmp.eq.s32.totalorder %s28, 1
      %p319 = scmp.ne.s32.totalorder %s314, %s316
      %p320 = scmp.eq.s32.totalorder %s28, 0
      %p321 = por %p319, %p320
      %p322 = scmp.ne.s32.totalorder %s314, %s316
      %p323 = scmp.eq.s32.totalorder %s33, 1
      %p324 = por %p322, %p323
      %p325 = scmp.ne.s32.totalorder %s316, %s317
      %p326 = scmp.eq.s32.totalorder %s33, 0
      %p327 = por %p325, %p326
      %p328 = scmp.ne.s32.totalorder %s316, %s317
      %p329 = scmp.eq.s32.totalorder %s34, 1
      %p330 = por %p328, %p329
      %p332 = scmp.ne.s32.totalorder %s317, %s331
      %p333 = scmp.eq.s32.totalorder %s34, 0
      %p334 = por %p332, %p333
      %s336 = sadd.s32 %s335, 1
      %p339 = scmp.eq.s32.totalorder %s28, 1
      %p340 = scmp.ne.s32.totalorder %s335, %s337
      %p341 = scmp.eq.s32.totalorder %s28, 0
      %p342 = por %p340, %p341
      %p343 = scmp.ne.s32.totalorder %s335, %s337
      %p344 = scmp.eq.s32.totalorder %s33, 1
      %p345 = por %p343, %p344
      %p346 = scmp.ne.s32.totalorder %s337, %s338
      %p347 = scmp.eq.s32.totalorder %s33, 0
      %p348 = por %p346, %p347
      %p349 = scmp.ne.s32.totalorder %s337, %s338
      %p350 = scmp.eq.s32.totalorder %s34, 1
      %p351 = por %p349, %p350
      %p353 = scmp.ne.s32.totalorder %s338, %s352
      %p354 = scmp.eq.s32.totalorder %s34, 0
      %p355 = por %p353, %p354
      %s357 = sadd.s32 %s356, 1
      %p360 = scmp.eq.s32.totalorder %s28, 1
      %p361 = scmp.ne.s32.totalorder %s356, %s358
      %p362 = scmp.eq.s32.totalorder %s28, 0
      %p363 = por %p361, %p362
      %p364 = scmp.ne.s32.totalorder %s356, %s358
      %p365 = scmp.eq.s32.totalorder %s33, 1
      %p366 = por %p364, %p365
      %p367 = scmp.ne.s32.totalorder %s358, %s359
      %p368 = scmp.eq.s32.totalorder %s33, 0
      %p369 = por %p367, %p368
      %p370 = scmp.ne.s32.totalorder %s358, %s359
      %p371 = scmp.eq.s32.totalorder %s34, 1
      %p372 = por %p370, %p371
      %p374 = scmp.ne.s32.totalorder %s359, %s373
      %p375 = scmp.eq.s32.totalorder %s34, 0
      %p376 = por %p374, %p375
      %s378 = sadd.s32 %s377, 1
      %p381 = scmp.eq.s32.totalorder %s28, 1
      %p382 = scmp.ne.s32.totalorder %s377, %s379
      %p383 = scmp.eq.s32.totalorder %s28, 0
      %p384 = por %p382, %p383
      %p385 = scmp.ne.s32.totalorder %s377, %s379
      %p386 = scmp.eq.s32.totalorder %s33, 1
      %p387 = por %p385, %p386
      %p388 = scmp.ne.s32.totalorder %s379, %s380
      %p389 = scmp.eq.s32.totalorder %s33, 0
      %p390 = por %p388, %p389
      %p391 = scmp.ne.s32.totalorder %s379, %s380
      %p392 = scmp.eq.s32.totalorder %s34, 1
      %p393 = por %p391, %p392
      %p395 = scmp.ne.s32.totalorder %s380, %s394
      %p396 = scmp.eq.s32.totalorder %s34, 0
      %p397 = por %p395, %p396
      %s399 = sadd.s32 %s398, 1
      %p402 = scmp.eq.s32.totalorder %s28, 1
      %p403 = scmp.ne.s32.totalorder %s398, %s400
      %p404 = scmp.eq.s32.totalorder %s28, 0
      %p405 = por %p403, %p404
      %p406 = scmp.ne.s32.totalorder %s398, %s400
      %p407 = scmp.eq.s32.totalorder %s33, 1
      %p408 = por %p406, %p407
      %p409 = scmp.ne.s32.totalorder %s400, %s401
      %p410 = scmp.eq.s32.totalorder %s33, 0
      %p411 = por %p409, %p410
      %p412 = scmp.ne.s32.totalorder %s400, %s401
      %p413 = scmp.eq.s32.totalorder %s34, 1
      %p414 = por %p412, %p413
      %p416 = scmp.ne.s32.totalorder %s401, %s415
      %p417 = scmp.eq.s32.totalorder %s34, 0
      %p418 = por %p416, %p417
      %s420 = sadd.s32 %s419, 1
      %p423 = scmp.eq.s32.totalorder %s28, 1
      %p424 = scmp.ne.s32.totalorder %s419, %s421
      %p425 = scmp.eq.s32.totalorder %s28, 0
      %p426 = por %p424, %p425
      %p427 = scmp.ne.s32.totalorder %s419, %s421
      %p428 = scmp.eq.s32.totalorder %s33, 1
      %p429 = por %p427, %p428
      %p430 = scmp.ne.s32.totalorder %s421, %s422
      %p431 = scmp.eq.s32.totalorder %s33, 0
      %p432 = por %p430, %p431
      %p433 = scmp.ne.s32.totalorder %s421, %s422
      %p434 = scmp.eq.s32.totalorder %s34, 1
      %p435 = por %p433, %p434
      %p437 = scmp.ne.s32.totalorder %s422, %s436
      %p438 = scmp.eq.s32.totalorder %s34, 0
      %p439 = por %p437, %p438
      %s440 = ssub.s32 %s28, %s35
      %p441 = scmp.eq.s32.totalorder %s440, 0
      %s443 = sadd.s32 %s442, 1
      %s444 = scalar_select %p441, %s442, %s443
      %p447 = pneg %p441
      %p448 = scmp.eq.s32.totalorder %s28, 1
      %p449 = por %p447, %p448
      %p450 = scmp.ne.s32.totalorder %s442, %s445
      %p451 = scmp.eq.s32.totalorder %s28, 0
      %p452 = por %p450, %p451
      %p453 = scmp.ne.s32.totalorder %s442, %s445
      %p454 = scmp.eq.s32.totalorder %s33, 1
      %p455 = por %p453, %p454
      %p456 = scmp.ne.s32.totalorder %s445, %s446
      %p457 = scmp.eq.s32.totalorder %s33, 0
      %p458 = por %p456, %p457
      %p459 = scmp.ne.s32.totalorder %s445, %s446
      %p460 = scmp.eq.s32.totalorder %s34, 1
      %p461 = por %p459, %p460
      %p463 = scmp.ne.s32.totalorder %s446, %s462
      %p464 = scmp.eq.s32.totalorder %s34, 0
      %p465 = por %p463, %p464
      %p466 = scmp.le.s32.totalorder 1, %s28
      %p467 = scmp.lt.s32.totalorder %s28, 3
      %p468 = pnand %p466, %p467
      %p469 = pneg %p468
      // Predicated region
      $region9: #{m5_forward.1} parent=5 // pred_check
        _
      $region10: #{m5_forward.1} parent=5 // pred_check_branch
        %471 = sbr.rel (%p468) target = $region12
      $region11: #{m5_forward.1} parent=5 // pred_region
        %s472 = ssub.s32 %s28, 1
        // Predicated region
        $region13: #{m5_forward.1} parent=11 // pred_check
          %p473 = pneg %p75
        $region14: #{m5_forward.1} parent=11 // pred_check_branch
          %475 = sbr.rel (%p473) target = $region16
        $region15: #{m5_forward.1} parent=11 // pred_region
          _
        $region16: #{m5_forward.1} parent=11 // pred_fallthru
          _
        // Predicated region
        $region17: #{m5_forward.1} parent=11 // pred_check
          %p476 = pneg %p96
        $region18: #{m5_forward.1} parent=11 // pred_check_branch
          %478 = sbr.rel (%p476) target = $region20
        $region19: #{m5_forward.1} parent=11 // pred_region
          _
        $region20: #{m5_forward.1} parent=11 // pred_fallthru
          _
        // Predicated region
        $region21: #{m5_forward.1} parent=11 // pred_check
          %p479 = pneg %p117
        $region22: #{m5_forward.1} parent=11 // pred_check_branch
          %481 = sbr.rel (%p479) target = $region24
        $region23: #{m5_forward.1} parent=11 // pred_region
          _
        $region24: #{m5_forward.1} parent=11 // pred_fallthru
          _
        // Predicated region
        $region25: #{m5_forward.1} parent=11 // pred_check
          %p482 = pneg %p138
        $region26: #{m5_forward.1} parent=11 // pred_check_branch
          %484 = sbr.rel (%p482) target = $region28
        $region27: #{m5_forward.1} parent=11 // pred_region
          _
        $region28: #{m5_forward.1} parent=11 // pred_fallthru
          _
        // Predicated region
        $region29: #{m5_forward.1} parent=11 // pred_check
          %p485 = pneg %p159
        $region30: #{m5_forward.1} parent=11 // pred_check_branch
          %487 = sbr.rel (%p485) target = $region32
        $region31: #{m5_forward.1} parent=11 // pred_region
          _
        $region32: #{m5_forward.1} parent=11 // pred_fallthru
          _
        // Predicated region
        $region33: #{m5_forward.1} parent=11 // pred_check
          %p488 = pneg %p180
        $region34: #{m5_forward.1} parent=11 // pred_check_branch
          %490 = sbr.rel (%p488) target = $region36
        $region35: #{m5_forward.1} parent=11 // pred_region
          _
        $region36: #{m5_forward.1} parent=11 // pred_fallthru
          _
        // Predicated region
        $region37: #{m5_forward.1} parent=11 // pred_check
          %p491 = pneg %p201
        $region38: #{m5_forward.1} parent=11 // pred_check_branch
          %493 = sbr.rel (%p491) target = $region40
        $region39: #{m5_forward.1} parent=11 // pred_region
          _
        $region40: #{m5_forward.1} parent=11 // pred_fallthru
          _
        // Predicated region
        $region41: #{m5_forward.1} parent=11 // pred_check
          %p494 = pneg %p222
        $region42: #{m5_forward.1} parent=11 // pred_check_branch
          %496 = sbr.rel (%p494) target = $region44
        $region43: #{m5_forward.1} parent=11 // pred_region
          _
        $region44: #{m5_forward.1} parent=11 // pred_fallthru
          _
        // Predicated region
        $region45: #{m5_forward.1} parent=11 // pred_check
          %p497 = pneg %p243
        $region46: #{m5_forward.1} parent=11 // pred_check_branch
          %499 = sbr.rel (%p497) target = $region48
        $region47: #{m5_forward.1} parent=11 // pred_region
          _
        $region48: #{m5_forward.1} parent=11 // pred_fallthru
          _
        // Predicated region
        $region49: #{m5_forward.1} parent=11 // pred_check
          %p500 = pneg %p264
        $region50: #{m5_forward.1} parent=11 // pred_check_branch
          %502 = sbr.rel (%p500) target = $region52
        $region51: #{m5_forward.1} parent=11 // pred_region
          _
        $region52: #{m5_forward.1} parent=11 // pred_fallthru
          _
        // Predicated region
        $region53: #{m5_forward.1} parent=11 // pred_check
          %p503 = pneg %p285
        $region54: #{m5_forward.1} parent=11 // pred_check_branch
          %505 = sbr.rel (%p503) target = $region56
        $region55: #{m5_forward.1} parent=11 // pred_region
          _
        $region56: #{m5_forward.1} parent=11 // pred_fallthru
          _
        // Predicated region
        $region57: #{m5_forward.1} parent=11 // pred_check
          %p506 = pneg %p306
        $region58: #{m5_forward.1} parent=11 // pred_check_branch
          %508 = sbr.rel (%p506) target = $region60
        $region59: #{m5_forward.1} parent=11 // pred_region
          _
        $region60: #{m5_forward.1} parent=11 // pred_fallthru
          _
        // Predicated region
        $region61: #{m5_forward.1} parent=11 // pred_check
          %p509 = pneg %p327
        $region62: #{m5_forward.1} parent=11 // pred_check_branch
          %511 = sbr.rel (%p509) target = $region64
        $region63: #{m5_forward.1} parent=11 // pred_region
          _
        $region64: #{m5_forward.1} parent=11 // pred_fallthru
          _
        // Predicated region
        $region65: #{m5_forward.1} parent=11 // pred_check
          %p512 = pneg %p348
        $region66: #{m5_forward.1} parent=11 // pred_check_branch
          %514 = sbr.rel (%p512) target = $region68
        $region67: #{m5_forward.1} parent=11 // pred_region
          _
        $region68: #{m5_forward.1} parent=11 // pred_fallthru
          _
        // Predicated region
        $region69: #{m5_forward.1} parent=11 // pred_check
          %p515 = pneg %p369
        $region70: #{m5_forward.1} parent=11 // pred_check_branch
          %517 = sbr.rel (%p515) target = $region72
        $region71: #{m5_forward.1} parent=11 // pred_region
          _
        $region72: #{m5_forward.1} parent=11 // pred_fallthru
          _
        // Predicated region
        $region73: #{m5_forward.1} parent=11 // pred_check
          %p518 = pneg %p390
        $region74: #{m5_forward.1} parent=11 // pred_check_branch
          %520 = sbr.rel (%p518) target = $region76
        $region75: #{m5_forward.1} parent=11 // pred_region
          _
        $region76: #{m5_forward.1} parent=11 // pred_fallthru
          _
        // Predicated region
        $region77: #{m5_forward.1} parent=11 // pred_check
          %p521 = pneg %p411
        $region78: #{m5_forward.1} parent=11 // pred_check_branch
          %523 = sbr.rel (%p521) target = $region80
        $region79: #{m5_forward.1} parent=11 // pred_region
          _
        $region80: #{m5_forward.1} parent=11 // pred_fallthru
          _
        // Predicated region
        $region81: #{m5_forward.1} parent=11 // pred_check
          %p524 = pneg %p432
        $region82: #{m5_forward.1} parent=11 // pred_check_branch
          %526 = sbr.rel (%p524) target = $region84
        $region83: #{m5_forward.1} parent=11 // pred_region
          _
        $region84: #{m5_forward.1} parent=11 // pred_fallthru
          _
      $region12: #{m5_forward.1} parent=5 // pred_fallthru
        _
      %p527 = scmp.lt.s32.totalorder %s28, 2
      // Predicated region
      $region85: #{m5_forward.1} parent=5 // pred_check
        %p528 = pneg %p527
      $region86: #{m5_forward.1} parent=5 // pred_check_branch
        %530 = sbr.rel (%p528) target = $region88
      $region87: #{m5_forward.1} parent=5 // pred_region
        // Predicated region
        $region89: #{m5_forward.1} parent=87 // pred_check
          %p531 = pneg %p48
        $region90: #{m5_forward.1} parent=87 // pred_check_branch
          %533 = sbr.rel (%p531) target = $region92
        $region91: #{m5_forward.1} parent=87 // pred_region
          %p534 = scmp.lt.s32.totalorder %s28, 1
          %s535 = scalar_select %p534, %s28, 1
          %s536 = smul.addr %s535, 63
          %s537 = smul.addr %s536, 8
          %s538 = scalar_lea.vmem %s0, %s537
        $region92: #{m5_forward.1} parent=87 // pred_fallthru
          _
      $region88: #{m5_forward.1} parent=5 // pred_fallthru
        _
      %p539 = scmp.le.s32.totalorder 1, %s28
      %p540 = scmp.lt.s32.totalorder %s28, 3
      %p541 = pnand %p539, %p540
      %p542 = pneg %p541
      // Predicated region
      $region93: #{m5_forward.1} parent=5 // pred_check
        _
      $region94: #{m5_forward.1} parent=5 // pred_check_branch
        %544 = sbr.rel (%p541) target = $region96
      $region95: #{m5_forward.1} parent=5 // pred_region
        %s545 = ssub.s32 %s28, 1
        %p546 = scmp.lt.s32.totalorder %s33, 1
        %s547 = scalar_select %p546, %s33, 1
        %s548 = smul.addr %s547, 63
        %s549 = smul.addr %s548, 8
        %s550 = scalar_lea.vmem %s0, %s549
        %p551 = pneg %p54
        %p552 = pneg %p51
        %p553 = pneg %p75
        %p554 = pneg %p72
        %p555 = pneg %p96
        %p556 = pneg %p93
        %p557 = pneg %p117
        %p558 = pneg %p114
        %p559 = pneg %p138
        %p560 = pneg %p135
        %p561 = pneg %p159
        %p562 = pneg %p156
        %p563 = pneg %p180
        %p564 = pneg %p177
        %p565 = pneg %p201
        %p566 = pneg %p198
        %p567 = pneg %p222
        %p568 = pneg %p219
        %p569 = pneg %p243
        %p570 = pneg %p240
        %p571 = pneg %p264
        %p572 = pneg %p261
        %p573 = pneg %p285
        %p574 = pneg %p282
        %p575 = pneg %p306
        %p576 = pneg %p303
        %p577 = pneg %p327
        %p578 = pneg %p324
        %p579 = pneg %p348
        %p580 = pneg %p345
        %p581 = pneg %p369
        %p582 = pneg %p366
        %p583 = pneg %p390
        %p584 = pneg %p387
        %p585 = pneg %p411
        %p586 = pneg %p408
        %p587 = pneg %p432
        %p588 = pneg %p429
        %p589 = pneg %p458
        %p590 = pneg %p455
        %s591 = sand.u32 %s445, 1
        %s592 = scalar_lea.sflag [#allocation10], %s591
        %s593 = sand.u32 %s445, 1
        %s594 = scalar_lea.vmem [#allocation9], %s593
        %p595 = scmp.lt.s32.totalorder %s33, 1
        %s596 = scalar_select %p595, %s33, 1
        %s597 = smul.addr %s596, 63
        %s598 = smul.addr %s597, 8
        %s599 = scalar_lea.vmem %s0, %s598
        %v600 = vld [vmem:[%s599] sm:$0xff]
        %v601 = vld [vmem:[%s599 + $0x8] sm:$0xff]
        %v602 = vld [vmem:[%s599 + $0x10] sm:$0xff]
        %v603 = vld [vmem:[%s599 + $0x18] sm:$0xff]
        %v604 = vld [vmem:[%s599 + $0x20] sm:$0xff]
        %v605 = vld [vmem:[%s599 + $0x28] sm:$0xff]
        %v606 = vld [vmem:[%s599 + $0x30] sm:$0xff]
        %v607 = vld [vmem:[%s599 + $0x38] sm:$0xff]
        %v608 = vld [vmem:[%s599 + $0x40] sm:$0xff]
        %v609 = vld [vmem:[%s599 + $0x48] sm:$0xff]
        %v610 = vld [vmem:[%s599 + $0x50] sm:$0xff]
        %v611 = vld [vmem:[%s599 + $0x58] sm:$0xff]
        %v612 = vld [vmem:[%s599 + $0x60] sm:$0xff]
        %v613 = vld [vmem:[%s599 + $0x68] sm:$0xff]
        %v614 = vld [vmem:[%s599 + $0x70] sm:$0xff]
        %v615 = vld [vmem:[%s599 + $0x78] sm:$0xff]
        %v616 = vld [vmem:[%s599 + $0x80] sm:$0xff]
        %v617 = vld [vmem:[%s599 + $0x88] sm:$0xff]
        %v618 = vld [vmem:[%s599 + $0x90] sm:$0xff]
        %v619 = vld [vmem:[%s599 + $0x98] sm:$0xff]
        %v620 = vld [vmem:[%s599 + $0xa0] sm:$0xff]
        %v621 = vld [vmem:[%s599 + $0xa8] sm:$0xff]
        %v622 = vld [vmem:[%s599 + $0xb0] sm:$0xff]
        %v623 = vld [vmem:[%s599 + $0xb8] sm:$0xff]
        %v624 = vld [vmem:[%s599 + $0xc0] sm:$0xff]
        %v625 = vld [vmem:[%s599 + $0xc8] sm:$0xff]
        %v626 = vld [vmem:[%s599 + $0xd0] sm:$0xff]
        %v627 = vld [vmem:[%s599 + $0xd8] sm:$0xff]
        %v628 = vld [vmem:[%s599 + $0xe0] sm:$0xff]
        %v629 = vld [vmem:[%s599 + $0xe8] sm:$0xff]
        %v630 = vld [vmem:[%s599 + $0xf0] sm:$0xff]
        %v631 = vld [vmem:[%s599 + $0xf8] sm:$0xff]
        %v632 = vld [vmem:[%s599 + $0x100] sm:$0xff]
        %v633 = vld [vmem:[%s599 + $0x108] sm:$0xff]
        %v634 = vld [vmem:[%s599 + $0x110] sm:$0xff]
        %v635 = vld [vmem:[%s599 + $0x118] sm:$0xff]
        %v636 = vld [vmem:[%s599 + $0x120] sm:$0xff]
        %v637 = vld [vmem:[%s599 + $0x128] sm:$0xff]
        %v638 = vld [vmem:[%s599 + $0x130] sm:$0xff]
        %v639 = vld [vmem:[%s599 + $0x138] sm:$0xff]
        %v640 = vld [vmem:[%s599 + $0x140] sm:$0xff]
        %v641 = vld [vmem:[%s599 + $0x148] sm:$0xff]
        %v642 = vld [vmem:[%s599 + $0x150] sm:$0xff]
        %v643 = vld [vmem:[%s599 + $0x158] sm:$0xff]
        %v644 = vld [vmem:[%s599 + $0x160] sm:$0xff]
        %v645 = vld [vmem:[%s599 + $0x168] sm:$0xff]
        %v646 = vld [vmem:[%s599 + $0x170] sm:$0xff]
        %v647 = vld [vmem:[%s599 + $0x178] sm:$0xff]
        %v648 = vld [vmem:[%s599 + $0x180] sm:$0xff]
        %v649 = vld [vmem:[%s599 + $0x188] sm:$0xff]
        %v650 = vld [vmem:[%s599 + $0x190] sm:$0xff]
        %v651 = vld [vmem:[%s599 + $0x198] sm:$0xff]
        %v652 = vld [vmem:[%s599 + $0x1a0] sm:$0xff]
        %v653 = vld [vmem:[%s599 + $0x1a8] sm:$0xff]
        %v654 = vld [vmem:[%s599 + $0x1b0] sm:$0xff]
        %v655 = vld [vmem:[%s599 + $0x1b8] sm:$0xff]
        %v656 = vld [vmem:[%s599 + $0x1c0] sm:$0xff]
        %v657 = vld [vmem:[%s599 + $0x1c8] sm:$0xff]
        %v658 = vld [vmem:[%s599 + $0x1d0] sm:$0xff]
        %v659 = vld [vmem:[%s599 + $0x1d8] sm:$0xff]
        %v660 = vld [vmem:[%s599 + $0x1e0] sm:$0xff]
        %v661 = vld [vmem:[%s599 + $0x1e8] sm:$0xff]
        %v662 = vld [vmem:[%s1] sm:$0xff]
        %v663 = vld [vmem:[%s1 + $0x8] sm:$0xff]
        %v664 = vld [vmem:[%s599 + $0x1] sm:$0xff]
        %v665 = vld [vmem:[%s599 + $0x9] sm:$0xff]
        %v666 = vld [vmem:[%s599 + $0x11] sm:$0xff]
        %v667 = vld [vmem:[%s599 + $0x19] sm:$0xff]
        %v668 = vld [vmem:[%s599 + $0x21] sm:$0xff]
        %v669 = vld [vmem:[%s599 + $0x29] sm:$0xff]
        %v670 = vld [vmem:[%s599 + $0x31] sm:$0xff]
        %v671 = vld [vmem:[%s599 + $0x39] sm:$0xff]
        %v672 = vld [vmem:[%s599 + $0x41] sm:$0xff]
        %v673 = vld [vmem:[%s599 + $0x49] sm:$0xff]
        %v674 = vld [vmem:[%s599 + $0x51] sm:$0xff]
        %v675 = vld [vmem:[%s599 + $0x59] sm:$0xff]
        %v676 = vld [vmem:[%s599 + $0x61] sm:$0xff]
        %v677 = vld [vmem:[%s599 + $0x69] sm:$0xff]
        %v678 = vld [vmem:[%s599 + $0x71] sm:$0xff]
        %v679 = vld [vmem:[%s599 + $0x79] sm:$0xff]
        %v680 = vld [vmem:[%s599 + $0x81] sm:$0xff]
        %v681 = vld [vmem:[%s599 + $0x89] sm:$0xff]
        %v682 = vld [vmem:[%s599 + $0x91] sm:$0xff]
        %v683 = vld [vmem:[%s599 + $0x99] sm:$0xff]
        %v684 = vld [vmem:[%s599 + $0xa1] sm:$0xff]
        %v685 = vld [vmem:[%s599 + $0xa9] sm:$0xff]
        %v686 = vld [vmem:[%s599 + $0xb1] sm:$0xff]
        %v687 = vld [vmem:[%s599 + $0xb9] sm:$0xff]
        %v688 = vld [vmem:[%s599 + $0xc1] sm:$0xff]
        %v689 = vld [vmem:[%s599 + $0xc9] sm:$0xff]
        %v690 = vld [vmem:[%s599 + $0xd1] sm:$0xff]
        %v691 = vld [vmem:[%s599 + $0xd9] sm:$0xff]
        %v692 = vld [vmem:[%s599 + $0xe1] sm:$0xff]
        %v693 = vld [vmem:[%s599 + $0xe9] sm:$0xff]
        %v694 = vld [vmem:[%s599 + $0xf1] sm:$0xff]
        %v695 = vld [vmem:[%s599 + $0xf9] sm:$0xff]
        %v696 = vld [vmem:[%s599 + $0x101] sm:$0xff]
        %v697 = vld [vmem:[%s599 + $0x109] sm:$0xff]
        %v698 = vld [vmem:[%s599 + $0x111] sm:$0xff]
        %v699 = vld [vmem:[%s599 + $0x119] sm:$0xff]
        %v700 = vld [vmem:[%s599 + $0x121] sm:$0xff]
        %v701 = vld [vmem:[%s599 + $0x129] sm:$0xff]
        %v702 = vld [vmem:[%s599 + $0x131] sm:$0xff]
        %v703 = vld [vmem:[%s599 + $0x139] sm:$0xff]
        %v704 = vld [vmem:[%s599 + $0x141] sm:$0xff]
        %v705 = vld [vmem:[%s599 + $0x149] sm:$0xff]
        %v706 = vld [vmem:[%s599 + $0x151] sm:$0xff]
        %v707 = vld [vmem:[%s599 + $0x159] sm:$0xff]
        %v708 = vld [vmem:[%s599 + $0x161] sm:$0xff]
        %v709 = vld [vmem:[%s599 + $0x169] sm:$0xff]
        %v710 = vld [vmem:[%s599 + $0x171] sm:$0xff]
        %v711 = vld [vmem:[%s599 + $0x179] sm:$0xff]
        %v712 = vld [vmem:[%s599 + $0x181] sm:$0xff]
        %v713 = vld [vmem:[%s599 + $0x189] sm:$0xff]
        %v714 = vld [vmem:[%s599 + $0x191] sm:$0xff]
        %v715 = vld [vmem:[%s599 + $0x199] sm:$0xff]
        %v716 = vld [vmem:[%s599 + $0x1a1] sm:$0xff]
        %v717 = vld [vmem:[%s599 + $0x1a9] sm:$0xff]
        %v718 = vld [vmem:[%s599 + $0x1b1] sm:$0xff]
        %v719 = vld [vmem:[%s599 + $0x1b9] sm:$0xff]
        %v720 = vld [vmem:[%s599 + $0x1c1] sm:$0xff]
        %v721 = vld [vmem:[%s599 + $0x1c9] sm:$0xff]
        %v722 = vld [vmem:[%s599 + $0x1d1] sm:$0xff]
        %v723 = vld [vmem:[%s599 + $0x1d9] sm:$0xff]
        %v724 = vld [vmem:[%s599 + $0x1e1] sm:$0xff]
        %v725 = vld [vmem:[%s599 + $0x1e9] sm:$0xff]
        %s726 = scalar_lea.vmem %s1, 16
        %v727 = vld [vmem:[%s726] sm:$0xff]
        %v728 = vld [vmem:[%s726 + $0x8] sm:$0xff]
        %vm729 = vcmask 130048
        %v731 = vsel %vm729, %v664, 0
        %v734 = vsel %vm729, %v665, 0
        %v737 = vsel %vm729, %v666, 0
        %v740 = vsel %vm729, %v667, 0
        %v743 = vsel %vm729, %v668, 0
        %v746 = vsel %vm729, %v669, 0
        %v749 = vsel %vm729, %v670, 0
        %v752 = vsel %vm729, %v671, 0
        %v755 = vsel %vm729, %v672, 0
        %v758 = vsel %vm729, %v673, 0
        %v761 = vsel %vm729, %v674, 0
        %v764 = vsel %vm729, %v675, 0
        %v767 = vsel %vm729, %v676, 0
        %v770 = vsel %vm729, %v677, 0
        %v773 = vsel %vm729, %v678, 0
        %v776 = vsel %vm729, %v679, 0
        %v779 = vsel %vm729, %v680, 0
        %v782 = vsel %vm729, %v681, 0
        %v785 = vsel %vm729, %v682, 0
        %v788 = vsel %vm729, %v683, 0
        %v791 = vsel %vm729, %v684, 0
        %v794 = vsel %vm729, %v685, 0
        %v797 = vsel %vm729, %v686, 0
        %v800 = vsel %vm729, %v687, 0
        %v803 = vsel %vm729, %v688, 0
        %v806 = vsel %vm729, %v689, 0
        %v809 = vsel %vm729, %v690, 0
        %v812 = vsel %vm729, %v691, 0
        %v815 = vsel %vm729, %v692, 0
        %v818 = vsel %vm729, %v693, 0
        %v821 = vsel %vm729, %v694, 0
        %v824 = vsel %vm729, %v695, 0
        %v827 = vsel %vm729, %v696, 0
        %v830 = vsel %vm729, %v697, 0
        %v833 = vsel %vm729, %v698, 0
        %v836 = vsel %vm729, %v699, 0
        %v839 = vsel %vm729, %v700, 0
        %v842 = vsel %vm729, %v701, 0
        %v845 = vsel %vm729, %v702, 0
        %v848 = vsel %vm729, %v703, 0
        %v851 = vsel %vm729, %v704, 0
        %v854 = vsel %vm729, %v705, 0
        %v857 = vsel %vm729, %v706, 0
        %v860 = vsel %vm729, %v707, 0
        %v863 = vsel %vm729, %v708, 0
        %v866 = vsel %vm729, %v709, 0
        %v869 = vsel %vm729, %v710, 0
        %v872 = vsel %vm729, %v711, 0
        %v875 = vsel %vm729, %v712, 0
        %v878 = vsel %vm729, %v713, 0
        %v881 = vsel %vm729, %v714, 0
        %v884 = vsel %vm729, %v715, 0
        %v887 = vsel %vm729, %v716, 0
        %v890 = vsel %vm729, %v717, 0
        %v893 = vsel %vm729, %v718, 0
        %v896 = vsel %vm729, %v719, 0
        %v899 = vsel %vm729, %v720, 0
        %v902 = vsel %vm729, %v721, 0
        %v905 = vsel %vm729, %v722, 0
        %v908 = vsel %vm729, %v723, 0
        %v911 = vsel %vm729, %v724, 0
        %v914 = vsel %vm729, %v725, 0
        %916 = vmatprep.subr.mxu0 0.0
        %917 = vmatpush1.msra.mxu0 %v727
        %918 = vmatprep.subr.mxu0 0.0
        %919 = vmatpush1.msra.mxu0 %v728
        %920 = vmatprep.subr.mxu0 0.0
        %921 = vmatpush1.msra.mxu0 0.0
        %922 = vmatprep.subr.mxu0 0.0
        %923 = vmatpush1.msra.mxu0 0.0
        %924 = vmatprep.subr.mxu0 0.0
        %925 = vmatpush1.msra.mxu0 0.0
        %926 = vmatprep.subr.mxu0 0.0
        %927 = vmatpush1.msra.mxu0 0.0
        %928 = vmatprep.subr.mxu0 0.0
        %929 = vmatpush1.msra.mxu0 0.0
        %930 = vmatprep.subr.mxu0 0.0
        %931 = vmatpush1.msra.mxu0 0.0
        %932 = vmatprep.subr.mxu0 0.0
        %933 = vmatpush1.msra.mxu0 0.0
        %934 = vmatprep.subr.mxu0 0.0
        %935 = vmatpush1.msra.mxu0 0.0
        %936 = vmatprep.subr.mxu0 0.0
        %937 = vmatpush1.msra.mxu0 0.0
        %938 = vmatprep.subr.mxu0 0.0
        %939 = vmatpush1.msra.mxu0 0.0
        %940 = vmatprep.subr.mxu0 0.0
        %941 = vmatpush1.msra.mxu0 0.0
        %942 = vmatprep.subr.mxu0 0.0
        %943 = vmatpush1.msra.mxu0 0.0
        %944 = vmatprep.subr.mxu0 0.0
        %945 = vmatpush1.msra.mxu0 0.0
        %946 = vmatprep.subr.mxu0 0.0
        %947 = vmatpush1.msra.mxu0 0.0
        %948 = vmatprep.subr.mxu0 0.0
        %949 = vmatpush1.msra.mxu0 0.0
        %950 = vmatprep.subr.mxu0 0.0
        %951 = vmatpush1.msra.mxu0 0.0
        %952 = vmatprep.subr.mxu0 0.0
        %953 = vmatpush1.msra.mxu0 0.0
        %954 = vmatprep.subr.mxu0 0.0
        %955 = vmatpush1.msra.mxu0 0.0
        %956 = vmatprep.subr.mxu0 0.0
        %957 = vmatpush1.msra.mxu0 0.0
        %958 = vmatprep.subr.mxu0 0.0
        %959 = vmatpush1.msra.mxu0 0.0
        %960 = vmatprep.subr.mxu0 0.0
        %961 = vmatpush1.msra.mxu0 0.0
        %962 = vmatprep.subr.mxu0 0.0
        %963 = vmatpush1.msra.mxu0 0.0
        %964 = vmatprep.subr.mxu0 0.0
        %965 = vmatpush1.msra.mxu0 0.0
        %966 = vmatprep.subr.mxu0 0.0
        %967 = vmatpush1.msra.mxu0 0.0
        %968 = vmatprep.subr.mxu0 0.0
        %969 = vmatpush1.msra.mxu0 0.0
        %970 = vmatprep.subr.mxu0 0.0
        %971 = vmatpush1.msra.mxu0 0.0
        %972 = vmatprep.subr.mxu0 0.0
        %973 = vmatpush1.msra.mxu0 0.0
        %974 = vmatprep.subr.mxu0 0.0
        %975 = vmatpush1.msra.mxu0 0.0
        %976 = vmatprep.subr.mxu0 0.0
        %977 = vmatpush1.msra.mxu0 0.0
        %978 = vmatprep.subr.mxu0 0.0
        %979 = vmatpush1.msra.mxu0 0.0
        %980 = vmatprep.mubr.f32.mxu0 0.0
        %981 = vmatmul.mubr.f32.gmra.mrb[0].mxu0 %v731
        %v982 = vpop.f32.mrb[0].mxu0
        %v983 = vadd.f32 0.0, %v982
        %v984 = vpop.f32.mrb[0].mxu0
        %985 = vmatprep.mubr.f32.mxu0 0.0
        %986 = vmatmul.mubr.f32.gmra.mrb[0].mxu0 %v734
        %v987 = vpop.f32.mrb[0].mxu0
        %v988 = vadd.f32 0.0, %v987
        %v989 = vpop.f32.mrb[0].mxu0
        %990 = vmatprep.mubr.f32.mxu0 0.0
        %991 = vmatmul.mubr.f32.gmra.mrb[0].mxu0 %v737
        %v992 = vpop.f32.mrb[0].mxu0
        %v993 = vadd.f32 0.0, %v992
        %v994 = vpop.f32.mrb[0].mxu0
        %995 = vmatprep.mubr.f32.mxu0 0.0
        %996 = vmatmul.mubr.f32.gmra.mrb[0].mxu0 %v740
        %v997 = vpop.f32.mrb[0].mxu0
        %v998 = vadd.f32 0.0, %v997
        %v999 = vpop.f32.mrb[0].mxu0
        %1000 = vmatprep.mubr.f32.mxu0 0.0
        %1001 = vmatmul.mubr.f32.gmra.mrb[0].mxu0 %v743
        %v1002 = vpop.f32.mrb[0].mxu0
        %v1003 = vadd.f32 0.0, %v1002
        %v1004 = vpop.f32.mrb[0].mxu0
        %1005 = vmatprep.mubr.f32.mxu0 0.0
        %1006 = vmatmul.mubr.f32.gmra.mrb[0].mxu0 %v746
        %v1007 = vpop.f32.mrb[0].mxu0
        %v1008 = vadd.f32 0.0, %v1007
        %v1009 = vpop.f32.mrb[0].mxu0
        %1010 = vmatprep.mubr.f32.mxu0 0.0
        %1011 = vmatmul.mubr.f32.gmra.mrb[0].mxu0 %v749
        %v1012 = vpop.f32.mrb[0].mxu0
        %v1013 = vadd.f32 0.0, %v1012
        %v1014 = vpop.f32.mrb[0].mxu0
        %1015 = vmatprep.mubr.f32.mxu0 0.0
        %1016 = vmatmul.mubr.f32.gmra.mrb[0].mxu0 %v752
        %v1017 = vpop.f32.mrb[0].mxu0
        %v1018 = vadd.f32 0.0, %v1017
        %v1019 = vpop.f32.mrb[0].mxu0
        %1020 = vmatprep.mubr.f32.mxu0 0.0
        %1021 = vmatmul.mubr.f32.gmra.mrb[0].mxu0 %v755
        %v1022 = vpop.f32.mrb[0].mxu0
        %v1023 = vadd.f32 0.0, %v1022
        %v1024 = vpop.f32.mrb[0].mxu0
        %1025 = vmatprep.mubr.f32.mxu0 0.0
        %1026 = vmatmul.mubr.f32.gmra.mrb[0].mxu0 %v758
        %v1027 = vpop.f32.mrb[0].mxu0
        %v1028 = vadd.f32 0.0, %v1027
        %v1029 = vpop.f32.mrb[0].mxu0
        %1030 = vmatprep.mubr.f32.mxu0 0.0
        %1031 = vmatmul.mubr.f32.gmra.mrb[0].mxu0 %v761
        %v1032 = vpop.f32.mrb[0].mxu0
        %v1033 = vadd.f32 0.0, %v1032
        %v1034 = vpop.f32.mrb[0].mxu0
        %1035 = vmatprep.mubr.f32.mxu0 0.0
        %1036 = vmatmul.mubr.f32.gmra.mrb[0].mxu0 %v764
        %v1037 = vpop.f32.mrb[0].mxu0
        %v1038 = vadd.f32 0.0, %v1037
        %v1039 = vpop.f32.mrb[0].mxu0
        %1040 = vmatprep.mubr.f32.mxu0 0.0
        %1041 = vmatmul.mubr.f32.gmra.mrb[0].mxu0 %v767
        %v1042 = vpop.f32.mrb[0].mxu0
        %v1043 = vadd.f32 0.0, %v1042
        %v1044 = vpop.f32.mrb[0].mxu0
        %1045 = vmatprep.mubr.f32.mxu0 0.0
        %1046 = vmatmul.mubr.f32.gmra.mrb[0].mxu0 %v770
        %v1047 = vpop.f32.mrb[0].mxu0
        %v1048 = vadd.f32 0.0, %v1047
        %v1049 = vpop.f32.mrb[0].mxu0
        %1050 = vmatprep.mubr.f32.mxu0 0.0
        %1051 = vmatmul.mubr.f32.gmra.mrb[0].mxu0 %v773
        %v1052 = vpop.f32.mrb[0].mxu0
        %v1053 = vadd.f32 0.0, %v1052
        %v1054 = vpop.f32.mrb[0].mxu0
        %1055 = vmatprep.mubr.f32.mxu0 0.0
        %1056 = vmatmul.mubr.f32.gmra.mrb[0].mxu0 %v776
        %v1057 = vpop.f32.mrb[0].mxu0
        %v1058 = vadd.f32 0.0, %v1057
        %v1059 = vpop.f32.mrb[0].mxu0
        %1060 = vmatprep.mubr.f32.mxu0 0.0
        %1061 = vmatmul.mubr.f32.gmra.mrb[0].mxu0 %v779
        %v1062 = vpop.f32.mrb[0].mxu0
        %v1063 = vadd.f32 0.0, %v1062
        %v1064 = vpop.f32.mrb[0].mxu0
        %1065 = vmatprep.mubr.f32.mxu0 0.0
        %1066 = vmatmul.mubr.f32.gmra.mrb[0].mxu0 %v782
        %v1067 = vpop.f32.mrb[0].mxu0
        %v1068 = vadd.f32 0.0, %v1067
        %v1069 = vpop.f32.mrb[0].mxu0
        %1070 = vmatprep.mubr.f32.mxu0 0.0
        %1071 = vmatmul.mubr.f32.gmra.mrb[0].mxu0 %v785
        %v1072 = vpop.f32.mrb[0].mxu0
        %v1073 = vadd.f32 0.0, %v1072
        %v1074 = vpop.f32.mrb[0].mxu0
        %1075 = vmatprep.mubr.f32.mxu0 0.0
        %1076 = vmatmul.mubr.f32.gmra.mrb[0].mxu0 %v788
        %v1077 = vpop.f32.mrb[0].mxu0
        %v1078 = vadd.f32 0.0, %v1077
        %v1079 = vpop.f32.mrb[0].mxu0
        %1080 = vmatprep.mubr.f32.mxu0 0.0
        %1081 = vmatmul.mubr.f32.gmra.mrb[0].mxu0 %v791
        %v1082 = vpop.f32.mrb[0].mxu0
        %v1083 = vadd.f32 0.0, %v1082
        %v1084 = vpop.f32.mrb[0].mxu0
        %1085 = vmatprep.mubr.f32.mxu0 0.0
        %1086 = vmatmul.mubr.f32.gmra.mrb[0].mxu0 %v794
        %v1087 = vpop.f32.mrb[0].mxu0
        %v1088 = vadd.f32 0.0, %v1087
        %v1089 = vpop.f32.mrb[0].mxu0
        %1090 = vmatprep.mubr.f32.mxu0 0.0
        %1091 = vmatmul.mubr.f32.gmra.mrb[0].mxu0 %v797
        %v1092 = vpop.f32.mrb[0].mxu0
        %v1093 = vadd.f32 0.0, %v1092
        %v1094 = vpop.f32.mrb[0].mxu0
        %1095 = vmatprep.mubr.f32.mxu0 0.0
        %1096 = vmatmul.mubr.f32.gmra.mrb[0].mxu0 %v800
        %v1097 = vpop.f32.mrb[0].mxu0
        %v1098 = vadd.f32 0.0, %v1097
        %v1099 = vpop.f32.mrb[0].mxu0
        %1100 = vmatprep.mubr.f32.mxu0 0.0
        %1101 = vmatmul.mubr.f32.gmra.mrb[0].mxu0 %v803
        %v1102 = vpop.f32.mrb[0].mxu0
        %v1103 = vadd.f32 0.0, %v1102
        %v1104 = vpop.f32.mrb[0].mxu0
        %1105 = vmatprep.mubr.f32.mxu0 0.0
        %1106 = vmatmul.mubr.f32.gmra.mrb[0].mxu0 %v806
        %v1107 = vpop.f32.mrb[0].mxu0
        %v1108 = vadd.f32 0.0, %v1107
        %v1109 = vpop.f32.mrb[0].mxu0
        %1110 = vmatprep.mubr.f32.mxu0 0.0
        %1111 = vmatmul.mubr.f32.gmra.mrb[0].mxu0 %v809
        %v1112 = vpop.f32.mrb[0].mxu0
        %v1113 = vadd.f32 0.0, %v1112
        %v1114 = vpop.f32.mrb[0].mxu0
        %1115 = vmatprep.mubr.f32.mxu0 0.0
        %1116 = vmatmul.mubr.f32.gmra.mrb[0].mxu0 %v812
        %v1117 = vpop.f32.mrb[0].mxu0
        %v1118 = vadd.f32 0.0, %v1117
        %v1119 = vpop.f32.mrb[0].mxu0
        %1120 = vmatprep.mubr.f32.mxu0 0.0
        %1121 = vmatmul.mubr.f32.gmra.mrb[0].mxu0 %v815
        %v1122 = vpop.f32.mrb[0].mxu0
        %v1123 = vadd.f32 0.0, %v1122
        %v1124 = vpop.f32.mrb[0].mxu0
        %1125 = vmatprep.mubr.f32.mxu0 0.0
        %1126 = vmatmul.mubr.f32.gmra.mrb[0].mxu0 %v818
        %v1127 = vpop.f32.mrb[0].mxu0
        %v1128 = vadd.f32 0.0, %v1127
        %v1129 = vpop.f32.mrb[0].mxu0
        %1130 = vmatprep.mubr.f32.mxu0 0.0
        %1131 = vmatmul.mubr.f32.gmra.mrb[0].mxu0 %v821
        %v1132 = vpop.f32.mrb[0].mxu0
        %v1133 = vadd.f32 0.0, %v1132
        %v1134 = vpop.f32.mrb[0].mxu0
        %1135 = vmatprep.mubr.f32.mxu0 0.0
        %1136 = vmatmul.mubr.f32.gmra.mrb[0].mxu0 %v824
        %v1137 = vpop.f32.mrb[0].mxu0
        %v1138 = vadd.f32 0.0, %v1137
        %v1139 = vpop.f32.mrb[0].mxu0
        %1140 = vmatprep.mubr.f32.mxu0 0.0
        %1141 = vmatmul.mubr.f32.gmra.mrb[0].mxu0 %v827
        %v1142 = vpop.f32.mrb[0].mxu0
        %v1143 = vadd.f32 0.0, %v1142
        %v1144 = vpop.f32.mrb[0].mxu0
        %1145 = vmatprep.mubr.f32.mxu0 0.0
        %1146 = vmatmul.mubr.f32.gmra.mrb[0].mxu0 %v830
        %v1147 = vpop.f32.mrb[0].mxu0
        %v1148 = vadd.f32 0.0, %v1147
        %v1149 = vpop.f32.mrb[0].mxu0
        %1150 = vmatprep.mubr.f32.mxu0 0.0
        %1151 = vmatmul.mubr.f32.gmra.mrb[0].mxu0 %v833
        %v1152 = vpop.f32.mrb[0].mxu0
        %v1153 = vadd.f32 0.0, %v1152
        %v1154 = vpop.f32.mrb[0].mxu0
        %1155 = vmatprep.mubr.f32.mxu0 0.0
        %1156 = vmatmul.mubr.f32.gmra.mrb[0].mxu0 %v836
        %v1157 = vpop.f32.mrb[0].mxu0
        %v1158 = vadd.f32 0.0, %v1157
        %v1159 = vpop.f32.mrb[0].mxu0
        %1160 = vmatprep.mubr.f32.mxu0 0.0
        %1161 = vmatmul.mubr.f32.gmra.mrb[0].mxu0 %v839
        %v1162 = vpop.f32.mrb[0].mxu0
        %v1163 = vadd.f32 0.0, %v1162
        %v1164 = vpop.f32.mrb[0].mxu0
        %1165 = vmatprep.mubr.f32.mxu0 0.0
        %1166 = vmatmul.mubr.f32.gmra.mrb[0].mxu0 %v842
        %v1167 = vpop.f32.mrb[0].mxu0
        %v1168 = vadd.f32 0.0, %v1167
        %v1169 = vpop.f32.mrb[0].mxu0
        %1170 = vmatprep.mubr.f32.mxu0 0.0
        %1171 = vmatmul.mubr.f32.gmra.mrb[0].mxu0 %v845
        %v1172 = vpop.f32.mrb[0].mxu0
        %v1173 = vadd.f32 0.0, %v1172
        %v1174 = vpop.f32.mrb[0].mxu0
        %1175 = vmatprep.mubr.f32.mxu0 0.0
        %1176 = vmatmul.mubr.f32.gmra.mrb[0].mxu0 %v848
        %v1177 = vpop.f32.mrb[0].mxu0
        %v1178 = vadd.f32 0.0, %v1177
        %v1179 = vpop.f32.mrb[0].mxu0
        %1180 = vmatprep.mubr.f32.mxu0 0.0
        %1181 = vmatmul.mubr.f32.gmra.mrb[0].mxu0 %v851
        %v1182 = vpop.f32.mrb[0].mxu0
        %v1183 = vadd.f32 0.0, %v1182
        %v1184 = vpop.f32.mrb[0].mxu0
        %1185 = vmatprep.mubr.f32.mxu0 0.0
        %1186 = vmatmul.mubr.f32.gmra.mrb[0].mxu0 %v854
        %v1187 = vpop.f32.mrb[0].mxu0
        %v1188 = vadd.f32 0.0, %v1187
        %v1189 = vpop.f32.mrb[0].mxu0
        %1190 = vmatprep.mubr.f32.mxu0 0.0
        %1191 = vmatmul.mubr.f32.gmra.mrb[0].mxu0 %v857
        %v1192 = vpop.f32.mrb[0].mxu0
        %v1193 = vadd.f32 0.0, %v1192
        %v1194 = vpop.f32.mrb[0].mxu0
        %1195 = vmatprep.mubr.f32.mxu0 0.0
        %1196 = vmatmul.mubr.f32.gmra.mrb[0].mxu0 %v860
        %v1197 = vpop.f32.mrb[0].mxu0
        %v1198 = vadd.f32 0.0, %v1197
        %v1199 = vpop.f32.mrb[0].mxu0
        %1200 = vmatprep.mubr.f32.mxu0 0.0
        %1201 = vmatmul.mubr.f32.gmra.mrb[0].mxu0 %v863
        %v1202 = vpop.f32.mrb[0].mxu0
        %v1203 = vadd.f32 0.0, %v1202
        %v1204 = vpop.f32.mrb[0].mxu0
        %1205 = vmatprep.mubr.f32.mxu0 0.0
        %1206 = vmatmul.mubr.f32.gmra.mrb[0].mxu0 %v866
        %v1207 = vpop.f32.mrb[0].mxu0
        %v1208 = vadd.f32 0.0, %v1207
        %v1209 = vpop.f32.mrb[0].mxu0
        %1210 = vmatprep.mubr.f32.mxu0 0.0
        %1211 = vmatmul.mubr.f32.gmra.mrb[0].mxu0 %v869
        %v1212 = vpop.f32.mrb[0].mxu0
        %v1213 = vadd.f32 0.0, %v1212
        %v1214 = vpop.f32.mrb[0].mxu0
        %1215 = vmatprep.mubr.f32.mxu0 0.0
        %1216 = vmatmul.mubr.f32.gmra.mrb[0].mxu0 %v872
        %v1217 = vpop.f32.mrb[0].mxu0
        %v1218 = vadd.f32 0.0, %v1217
        %v1219 = vpop.f32.mrb[0].mxu0
        %1220 = vmatprep.mubr.f32.mxu0 0.0
        %1221 = vmatmul.mubr.f32.gmra.mrb[0].mxu0 %v875
        %v1222 = vpop.f32.mrb[0].mxu0
        %v1223 = vadd.f32 0.0, %v1222
        %v1224 = vpop.f32.mrb[0].mxu0
        %1225 = vmatprep.mubr.f32.mxu0 0.0
        %1226 = vmatmul.mubr.f32.gmra.mrb[0].mxu0 %v878
        %v1227 = vpop.f32.mrb[0].mxu0
        %v1228 = vadd.f32 0.0, %v1227
        %v1229 = vpop.f32.mrb[0].mxu0
        %1230 = vmatprep.mubr.f32.mxu0 0.0
        %1231 = vmatmul.mubr.f32.gmra.mrb[0].mxu0 %v881
        %v1232 = vpop.f32.mrb[0].mxu0
        %v1233 = vadd.f32 0.0, %v1232
        %v1234 = vpop.f32.mrb[0].mxu0
        %1235 = vmatprep.mubr.f32.mxu0 0.0
        %1236 = vmatmul.mubr.f32.gmra.mrb[0].mxu0 %v884
        %v1237 = vpop.f32.mrb[0].mxu0
        %v1238 = vadd.f32 0.0, %v1237
        %v1239 = vpop.f32.mrb[0].mxu0
        %1240 = vmatprep.mubr.f32.mxu0 0.0
        %1241 = vmatmul.mubr.f32.gmra.mrb[0].mxu0 %v887
        %v1242 = vpop.f32.mrb[0].mxu0
        %v1243 = vadd.f32 0.0, %v1242
        %v1244 = vpop.f32.mrb[0].mxu0
        %1245 = vmatprep.mubr.f32.mxu0 0.0
        %1246 = vmatmul.mubr.f32.gmra.mrb[0].mxu0 %v890
        %v1247 = vpop.f32.mrb[0].mxu0
        %v1248 = vadd.f32 0.0, %v1247
        %v1249 = vpop.f32.mrb[0].mxu0
        %1250 = vmatprep.mubr.f32.mxu0 0.0
        %1251 = vmatmul.mubr.f32.gmra.mrb[0].mxu0 %v893
        %v1252 = vpop.f32.mrb[0].mxu0
        %v1253 = vadd.f32 0.0, %v1252
        %v1254 = vpop.f32.mrb[0].mxu0
        %1255 = vmatprep.mubr.f32.mxu0 0.0
        %1256 = vmatmul.mubr.f32.gmra.mrb[0].mxu0 %v896
        %v1257 = vpop.f32.mrb[0].mxu0
        %v1258 = vadd.f32 0.0, %v1257
        %v1259 = vpop.f32.mrb[0].mxu0
        %1260 = vmatprep.mubr.f32.mxu0 0.0
        %1261 = vmatmul.mubr.f32.gmra.mrb[0].mxu0 %v899
        %v1262 = vpop.f32.mrb[0].mxu0
        %v1263 = vadd.f32 0.0, %v1262
        %v1264 = vpop.f32.mrb[0].mxu0
        %1265 = vmatprep.mubr.f32.mxu0 0.0
        %1266 = vmatmul.mubr.f32.gmra.mrb[0].mxu0 %v902
        %v1267 = vpop.f32.mrb[0].mxu0
        %v1268 = vadd.f32 0.0, %v1267
        %v1269 = vpop.f32.mrb[0].mxu0
        %1270 = vmatprep.mubr.f32.mxu0 0.0
        %1271 = vmatmul.mubr.f32.gmra.mrb[0].mxu0 %v905
        %v1272 = vpop.f32.mrb[0].mxu0
        %v1273 = vadd.f32 0.0, %v1272
        %v1274 = vpop.f32.mrb[0].mxu0
        %1275 = vmatprep.mubr.f32.mxu0 0.0
        %1276 = vmatmul.mubr.f32.gmra.mrb[0].mxu0 %v908
        %v1277 = vpop.f32.mrb[0].mxu0
        %v1278 = vadd.f32 0.0, %v1277
        %v1279 = vpop.f32.mrb[0].mxu0
        %1280 = vmatprep.mubr.f32.mxu0 0.0
        %1281 = vmatmul.mubr.f32.gmra.mrb[0].mxu0 %v911
        %v1282 = vpop.f32.mrb[0].mxu0
        %v1283 = vadd.f32 0.0, %v1282
        %v1284 = vpop.f32.mrb[0].mxu0
        %1285 = vmatprep.mubr.f32.mxu0 0.0
        %1286 = vmatmul.mubr.f32.gmra.mrb[0].mxu0 %v914
        %v1287 = vpop.f32.mrb[0].mxu0
        %v1288 = vadd.f32 0.0, %v1287
        %v1289 = vpop.f32.mrb[0].mxu0
        %1290 = vdwg.mxu0
        %v1292 = vsel %vm729, %v600, 0
        %v1295 = vsel %vm729, %v601, 0
        %v1298 = vsel %vm729, %v602, 0
        %v1301 = vsel %vm729, %v603, 0
        %v1304 = vsel %vm729, %v604, 0
        %v1307 = vsel %vm729, %v605, 0
        %v1310 = vsel %vm729, %v606, 0
        %v1313 = vsel %vm729, %v607, 0
        %v1316 = vsel %vm729, %v608, 0
        %v1319 = vsel %vm729, %v609, 0
        %v1322 = vsel %vm729, %v610, 0
        %v1325 = vsel %vm729, %v611, 0
        %v1328 = vsel %vm729, %v612, 0
        %v1331 = vsel %vm729, %v613, 0
        %v1334 = vsel %vm729, %v614, 0
        %v1337 = vsel %vm729, %v615, 0
        %v1340 = vsel %vm729, %v616, 0
        %v1343 = vsel %vm729, %v617, 0
        %v1346 = vsel %vm729, %v618, 0
        %v1349 = vsel %vm729, %v619, 0
        %v1352 = vsel %vm729, %v620, 0
        %v1355 = vsel %vm729, %v621, 0
        %v1358 = vsel %vm729, %v622, 0
        %v1361 = vsel %vm729, %v623, 0
        %v1364 = vsel %vm729, %v624, 0
        %v1367 = vsel %vm729, %v625, 0
        %v1370 = vsel %vm729, %v626, 0
        %v1373 = vsel %vm729, %v627, 0
        %v1376 = vsel %vm729, %v628, 0
        %v1379 = vsel %vm729, %v629, 0
        %v1382 = vsel %vm729, %v630, 0
        %v1385 = vsel %vm729, %v631, 0
        %v1388 = vsel %vm729, %v632, 0
        %v1391 = vsel %vm729, %v633, 0
        %v1394 = vsel %vm729, %v634, 0
        %v1397 = vsel %vm729, %v635, 0
        %v1400 = vsel %vm729, %v636, 0
        %v1403 = vsel %vm729, %v637, 0
        %v1406 = vsel %vm729, %v638, 0
        %v1409 = vsel %vm729, %v639, 0
        %v1412 = vsel %vm729, %v640, 0
        %v1415 = vsel %vm729, %v641, 0
        %v1418 = vsel %vm729, %v642, 0
        %v1421 = vsel %vm729, %v643, 0
        %v1424 = vsel %vm729, %v644, 0
        %v1427 = vsel %vm729, %v645, 0
        %v1430 = vsel %vm729, %v646, 0
        %v1433 = vsel %vm729, %v647, 0
        %v1436 = vsel %vm729, %v648, 0
        %v1439 = vsel %vm729, %v649, 0
        %v1442 = vsel %vm729, %v650, 0
        %v1445 = vsel %vm729, %v651, 0
        %v1448 = vsel %vm729, %v652, 0
        %v1451 = vsel %vm729, %v653, 0
        %v1454 = vsel %vm729, %v654, 0
        %v1457 = vsel %vm729, %v655, 0
        %v1460 = vsel %vm729, %v656, 0
        %v1463 = vsel %vm729, %v657, 0
        %v1466 = vsel %vm729, %v658, 0
        %v1469 = vsel %vm729, %v659, 0
        %v1472 = vsel %vm729, %v660, 0
        %v1475 = vsel %vm729, %v661, 0
        %1477 = vmatprep.subr.mxu0 0.0
        %1478 = vmatpush1.msra.mxu0 %v662
        %1479 = vmatprep.subr.mxu0 0.0
        %1480 = vmatpush1.msra.mxu0 %v663
        %1481 = vmatprep.subr.mxu0 0.0
        %1482 = vmatpush1.msra.mxu0 0.0
        %1483 = vmatprep.subr.mxu0 0.0
        %1484 = vmatpush1.msra.mxu0 0.0
        %1485 = vmatprep.subr.mxu0 0.0
        %1486 = vmatpush1.msra.mxu0 0.0
        %1487 = vmatprep.subr.mxu0 0.0
        %1488 = vmatpush1.msra.mxu0 0.0
        %1489 = vmatprep.subr.mxu0 0.0
        %1490 = vmatpush1.msra.mxu0 0.0
        %1491 = vmatprep.subr.mxu0 0.0
        %1492 = vmatpush1.msra.mxu0 0.0
        %1493 = vmatprep.subr.mxu0 0.0
        %1494 = vmatpush1.msra.mxu0 0.0
        %1495 = vmatprep.subr.mxu0 0.0
        %1496 = vmatpush1.msra.mxu0 0.0
        %1497 = vmatprep.subr.mxu0 0.0
        %1498 = vmatpush1.msra.mxu0 0.0
        %1499 = vmatprep.subr.mxu0 0.0
        %1500 = vmatpush1.msra.mxu0 0.0
        %1501 = vmatprep.subr.mxu0 0.0
        %1502 = vmatpush1.msra.mxu0 0.0
        %1503 = vmatprep.subr.mxu0 0.0
        %1504 = vmatpush1.msra.mxu0 0.0
        %1505 = vmatprep.subr.mxu0 0.0
        %1506 = vmatpush1.msra.mxu0 0.0
        %1507 = vmatprep.subr.mxu0 0.0
        %1508 = vmatpush1.msra.mxu0 0.0
        %1509 = vmatprep.subr.mxu0 0.0
        %1510 = vmatpush1.msra.mxu0 0.0
        %1511 = vmatprep.subr.mxu0 0.0
        %1512 = vmatpush1.msra.mxu0 0.0
        %1513 = vmatprep.subr.mxu0 0.0
        %1514 = vmatpush1.msra.mxu0 0.0
        %1515 = vmatprep.subr.mxu0 0.0
        %1516 = vmatpush1.msra.mxu0 0.0
        %1517 = vmatprep.subr.mxu0 0.0
        %1518 = vmatpush1.msra.mxu0 0.0
        %1519 = vmatprep.subr.mxu0 0.0
        %1520 = vmatpush1.msra.mxu0 0.0
        %1521 = vmatprep.subr.mxu0 0.0
        %1522 = vmatpush1.msra.mxu0 0.0
        %1523 = vmatprep.subr.mxu0 0.0
        %1524 = vmatpush1.msra.mxu0 0.0
        %1525 = vmatprep.subr.mxu0 0.0
        %1526 = vmatpush1.msra.mxu0 0.0
        %1527 = vmatprep.subr.mxu0 0.0
        %1528 = vmatpush1.msra.mxu0 0.0
        %1529 = vmatprep.subr.mxu0 0.0
        %1530 = vmatpush1.msra.mxu0 0.0
        %1531 = vmatprep.subr.mxu0 0.0
        %1532 = vmatpush1.msra.mxu0 0.0
        %1533 = vmatprep.subr.mxu0 0.0
        %1534 = vmatpush1.msra.mxu0 0.0
        %1535 = vmatprep.subr.mxu0 0.0
        %1536 = vmatpush1.msra.mxu0 0.0
        %1537 = vmatprep.subr.mxu0 0.0
        %1538 = vmatpush1.msra.mxu0 0.0
        %1539 = vmatprep.subr.mxu0 0.0
        %1540 = vmatpush1.msra.mxu0 0.0
        %1541 = vmatprep.mubr.f32.mxu0 0.0
        %1542 = vmatmul.mubr.f32.gmra.mrb[0].mxu0 %v1292
        %v1543 = vpop.f32.mrb[0].mxu0
        %v1544 = vadd.f32 %v983, %v1543
        %v1545 = vpop.f32.mrb[0].mxu0
        %1546 = vmatprep.mubr.f32.mxu0 0.0
        %1547 = vmatmul.mubr.f32.gmra.mrb[0].mxu0 %v1295
        %v1548 = vpop.f32.mrb[0].mxu0
        %v1549 = vadd.f32 %v988, %v1548
        %v1550 = vpop.f32.mrb[0].mxu0
        %1551 = vmatprep.mubr.f32.mxu0 0.0
        %1552 = vmatmul.mubr.f32.gmra.mrb[0].mxu0 %v1298
        %v1553 = vpop.f32.mrb[0].mxu0
        %v1554 = vadd.f32 %v993, %v1553
        %v1555 = vpop.f32.mrb[0].mxu0
        %1556 = vmatprep.mubr.f32.mxu0 0.0
        %1557 = vmatmul.mubr.f32.gmra.mrb[0].mxu0 %v1301
        %v1558 = vpop.f32.mrb[0].mxu0
        %v1559 = vadd.f32 %v998, %v1558
        %v1560 = vpop.f32.mrb[0].mxu0
        %1561 = vmatprep.mubr.f32.mxu0 0.0
        %1562 = vmatmul.mubr.f32.gmra.mrb[0].mxu0 %v1304
        %v1563 = vpop.f32.mrb[0].mxu0
        %v1564 = vadd.f32 %v1003, %v1563
        %v1565 = vpop.f32.mrb[0].mxu0
        %1566 = vmatprep.mubr.f32.mxu0 0.0
        %1567 = vmatmul.mubr.f32.gmra.mrb[0].mxu0 %v1307
        %v1568 = vpop.f32.mrb[0].mxu0
        %v1569 = vadd.f32 %v1008, %v1568
        %v1570 = vpop.f32.mrb[0].mxu0
        %1571 = vmatprep.mubr.f32.mxu0 0.0
        %1572 = vmatmul.mubr.f32.gmra.mrb[0].mxu0 %v1310
        %v1573 = vpop.f32.mrb[0].mxu0
        %v1574 = vadd.f32 %v1013, %v1573
        %v1575 = vpop.f32.mrb[0].mxu0
        %1576 = vmatprep.mubr.f32.mxu0 0.0
        %1577 = vmatmul.mubr.f32.gmra.mrb[0].mxu0 %v1313
        %v1578 = vpop.f32.mrb[0].mxu0
        %v1579 = vadd.f32 %v1018, %v1578
        %v1580 = vpop.f32.mrb[0].mxu0
        %1581 = vmatprep.mubr.f32.mxu0 0.0
        %1582 = vmatmul.mubr.f32.gmra.mrb[0].mxu0 %v1316
        %v1583 = vpop.f32.mrb[0].mxu0
        %v1584 = vadd.f32 %v1023, %v1583
        %v1585 = vpop.f32.mrb[0].mxu0
        %1586 = vmatprep.mubr.f32.mxu0 0.0
        %1587 = vmatmul.mubr.f32.gmra.mrb[0].mxu0 %v1319
        %v1588 = vpop.f32.mrb[0].mxu0
        %v1589 = vadd.f32 %v1028, %v1588
        %v1590 = vpop.f32.mrb[0].mxu0
        %1591 = vmatprep.mubr.f32.mxu0 0.0
        %1592 = vmatmul.mubr.f32.gmra.mrb[0].mxu0 %v1322
        %v1593 = vpop.f32.mrb[0].mxu0
        %v1594 = vadd.f32 %v1033, %v1593
        %v1595 = vpop.f32.mrb[0].mxu0
        %1596 = vmatprep.mubr.f32.mxu0 0.0
        %1597 = vmatmul.mubr.f32.gmra.mrb[0].mxu0 %v1325
        %v1598 = vpop.f32.mrb[0].mxu0
        %v1599 = vadd.f32 %v1038, %v1598
        %v1600 = vpop.f32.mrb[0].mxu0
        %1601 = vmatprep.mubr.f32.mxu0 0.0
        %1602 = vmatmul.mubr.f32.gmra.mrb[0].mxu0 %v1328
        %v1603 = vpop.f32.mrb[0].mxu0
        %v1604 = vadd.f32 %v1043, %v1603
        %v1605 = vpop.f32.mrb[0].mxu0
        %1606 = vmatprep.mubr.f32.mxu0 0.0
        %1607 = vmatmul.mubr.f32.gmra.mrb[0].mxu0 %v1331
        %v1608 = vpop.f32.mrb[0].mxu0
        %v1609 = vadd.f32 %v1048, %v1608
        %v1610 = vpop.f32.mrb[0].mxu0
        %1611 = vmatprep.mubr.f32.mxu0 0.0
        %1612 = vmatmul.mubr.f32.gmra.mrb[0].mxu0 %v1334
        %v1613 = vpop.f32.mrb[0].mxu0
        %v1614 = vadd.f32 %v1053, %v1613
        %v1615 = vpop.f32.mrb[0].mxu0
        %1616 = vmatprep.mubr.f32.mxu0 0.0
        %1617 = vmatmul.mubr.f32.gmra.mrb[0].mxu0 %v1337
        %v1618 = vpop.f32.mrb[0].mxu0
        %v1619 = vadd.f32 %v1058, %v1618
        %v1620 = vpop.f32.mrb[0].mxu0
        %1621 = vmatprep.mubr.f32.mxu0 0.0
        %1622 = vmatmul.mubr.f32.gmra.mrb[0].mxu0 %v1340
        %v1623 = vpop.f32.mrb[0].mxu0
        %v1624 = vadd.f32 %v1063, %v1623
        %v1625 = vpop.f32.mrb[0].mxu0
        %1626 = vmatprep.mubr.f32.mxu0 0.0
        %1627 = vmatmul.mubr.f32.gmra.mrb[0].mxu0 %v1343
        %v1628 = vpop.f32.mrb[0].mxu0
        %v1629 = vadd.f32 %v1068, %v1628
        %v1630 = vpop.f32.mrb[0].mxu0
        %1631 = vmatprep.mubr.f32.mxu0 0.0
        %1632 = vmatmul.mubr.f32.gmra.mrb[0].mxu0 %v1346
        %v1633 = vpop.f32.mrb[0].mxu0
        %v1634 = vadd.f32 %v1073, %v1633
        %v1635 = vpop.f32.mrb[0].mxu0
        %1636 = vmatprep.mubr.f32.mxu0 0.0
        %1637 = vmatmul.mubr.f32.gmra.mrb[0].mxu0 %v1349
        %v1638 = vpop.f32.mrb[0].mxu0
        %v1639 = vadd.f32 %v1078, %v1638
        %v1640 = vpop.f32.mrb[0].mxu0
        %1641 = vmatprep.mubr.f32.mxu0 0.0
        %1642 = vmatmul.mubr.f32.gmra.mrb[0].mxu0 %v1352
        %v1643 = vpop.f32.mrb[0].mxu0
        %v1644 = vadd.f32 %v1083, %v1643
        %v1645 = vpop.f32.mrb[0].mxu0
        %1646 = vmatprep.mubr.f32.mxu0 0.0
        %1647 = vmatmul.mubr.f32.gmra.mrb[0].mxu0 %v1355
        %v1648 = vpop.f32.mrb[0].mxu0
        %v1649 = vadd.f32 %v1088, %v1648
        %v1650 = vpop.f32.mrb[0].mxu0
        %1651 = vmatprep.mubr.f32.mxu0 0.0
        %1652 = vmatmul.mubr.f32.gmra.mrb[0].mxu0 %v1358
        %v1653 = vpop.f32.mrb[0].mxu0
        %v1654 = vadd.f32 %v1093, %v1653
        %v1655 = vpop.f32.mrb[0].mxu0
        %1656 = vmatprep.mubr.f32.mxu0 0.0
        %1657 = vmatmul.mubr.f32.gmra.mrb[0].mxu0 %v1361
        %v1658 = vpop.f32.mrb[0].mxu0
        %v1659 = vadd.f32 %v1098, %v1658
        %v1660 = vpop.f32.mrb[0].mxu0
        %1661 = vmatprep.mubr.f32.mxu0 0.0
        %1662 = vmatmul.mubr.f32.gmra.mrb[0].mxu0 %v1364
        %v1663 = vpop.f32.mrb[0].mxu0
        %v1664 = vadd.f32 %v1103, %v1663
        %v1665 = vpop.f32.mrb[0].mxu0
        %1666 = vmatprep.mubr.f32.mxu0 0.0
        %1667 = vmatmul.mubr.f32.gmra.mrb[0].mxu0 %v1367
        %v1668 = vpop.f32.mrb[0].mxu0
        %v1669 = vadd.f32 %v1108, %v1668
        %v1670 = vpop.f32.mrb[0].mxu0
        %1671 = vmatprep.mubr.f32.mxu0 0.0
        %1672 = vmatmul.mubr.f32.gmra.mrb[0].mxu0 %v1370
        %v1673 = vpop.f32.mrb[0].mxu0
        %v1674 = vadd.f32 %v1113, %v1673
        %v1675 = vpop.f32.mrb[0].mxu0
        %1676 = vmatprep.mubr.f32.mxu0 0.0
        %1677 = vmatmul.mubr.f32.gmra.mrb[0].mxu0 %v1373
        %v1678 = vpop.f32.mrb[0].mxu0
        %v1679 = vadd.f32 %v1118, %v1678
        %v1680 = vpop.f32.mrb[0].mxu0
        %1681 = vmatprep.mubr.f32.mxu0 0.0
        %1682 = vmatmul.mubr.f32.gmra.mrb[0].mxu0 %v1376
        %v1683 = vpop.f32.mrb[0].mxu0
        %v1684 = vadd.f32 %v1123, %v1683
        %v1685 = vpop.f32.mrb[0].mxu0
        %1686 = vmatprep.mubr.f32.mxu0 0.0
        %1687 = vmatmul.mubr.f32.gmra.mrb[0].mxu0 %v1379
        %v1688 = vpop.f32.mrb[0].mxu0
        %v1689 = vadd.f32 %v1128, %v1688
        %v1690 = vpop.f32.mrb[0].mxu0
        %1691 = vmatprep.mubr.f32.mxu0 0.0
        %1692 = vmatmul.mubr.f32.gmra.mrb[0].mxu0 %v1382
        %v1693 = vpop.f32.mrb[0].mxu0
        %v1694 = vadd.f32 %v1133, %v1693
        %v1695 = vpop.f32.mrb[0].mxu0
        %1696 = vmatprep.mubr.f32.mxu0 0.0
        %1697 = vmatmul.mubr.f32.gmra.mrb[0].mxu0 %v1385
        %v1698 = vpop.f32.mrb[0].mxu0
        %v1699 = vadd.f32 %v1138, %v1698
        %v1700 = vpop.f32.mrb[0].mxu0
        %1701 = vmatprep.mubr.f32.mxu0 0.0
        %1702 = vmatmul.mubr.f32.gmra.mrb[0].mxu0 %v1388
        %v1703 = vpop.f32.mrb[0].mxu0
        %v1704 = vadd.f32 %v1143, %v1703
        %v1705 = vpop.f32.mrb[0].mxu0
        %1706 = vmatprep.mubr.f32.mxu0 0.0
        %1707 = vmatmul.mubr.f32.gmra.mrb[0].mxu0 %v1391
        %v1708 = vpop.f32.mrb[0].mxu0
        %v1709 = vadd.f32 %v1148, %v1708
        %v1710 = vpop.f32.mrb[0].mxu0
        %1711 = vmatprep.mubr.f32.mxu0 0.0
        %1712 = vmatmul.mubr.f32.gmra.mrb[0].mxu0 %v1394
        %v1713 = vpop.f32.mrb[0].mxu0
        %v1714 = vadd.f32 %v1153, %v1713
        %v1715 = vpop.f32.mrb[0].mxu0
        %1716 = vmatprep.mubr.f32.mxu0 0.0
        %1717 = vmatmul.mubr.f32.gmra.mrb[0].mxu0 %v1397
        %v1718 = vpop.f32.mrb[0].mxu0
        %v1719 = vadd.f32 %v1158, %v1718
        %v1720 = vpop.f32.mrb[0].mxu0
        %1721 = vmatprep.mubr.f32.mxu0 0.0
        %1722 = vmatmul.mubr.f32.gmra.mrb[0].mxu0 %v1400
        %v1723 = vpop.f32.mrb[0].mxu0
        %v1724 = vadd.f32 %v1163, %v1723
        %v1725 = vpop.f32.mrb[0].mxu0
        %1726 = vmatprep.mubr.f32.mxu0 0.0
        %1727 = vmatmul.mubr.f32.gmra.mrb[0].mxu0 %v1403
        %v1728 = vpop.f32.mrb[0].mxu0
        %v1729 = vadd.f32 %v1168, %v1728
        %v1730 = vpop.f32.mrb[0].mxu0
        %1731 = vmatprep.mubr.f32.mxu0 0.0
        %1732 = vmatmul.mubr.f32.gmra.mrb[0].mxu0 %v1406
        %v1733 = vpop.f32.mrb[0].mxu0
        %v1734 = vadd.f32 %v1173, %v1733
        %v1735 = vpop.f32.mrb[0].mxu0
        %1736 = vmatprep.mubr.f32.mxu0 0.0
        %1737 = vmatmul.mubr.f32.gmra.mrb[0].mxu0 %v1409
        %v1738 = vpop.f32.mrb[0].mxu0
        %v1739 = vadd.f32 %v1178, %v1738
        %v1740 = vpop.f32.mrb[0].mxu0
        %1741 = vmatprep.mubr.f32.mxu0 0.0
        %1742 = vmatmul.mubr.f32.gmra.mrb[0].mxu0 %v1412
        %v1743 = vpop.f32.mrb[0].mxu0
        %v1744 = vadd.f32 %v1183, %v1743
        %v1745 = vpop.f32.mrb[0].mxu0
        %1746 = vmatprep.mubr.f32.mxu0 0.0
        %1747 = vmatmul.mubr.f32.gmra.mrb[0].mxu0 %v1415
        %v1748 = vpop.f32.mrb[0].mxu0
        %v1749 = vadd.f32 %v1188, %v1748
        %v1750 = vpop.f32.mrb[0].mxu0
        %1751 = vmatprep.mubr.f32.mxu0 0.0
        %1752 = vmatmul.mubr.f32.gmra.mrb[0].mxu0 %v1418
        %v1753 = vpop.f32.mrb[0].mxu0
        %v1754 = vadd.f32 %v1193, %v1753
        %v1755 = vpop.f32.mrb[0].mxu0
        %1756 = vmatprep.mubr.f32.mxu0 0.0
        %1757 = vmatmul.mubr.f32.gmra.mrb[0].mxu0 %v1421
        %v1758 = vpop.f32.mrb[0].mxu0
        %v1759 = vadd.f32 %v1198, %v1758
        %v1760 = vpop.f32.mrb[0].mxu0
        %1761 = vmatprep.mubr.f32.mxu0 0.0
        %1762 = vmatmul.mubr.f32.gmra.mrb[0].mxu0 %v1424
        %v1763 = vpop.f32.mrb[0].mxu0
        %v1764 = vadd.f32 %v1203, %v1763
        %v1765 = vpop.f32.mrb[0].mxu0
        %1766 = vmatprep.mubr.f32.mxu0 0.0
        %1767 = vmatmul.mubr.f32.gmra.mrb[0].mxu0 %v1427
        %v1768 = vpop.f32.mrb[0].mxu0
        %v1769 = vadd.f32 %v1208, %v1768
        %v1770 = vpop.f32.mrb[0].mxu0
        %1771 = vmatprep.mubr.f32.mxu0 0.0
        %1772 = vmatmul.mubr.f32.gmra.mrb[0].mxu0 %v1430
        %v1773 = vpop.f32.mrb[0].mxu0
        %v1774 = vadd.f32 %v1213, %v1773
        %v1775 = vpop.f32.mrb[0].mxu0
        %1776 = vmatprep.mubr.f32.mxu0 0.0
        %1777 = vmatmul.mubr.f32.gmra.mrb[0].mxu0 %v1433
        %v1778 = vpop.f32.mrb[0].mxu0
        %v1779 = vadd.f32 %v1218, %v1778
        %v1780 = vpop.f32.mrb[0].mxu0
        %1781 = vmatprep.mubr.f32.mxu0 0.0
        %1782 = vmatmul.mubr.f32.gmra.mrb[0].mxu0 %v1436
        %v1783 = vpop.f32.mrb[0].mxu0
        %v1784 = vadd.f32 %v1223, %v1783
        %v1785 = vpop.f32.mrb[0].mxu0
        %1786 = vmatprep.mubr.f32.mxu0 0.0
        %1787 = vmatmul.mubr.f32.gmra.mrb[0].mxu0 %v1439
        %v1788 = vpop.f32.mrb[0].mxu0
        %v1789 = vadd.f32 %v1228, %v1788
        %v1790 = vpop.f32.mrb[0].mxu0
        %1791 = vmatprep.mubr.f32.mxu0 0.0
        %1792 = vmatmul.mubr.f32.gmra.mrb[0].mxu0 %v1442
        %v1793 = vpop.f32.mrb[0].mxu0
        %v1794 = vadd.f32 %v1233, %v1793
        %v1795 = vpop.f32.mrb[0].mxu0
        %1796 = vmatprep.mubr.f32.mxu0 0.0
        %1797 = vmatmul.mubr.f32.gmra.mrb[0].mxu0 %v1445
        %v1798 = vpop.f32.mrb[0].mxu0
        %v1799 = vadd.f32 %v1238, %v1798
        %v1800 = vpop.f32.mrb[0].mxu0
        %1801 = vmatprep.mubr.f32.mxu0 0.0
        %1802 = vmatmul.mubr.f32.gmra.mrb[0].mxu0 %v1448
        %v1803 = vpop.f32.mrb[0].mxu0
        %v1804 = vadd.f32 %v1243, %v1803
        %v1805 = vpop.f32.mrb[0].mxu0
        %1806 = vmatprep.mubr.f32.mxu0 0.0
        %1807 = vmatmul.mubr.f32.gmra.mrb[0].mxu0 %v1451
        %v1808 = vpop.f32.mrb[0].mxu0
        %v1809 = vadd.f32 %v1248, %v1808
        %v1810 = vpop.f32.mrb[0].mxu0
        %1811 = vmatprep.mubr.f32.mxu0 0.0
        %1812 = vmatmul.mubr.f32.gmra.mrb[0].mxu0 %v1454
        %v1813 = vpop.f32.mrb[0].mxu0
        %v1814 = vadd.f32 %v1253, %v1813
        %v1815 = vpop.f32.mrb[0].mxu0
        %1816 = vmatprep.mubr.f32.mxu0 0.0
        %1817 = vmatmul.mubr.f32.gmra.mrb[0].mxu0 %v1457
        %v1818 = vpop.f32.mrb[0].mxu0
        %v1819 = vadd.f32 %v1258, %v1818
        %v1820 = vpop.f32.mrb[0].mxu0
        %1821 = vmatprep.mubr.f32.mxu0 0.0
        %1822 = vmatmul.mubr.f32.gmra.mrb[0].mxu0 %v1460
        %v1823 = vpop.f32.mrb[0].mxu0
        %v1824 = vadd.f32 %v1263, %v1823
        %v1825 = vpop.f32.mrb[0].mxu0
        %1826 = vmatprep.mubr.f32.mxu0 0.0
        %1827 = vmatmul.mubr.f32.gmra.mrb[0].mxu0 %v1463
        %v1828 = vpop.f32.mrb[0].mxu0
        %v1829 = vadd.f32 %v1268, %v1828
        %v1830 = vpop.f32.mrb[0].mxu0
        %1831 = vmatprep.mubr.f32.mxu0 0.0
        %1832 = vmatmul.mubr.f32.gmra.mrb[0].mxu0 %v1466
        %v1833 = vpop.f32.mrb[0].mxu0
        %v1834 = vadd.f32 %v1273, %v1833
        %v1835 = vpop.f32.mrb[0].mxu0
        %1836 = vmatprep.mubr.f32.mxu0 0.0
        %1837 = vmatmul.mubr.f32.gmra.mrb[0].mxu0 %v1469
        %v1838 = vpop.f32.mrb[0].mxu0
        %v1839 = vadd.f32 %v1278, %v1838
        %v1840 = vpop.f32.mrb[0].mxu0
        %1841 = vmatprep.mubr.f32.mxu0 0.0
        %1842 = vmatmul.mubr.f32.gmra.mrb[0].mxu0 %v1472
        %v1843 = vpop.f32.mrb[0].mxu0
        %v1844 = vadd.f32 %v1283, %v1843
        %v1845 = vpop.f32.mrb[0].mxu0
        %1846 = vmatprep.mubr.f32.mxu0 0.0
        %1847 = vmatmul.mubr.f32.gmra.mrb[0].mxu0 %v1475
        %v1848 = vpop.f32.mrb[0].mxu0
        %v1849 = vadd.f32 %v1288, %v1848
        %v1850 = vpop.f32.mrb[0].mxu0
        %1851 = vdwg.mxu0
        %v1852 = vld [vmem:[%s599 + $0x2] sm:$0xff]
        %v1853 = vld [vmem:[%s599 + $0xa] sm:$0xff]
        %v1854 = vld [vmem:[%s599 + $0x12] sm:$0xff]
        %v1855 = vld [vmem:[%s599 + $0x1a] sm:$0xff]
        %v1856 = vld [vmem:[%s599 + $0x22] sm:$0xff]
        %v1857 = vld [vmem:[%s599 + $0x2a] sm:$0xff]
        %v1858 = vld [vmem:[%s599 + $0x32] sm:$0xff]
        %v1859 = vld [vmem:[%s599 + $0x3a] sm:$0xff]
        %v1860 = vld [vmem:[%s599 + $0x42] sm:$0xff]
        %v1861 = vld [vmem:[%s599 + $0x4a] sm:$0xff]
        %v1862 = vld [vmem:[%s599 + $0x52] sm:$0xff]
        %v1863 = vld [vmem:[%s599 + $0x5a] sm:$0xff]
        %v1864 = vld [vmem:[%s599 + $0x62] sm:$0xff]
        %v1865 = vld [vmem:[%s599 + $0x6a] sm:$0xff]
        %v1866 = vld [vmem:[%s599 + $0x72] sm:$0xff]
        %v1867 = vld [vmem:[%s599 + $0x7a] sm:$0xff]
        %v1868 = vld [vmem:[%s599 + $0x82] sm:$0xff]
        %v1869 = vld [vmem:[%s599 + $0x8a] sm:$0xff]
        %v1870 = vld [vmem:[%s599 + $0x92] sm:$0xff]
        %v1871 = vld [vmem:[%s599 + $0x9a] sm:$0xff]
        %v1872 = vld [vmem:[%s599 + $0xa2] sm:$0xff]
        %v1873 = vld [vmem:[%s599 + $0xaa] sm:$0xff]
        %v1874 = vld [vmem:[%s599 + $0xb2] sm:$0xff]
        %v1875 = vld [vmem:[%s599 + $0xba] sm:$0xff]
        %v1876 = vld [vmem:[%s599 + $0xc2] sm:$0xff]
        %v1877 = vld [vmem:[%s599 + $0xca] sm:$0xff]
        %v1878 = vld [vmem:[%s599 + $0xd2] sm:$0xff]
        %v1879 = vld [vmem:[%s599 + $0xda] sm:$0xff]
        %v1880 = vld [vmem:[%s599 + $0xe2] sm:$0xff]
        %v1881 = vld [vmem:[%s599 + $0xea] sm:$0xff]
        %v1882 = vld [vmem:[%s599 + $0xf2] sm:$0xff]
        %v1883 = vld [vmem:[%s599 + $0xfa] sm:$0xff]
        %v1884 = vld [vmem:[%s599 + $0x102] sm:$0xff]
        %v1885 = vld [vmem:[%s599 + $0x10a] sm:$0xff]
        %v1886 = vld [vmem:[%s599 + $0x112] sm:$0xff]
        %v1887 = vld [vmem:[%s599 + $0x11a] sm:$0xff]
        %v1888 = vld [vmem:[%s599 + $0x122] sm:$0xff]
        %v1889 = vld [vmem:[%s599 + $0x12a] sm:$0xff]
        %v1890 = vld [vmem:[%s599 + $0x132] sm:$0xff]
        %v1891 = vld [vmem:[%s599 + $0x13a] sm:$0xff]
        %v1892 = vld [vmem:[%s599 + $0x142] sm:$0xff]
        %v1893 = vld [vmem:[%s599 + $0x14a] sm:$0xff]
        %v1894 = vld [vmem:[%s599 + $0x152] sm:$0xff]
        %v1895 = vld [vmem:[%s599 + $0x15a] sm:$0xff]
        %v1896 = vld [vmem:[%s599 + $0x162] sm:$0xff]
        %v1897 = vld [vmem:[%s599 + $0x16a] sm:$0xff]
        %v1898 = vld [vmem:[%s599 + $0x172] sm:$0xff]
        %v1899 = vld [vmem:[%s599 + $0x17a] sm:$0xff]
        %v1900 = vld [vmem:[%s599 + $0x182] sm:$0xff]
        %v1901 = vld [vmem:[%s599 + $0x18a] sm:$0xff]
        %v1902 = vld [vmem:[%s599 + $0x192] sm:$0xff]
        %v1903 = vld [vmem:[%s599 + $0x19a] sm:$0xff]
        %v1904 = vld [vmem:[%s599 + $0x1a2] sm:$0xff]
        %v1905 = vld [vmem:[%s599 + $0x1aa] sm:$0xff]
        %v1906 = vld [vmem:[%s599 + $0x1b2] sm:$0xff]
        %v1907 = vld [vmem:[%s599 + $0x1ba] sm:$0xff]
        %v1908 = vld [vmem:[%s599 + $0x1c2] sm:$0xff]
        %v1909 = vld [vmem:[%s599 + $0x1ca] sm:$0xff]
        %v1910 = vld [vmem:[%s599 + $0x1d2] sm:$0xff]
        %v1911 = vld [vmem:[%s599 + $0x1da] sm:$0xff]
        %v1912 = vld [vmem:[%s599 + $0x1e2] sm:$0xff]
        %v1913 = vld [vmem:[%s599 + $0x1ea] sm:$0xff]
        %s1914 = scalar_lea.vmem %s1, 32
        %v1915 = vld [vmem:[%s1914] sm:$0xff]
        %v1916 = vld [vmem:[%s1914 + $0x8] sm:$0xff]
        %v1918 = vsel %vm729, %v1852, 0
        %v1921 = vsel %vm729, %v1853, 0
        %v1924 = vsel %vm729, %v1854, 0
        %v1927 = vsel %vm729, %v1855, 0
        %v1930 = vsel %vm729, %v1856, 0
        %v1933 = vsel %vm729, %v1857, 0
        %v1936 = vsel %vm729, %v1858, 0
        %v1939 = vsel %vm729, %v1859, 0
        %v1942 = vsel %vm729, %v1860, 0
        %v1945 = vsel %vm729, %v1861, 0
        %v1948 = vsel %vm729, %v1862, 0
        %v1951 = vsel %vm729, %v1863, 0
        %v1954 = vsel %vm729, %v1864, 0
        %v1957 = vsel %vm729, %v1865, 0
        %v1960 = vsel %vm729, %v1866, 0
        %v1963 = vsel %vm729, %v1867, 0
        %v1966 = vsel %vm729, %v1868, 0
        %v1969 = vsel %vm729, %v1869, 0
        %v1972 = vsel %vm729, %v1870, 0
        %v1975 = vsel %vm729, %v1871, 0
        %v1978 = vsel %vm729, %v1872, 0
        %v1981 = vsel %vm729, %v1873, 0
        %v1984 = vsel %vm729, %v1874, 0
        %v1987 = vsel %vm729, %v1875, 0
        %v1990 = vsel %vm729, %v1876, 0
        %v1993 = vsel %vm729, %v1877, 0
        %v1996 = vsel %vm729, %v1878, 0
        %v1999 = vsel %vm729, %v1879, 0
        %v2002 = vsel %vm729, %v1880, 0
        %v2005 = vsel %vm729, %v1881, 0
        %v2008 = vsel %vm729, %v1882, 0
        %v2011 = vsel %vm729, %v1883, 0
        %v2014 = vsel %vm729, %v1884, 0
        %v2017 = vsel %vm729, %v1885, 0
        %v2020 = vsel %vm729, %v1886, 0
        %v2023 = vsel %vm729, %v1887, 0
        %v2026 = vsel %vm729, %v1888, 0
        %v2029 = vsel %vm729, %v1889, 0
        %v2032 = vsel %vm729, %v1890, 0
        %v2035 = vsel %vm729, %v1891, 0
        %v2038 = vsel %vm729, %v1892, 0
        %v2041 = vsel %vm729, %v1893, 0
        %v2044 = vsel %vm729, %v1894, 0
        %v2047 = vsel %vm729, %v1895, 0
        %v2050 = vsel %vm729, %v1896, 0
        %v2053 = vsel %vm729, %v1897, 0
        %v2056 = vsel %vm729, %v1898, 0
        %v2059 = vsel %vm729, %v1899, 0
        %v2062 = vsel %vm729, %v1900, 0
        %v2065 = vsel %vm729, %v1901, 0
        %v2068 = vsel %vm729, %v1902, 0
        %v2071 = vsel %vm729, %v1903, 0
        %v2074 = vsel %vm729, %v1904, 0
        %v2077 = vsel %vm729, %v1905, 0
        %v2080 = vsel %vm729, %v1906, 0
        %v2083 = vsel %vm729, %v1907, 0
        %v2086 = vsel %vm729, %v1908, 0
        %v2089 = vsel %vm729, %v1909, 0
        %v2092 = vsel %vm729, %v1910, 0
        %v2095 = vsel %vm729, %v1911, 0
        %v2098 = vsel %vm729, %v1912, 0
        %v2101 = vsel %vm729, %v1913, 0
        %2103 = vmatprep.subr.mxu0 0.0
        %2104 = vmatpush1.msra.mxu0 %v1915
        %2105 = vmatprep.subr.mxu0 0.0
        %2106 = vmatpush1.msra.mxu0 %v1916
        %2107 = vmatprep.subr.mxu0 0.0
        %2108 = vmatpush1.msra.mxu0 0.0
        %2109 = vmatprep.subr.mxu0 0.0
        %2110 = vmatpush1.msra.mxu0 0.0
        %2111 = vmatprep.subr.mxu0 0.0
        %2112 = vmatpush1.msra.mxu0 0.0
        %2113 = vmatprep.subr.mxu0 0.0
        %2114 = vmatpush1.msra.mxu0 0.0
        %2115 = vmatprep.subr.mxu0 0.0
        %2116 = vmatpush1.msra.mxu0 0.0
        %2117 = vmatprep.subr.mxu0 0.0
        %2118 = vmatpush1.msra.mxu0 0.0
        %2119 = vmatprep.subr.mxu0 0.0
        %2120 = vmatpush1.msra.mxu0 0.0
        %2121 = vmatprep.subr.mxu0 0.0
        %2122 = vmatpush1.msra.mxu0 0.0
        %2123 = vmatprep.subr.mxu0 0.0
        %2124 = vmatpush1.msra.mxu0 0.0
        %2125 = vmatprep.subr.mxu0 0.0
        %2126 = vmatpush1.msra.mxu0 0.0
        %2127 = vmatprep.subr.mxu0 0.0
        %2128 = vmatpush1.msra.mxu0 0.0
        %2129 = vmatprep.subr.mxu0 0.0
        %2130 = vmatpush1.msra.mxu0 0.0
        %2131 = vmatprep.subr.mxu0 0.0
        %2132 = vmatpush1.msra.mxu0 0.0
        %2133 = vmatprep.subr.mxu0 0.0
        %2134 = vmatpush1.msra.mxu0 0.0
        %2135 = vmatprep.subr.mxu0 0.0
        %2136 = vmatpush1.msra.mxu0 0.0
        %2137 = vmatprep.subr.mxu0 0.0
        %2138 = vmatpush1.msra.mxu0 0.0
        %2139 = vmatprep.subr.mxu0 0.0
        %2140 = vmatpush1.msra.mxu0 0.0
        %2141 = vmatprep.subr.mxu0 0.0
        %2142 = vmatpush1.msra.mxu0 0.0
        %2143 = vmatprep.subr.mxu0 0.0
        %2144 = vmatpush1.msra.mxu0 0.0
        %2145 = vmatprep.subr.mxu0 0.0
        %2146 = vmatpush1.msra.mxu0 0.0
        %2147 = vmatprep.subr.mxu0 0.0
        %2148 = vmatpush1.msra.mxu0 0.0
        %2149 = vmatprep.subr.mxu0 0.0
        %2150 = vmatpush1.msra.mxu0 0.0
        %2151 = vmatprep.subr.mxu0 0.0
        %2152 = vmatpush1.msra.mxu0 0.0
        %2153 = vmatprep.subr.mxu0 0.0
        %2154 = vmatpush1.msra.mxu0 0.0
        %2155 = vmatprep.subr.mxu0 0.0
        %2156 = vmatpush1.msra.mxu0 0.0
        %2157 = vmatprep.subr.mxu0 0.0
        %2158 = vmatpush1.msra.mxu0 0.0
        %2159 = vmatprep.subr.mxu0 0.0
        %2160 = vmatpush1.msra.mxu0 0.0
        %2161 = vmatprep.subr.mxu0 0.0
        %2162 = vmatpush1.msra.mxu0 0.0
        %2163 = vmatprep.subr.mxu0 0.0
        %2164 = vmatpush1.msra.mxu0 0.0
        %2165 = vmatprep.subr.mxu0 0.0
        %2166 = vmatpush1.msra.mxu0 0.0
        %2167 = vmatprep.mubr.f32.mxu0 0.0
        %2168 = vmatmul.mubr.f32.gmra.mrb[0].mxu0 %v1918
        %v2169 = vpop.f32.mrb[0].mxu0
        %v2170 = vadd.f32 0.0, %v2169
        %v2171 = vpop.f32.mrb[0].mxu0
        %2172 = vmatprep.mubr.f32.mxu0 0.0
        %2173 = vmatmul.mubr.f32.gmra.mrb[0].mxu0 %v1921
        %v2174 = vpop.f32.mrb[0].mxu0
        %v2175 = vadd.f32 0.0, %v2174
        %v2176 = vpop.f32.mrb[0].mxu0
        %2177 = vmatprep.mubr.f32.mxu0 0.0
        %2178 = vmatmul.mubr.f32.gmra.mrb[0].mxu0 %v1924
        %v2179 = vpop.f32.mrb[0].mxu0
        %v2180 = vadd.f32 0.0, %v2179
        %v2181 = vpop.f32.mrb[0].mxu0
        %2182 = vmatprep.mubr.f32.mxu0 0.0
        %2183 = vmatmul.mubr.f32.gmra.mrb[0].mxu0 %v1927
        %v2184 = vpop.f32.mrb[0].mxu0
        %v2185 = vadd.f32 0.0, %v2184
        %v2186 = vpop.f32.mrb[0].mxu0
        %2187 = vmatprep.mubr.f32.mxu0 0.0
        %2188 = vmatmul.mubr.f32.gmra.mrb[0].mxu0 %v1930
        %v2189 = vpop.f32.mrb[0].mxu0
        %v2190 = vadd.f32 0.0, %v2189
        %v2191 = vpop.f32.mrb[0].mxu0
        %2192 = vmatprep.mubr.f32.mxu0 0.0
        %2193 = vmatmul.mubr.f32.gmra.mrb[0].mxu0 %v1933
        %v2194 = vpop.f32.mrb[0].mxu0
        %v2195 = vadd.f32 0.0, %v2194
        %v2196 = vpop.f32.mrb[0].mxu0
        %2197 = vmatprep.mubr.f32.mxu0 0.0
        %2198 = vmatmul.mubr.f32.gmra.mrb[0].mxu0 %v1936
        %v2199 = vpop.f32.mrb[0].mxu0
        %v2200 = vadd.f32 0.0, %v2199
        %v2201 = vpop.f32.mrb[0].mxu0
        %2202 = vmatprep.mubr.f32.mxu0 0.0
        %2203 = vmatmul.mubr.f32.gmra.mrb[0].mxu0 %v1939
        %v2204 = vpop.f32.mrb[0].mxu0
        %v2205 = vadd.f32 0.0, %v2204
        %v2206 = vpop.f32.mrb[0].mxu0
        %2207 = vmatprep.mubr.f32.mxu0 0.0
        %2208 = vmatmul.mubr.f32.gmra.mrb[0].mxu0 %v1942
        %v2209 = vpop.f32.mrb[0].mxu0
        %v2210 = vadd.f32 0.0, %v2209
        %v2211 = vpop.f32.mrb[0].mxu0
        %2212 = vmatprep.mubr.f32.mxu0 0.0
        %2213 = vmatmul.mubr.f32.gmra.mrb[0].mxu0 %v1945
        %v2214 = vpop.f32.mrb[0].mxu0
        %v2215 = vadd.f32 0.0, %v2214
        %v2216 = vpop.f32.mrb[0].mxu0
        %2217 = vmatprep.mubr.f32.mxu0 0.0
        %2218 = vmatmul.mubr.f32.gmra.mrb[0].mxu0 %v1948
        %v2219 = vpop.f32.mrb[0].mxu0
        %v2220 = vadd.f32 0.0, %v2219
        %v2221 = vpop.f32.mrb[0].mxu0
        %2222 = vmatprep.mubr.f32.mxu0 0.0
        %2223 = vmatmul.mubr.f32.gmra.mrb[0].mxu0 %v1951
        %v2224 = vpop.f32.mrb[0].mxu0
        %v2225 = vadd.f32 0.0, %v2224
        %v2226 = vpop.f32.mrb[0].mxu0
        %2227 = vmatprep.mubr.f32.mxu0 0.0
        %2228 = vmatmul.mubr.f32.gmra.mrb[0].mxu0 %v1954
        %v2229 = vpop.f32.mrb[0].mxu0
        %v2230 = vadd.f32 0.0, %v2229
        %v2231 = vpop.f32.mrb[0].mxu0
        %2232 = vmatprep.mubr.f32.mxu0 0.0
        %2233 = vmatmul.mubr.f32.gmra.mrb[0].mxu0 %v1957
        %v2234 = vpop.f32.mrb[0].mxu0
        %v2235 = vadd.f32 0.0, %v2234
        %v2236 = vpop.f32.mrb[0].mxu0
        %2237 = vmatprep.mubr.f32.mxu0 0.0
        %2238 = vmatmul.mubr.f32.gmra.mrb[0].mxu0 %v1960
        %v2239 = vpop.f32.mrb[0].mxu0
        %v2240 = vadd.f32 0.0, %v2239
        %v2241 = vpop.f32.mrb[0].mxu0
        %2242 = vmatprep.mubr.f32.mxu0 0.0
        %2243 = vmatmul.mubr.f32.gmra.mrb[0].mxu0 %v1963
        %v2244 = vpop.f32.mrb[0].mxu0
        %v2245 = vadd.f32 0.0, %v2244
        %v2246 = vpop.f32.mrb[0].mxu0
        %2247 = vmatprep.mubr.f32.mxu0 0.0
        %2248 = vmatmul.mubr.f32.gmra.mrb[0].mxu0 %v1966
        %v2249 = vpop.f32.mrb[0].mxu0
        %v2250 = vadd.f32 0.0, %v2249
        %v2251 = vpop.f32.mrb[0].mxu0
        %2252 = vmatprep.mubr.f32.mxu0 0.0
        %2253 = vmatmul.mubr.f32.gmra.mrb[0].mxu0 %v1969
        %v2254 = vpop.f32.mrb[0].mxu0
        %v2255 = vadd.f32 0.0, %v2254
        %v2256 = vpop.f32.mrb[0].mxu0
        %2257 = vmatprep.mubr.f32.mxu0 0.0
        %2258 = vmatmul.mubr.f32.gmra.mrb[0].mxu0 %v1972
        %v2259 = vpop.f32.mrb[0].mxu0
        %v2260 = vadd.f32 0.0, %v2259
        %v2261 = vpop.f32.mrb[0].mxu0
        %2262 = vmatprep.mubr.f32.mxu0 0.0
        %2263 = vmatmul.mubr.f32.gmra.mrb[0].mxu0 %v1975
        %v2264 = vpop.f32.mrb[0].mxu0
        %v2265 = vadd.f32 0.0, %v2264
        %v2266 = vpop.f32.mrb[0].mxu0
        %2267 = vmatprep.mubr.f32.mxu0 0.0
        %2268 = vmatmul.mubr.f32.gmra.mrb[0].mxu0 %v1978
        %v2269 = vpop.f32.mrb[0].mxu0
        %v2270 = vadd.f32 0.0, %v2269
        %v2271 = vpop.f32.mrb[0].mxu0
        %2272 = vmatprep.mubr.f32.mxu0 0.0
        %2273 = vmatmul.mubr.f32.gmra.mrb[0].mxu0 %v1981
        %v2274 = vpop.f32.mrb[0].mxu0
        %v2275 = vadd.f32 0.0, %v2274
        %v2276 = vpop.f32.mrb[0].mxu0
        %2277 = vmatprep.mubr.f32.mxu0 0.0
        %2278 = vmatmul.mubr.f32.gmra.mrb[0].mxu0 %v1984
        %v2279 = vpop.f32.mrb[0].mxu0
        %v2280 = vadd.f32 0.0, %v2279
        %v2281 = vpop.f32.mrb[0].mxu0
        %2282 = vmatprep.mubr.f32.mxu0 0.0
        %2283 = vmatmul.mubr.f32.gmra.mrb[0].mxu0 %v1987
        %v2284 = vpop.f32.mrb[0].mxu0
        %v2285 = vadd.f32 0.0, %v2284
        %v2286 = vpop.f32.mrb[0].mxu0
        %2287 = vmatprep.mubr.f32.mxu0 0.0
        %2288 = vmatmul.mubr.f32.gmra.mrb[0].mxu0 %v1990
        %v2289 = vpop.f32.mrb[0].mxu0
        %v2290 = vadd.f32 0.0, %v2289
        %v2291 = vpop.f32.mrb[0].mxu0
        %2292 = vmatprep.mubr.f32.mxu0 0.0
        %2293 = vmatmul.mubr.f32.gmra.mrb[0].mxu0 %v1993
        %v2294 = vpop.f32.mrb[0].mxu0
        %v2295 = vadd.f32 0.0, %v2294
        %v2296 = vpop.f32.mrb[0].mxu0
        %2297 = vmatprep.mubr.f32.mxu0 0.0
        %2298 = vmatmul.mubr.f32.gmra.mrb[0].mxu0 %v1996
        %v2299 = vpop.f32.mrb[0].mxu0
        %v2300 = vadd.f32 0.0, %v2299
        %v2301 = vpop.f32.mrb[0].mxu0
        %2302 = vmatprep.mubr.f32.mxu0 0.0
        %2303 = vmatmul.mubr.f32.gmra.mrb[0].mxu0 %v1999
        %v2304 = vpop.f32.mrb[0].mxu0
        %v2305 = vadd.f32 0.0, %v2304
        %v2306 = vpop.f32.mrb[0].mxu0
        %2307 = vmatprep.mubr.f32.mxu0 0.0
        %2308 = vmatmul.mubr.f32.gmra.mrb[0].mxu0 %v2002
        %v2309 = vpop.f32.mrb[0].mxu0
        %v2310 = vadd.f32 0.0, %v2309
        %v2311 = vpop.f32.mrb[0].mxu0
        %2312 = vmatprep.mubr.f32.mxu0 0.0
        %2313 = vmatmul.mubr.f32.gmra.mrb[0].mxu0 %v2005
        %v2314 = vpop.f32.mrb[0].mxu0
        %v2315 = vadd.f32 0.0, %v2314
        %v2316 = vpop.f32.mrb[0].mxu0
        %2317 = vmatprep.mubr.f32.mxu0 0.0
        %2318 = vmatmul.mubr.f32.gmra.mrb[0].mxu0 %v2008
        %v2319 = vpop.f32.mrb[0].mxu0
        %v2320 = vadd.f32 0.0, %v2319
        %v2321 = vpop.f32.mrb[0].mxu0
        %2322 = vmatprep.mubr.f32.mxu0 0.0
        %2323 = vmatmul.mubr.f32.gmra.mrb[0].mxu0 %v2011
        %v2324 = vpop.f32.mrb[0].mxu0
        %v2325 = vadd.f32 0.0, %v2324
        %v2326 = vpop.f32.mrb[0].mxu0
        %2327 = vmatprep.mubr.f32.mxu0 0.0
        %2328 = vmatmul.mubr.f32.gmra.mrb[0].mxu0 %v2014
        %v2329 = vpop.f32.mrb[0].mxu0
        %v2330 = vadd.f32 0.0, %v2329
        %v2331 = vpop.f32.mrb[0].mxu0
        %2332 = vmatprep.mubr.f32.mxu0 0.0
        %2333 = vmatmul.mubr.f32.gmra.mrb[0].mxu0 %v2017
        %v2334 = vpop.f32.mrb[0].mxu0
        %v2335 = vadd.f32 0.0, %v2334
        %v2336 = vpop.f32.mrb[0].mxu0
        %2337 = vmatprep.mubr.f32.mxu0 0.0
        %2338 = vmatmul.mubr.f32.gmra.mrb[0].mxu0 %v2020
        %v2339 = vpop.f32.mrb[0].mxu0
        %v2340 = vadd.f32 0.0, %v2339
        %v2341 = vpop.f32.mrb[0].mxu0
        %2342 = vmatprep.mubr.f32.mxu0 0.0
        %2343 = vmatmul.mubr.f32.gmra.mrb[0].mxu0 %v2023
        %v2344 = vpop.f32.mrb[0].mxu0
        %v2345 = vadd.f32 0.0, %v2344
        %v2346 = vpop.f32.mrb[0].mxu0
        %2347 = vmatprep.mubr.f32.mxu0 0.0
        %2348 = vmatmul.mubr.f32.gmra.mrb[0].mxu0 %v2026
        %v2349 = vpop.f32.mrb[0].mxu0
        %v2350 = vadd.f32 0.0, %v2349
        %v2351 = vpop.f32.mrb[0].mxu0
        %2352 = vmatprep.mubr.f32.mxu0 0.0
        %2353 = vmatmul.mubr.f32.gmra.mrb[0].mxu0 %v2029
        %v2354 = vpop.f32.mrb[0].mxu0
        %v2355 = vadd.f32 0.0, %v2354
        %v2356 = vpop.f32.mrb[0].mxu0
        %2357 = vmatprep.mubr.f32.mxu0 0.0
        %2358 = vmatmul.mubr.f32.gmra.mrb[0].mxu0 %v2032
        %v2359 = vpop.f32.mrb[0].mxu0
        %v2360 = vadd.f32 0.0, %v2359
        %v2361 = vpop.f32.mrb[0].mxu0
        %2362 = vmatprep.mubr.f32.mxu0 0.0
        %2363 = vmatmul.mubr.f32.gmra.mrb[0].mxu0 %v2035
        %v2364 = vpop.f32.mrb[0].mxu0
        %v2365 = vadd.f32 0.0, %v2364
        %v2366 = vpop.f32.mrb[0].mxu0
        %2367 = vmatprep.mubr.f32.mxu0 0.0
        %2368 = vmatmul.mubr.f32.gmra.mrb[0].mxu0 %v2038
        %v2369 = vpop.f32.mrb[0].mxu0
        %v2370 = vadd.f32 0.0, %v2369
        %v2371 = vpop.f32.mrb[0].mxu0
        %2372 = vmatprep.mubr.f32.mxu0 0.0
        %2373 = vmatmul.mubr.f32.gmra.mrb[0].mxu0 %v2041
        %v2374 = vpop.f32.mrb[0].mxu0
        %v2375 = vadd.f32 0.0, %v2374
        %v2376 = vpop.f32.mrb[0].mxu0
        %2377 = vmatprep.mubr.f32.mxu0 0.0
        %2378 = vmatmul.mubr.f32.gmra.mrb[0].mxu0 %v2044
        %v2379 = vpop.f32.mrb[0].mxu0
        %v2380 = vadd.f32 0.0, %v2379
        %v2381 = vpop.f32.mrb[0].mxu0
        %2382 = vmatprep.mubr.f32.mxu0 0.0
        %2383 = vmatmul.mubr.f32.gmra.mrb[0].mxu0 %v2047
        %v2384 = vpop.f32.mrb[0].mxu0
        %v2385 = vadd.f32 0.0, %v2384
        %v2386 = vpop.f32.mrb[0].mxu0
        %2387 = vmatprep.mubr.f32.mxu0 0.0
        %2388 = vmatmul.mubr.f32.gmra.mrb[0].mxu0 %v2050
        %v2389 = vpop.f32.mrb[0].mxu0
        %v2390 = vadd.f32 0.0, %v2389
        %v2391 = vpop.f32.mrb[0].mxu0
        %2392 = vmatprep.mubr.f32.mxu0 0.0
        %2393 = vmatmul.mubr.f32.gmra.mrb[0].mxu0 %v2053
        %v2394 = vpop.f32.mrb[0].mxu0
        %v2395 = vadd.f32 0.0, %v2394
        %v2396 = vpop.f32.mrb[0].mxu0
        %2397 = vmatprep.mubr.f32.mxu0 0.0
        %2398 = vmatmul.mubr.f32.gmra.mrb[0].mxu0 %v2056
        %v2399 = vpop.f32.mrb[0].mxu0
        %v2400 = vadd.f32 0.0, %v2399
        %v2401 = vpop.f32.mrb[0].mxu0
        %2402 = vmatprep.mubr.f32.mxu0 0.0
        %2403 = vmatmul.mubr.f32.gmra.mrb[0].mxu0 %v2059
        %v2404 = vpop.f32.mrb[0].mxu0
        %v2405 = vadd.f32 0.0, %v2404
        %v2406 = vpop.f32.mrb[0].mxu0
        %2407 = vmatprep.mubr.f32.mxu0 0.0
        %2408 = vmatmul.mubr.f32.gmra.mrb[0].mxu0 %v2062
        %v2409 = vpop.f32.mrb[0].mxu0
        %v2410 = vadd.f32 0.0, %v2409
        %v2411 = vpop.f32.mrb[0].mxu0
        %2412 = vmatprep.mubr.f32.mxu0 0.0
        %2413 = vmatmul.mubr.f32.gmra.mrb[0].mxu0 %v2065
        %v2414 = vpop.f32.mrb[0].mxu0
        %v2415 = vadd.f32 0.0, %v2414
        %v2416 = vpop.f32.mrb[0].mxu0
        %2417 = vmatprep.mubr.f32.mxu0 0.0
        %2418 = vmatmul.mubr.f32.gmra.mrb[0].mxu0 %v2068
        %v2419 = vpop.f32.mrb[0].mxu0
        %v2420 = vadd.f32 0.0, %v2419
        %v2421 = vpop.f32.mrb[0].mxu0
        %2422 = vmatprep.mubr.f32.mxu0 0.0
        %2423 = vmatmul.mubr.f32.gmra.mrb[0].mxu0 %v2071
        %v2424 = vpop.f32.mrb[0].mxu0
        %v2425 = vadd.f32 0.0, %v2424
        %v2426 = vpop.f32.mrb[0].mxu0
        %2427 = vmatprep.mubr.f32.mxu0 0.0
        %2428 = vmatmul.mubr.f32.gmra.mrb[0].mxu0 %v2074
        %v2429 = vpop.f32.mrb[0].mxu0
        %v2430 = vadd.f32 0.0, %v2429
        %v2431 = vpop.f32.mrb[0].mxu0
        %2432 = vmatprep.mubr.f32.mxu0 0.0
        %2433 = vmatmul.mubr.f32.gmra.mrb[0].mxu0 %v2077
        %v2434 = vpop.f32.mrb[0].mxu0
        %v2435 = vadd.f32 0.0, %v2434
        %v2436 = vpop.f32.mrb[0].mxu0
        %2437 = vmatprep.mubr.f32.mxu0 0.0
        %2438 = vmatmul.mubr.f32.gmra.mrb[0].mxu0 %v2080
        %v2439 = vpop.f32.mrb[0].mxu0
        %v2440 = vadd.f32 0.0, %v2439
        %v2441 = vpop.f32.mrb[0].mxu0
        %2442 = vmatprep.mubr.f32.mxu0 0.0
        %2443 = vmatmul.mubr.f32.gmra.mrb[0].mxu0 %v2083
        %v2444 = vpop.f32.mrb[0].mxu0
        %v2445 = vadd.f32 0.0, %v2444
        %v2446 = vpop.f32.mrb[0].mxu0
        %2447 = vmatprep.mubr.f32.mxu0 0.0
        %2448 = vmatmul.mubr.f32.gmra.mrb[0].mxu0 %v2086
        %v2449 = vpop.f32.mrb[0].mxu0
        %v2450 = vadd.f32 0.0, %v2449
        %v2451 = vpop.f32.mrb[0].mxu0
        %2452 = vmatprep.mubr.f32.mxu0 0.0
        %2453 = vmatmul.mubr.f32.gmra.mrb[0].mxu0 %v2089
        %v2454 = vpop.f32.mrb[0].mxu0
        %v2455 = vadd.f32 0.0, %v2454
        %v2456 = vpop.f32.mrb[0].mxu0
        %2457 = vmatprep.mubr.f32.mxu0 0.0
        %2458 = vmatmul.mubr.f32.gmra.mrb[0].mxu0 %v2092
        %v2459 = vpop.f32.mrb[0].mxu0
        %v2460 = vadd.f32 0.0, %v2459
        %v2461 = vpop.f32.mrb[0].mxu0
        %2462 = vmatprep.mubr.f32.mxu0 0.0
        %2463 = vmatmul.mubr.f32.gmra.mrb[0].mxu0 %v2095
        %v2464 = vpop.f32.mrb[0].mxu0
        %v2465 = vadd.f32 0.0, %v2464
        %v2466 = vpop.f32.mrb[0].mxu0
        %2467 = vmatprep.mubr.f32.mxu0 0.0
        %2468 = vmatmul.mubr.f32.gmra.mrb[0].mxu0 %v2098
        %v2469 = vpop.f32.mrb[0].mxu0
        %v2470 = vadd.f32 0.0, %v2469
        %v2471 = vpop.f32.mrb[0].mxu0
        %2472 = vmatprep.mubr.f32.mxu0 0.0
        %2473 = vmatmul.mubr.f32.gmra.mrb[0].mxu0 %v2101
        %v2474 = vpop.f32.mrb[0].mxu0
        %v2475 = vadd.f32 0.0, %v2474
        %v2476 = vpop.f32.mrb[0].mxu0
        %2477 = vdwg.mxu0
        %v2478 = vadd.f32 %v1544, %v2170
        %v2479 = vadd.f32 %v1549, %v2175
        %v2480 = vadd.f32 %v1554, %v2180
        %v2481 = vadd.f32 %v1559, %v2185
        %v2482 = vadd.f32 %v1564, %v2190
        %v2483 = vadd.f32 %v1569, %v2195
        %v2484 = vadd.f32 %v1574, %v2200
        %v2485 = vadd.f32 %v1579, %v2205
        %v2486 = vadd.f32 %v1584, %v2210
        %v2487 = vadd.f32 %v1589, %v2215
        %v2488 = vadd.f32 %v1594, %v2220
        %v2489 = vadd.f32 %v1599, %v2225
        %v2490 = vadd.f32 %v1604, %v2230
        %v2491 = vadd.f32 %v1609, %v2235
        %v2492 = vadd.f32 %v1614, %v2240
        %v2493 = vadd.f32 %v1619, %v2245
        %v2494 = vadd.f32 %v1624, %v2250
        %v2495 = vadd.f32 %v1629, %v2255
        %v2496 = vadd.f32 %v1634, %v2260
        %v2497 = vadd.f32 %v1639, %v2265
        %v2498 = vadd.f32 %v1644, %v2270
        %v2499 = vadd.f32 %v1649, %v2275
        %v2500 = vadd.f32 %v1654, %v2280
        %v2501 = vadd.f32 %v1659, %v2285
        %v2502 = vadd.f32 %v1664, %v2290
        %v2503 = vadd.f32 %v1669, %v2295
        %v2504 = vadd.f32 %v1674, %v2300
        %v2505 = vadd.f32 %v1679, %v2305
        %v2506 = vadd.f32 %v1684, %v2310
        %v2507 = vadd.f32 %v1689, %v2315
        %v2508 = vadd.f32 %v1694, %v2320
        %v2509 = vadd.f32 %v1699, %v2325
        %v2510 = vadd.f32 %v1704, %v2330
        %v2511 = vadd.f32 %v1709, %v2335
        %v2512 = vadd.f32 %v1714, %v2340
        %v2513 = vadd.f32 %v1719, %v2345
        %v2514 = vadd.f32 %v1724, %v2350
        %v2515 = vadd.f32 %v1729, %v2355
        %v2516 = vadd.f32 %v1734, %v2360
        %v2517 = vadd.f32 %v1739, %v2365
        %v2518 = vadd.f32 %v1744, %v2370
        %v2519 = vadd.f32 %v1749, %v2375
        %v2520 = vadd.f32 %v1754, %v2380
        %v2521 = vadd.f32 %v1759, %v2385
        %v2522 = vadd.f32 %v1764, %v2390
        %v2523 = vadd.f32 %v1769, %v2395
        %v2524 = vadd.f32 %v1774, %v2400
        %v2525 = vadd.f32 %v1779, %v2405
        %v2526 = vadd.f32 %v1784, %v2410
        %v2527 = vadd.f32 %v1789, %v2415
        %v2528 = vadd.f32 %v1794, %v2420
        %v2529 = vadd.f32 %v1799, %v2425
        %v2530 = vadd.f32 %v1804, %v2430
        %v2531 = vadd.f32 %v1809, %v2435
        %v2532 = vadd.f32 %v1814, %v2440
        %v2533 = vadd.f32 %v1819, %v2445
        %v2534 = vadd.f32 %v1824, %v2450
        %v2535 = vadd.f32 %v1829, %v2455
        %v2536 = vadd.f32 %v1834, %v2460
        %v2537 = vadd.f32 %v1839, %v2465
        %v2538 = vadd.f32 %v1844, %v2470
        %v2539 = vadd.f32 %v1849, %v2475
        %v2540 = vld [vmem:[%s599 + $0x3] sm:$0xff]
        %v2541 = vld [vmem:[%s599 + $0xb] sm:$0xff]
        %v2542 = vld [vmem:[%s599 + $0x13] sm:$0xff]
        %v2543 = vld [vmem:[%s599 + $0x1b] sm:$0xff]
        %v2544 = vld [vmem:[%s599 + $0x23] sm:$0xff]
        %v2545 = vld [vmem:[%s599 + $0x2b] sm:$0xff]
        %v2546 = vld [vmem:[%s599 + $0x33] sm:$0xff]
        %v2547 = vld [vmem:[%s599 + $0x3b] sm:$0xff]
        %v2548 = vld [vmem:[%s599 + $0x43] sm:$0xff]
        %v2549 = vld [vmem:[%s599 + $0x4b] sm:$0xff]
        %v2550 = vld [vmem:[%s599 + $0x53] sm:$0xff]
        %v2551 = vld [vmem:[%s599 + $0x5b] sm:$0xff]
        %v2552 = vld [vmem:[%s599 + $0x63] sm:$0xff]
        %v2553 = vld [vmem:[%s599 + $0x6b] sm:$0xff]
        %v2554 = vld [vmem:[%s599 + $0x73] sm:$0xff]
        %v2555 = vld [vmem:[%s599 + $0x7b] sm:$0xff]
        %v2556 = vld [vmem:[%s599 + $0x83] sm:$0xff]
        %v2557 = vld [vmem:[%s599 + $0x8b] sm:$0xff]
        %v2558 = vld [vmem:[%s599 + $0x93] sm:$0xff]
        %v2559 = vld [vmem:[%s599 + $0x9b] sm:$0xff]
        %v2560 = vld [vmem:[%s599 + $0xa3] sm:$0xff]
        %v2561 = vld [vmem:[%s599 + $0xab] sm:$0xff]
        %v2562 = vld [vmem:[%s599 + $0xb3] sm:$0xff]
        %v2563 = vld [vmem:[%s599 + $0xbb] sm:$0xff]
        %v2564 = vld [vmem:[%s599 + $0xc3] sm:$0xff]
        %v2565 = vld [vmem:[%s599 + $0xcb] sm:$0xff]
        %v2566 = vld [vmem:[%s599 + $0xd3] sm:$0xff]
        %v2567 = vld [vmem:[%s599 + $0xdb] sm:$0xff]
        %v2568 = vld [vmem:[%s599 + $0xe3] sm:$0xff]
        %v2569 = vld [vmem:[%s599 + $0xeb] sm:$0xff]
        %v2570 = vld [vmem:[%s599 + $0xf3] sm:$0xff]
        %v2571 = vld [vmem:[%s599 + $0xfb] sm:$0xff]
        %v2572 = vld [vmem:[%s599 + $0x103] sm:$0xff]
        %v2573 = vld [vmem:[%s599 + $0x10b] sm:$0xff]
        %v2574 = vld [vmem:[%s599 + $0x113] sm:$0xff]
        %v2575 = vld [vmem:[%s599 + $0x11b] sm:$0xff]
        %v2576 = vld [vmem:[%s599 + $0x123] sm:$0xff]
        %v2577 = vld [vmem:[%s599 + $0x12b] sm:$0xff]
        %v2578 = vld [vmem:[%s599 + $0x133] sm:$0xff]
        %v2579 = vld [vmem:[%s599 + $0x13b] sm:$0xff]
        %v2580 = vld [vmem:[%s599 + $0x143] sm:$0xff]
        %v2581 = vld [vmem:[%s599 + $0x14b] sm:$0xff]
        %v2582 = vld [vmem:[%s599 + $0x153] sm:$0xff]
        %v2583 = vld [vmem:[%s599 + $0x15b] sm:$0xff]
        %v2584 = vld [vmem:[%s599 + $0x163] sm:$0xff]
        %v2585 = vld [vmem:[%s599 + $0x16b] sm:$0xff]
        %v2586 = vld [vmem:[%s599 + $0x173] sm:$0xff]
        %v2587 = vld [vmem:[%s599 + $0x17b] sm:$0xff]
        %v2588 = vld [vmem:[%s599 + $0x183] sm:$0xff]
        %v2589 = vld [vmem:[%s599 + $0x18b] sm:$0xff]
        %v2590 = vld [vmem:[%s599 + $0x193] sm:$0xff]
        %v2591 = vld [vmem:[%s599 + $0x19b] sm:$0xff]
        %v2592 = vld [vmem:[%s599 + $0x1a3] sm:$0xff]
        %v2593 = vld [vmem:[%s599 + $0x1ab] sm:$0xff]
        %v2594 = vld [vmem:[%s599 + $0x1b3] sm:$0xff]
        %v2595 = vld [vmem:[%s599 + $0x1bb] sm:$0xff]
        %v2596 = vld [vmem:[%s599 + $0x1c3] sm:$0xff]
        %v2597 = vld [vmem:[%s599 + $0x1cb] sm:$0xff]
        %v2598 = vld [vmem:[%s599 + $0x1d3] sm:$0xff]
        %v2599 = vld [vmem:[%s599 + $0x1db] sm:$0xff]
        %v2600 = vld [vmem:[%s599 + $0x1e3] sm:$0xff]
        %v2601 = vld [vmem:[%s599 + $0x1eb] sm:$0xff]
        %s2602 = scalar_lea.vmem %s1, 48
        %v2603 = vld [vmem:[%s2602] sm:$0xff]
        %v2604 = vld [vmem:[%s2602 + $0x8] sm:$0xff]
        %v2606 = vsel %vm729, %v2540, 0
        %v2609 = vsel %vm729, %v2541, 0
        %v2612 = vsel %vm729, %v2542, 0
        %v2615 = vsel %vm729, %v2543, 0
        %v2618 = vsel %vm729, %v2544, 0
        %v2621 = vsel %vm729, %v2545, 0
        %v2624 = vsel %vm729, %v2546, 0
        %v2627 = vsel %vm729, %v2547, 0
        %v2630 = vsel %vm729, %v2548, 0
        %v2633 = vsel %vm729, %v2549, 0
        %v2636 = vsel %vm729, %v2550, 0
        %v2639 = vsel %vm729, %v2551, 0
        %v2642 = vsel %vm729, %v2552, 0
        %v2645 = vsel %vm729, %v2553, 0
        %v2648 = vsel %vm729, %v2554, 0
        %v2651 = vsel %vm729, %v2555, 0
        %v2654 = vsel %vm729, %v2556, 0
        %v2657 = vsel %vm729, %v2557, 0
        %v2660 = vsel %vm729, %v2558, 0
        %v2663 = vsel %vm729, %v2559, 0
        %v2666 = vsel %vm729, %v2560, 0
        %v2669 = vsel %vm729, %v2561, 0
        %v2672 = vsel %vm729, %v2562, 0
        %v2675 = vsel %vm729, %v2563, 0
        %v2678 = vsel %vm729, %v2564, 0
        %v2681 = vsel %vm729, %v2565, 0
        %v2684 = vsel %vm729, %v2566, 0
        %v2687 = vsel %vm729, %v2567, 0
        %v2690 = vsel %vm729, %v2568, 0
        %v2693 = vsel %vm729, %v2569, 0
        %v2696 = vsel %vm729, %v2570, 0
        %v2699 = vsel %vm729, %v2571, 0
        %v2702 = vsel %vm729, %v2572, 0
        %v2705 = vsel %vm729, %v2573, 0
        %v2708 = vsel %vm729, %v2574, 0
        %v2711 = vsel %vm729, %v2575, 0
        %v2714 = vsel %vm729, %v2576, 0
        %v2717 = vsel %vm729, %v2577, 0
        %v2720 = vsel %vm729, %v2578, 0
        %v2723 = vsel %vm729, %v2579, 0
        %v2726 = vsel %vm729, %v2580, 0
        %v2729 = vsel %vm729, %v2581, 0
        %v2732 = vsel %vm729, %v2582, 0
        %v2735 = vsel %vm729, %v2583, 0
        %v2738 = vsel %vm729, %v2584, 0
        %v2741 = vsel %vm729, %v2585, 0
        %v2744 = vsel %vm729, %v2586, 0
        %v2747 = vsel %vm729, %v2587, 0
        %v2750 = vsel %vm729, %v2588, 0
        %v2753 = vsel %vm729, %v2589, 0
        %v2756 = vsel %vm729, %v2590, 0
        %v2759 = vsel %vm729, %v2591, 0
        %v2762 = vsel %vm729, %v2592, 0
        %v2765 = vsel %vm729, %v2593, 0
        %v2768 = vsel %vm729, %v2594, 0
        %v2771 = vsel %vm729, %v2595, 0
        %v2774 = vsel %vm729, %v2596, 0
        %v2777 = vsel %vm729, %v2597, 0
        %v2780 = vsel %vm729, %v2598, 0
        %v2783 = vsel %vm729, %v2599, 0
        %v2786 = vsel %vm729, %v2600, 0
        %v2789 = vsel %vm729, %v2601, 0
        %2791 = vmatprep.subr.mxu0 0.0
        %2792 = vmatpush1.msra.mxu0 %v2603
        %2793 = vmatprep.subr.mxu0 0.0
        %2794 = vmatpush1.msra.mxu0 %v2604
        %2795 = vmatprep.subr.mxu0 0.0
        %2796 = vmatpush1.msra.mxu0 0.0
        %2797 = vmatprep.subr.mxu0 0.0
        %2798 = vmatpush1.msra.mxu0 0.0
        %2799 = vmatprep.subr.mxu0 0.0
        %2800 = vmatpush1.msra.mxu0 0.0
        %2801 = vmatprep.subr.mxu0 0.0
        %2802 = vmatpush1.msra.mxu0 0.0
        %2803 = vmatprep.subr.mxu0 0.0
        %2804 = vmatpush1.msra.mxu0 0.0
        %2805 = vmatprep.subr.mxu0 0.0
        %2806 = vmatpush1.msra.mxu0 0.0
        %2807 = vmatprep.subr.mxu0 0.0
        %2808 = vmatpush1.msra.mxu0 0.0
        %2809 = vmatprep.subr.mxu0 0.0
        %2810 = vmatpush1.msra.mxu0 0.0
        %2811 = vmatprep.subr.mxu0 0.0
        %2812 = vmatpush1.msra.mxu0 0.0
        %2813 = vmatprep.subr.mxu0 0.0
        %2814 = vmatpush1.msra.mxu0 0.0
        %2815 = vmatprep.subr.mxu0 0.0
        %2816 = vmatpush1.msra.mxu0 0.0
        %2817 = vmatprep.subr.mxu0 0.0
        %2818 = vmatpush1.msra.mxu0 0.0
        %2819 = vmatprep.subr.mxu0 0.0
        %2820 = vmatpush1.msra.mxu0 0.0
        %2821 = vmatprep.subr.mxu0 0.0
        %2822 = vmatpush1.msra.mxu0 0.0
        %2823 = vmatprep.subr.mxu0 0.0
        %2824 = vmatpush1.msra.mxu0 0.0
        %2825 = vmatprep.subr.mxu0 0.0
        %2826 = vmatpush1.msra.mxu0 0.0
        %2827 = vmatprep.subr.mxu0 0.0
        %2828 = vmatpush1.msra.mxu0 0.0
        %2829 = vmatprep.subr.mxu0 0.0
        %2830 = vmatpush1.msra.mxu0 0.0
        %2831 = vmatprep.subr.mxu0 0.0
        %2832 = vmatpush1.msra.mxu0 0.0
        %2833 = vmatprep.subr.mxu0 0.0
        %2834 = vmatpush1.msra.mxu0 0.0
        %2835 = vmatprep.subr.mxu0 0.0
        %2836 = vmatpush1.msra.mxu0 0.0
        %2837 = vmatprep.subr.mxu0 0.0
        %2838 = vmatpush1.msra.mxu0 0.0
        %2839 = vmatprep.subr.mxu0 0.0
        %2840 = vmatpush1.msra.mxu0 0.0
        %2841 = vmatprep.subr.mxu0 0.0
        %2842 = vmatpush1.msra.mxu0 0.0
        %2843 = vmatprep.subr.mxu0 0.0
        %2844 = vmatpush1.msra.mxu0 0.0
        %2845 = vmatprep.subr.mxu0 0.0
        %2846 = vmatpush1.msra.mxu0 0.0
        %2847 = vmatprep.subr.mxu0 0.0
        %2848 = vmatpush1.msra.mxu0 0.0
        %2849 = vmatprep.subr.mxu0 0.0
        %2850 = vmatpush1.msra.mxu0 0.0
        %2851 = vmatprep.subr.mxu0 0.0
        %2852 = vmatpush1.msra.mxu0 0.0
        %2853 = vmatprep.subr.mxu0 0.0
        %2854 = vmatpush1.msra.mxu0 0.0
        %2855 = vmatprep.mubr.f32.mxu0 0.0
        %2856 = vmatmul.mubr.f32.gmra.mrb[0].mxu0 %v2606
        %v2857 = vpop.f32.mrb[0].mxu0
        %v2858 = vadd.f32 0.0, %v2857
        %v2859 = vpop.f32.mrb[0].mxu0
        %2860 = vmatprep.mubr.f32.mxu0 0.0
        %2861 = vmatmul.mubr.f32.gmra.mrb[0].mxu0 %v2609
        %v2862 = vpop.f32.mrb[0].mxu0
        %v2863 = vadd.f32 0.0, %v2862
        %v2864 = vpop.f32.mrb[0].mxu0
        %2865 = vmatprep.mubr.f32.mxu0 0.0
        %2866 = vmatmul.mubr.f32.gmra.mrb[0].mxu0 %v2612
        %v2867 = vpop.f32.mrb[0].mxu0
        %v2868 = vadd.f32 0.0, %v2867
        %v2869 = vpop.f32.mrb[0].mxu0
        %2870 = vmatprep.mubr.f32.mxu0 0.0
        %2871 = vmatmul.mubr.f32.gmra.mrb[0].mxu0 %v2615
        %v2872 = vpop.f32.mrb[0].mxu0
        %v2873 = vadd.f32 0.0, %v2872
        %v2874 = vpop.f32.mrb[0].mxu0
        %2875 = vmatprep.mubr.f32.mxu0 0.0
        %2876 = vmatmul.mubr.f32.gmra.mrb[0].mxu0 %v2618
        %v2877 = vpop.f32.mrb[0].mxu0
        %v2878 = vadd.f32 0.0, %v2877
        %v2879 = vpop.f32.mrb[0].mxu0
        %2880 = vmatprep.mubr.f32.mxu0 0.0
        %2881 = vmatmul.mubr.f32.gmra.mrb[0].mxu0 %v2621
        %v2882 = vpop.f32.mrb[0].mxu0
        %v2883 = vadd.f32 0.0, %v2882
        %v2884 = vpop.f32.mrb[0].mxu0
        %2885 = vmatprep.mubr.f32.mxu0 0.0
        %2886 = vmatmul.mubr.f32.gmra.mrb[0].mxu0 %v2624
        %v2887 = vpop.f32.mrb[0].mxu0
        %v2888 = vadd.f32 0.0, %v2887
        %v2889 = vpop.f32.mrb[0].mxu0
        %2890 = vmatprep.mubr.f32.mxu0 0.0
        %2891 = vmatmul.mubr.f32.gmra.mrb[0].mxu0 %v2627
        %v2892 = vpop.f32.mrb[0].mxu0
        %v2893 = vadd.f32 0.0, %v2892
        %v2894 = vpop.f32.mrb[0].mxu0
        %2895 = vmatprep.mubr.f32.mxu0 0.0
        %2896 = vmatmul.mubr.f32.gmra.mrb[0].mxu0 %v2630
        %v2897 = vpop.f32.mrb[0].mxu0
        %v2898 = vadd.f32 0.0, %v2897
        %v2899 = vpop.f32.mrb[0].mxu0
        %2900 = vmatprep.mubr.f32.mxu0 0.0
        %2901 = vmatmul.mubr.f32.gmra.mrb[0].mxu0 %v2633
        %v2902 = vpop.f32.mrb[0].mxu0
        %v2903 = vadd.f32 0.0, %v2902
        %v2904 = vpop.f32.mrb[0].mxu0
        %2905 = vmatprep.mubr.f32.mxu0 0.0
        %2906 = vmatmul.mubr.f32.gmra.mrb[0].mxu0 %v2636
        %v2907 = vpop.f32.mrb[0].mxu0
        %v2908 = vadd.f32 0.0, %v2907
        %v2909 = vpop.f32.mrb[0].mxu0
        %2910 = vmatprep.mubr.f32.mxu0 0.0
        %2911 = vmatmul.mubr.f32.gmra.mrb[0].mxu0 %v2639
        %v2912 = vpop.f32.mrb[0].mxu0
        %v2913 = vadd.f32 0.0, %v2912
        %v2914 = vpop.f32.mrb[0].mxu0
        %2915 = vmatprep.mubr.f32.mxu0 0.0
        %2916 = vmatmul.mubr.f32.gmra.mrb[0].mxu0 %v2642
        %v2917 = vpop.f32.mrb[0].mxu0
        %v2918 = vadd.f32 0.0, %v2917
        %v2919 = vpop.f32.mrb[0].mxu0
        %2920 = vmatprep.mubr.f32.mxu0 0.0
        %2921 = vmatmul.mubr.f32.gmra.mrb[0].mxu0 %v2645
        %v2922 = vpop.f32.mrb[0].mxu0
        %v2923 = vadd.f32 0.0, %v2922
        %v2924 = vpop.f32.mrb[0].mxu0
        %2925 = vmatprep.mubr.f32.mxu0 0.0
        %2926 = vmatmul.mubr.f32.gmra.mrb[0].mxu0 %v2648
        %v2927 = vpop.f32.mrb[0].mxu0
        %v2928 = vadd.f32 0.0, %v2927
        %v2929 = vpop.f32.mrb[0].mxu0
        %2930 = vmatprep.mubr.f32.mxu0 0.0
        %2931 = vmatmul.mubr.f32.gmra.mrb[0].mxu0 %v2651
        %v2932 = vpop.f32.mrb[0].mxu0
        %v2933 = vadd.f32 0.0, %v2932
        %v2934 = vpop.f32.mrb[0].mxu0
        %2935 = vmatprep.mubr.f32.mxu0 0.0
        %2936 = vmatmul.mubr.f32.gmra.mrb[0].mxu0 %v2654
        %v2937 = vpop.f32.mrb[0].mxu0
        %v2938 = vadd.f32 0.0, %v2937
        %v2939 = vpop.f32.mrb[0].mxu0
        %2940 = vmatprep.mubr.f32.mxu0 0.0
        %2941 = vmatmul.mubr.f32.gmra.mrb[0].mxu0 %v2657
        %v2942 = vpop.f32.mrb[0].mxu0
        %v2943 = vadd.f32 0.0, %v2942
        %v2944 = vpop.f32.mrb[0].mxu0
        %2945 = vmatprep.mubr.f32.mxu0 0.0
        %2946 = vmatmul.mubr.f32.gmra.mrb[0].mxu0 %v2660
        %v2947 = vpop.f32.mrb[0].mxu0
        %v2948 = vadd.f32 0.0, %v2947
        %v2949 = vpop.f32.mrb[0].mxu0
        %2950 = vmatprep.mubr.f32.mxu0 0.0
        %2951 = vmatmul.mubr.f32.gmra.mrb[0].mxu0 %v2663
        %v2952 = vpop.f32.mrb[0].mxu0
        %v2953 = vadd.f32 0.0, %v2952
        %v2954 = vpop.f32.mrb[0].mxu0
        %2955 = vmatprep.mubr.f32.mxu0 0.0
        %2956 = vmatmul.mubr.f32.gmra.mrb[0].mxu0 %v2666
        %v2957 = vpop.f32.mrb[0].mxu0
        %v2958 = vadd.f32 0.0, %v2957
        %v2959 = vpop.f32.mrb[0].mxu0
        %2960 = vmatprep.mubr.f32.mxu0 0.0
        %2961 = vmatmul.mubr.f32.gmra.mrb[0].mxu0 %v2669
        %v2962 = vpop.f32.mrb[0].mxu0
        %v2963 = vadd.f32 0.0, %v2962
        %v2964 = vpop.f32.mrb[0].mxu0
        %2965 = vmatprep.mubr.f32.mxu0 0.0
        %2966 = vmatmul.mubr.f32.gmra.mrb[0].mxu0 %v2672
        %v2967 = vpop.f32.mrb[0].mxu0
        %v2968 = vadd.f32 0.0, %v2967
        %v2969 = vpop.f32.mrb[0].mxu0
        %2970 = vmatprep.mubr.f32.mxu0 0.0
        %2971 = vmatmul.mubr.f32.gmra.mrb[0].mxu0 %v2675
        %v2972 = vpop.f32.mrb[0].mxu0
        %v2973 = vadd.f32 0.0, %v2972
        %v2974 = vpop.f32.mrb[0].mxu0
        %2975 = vmatprep.mubr.f32.mxu0 0.0
        %2976 = vmatmul.mubr.f32.gmra.mrb[0].mxu0 %v2678
        %v2977 = vpop.f32.mrb[0].mxu0
        %v2978 = vadd.f32 0.0, %v2977
        %v2979 = vpop.f32.mrb[0].mxu0
        %2980 = vmatprep.mubr.f32.mxu0 0.0
        %2981 = vmatmul.mubr.f32.gmra.mrb[0].mxu0 %v2681
        %v2982 = vpop.f32.mrb[0].mxu0
        %v2983 = vadd.f32 0.0, %v2982
        %v2984 = vpop.f32.mrb[0].mxu0
        %2985 = vmatprep.mubr.f32.mxu0 0.0
        %2986 = vmatmul.mubr.f32.gmra.mrb[0].mxu0 %v2684
        %v2987 = vpop.f32.mrb[0].mxu0
        %v2988 = vadd.f32 0.0, %v2987
        %v2989 = vpop.f32.mrb[0].mxu0
        %2990 = vmatprep.mubr.f32.mxu0 0.0
        %2991 = vmatmul.mubr.f32.gmra.mrb[0].mxu0 %v2687
        %v2992 = vpop.f32.mrb[0].mxu0
        %v2993 = vadd.f32 0.0, %v2992
        %v2994 = vpop.f32.mrb[0].mxu0
        %2995 = vmatprep.mubr.f32.mxu0 0.0
        %2996 = vmatmul.mubr.f32.gmra.mrb[0].mxu0 %v2690
        %v2997 = vpop.f32.mrb[0].mxu0
        %v2998 = vadd.f32 0.0, %v2997
        %v2999 = vpop.f32.mrb[0].mxu0
        %3000 = vmatprep.mubr.f32.mxu0 0.0
        %3001 = vmatmul.mubr.f32.gmra.mrb[0].mxu0 %v2693
        %v3002 = vpop.f32.mrb[0].mxu0
        %v3003 = vadd.f32 0.0, %v3002
        %v3004 = vpop.f32.mrb[0].mxu0
        %3005 = vmatprep.mubr.f32.mxu0 0.0
        %3006 = vmatmul.mubr.f32.gmra.mrb[0].mxu0 %v2696
        %v3007 = vpop.f32.mrb[0].mxu0
        %v3008 = vadd.f32 0.0, %v3007
        %v3009 = vpop.f32.mrb[0].mxu0
        %3010 = vmatprep.mubr.f32.mxu0 0.0
        %3011 = vmatmul.mubr.f32.gmra.mrb[0].mxu0 %v2699
        %v3012 = vpop.f32.mrb[0].mxu0
        %v3013 = vadd.f32 0.0, %v3012
        %v3014 = vpop.f32.mrb[0].mxu0
        %3015 = vmatprep.mubr.f32.mxu0 0.0
        %3016 = vmatmul.mubr.f32.gmra.mrb[0].mxu0 %v2702
        %v3017 = vpop.f32.mrb[0].mxu0
        %v3018 = vadd.f32 0.0, %v3017
        %v3019 = vpop.f32.mrb[0].mxu0
        %3020 = vmatprep.mubr.f32.mxu0 0.0
        %3021 = vmatmul.mubr.f32.gmra.mrb[0].mxu0 %v2705
        %v3022 = vpop.f32.mrb[0].mxu0
        %v3023 = vadd.f32 0.0, %v3022
        %v3024 = vpop.f32.mrb[0].mxu0
        %3025 = vmatprep.mubr.f32.mxu0 0.0
        %3026 = vmatmul.mubr.f32.gmra.mrb[0].mxu0 %v2708
        %v3027 = vpop.f32.mrb[0].mxu0
        %v3028 = vadd.f32 0.0, %v3027
        %v3029 = vpop.f32.mrb[0].mxu0
        %3030 = vmatprep.mubr.f32.mxu0 0.0
        %3031 = vmatmul.mubr.f32.gmra.mrb[0].mxu0 %v2711
        %v3032 = vpop.f32.mrb[0].mxu0
        %v3033 = vadd.f32 0.0, %v3032
        %v3034 = vpop.f32.mrb[0].mxu0
        %3035 = vmatprep.mubr.f32.mxu0 0.0
        %3036 = vmatmul.mubr.f32.gmra.mrb[0].mxu0 %v2714
        %v3037 = vpop.f32.mrb[0].mxu0
        %v3038 = vadd.f32 0.0, %v3037
        %v3039 = vpop.f32.mrb[0].mxu0
        %3040 = vmatprep.mubr.f32.mxu0 0.0
        %3041 = vmatmul.mubr.f32.gmra.mrb[0].mxu0 %v2717
        %v3042 = vpop.f32.mrb[0].mxu0
        %v3043 = vadd.f32 0.0, %v3042
        %v3044 = vpop.f32.mrb[0].mxu0
        %3045 = vmatprep.mubr.f32.mxu0 0.0
        %3046 = vmatmul.mubr.f32.gmra.mrb[0].mxu0 %v2720
        %v3047 = vpop.f32.mrb[0].mxu0
        %v3048 = vadd.f32 0.0, %v3047
        %v3049 = vpop.f32.mrb[0].mxu0
        %3050 = vmatprep.mubr.f32.mxu0 0.0
        %3051 = vmatmul.mubr.f32.gmra.mrb[0].mxu0 %v2723
        %v3052 = vpop.f32.mrb[0].mxu0
        %v3053 = vadd.f32 0.0, %v3052
        %v3054 = vpop.f32.mrb[0].mxu0
        %3055 = vmatprep.mubr.f32.mxu0 0.0
        %3056 = vmatmul.mubr.f32.gmra.mrb[0].mxu0 %v2726
        %v3057 = vpop.f32.mrb[0].mxu0
        %v3058 = vadd.f32 0.0, %v3057
        %v3059 = vpop.f32.mrb[0].mxu0
        %3060 = vmatprep.mubr.f32.mxu0 0.0
        %3061 = vmatmul.mubr.f32.gmra.mrb[0].mxu0 %v2729
        %v3062 = vpop.f32.mrb[0].mxu0
        %v3063 = vadd.f32 0.0, %v3062
        %v3064 = vpop.f32.mrb[0].mxu0
        %3065 = vmatprep.mubr.f32.mxu0 0.0
        %3066 = vmatmul.mubr.f32.gmra.mrb[0].mxu0 %v2732
        %v3067 = vpop.f32.mrb[0].mxu0
        %v3068 = vadd.f32 0.0, %v3067
        %v3069 = vpop.f32.mrb[0].mxu0
        %3070 = vmatprep.mubr.f32.mxu0 0.0
        %3071 = vmatmul.mubr.f32.gmra.mrb[0].mxu0 %v2735
        %v3072 = vpop.f32.mrb[0].mxu0
        %v3073 = vadd.f32 0.0, %v3072
        %v3074 = vpop.f32.mrb[0].mxu0
        %3075 = vmatprep.mubr.f32.mxu0 0.0
        %3076 = vmatmul.mubr.f32.gmra.mrb[0].mxu0 %v2738
        %v3077 = vpop.f32.mrb[0].mxu0
        %v3078 = vadd.f32 0.0, %v3077
        %v3079 = vpop.f32.mrb[0].mxu0
        %3080 = vmatprep.mubr.f32.mxu0 0.0
        %3081 = vmatmul.mubr.f32.gmra.mrb[0].mxu0 %v2741
        %v3082 = vpop.f32.mrb[0].mxu0
        %v3083 = vadd.f32 0.0, %v3082
        %v3084 = vpop.f32.mrb[0].mxu0
        %3085 = vmatprep.mubr.f32.mxu0 0.0
        %3086 = vmatmul.mubr.f32.gmra.mrb[0].mxu0 %v2744
        %v3087 = vpop.f32.mrb[0].mxu0
        %v3088 = vadd.f32 0.0, %v3087
        %v3089 = vpop.f32.mrb[0].mxu0
        %3090 = vmatprep.mubr.f32.mxu0 0.0
        %3091 = vmatmul.mubr.f32.gmra.mrb[0].mxu0 %v2747
        %v3092 = vpop.f32.mrb[0].mxu0
        %v3093 = vadd.f32 0.0, %v3092
        %v3094 = vpop.f32.mrb[0].mxu0
        %3095 = vmatprep.mubr.f32.mxu0 0.0
        %3096 = vmatmul.mubr.f32.gmra.mrb[0].mxu0 %v2750
        %v3097 = vpop.f32.mrb[0].mxu0
        %v3098 = vadd.f32 0.0, %v3097
        %v3099 = vpop.f32.mrb[0].mxu0
        %3100 = vmatprep.mubr.f32.mxu0 0.0
        %3101 = vmatmul.mubr.f32.gmra.mrb[0].mxu0 %v2753
        %v3102 = vpop.f32.mrb[0].mxu0
        %v3103 = vadd.f32 0.0, %v3102
        %v3104 = vpop.f32.mrb[0].mxu0
        %3105 = vmatprep.mubr.f32.mxu0 0.0
        %3106 = vmatmul.mubr.f32.gmra.mrb[0].mxu0 %v2756
        %v3107 = vpop.f32.mrb[0].mxu0
        %v3108 = vadd.f32 0.0, %v3107
        %v3109 = vpop.f32.mrb[0].mxu0
        %3110 = vmatprep.mubr.f32.mxu0 0.0
        %3111 = vmatmul.mubr.f32.gmra.mrb[0].mxu0 %v2759
        %v3112 = vpop.f32.mrb[0].mxu0
        %v3113 = vadd.f32 0.0, %v3112
        %v3114 = vpop.f32.mrb[0].mxu0
        %3115 = vmatprep.mubr.f32.mxu0 0.0
        %3116 = vmatmul.mubr.f32.gmra.mrb[0].mxu0 %v2762
        %v3117 = vpop.f32.mrb[0].mxu0
        %v3118 = vadd.f32 0.0, %v3117
        %v3119 = vpop.f32.mrb[0].mxu0
        %3120 = vmatprep.mubr.f32.mxu0 0.0
        %3121 = vmatmul.mubr.f32.gmra.mrb[0].mxu0 %v2765
        %v3122 = vpop.f32.mrb[0].mxu0
        %v3123 = vadd.f32 0.0, %v3122
        %v3124 = vpop.f32.mrb[0].mxu0
        %3125 = vmatprep.mubr.f32.mxu0 0.0
        %3126 = vmatmul.mubr.f32.gmra.mrb[0].mxu0 %v2768
        %v3127 = vpop.f32.mrb[0].mxu0
        %v3128 = vadd.f32 0.0, %v3127
        %v3129 = vpop.f32.mrb[0].mxu0
        %3130 = vmatprep.mubr.f32.mxu0 0.0
        %3131 = vmatmul.mubr.f32.gmra.mrb[0].mxu0 %v2771
        %v3132 = vpop.f32.mrb[0].mxu0
        %v3133 = vadd.f32 0.0, %v3132
        %v3134 = vpop.f32.mrb[0].mxu0
        %3135 = vmatprep.mubr.f32.mxu0 0.0
        %3136 = vmatmul.mubr.f32.gmra.mrb[0].mxu0 %v2774
        %v3137 = vpop.f32.mrb[0].mxu0
        %v3138 = vadd.f32 0.0, %v3137
        %v3139 = vpop.f32.mrb[0].mxu0
        %3140 = vmatprep.mubr.f32.mxu0 0.0
        %3141 = vmatmul.mubr.f32.gmra.mrb[0].mxu0 %v2777
        %v3142 = vpop.f32.mrb[0].mxu0
        %v3143 = vadd.f32 0.0, %v3142
        %v3144 = vpop.f32.mrb[0].mxu0
        %3145 = vmatprep.mubr.f32.mxu0 0.0
        %3146 = vmatmul.mubr.f32.gmra.mrb[0].mxu0 %v2780
        %v3147 = vpop.f32.mrb[0].mxu0
        %v3148 = vadd.f32 0.0, %v3147
        %v3149 = vpop.f32.mrb[0].mxu0
        %3150 = vmatprep.mubr.f32.mxu0 0.0
        %3151 = vmatmul.mubr.f32.gmra.mrb[0].mxu0 %v2783
        %v3152 = vpop.f32.mrb[0].mxu0
        %v3153 = vadd.f32 0.0, %v3152
        %v3154 = vpop.f32.mrb[0].mxu0
        %3155 = vmatprep.mubr.f32.mxu0 0.0
        %3156 = vmatmul.mubr.f32.gmra.mrb[0].mxu0 %v2786
        %v3157 = vpop.f32.mrb[0].mxu0
        %v3158 = vadd.f32 0.0, %v3157
        %v3159 = vpop.f32.mrb[0].mxu0
        %3160 = vmatprep.mubr.f32.mxu0 0.0
        %3161 = vmatmul.mubr.f32.gmra.mrb[0].mxu0 %v2789
        %v3162 = vpop.f32.mrb[0].mxu0
        %v3163 = vadd.f32 0.0, %v3162
        %v3164 = vpop.f32.mrb[0].mxu0
        %3165 = vdwg.mxu0
        %v3166 = vadd.f32 %v2478, %v2858
        %v3167 = vadd.f32 %v2479, %v2863
        %v3168 = vadd.f32 %v2480, %v2868
        %v3169 = vadd.f32 %v2481, %v2873
        %v3170 = vadd.f32 %v2482, %v2878
        %v3171 = vadd.f32 %v2483, %v2883
        %v3172 = vadd.f32 %v2484, %v2888
        %v3173 = vadd.f32 %v2485, %v2893
        %v3174 = vadd.f32 %v2486, %v2898
        %v3175 = vadd.f32 %v2487, %v2903
        %v3176 = vadd.f32 %v2488, %v2908
        %v3177 = vadd.f32 %v2489, %v2913
        %v3178 = vadd.f32 %v2490, %v2918
        %v3179 = vadd.f32 %v2491, %v2923
        %v3180 = vadd.f32 %v2492, %v2928
        %v3181 = vadd.f32 %v2493, %v2933
        %v3182 = vadd.f32 %v2494, %v2938
        %v3183 = vadd.f32 %v2495, %v2943
        %v3184 = vadd.f32 %v2496, %v2948
        %v3185 = vadd.f32 %v2497, %v2953
        %v3186 = vadd.f32 %v2498, %v2958
        %v3187 = vadd.f32 %v2499, %v2963
        %v3188 = vadd.f32 %v2500, %v2968
        %v3189 = vadd.f32 %v2501, %v2973
        %v3190 = vadd.f32 %v2502, %v2978
        %v3191 = vadd.f32 %v2503, %v2983
        %v3192 = vadd.f32 %v2504, %v2988
        %v3193 = vadd.f32 %v2505, %v2993
        %v3194 = vadd.f32 %v2506, %v2998
        %v3195 = vadd.f32 %v2507, %v3003
        %v3196 = vadd.f32 %v2508, %v3008
        %v3197 = vadd.f32 %v2509, %v3013
        %v3198 = vadd.f32 %v2510, %v3018
        %v3199 = vadd.f32 %v2511, %v3023
        %v3200 = vadd.f32 %v2512, %v3028
        %v3201 = vadd.f32 %v2513, %v3033
        %v3202 = vadd.f32 %v2514, %v3038
        %v3203 = vadd.f32 %v2515, %v3043
        %v3204 = vadd.f32 %v2516, %v3048
        %v3205 = vadd.f32 %v2517, %v3053
        %v3206 = vadd.f32 %v2518, %v3058
        %v3207 = vadd.f32 %v2519, %v3063
        %v3208 = vadd.f32 %v2520, %v3068
        %v3209 = vadd.f32 %v2521, %v3073
        %v3210 = vadd.f32 %v2522, %v3078
        %v3211 = vadd.f32 %v2523, %v3083
        %v3212 = vadd.f32 %v2524, %v3088
        %v3213 = vadd.f32 %v2525, %v3093
        %v3214 = vadd.f32 %v2526, %v3098
        %v3215 = vadd.f32 %v2527, %v3103
        %v3216 = vadd.f32 %v2528, %v3108
        %v3217 = vadd.f32 %v2529, %v3113
        %v3218 = vadd.f32 %v2530, %v3118
        %v3219 = vadd.f32 %v2531, %v3123
        %v3220 = vadd.f32 %v2532, %v3128
        %v3221 = vadd.f32 %v2533, %v3133
        %v3222 = vadd.f32 %v2534, %v3138
        %v3223 = vadd.f32 %v2535, %v3143
        %v3224 = vadd.f32 %v2536, %v3148
        %v3225 = vadd.f32 %v2537, %v3153
        %v3226 = vadd.f32 %v2538, %v3158
        %v3227 = vadd.f32 %v2539, %v3163
        %v3228 = vld [vmem:[%s599 + $0x4] sm:$0xff]
        %v3229 = vld [vmem:[%s599 + $0xc] sm:$0xff]
        %v3230 = vld [vmem:[%s599 + $0x14] sm:$0xff]
        %v3231 = vld [vmem:[%s599 + $0x1c] sm:$0xff]
        %v3232 = vld [vmem:[%s599 + $0x24] sm:$0xff]
        %v3233 = vld [vmem:[%s599 + $0x2c] sm:$0xff]
        %v3234 = vld [vmem:[%s599 + $0x34] sm:$0xff]
        %v3235 = vld [vmem:[%s599 + $0x3c] sm:$0xff]
        %v3236 = vld [vmem:[%s599 + $0x44] sm:$0xff]
        %v3237 = vld [vmem:[%s599 + $0x4c] sm:$0xff]
        %v3238 = vld [vmem:[%s599 + $0x54] sm:$0xff]
        %v3239 = vld [vmem:[%s599 + $0x5c] sm:$0xff]
        %v3240 = vld [vmem:[%s599 + $0x64] sm:$0xff]
        %v3241 = vld [vmem:[%s599 + $0x6c] sm:$0xff]
        %v3242 = vld [vmem:[%s599 + $0x74] sm:$0xff]
        %v3243 = vld [vmem:[%s599 + $0x7c] sm:$0xff]
        %v3244 = vld [vmem:[%s599 + $0x84] sm:$0xff]
        %v3245 = vld [vmem:[%s599 + $0x8c] sm:$0xff]
        %v3246 = vld [vmem:[%s599 + $0x94] sm:$0xff]
        %v3247 = vld [vmem:[%s599 + $0x9c] sm:$0xff]
        %v3248 = vld [vmem:[%s599 + $0xa4] sm:$0xff]
        %v3249 = vld [vmem:[%s599 + $0xac] sm:$0xff]
        %v3250 = vld [vmem:[%s599 + $0xb4] sm:$0xff]
        %v3251 = vld [vmem:[%s599 + $0xbc] sm:$0xff]
        %v3252 = vld [vmem:[%s599 + $0xc4] sm:$0xff]
        %v3253 = vld [vmem:[%s599 + $0xcc] sm:$0xff]
        %v3254 = vld [vmem:[%s599 + $0xd4] sm:$0xff]
        %v3255 = vld [vmem:[%s599 + $0xdc] sm:$0xff]
        %v3256 = vld [vmem:[%s599 + $0xe4] sm:$0xff]
        %v3257 = vld [vmem:[%s599 + $0xec] sm:$0xff]
        %v3258 = vld [vmem:[%s599 + $0xf4] sm:$0xff]
        %v3259 = vld [vmem:[%s599 + $0xfc] sm:$0xff]
        %v3260 = vld [vmem:[%s599 + $0x104] sm:$0xff]
        %v3261 = vld [vmem:[%s599 + $0x10c] sm:$0xff]
        %v3262 = vld [vmem:[%s599 + $0x114] sm:$0xff]
        %v3263 = vld [vmem:[%s599 + $0x11c] sm:$0xff]
        %v3264 = vld [vmem:[%s599 + $0x124] sm:$0xff]
        %v3265 = vld [vmem:[%s599 + $0x12c] sm:$0xff]
        %v3266 = vld [vmem:[%s599 + $0x134] sm:$0xff]
        %v3267 = vld [vmem:[%s599 + $0x13c] sm:$0xff]
        %v3268 = vld [vmem:[%s599 + $0x144] sm:$0xff]
        %v3269 = vld [vmem:[%s599 + $0x14c] sm:$0xff]
        %v3270 = vld [vmem:[%s599 + $0x154] sm:$0xff]
        %v3271 = vld [vmem:[%s599 + $0x15c] sm:$0xff]
        %v3272 = vld [vmem:[%s599 + $0x164] sm:$0xff]
        %v3273 = vld [vmem:[%s599 + $0x16c] sm:$0xff]
        %v3274 = vld [vmem:[%s599 + $0x174] sm:$0xff]
        %v3275 = vld [vmem:[%s599 + $0x17c] sm:$0xff]
        %v3276 = vld [vmem:[%s599 + $0x184] sm:$0xff]
        %v3277 = vld [vmem:[%s599 + $0x18c] sm:$0xff]
        %v3278 = vld [vmem:[%s599 + $0x194] sm:$0xff]
        %v3279 = vld [vmem:[%s599 + $0x19c] sm:$0xff]
        %v3280 = vld [vmem:[%s599 + $0x1a4] sm:$0xff]
        %v3281 = vld [vmem:[%s599 + $0x1ac] sm:$0xff]
        %v3282 = vld [vmem:[%s599 + $0x1b4] sm:$0xff]
        %v3283 = vld [vmem:[%s599 + $0x1bc] sm:$0xff]
        %v3284 = vld [vmem:[%s599 + $0x1c4] sm:$0xff]
        %v3285 = vld [vmem:[%s599 + $0x1cc] sm:$0xff]
        %v3286 = vld [vmem:[%s599 + $0x1d4] sm:$0xff]
        %v3287 = vld [vmem:[%s599 + $0x1dc] sm:$0xff]
        %v3288 = vld [vmem:[%s599 + $0x1e4] sm:$0xff]
        %v3289 = vld [vmem:[%s599 + $0x1ec] sm:$0xff]
        %s3290 = scalar_lea.vmem %s1, 64
        %v3291 = vld [vmem:[%s3290] sm:$0xff]
        %v3292 = vld [vmem:[%s3290 + $0x8] sm:$0xff]
        %v3294 = vsel %vm729, %v3228, 0
        %v3297 = vsel %vm729, %v3229, 0
        %v3300 = vsel %vm729, %v3230, 0
        %v3303 = vsel %vm729, %v3231, 0
        %v3306 = vsel %vm729, %v3232, 0
        %v3309 = vsel %vm729, %v3233, 0
        %v3312 = vsel %vm729, %v3234, 0
        %v3315 = vsel %vm729, %v3235, 0
        %v3318 = vsel %vm729, %v3236, 0
        %v3321 = vsel %vm729, %v3237, 0
        %v3324 = vsel %vm729, %v3238, 0
        %v3327 = vsel %vm729, %v3239, 0
        %v3330 = vsel %vm729, %v3240, 0
        %v3333 = vsel %vm729, %v3241, 0
        %v3336 = vsel %vm729, %v3242, 0
        %v3339 = vsel %vm729, %v3243, 0
        %v3342 = vsel %vm729, %v3244, 0
        %v3345 = vsel %vm729, %v3245, 0
        %v3348 = vsel %vm729, %v3246, 0
        %v3351 = vsel %vm729, %v3247, 0
        %v3354 = vsel %vm729, %v3248, 0
        %v3357 = vsel %vm729, %v3249, 0
        %v3360 = vsel %vm729, %v3250, 0
        %v3363 = vsel %vm729, %v3251, 0
        %v3366 = vsel %vm729, %v3252, 0
        %v3369 = vsel %vm729, %v3253, 0
        %v3372 = vsel %vm729, %v3254, 0
        %v3375 = vsel %vm729, %v3255, 0
        %v3378 = vsel %vm729, %v3256, 0
        %v3381 = vsel %vm729, %v3257, 0
        %v3384 = vsel %vm729, %v3258, 0
        %v3387 = vsel %vm729, %v3259, 0
        %v3390 = vsel %vm729, %v3260, 0
        %v3393 = vsel %vm729, %v3261, 0
        %v3396 = vsel %vm729, %v3262, 0
        %v3399 = vsel %vm729, %v3263, 0
        %v3402 = vsel %vm729, %v3264, 0
        %v3405 = vsel %vm729, %v3265, 0
        %v3408 = vsel %vm729, %v3266, 0
        %v3411 = vsel %vm729, %v3267, 0
        %v3414 = vsel %vm729, %v3268, 0
        %v3417 = vsel %vm729, %v3269, 0
        %v3420 = vsel %vm729, %v3270, 0
        %v3423 = vsel %vm729, %v3271, 0
        %v3426 = vsel %vm729, %v3272, 0
        %v3429 = vsel %vm729, %v3273, 0
        %v3432 = vsel %vm729, %v3274, 0
        %v3435 = vsel %vm729, %v3275, 0
        %v3438 = vsel %vm729, %v3276, 0
        %v3441 = vsel %vm729, %v3277, 0
        %v3444 = vsel %vm729, %v3278, 0
        %v3447 = vsel %vm729, %v3279, 0
        %v3450 = vsel %vm729, %v3280, 0
        %v3453 = vsel %vm729, %v3281, 0
        %v3456 = vsel %vm729, %v3282, 0
        %v3459 = vsel %vm729, %v3283, 0
        %v3462 = vsel %vm729, %v3284, 0
        %v3465 = vsel %vm729, %v3285, 0
        %v3468 = vsel %vm729, %v3286, 0
        %v3471 = vsel %vm729, %v3287, 0
        %v3474 = vsel %vm729, %v3288, 0
        %v3477 = vsel %vm729, %v3289, 0
        %3479 = vmatprep.subr.mxu0 0.0
        %3480 = vmatpush1.msra.mxu0 %v3291
        %3481 = vmatprep.subr.mxu0 0.0
        %3482 = vmatpush1.msra.mxu0 %v3292
        %3483 = vmatprep.subr.mxu0 0.0
        %3484 = vmatpush1.msra.mxu0 0.0
        %3485 = vmatprep.subr.mxu0 0.0
        %3486 = vmatpush1.msra.mxu0 0.0
        %3487 = vmatprep.subr.mxu0 0.0
        %3488 = vmatpush1.msra.mxu0 0.0
        %3489 = vmatprep.subr.mxu0 0.0
        %3490 = vmatpush1.msra.mxu0 0.0
        %3491 = vmatprep.subr.mxu0 0.0
        %3492 = vmatpush1.msra.mxu0 0.0
        %3493 = vmatprep.subr.mxu0 0.0
        %3494 = vmatpush1.msra.mxu0 0.0
        %3495 = vmatprep.subr.mxu0 0.0
        %3496 = vmatpush1.msra.mxu0 0.0
        %3497 = vmatprep.subr.mxu0 0.0
        %3498 = vmatpush1.msra.mxu0 0.0
        %3499 = vmatprep.subr.mxu0 0.0
        %3500 = vmatpush1.msra.mxu0 0.0
        %3501 = vmatprep.subr.mxu0 0.0
        %3502 = vmatpush1.msra.mxu0 0.0
        %3503 = vmatprep.subr.mxu0 0.0
        %3504 = vmatpush1.msra.mxu0 0.0
        %3505 = vmatprep.subr.mxu0 0.0
        %3506 = vmatpush1.msra.mxu0 0.0
        %3507 = vmatprep.subr.mxu0 0.0
        %3508 = vmatpush1.msra.mxu0 0.0
        %3509 = vmatprep.subr.mxu0 0.0
        %3510 = vmatpush1.msra.mxu0 0.0
        %3511 = vmatprep.subr.mxu0 0.0
        %3512 = vmatpush1.msra.mxu0 0.0
        %3513 = vmatprep.subr.mxu0 0.0
        %3514 = vmatpush1.msra.mxu0 0.0
        %3515 = vmatprep.subr.mxu0 0.0
        %3516 = vmatpush1.msra.mxu0 0.0
        %3517 = vmatprep.subr.mxu0 0.0
        %3518 = vmatpush1.msra.mxu0 0.0
        %3519 = vmatprep.subr.mxu0 0.0
        %3520 = vmatpush1.msra.mxu0 0.0
        %3521 = vmatprep.subr.mxu0 0.0
        %3522 = vmatpush1.msra.mxu0 0.0
        %3523 = vmatprep.subr.mxu0 0.0
        %3524 = vmatpush1.msra.mxu0 0.0
        %3525 = vmatprep.subr.mxu0 0.0
        %3526 = vmatpush1.msra.mxu0 0.0
        %3527 = vmatprep.subr.mxu0 0.0
        %3528 = vmatpush1.msra.mxu0 0.0
        %3529 = vmatprep.subr.mxu0 0.0
        %3530 = vmatpush1.msra.mxu0 0.0
        %3531 = vmatprep.subr.mxu0 0.0
        %3532 = vmatpush1.msra.mxu0 0.0
        %3533 = vmatprep.subr.mxu0 0.0
        %3534 = vmatpush1.msra.mxu0 0.0
        %3535 = vmatprep.subr.mxu0 0.0
        %3536 = vmatpush1.msra.mxu0 0.0
        %3537 = vmatprep.subr.mxu0 0.0
        %3538 = vmatpush1.msra.mxu0 0.0
        %3539 = vmatprep.subr.mxu0 0.0
        %3540 = vmatpush1.msra.mxu0 0.0
        %3541 = vmatprep.subr.mxu0 0.0
        %3542 = vmatpush1.msra.mxu0 0.0
        %3543 = vmatprep.mubr.f32.mxu0 0.0
        %3544 = vmatmul.mubr.f32.gmra.mrb[0].mxu0 %v3294
        %v3545 = vpop.f32.mrb[0].mxu0
        %v3546 = vadd.f32 0.0, %v3545
        %v3547 = vpop.f32.mrb[0].mxu0
        %3548 = vmatprep.mubr.f32.mxu0 0.0
        %3549 = vmatmul.mubr.f32.gmra.mrb[0].mxu0 %v3297
        %v3550 = vpop.f32.mrb[0].mxu0
        %v3551 = vadd.f32 0.0, %v3550
        %v3552 = vpop.f32.mrb[0].mxu0
        %3553 = vmatprep.mubr.f32.mxu0 0.0
        %3554 = vmatmul.mubr.f32.gmra.mrb[0].mxu0 %v3300
        %v3555 = vpop.f32.mrb[0].mxu0
        %v3556 = vadd.f32 0.0, %v3555
        %v3557 = vpop.f32.mrb[0].mxu0
        %3558 = vmatprep.mubr.f32.mxu0 0.0
        %3559 = vmatmul.mubr.f32.gmra.mrb[0].mxu0 %v3303
        %v3560 = vpop.f32.mrb[0].mxu0
        %v3561 = vadd.f32 0.0, %v3560
        %v3562 = vpop.f32.mrb[0].mxu0
        %3563 = vmatprep.mubr.f32.mxu0 0.0
        %3564 = vmatmul.mubr.f32.gmra.mrb[0].mxu0 %v3306
        %v3565 = vpop.f32.mrb[0].mxu0
        %v3566 = vadd.f32 0.0, %v3565
        %v3567 = vpop.f32.mrb[0].mxu0
        %3568 = vmatprep.mubr.f32.mxu0 0.0
        %3569 = vmatmul.mubr.f32.gmra.mrb[0].mxu0 %v3309
        %v3570 = vpop.f32.mrb[0].mxu0
        %v3571 = vadd.f32 0.0, %v3570
        %v3572 = vpop.f32.mrb[0].mxu0
        %3573 = vmatprep.mubr.f32.mxu0 0.0
        %3574 = vmatmul.mubr.f32.gmra.mrb[0].mxu0 %v3312
        %v3575 = vpop.f32.mrb[0].mxu0
        %v3576 = vadd.f32 0.0, %v3575
        %v3577 = vpop.f32.mrb[0].mxu0
        %3578 = vmatprep.mubr.f32.mxu0 0.0
        %3579 = vmatmul.mubr.f32.gmra.mrb[0].mxu0 %v3315
        %v3580 = vpop.f32.mrb[0].mxu0
        %v3581 = vadd.f32 0.0, %v3580
        %v3582 = vpop.f32.mrb[0].mxu0
        %3583 = vmatprep.mubr.f32.mxu0 0.0
        %3584 = vmatmul.mubr.f32.gmra.mrb[0].mxu0 %v3318
        %v3585 = vpop.f32.mrb[0].mxu0
        %v3586 = vadd.f32 0.0, %v3585
        %v3587 = vpop.f32.mrb[0].mxu0
        %3588 = vmatprep.mubr.f32.mxu0 0.0
        %3589 = vmatmul.mubr.f32.gmra.mrb[0].mxu0 %v3321
        %v3590 = vpop.f32.mrb[0].mxu0
        %v3591 = vadd.f32 0.0, %v3590
        %v3592 = vpop.f32.mrb[0].mxu0
        %3593 = vmatprep.mubr.f32.mxu0 0.0
        %3594 = vmatmul.mubr.f32.gmra.mrb[0].mxu0 %v3324
        %v3595 = vpop.f32.mrb[0].mxu0
        %v3596 = vadd.f32 0.0, %v3595
        %v3597 = vpop.f32.mrb[0].mxu0
        %3598 = vmatprep.mubr.f32.mxu0 0.0
        %3599 = vmatmul.mubr.f32.gmra.mrb[0].mxu0 %v3327
        %v3600 = vpop.f32.mrb[0].mxu0
        %v3601 = vadd.f32 0.0, %v3600
        %v3602 = vpop.f32.mrb[0].mxu0
        %3603 = vmatprep.mubr.f32.mxu0 0.0
        %3604 = vmatmul.mubr.f32.gmra.mrb[0].mxu0 %v3330
        %v3605 = vpop.f32.mrb[0].mxu0
        %v3606 = vadd.f32 0.0, %v3605
        %v3607 = vpop.f32.mrb[0].mxu0
        %3608 = vmatprep.mubr.f32.mxu0 0.0
        %3609 = vmatmul.mubr.f32.gmra.mrb[0].mxu0 %v3333
        %v3610 = vpop.f32.mrb[0].mxu0
        %v3611 = vadd.f32 0.0, %v3610
        %v3612 = vpop.f32.mrb[0].mxu0
        %3613 = vmatprep.mubr.f32.mxu0 0.0
        %3614 = vmatmul.mubr.f32.gmra.mrb[0].mxu0 %v3336
        %v3615 = vpop.f32.mrb[0].mxu0
        %v3616 = vadd.f32 0.0, %v3615
        %v3617 = vpop.f32.mrb[0].mxu0
        %3618 = vmatprep.mubr.f32.mxu0 0.0
        %3619 = vmatmul.mubr.f32.gmra.mrb[0].mxu0 %v3339
        %v3620 = vpop.f32.mrb[0].mxu0
        %v3621 = vadd.f32 0.0, %v3620
        %v3622 = vpop.f32.mrb[0].mxu0
        %3623 = vmatprep.mubr.f32.mxu0 0.0
        %3624 = vmatmul.mubr.f32.gmra.mrb[0].mxu0 %v3342
        %v3625 = vpop.f32.mrb[0].mxu0
        %v3626 = vadd.f32 0.0, %v3625
        %v3627 = vpop.f32.mrb[0].mxu0
        %3628 = vmatprep.mubr.f32.mxu0 0.0
        %3629 = vmatmul.mubr.f32.gmra.mrb[0].mxu0 %v3345
        %v3630 = vpop.f32.mrb[0].mxu0
        %v3631 = vadd.f32 0.0, %v3630
        %v3632 = vpop.f32.mrb[0].mxu0
        %3633 = vmatprep.mubr.f32.mxu0 0.0
        %3634 = vmatmul.mubr.f32.gmra.mrb[0].mxu0 %v3348
        %v3635 = vpop.f32.mrb[0].mxu0
        %v3636 = vadd.f32 0.0, %v3635
        %v3637 = vpop.f32.mrb[0].mxu0
        %3638 = vmatprep.mubr.f32.mxu0 0.0
        %3639 = vmatmul.mubr.f32.gmra.mrb[0].mxu0 %v3351
        %v3640 = vpop.f32.mrb[0].mxu0
        %v3641 = vadd.f32 0.0, %v3640
        %v3642 = vpop.f32.mrb[0].mxu0
        %3643 = vmatprep.mubr.f32.mxu0 0.0
        %3644 = vmatmul.mubr.f32.gmra.mrb[0].mxu0 %v3354
        %v3645 = vpop.f32.mrb[0].mxu0
        %v3646 = vadd.f32 0.0, %v3645
        %v3647 = vpop.f32.mrb[0].mxu0
        %3648 = vmatprep.mubr.f32.mxu0 0.0
        %3649 = vmatmul.mubr.f32.gmra.mrb[0].mxu0 %v3357
        %v3650 = vpop.f32.mrb[0].mxu0
        %v3651 = vadd.f32 0.0, %v3650
        %v3652 = vpop.f32.mrb[0].mxu0
        %3653 = vmatprep.mubr.f32.mxu0 0.0
        %3654 = vmatmul.mubr.f32.gmra.mrb[0].mxu0 %v3360
        %v3655 = vpop.f32.mrb[0].mxu0
        %v3656 = vadd.f32 0.0, %v3655
        %v3657 = vpop.f32.mrb[0].mxu0
        %3658 = vmatprep.mubr.f32.mxu0 0.0
        %3659 = vmatmul.mubr.f32.gmra.mrb[0].mxu0 %v3363
        %v3660 = vpop.f32.mrb[0].mxu0
        %v3661 = vadd.f32 0.0, %v3660
        %v3662 = vpop.f32.mrb[0].mxu0
        %3663 = vmatprep.mubr.f32.mxu0 0.0
        %3664 = vmatmul.mubr.f32.gmra.mrb[0].mxu0 %v3366
        %v3665 = vpop.f32.mrb[0].mxu0
        %v3666 = vadd.f32 0.0, %v3665
        %v3667 = vpop.f32.mrb[0].mxu0
        %3668 = vmatprep.mubr.f32.mxu0 0.0
        %3669 = vmatmul.mubr.f32.gmra.mrb[0].mxu0 %v3369
        %v3670 = vpop.f32.mrb[0].mxu0
        %v3671 = vadd.f32 0.0, %v3670
        %v3672 = vpop.f32.mrb[0].mxu0
        %3673 = vmatprep.mubr.f32.mxu0 0.0
        %3674 = vmatmul.mubr.f32.gmra.mrb[0].mxu0 %v3372
        %v3675 = vpop.f32.mrb[0].mxu0
        %v3676 = vadd.f32 0.0, %v3675
        %v3677 = vpop.f32.mrb[0].mxu0
        %3678 = vmatprep.mubr.f32.mxu0 0.0
        %3679 = vmatmul.mubr.f32.gmra.mrb[0].mxu0 %v3375
        %v3680 = vpop.f32.mrb[0].mxu0
        %v3681 = vadd.f32 0.0, %v3680
        %v3682 = vpop.f32.mrb[0].mxu0
        %3683 = vmatprep.mubr.f32.mxu0 0.0
        %3684 = vmatmul.mubr.f32.gmra.mrb[0].mxu0 %v3378
        %v3685 = vpop.f32.mrb[0].mxu0
        %v3686 = vadd.f32 0.0, %v3685
        %v3687 = vpop.f32.mrb[0].mxu0
        %3688 = vmatprep.mubr.f32.mxu0 0.0
        %3689 = vmatmul.mubr.f32.gmra.mrb[0].mxu0 %v3381
        %v3690 = vpop.f32.mrb[0].mxu0
        %v3691 = vadd.f32 0.0, %v3690
        %v3692 = vpop.f32.mrb[0].mxu0
        %3693 = vmatprep.mubr.f32.mxu0 0.0
        %3694 = vmatmul.mubr.f32.gmra.mrb[0].mxu0 %v3384
        %v3695 = vpop.f32.mrb[0].mxu0
        %v3696 = vadd.f32 0.0, %v3695
        %v3697 = vpop.f32.mrb[0].mxu0
        %3698 = vmatprep.mubr.f32.mxu0 0.0
        %3699 = vmatmul.mubr.f32.gmra.mrb[0].mxu0 %v3387
        %v3700 = vpop.f32.mrb[0].mxu0
        %v3701 = vadd.f32 0.0, %v3700
        %v3702 = vpop.f32.mrb[0].mxu0
        %3703 = vmatprep.mubr.f32.mxu0 0.0
        %3704 = vmatmul.mubr.f32.gmra.mrb[0].mxu0 %v3390
        %v3705 = vpop.f32.mrb[0].mxu0
        %v3706 = vadd.f32 0.0, %v3705
        %v3707 = vpop.f32.mrb[0].mxu0
        %3708 = vmatprep.mubr.f32.mxu0 0.0
        %3709 = vmatmul.mubr.f32.gmra.mrb[0].mxu0 %v3393
        %v3710 = vpop.f32.mrb[0].mxu0
        %v3711 = vadd.f32 0.0, %v3710
        %v3712 = vpop.f32.mrb[0].mxu0
        %3713 = vmatprep.mubr.f32.mxu0 0.0
        %3714 = vmatmul.mubr.f32.gmra.mrb[0].mxu0 %v3396
        %v3715 = vpop.f32.mrb[0].mxu0
        %v3716 = vadd.f32 0.0, %v3715
        %v3717 = vpop.f32.mrb[0].mxu0
        %3718 = vmatprep.mubr.f32.mxu0 0.0
        %3719 = vmatmul.mubr.f32.gmra.mrb[0].mxu0 %v3399
        %v3720 = vpop.f32.mrb[0].mxu0
        %v3721 = vadd.f32 0.0, %v3720
        %v3722 = vpop.f32.mrb[0].mxu0
        %3723 = vmatprep.mubr.f32.mxu0 0.0
        %3724 = vmatmul.mubr.f32.gmra.mrb[0].mxu0 %v3402
        %v3725 = vpop.f32.mrb[0].mxu0
        %v3726 = vadd.f32 0.0, %v3725
        %v3727 = vpop.f32.mrb[0].mxu0
        %3728 = vmatprep.mubr.f32.mxu0 0.0
        %3729 = vmatmul.mubr.f32.gmra.mrb[0].mxu0 %v3405
        %v3730 = vpop.f32.mrb[0].mxu0
        %v3731 = vadd.f32 0.0, %v3730
        %v3732 = vpop.f32.mrb[0].mxu0
        %3733 = vmatprep.mubr.f32.mxu0 0.0
        %3734 = vmatmul.mubr.f32.gmra.mrb[0].mxu0 %v3408
        %v3735 = vpop.f32.mrb[0].mxu0
        %v3736 = vadd.f32 0.0, %v3735
        %v3737 = vpop.f32.mrb[0].mxu0
        %3738 = vmatprep.mubr.f32.mxu0 0.0
        %3739 = vmatmul.mubr.f32.gmra.mrb[0].mxu0 %v3411
        %v3740 = vpop.f32.mrb[0].mxu0
        %v3741 = vadd.f32 0.0, %v3740
        %v3742 = vpop.f32.mrb[0].mxu0
        %3743 = vmatprep.mubr.f32.mxu0 0.0
        %3744 = vmatmul.mubr.f32.gmra.mrb[0].mxu0 %v3414
        %v3745 = vpop.f32.mrb[0].mxu0
        %v3746 = vadd.f32 0.0, %v3745
        %v3747 = vpop.f32.mrb[0].mxu0
        %3748 = vmatprep.mubr.f32.mxu0 0.0
        %3749 = vmatmul.mubr.f32.gmra.mrb[0].mxu0 %v3417
        %v3750 = vpop.f32.mrb[0].mxu0
        %v3751 = vadd.f32 0.0, %v3750
        %v3752 = vpop.f32.mrb[0].mxu0
        %3753 = vmatprep.mubr.f32.mxu0 0.0
        %3754 = vmatmul.mubr.f32.gmra.mrb[0].mxu0 %v3420
        %v3755 = vpop.f32.mrb[0].mxu0
        %v3756 = vadd.f32 0.0, %v3755
        %v3757 = vpop.f32.mrb[0].mxu0
        %3758 = vmatprep.mubr.f32.mxu0 0.0
        %3759 = vmatmul.mubr.f32.gmra.mrb[0].mxu0 %v3423
        %v3760 = vpop.f32.mrb[0].mxu0
        %v3761 = vadd.f32 0.0, %v3760
        %v3762 = vpop.f32.mrb[0].mxu0
        %3763 = vmatprep.mubr.f32.mxu0 0.0
        %3764 = vmatmul.mubr.f32.gmra.mrb[0].mxu0 %v3426
        %v3765 = vpop.f32.mrb[0].mxu0
        %v3766 = vadd.f32 0.0, %v3765
        %v3767 = vpop.f32.mrb[0].mxu0
        %3768 = vmatprep.mubr.f32.mxu0 0.0
        %3769 = vmatmul.mubr.f32.gmra.mrb[0].mxu0 %v3429
        %v3770 = vpop.f32.mrb[0].mxu0
        %v3771 = vadd.f32 0.0, %v3770
        %v3772 = vpop.f32.mrb[0].mxu0
        %3773 = vmatprep.mubr.f32.mxu0 0.0
        %3774 = vmatmul.mubr.f32.gmra.mrb[0].mxu0 %v3432
        %v3775 = vpop.f32.mrb[0].mxu0
        %v3776 = vadd.f32 0.0, %v3775
        %v3777 = vpop.f32.mrb[0].mxu0
        %3778 = vmatprep.mubr.f32.mxu0 0.0
        %3779 = vmatmul.mubr.f32.gmra.mrb[0].mxu0 %v3435
        %v3780 = vpop.f32.mrb[0].mxu0
        %v3781 = vadd.f32 0.0, %v3780
        %v3782 = vpop.f32.mrb[0].mxu0
        %3783 = vmatprep.mubr.f32.mxu0 0.0
        %3784 = vmatmul.mubr.f32.gmra.mrb[0].mxu0 %v3438
        %v3785 = vpop.f32.mrb[0].mxu0
        %v3786 = vadd.f32 0.0, %v3785
        %v3787 = vpop.f32.mrb[0].mxu0
        %3788 = vmatprep.mubr.f32.mxu0 0.0
        %3789 = vmatmul.mubr.f32.gmra.mrb[0].mxu0 %v3441
        %v3790 = vpop.f32.mrb[0].mxu0
        %v3791 = vadd.f32 0.0, %v3790
        %v3792 = vpop.f32.mrb[0].mxu0
        %3793 = vmatprep.mubr.f32.mxu0 0.0
        %3794 = vmatmul.mubr.f32.gmra.mrb[0].mxu0 %v3444
        %v3795 = vpop.f32.mrb[0].mxu0
        %v3796 = vadd.f32 0.0, %v3795
        %v3797 = vpop.f32.mrb[0].mxu0
        %3798 = vmatprep.mubr.f32.mxu0 0.0
        %3799 = vmatmul.mubr.f32.gmra.mrb[0].mxu0 %v3447
        %v3800 = vpop.f32.mrb[0].mxu0
        %v3801 = vadd.f32 0.0, %v3800
        %v3802 = vpop.f32.mrb[0].mxu0
        %3803 = vmatprep.mubr.f32.mxu0 0.0
        %3804 = vmatmul.mubr.f32.gmra.mrb[0].mxu0 %v3450
        %v3805 = vpop.f32.mrb[0].mxu0
        %v3806 = vadd.f32 0.0, %v3805
        %v3807 = vpop.f32.mrb[0].mxu0
        %3808 = vmatprep.mubr.f32.mxu0 0.0
        %3809 = vmatmul.mubr.f32.gmra.mrb[0].mxu0 %v3453
        %v3810 = vpop.f32.mrb[0].mxu0
        %v3811 = vadd.f32 0.0, %v3810
        %v3812 = vpop.f32.mrb[0].mxu0
        %3813 = vmatprep.mubr.f32.mxu0 0.0
        %3814 = vmatmul.mubr.f32.gmra.mrb[0].mxu0 %v3456
        %v3815 = vpop.f32.mrb[0].mxu0
        %v3816 = vadd.f32 0.0, %v3815
        %v3817 = vpop.f32.mrb[0].mxu0
        %3818 = vmatprep.mubr.f32.mxu0 0.0
        %3819 = vmatmul.mubr.f32.gmra.mrb[0].mxu0 %v3459
        %v3820 = vpop.f32.mrb[0].mxu0
        %v3821 = vadd.f32 0.0, %v3820
        %v3822 = vpop.f32.mrb[0].mxu0
        %3823 = vmatprep.mubr.f32.mxu0 0.0
        %3824 = vmatmul.mubr.f32.gmra.mrb[0].mxu0 %v3462
        %v3825 = vpop.f32.mrb[0].mxu0
        %v3826 = vadd.f32 0.0, %v3825
        %v3827 = vpop.f32.mrb[0].mxu0
        %3828 = vmatprep.mubr.f32.mxu0 0.0
        %3829 = vmatmul.mubr.f32.gmra.mrb[0].mxu0 %v3465
        %v3830 = vpop.f32.mrb[0].mxu0
        %v3831 = vadd.f32 0.0, %v3830
        %v3832 = vpop.f32.mrb[0].mxu0
        %3833 = vmatprep.mubr.f32.mxu0 0.0
        %3834 = vmatmul.mubr.f32.gmra.mrb[0].mxu0 %v3468
        %v3835 = vpop.f32.mrb[0].mxu0
        %v3836 = vadd.f32 0.0, %v3835
        %v3837 = vpop.f32.mrb[0].mxu0
        %3838 = vmatprep.mubr.f32.mxu0 0.0
        %3839 = vmatmul.mubr.f32.gmra.mrb[0].mxu0 %v3471
        %v3840 = vpop.f32.mrb[0].mxu0
        %v3841 = vadd.f32 0.0, %v3840
        %v3842 = vpop.f32.mrb[0].mxu0
        %3843 = vmatprep.mubr.f32.mxu0 0.0
        %3844 = vmatmul.mubr.f32.gmra.mrb[0].mxu0 %v3474
        %v3845 = vpop.f32.mrb[0].mxu0
        %v3846 = vadd.f32 0.0, %v3845
        %v3847 = vpop.f32.mrb[0].mxu0
        %3848 = vmatprep.mubr.f32.mxu0 0.0
        %3849 = vmatmul.mubr.f32.gmra.mrb[0].mxu0 %v3477
        %v3850 = vpop.f32.mrb[0].mxu0
        %v3851 = vadd.f32 0.0, %v3850
        %v3852 = vpop.f32.mrb[0].mxu0
        %3853 = vdwg.mxu0
        %v3854 = vadd.f32 %v3166, %v3546
        %v3855 = vadd.f32 %v3167, %v3551
        %v3856 = vadd.f32 %v3168, %v3556
        %v3857 = vadd.f32 %v3169, %v3561
        %v3858 = vadd.f32 %v3170, %v3566
        %v3859 = vadd.f32 %v3171, %v3571
        %v3860 = vadd.f32 %v3172, %v3576
        %v3861 = vadd.f32 %v3173, %v3581
        %v3862 = vadd.f32 %v3174, %v3586
        %v3863 = vadd.f32 %v3175, %v3591
        %v3864 = vadd.f32 %v3176, %v3596
        %v3865 = vadd.f32 %v3177, %v3601
        %v3866 = vadd.f32 %v3178, %v3606
        %v3867 = vadd.f32 %v3179, %v3611
        %v3868 = vadd.f32 %v3180, %v3616
        %v3869 = vadd.f32 %v3181, %v3621
        %v3870 = vadd.f32 %v3182, %v3626
        %v3871 = vadd.f32 %v3183, %v3631
        %v3872 = vadd.f32 %v3184, %v3636
        %v3873 = vadd.f32 %v3185, %v3641
        %v3874 = vadd.f32 %v3186, %v3646
        %v3875 = vadd.f32 %v3187, %v3651
        %v3876 = vadd.f32 %v3188, %v3656
        %v3877 = vadd.f32 %v3189, %v3661
        %v3878 = vadd.f32 %v3190, %v3666
        %v3879 = vadd.f32 %v3191, %v3671
        %v3880 = vadd.f32 %v3192, %v3676
        %v3881 = vadd.f32 %v3193, %v3681
        %v3882 = vadd.f32 %v3194, %v3686
        %v3883 = vadd.f32 %v3195, %v3691
        %v3884 = vadd.f32 %v3196, %v3696
        %v3885 = vadd.f32 %v3197, %v3701
        %v3886 = vadd.f32 %v3198, %v3706
        %v3887 = vadd.f32 %v3199, %v3711
        %v3888 = vadd.f32 %v3200, %v3716
        %v3889 = vadd.f32 %v3201, %v3721
        %v3890 = vadd.f32 %v3202, %v3726
        %v3891 = vadd.f32 %v3203, %v3731
        %v3892 = vadd.f32 %v3204, %v3736
        %v3893 = vadd.f32 %v3205, %v3741
        %v3894 = vadd.f32 %v3206, %v3746
        %v3895 = vadd.f32 %v3207, %v3751
        %v3896 = vadd.f32 %v3208, %v3756
        %v3897 = vadd.f32 %v3209, %v3761
        %v3898 = vadd.f32 %v3210, %v3766
        %v3899 = vadd.f32 %v3211, %v3771
        %v3900 = vadd.f32 %v3212, %v3776
        %v3901 = vadd.f32 %v3213, %v3781
        %v3902 = vadd.f32 %v3214, %v3786
        %v3903 = vadd.f32 %v3215, %v3791
        %v3904 = vadd.f32 %v3216, %v3796
        %v3905 = vadd.f32 %v3217, %v3801
        %v3906 = vadd.f32 %v3218, %v3806
        %v3907 = vadd.f32 %v3219, %v3811
        %v3908 = vadd.f32 %v3220, %v3816
        %v3909 = vadd.f32 %v3221, %v3821
        %v3910 = vadd.f32 %v3222, %v3826
        %v3911 = vadd.f32 %v3223, %v3831
        %v3912 = vadd.f32 %v3224, %v3836
        %v3913 = vadd.f32 %v3225, %v3841
        %v3914 = vadd.f32 %v3226, %v3846
        %v3915 = vadd.f32 %v3227, %v3851
        %v3916 = vld [vmem:[%s2] sm:$0x1]
        %v3918 = vlaneseq
        %v3919 = vshrl.u32 %v3918, 7
        %v3920 = vsub.s32 0, %v3919
        %v3921 = vrot.slane %v3916, %v3920
        %v3923 = vmul.f32 %v3854, %v3921
        %v3924 = vmul.f32 %v3855, %v3921
        %v3925 = vmul.f32 %v3856, %v3921
        %v3926 = vmul.f32 %v3857, %v3921
        %v3927 = vmul.f32 %v3858, %v3921
        %v3928 = vmul.f32 %v3859, %v3921
        %v3929 = vmul.f32 %v3860, %v3921
        %v3930 = vmul.f32 %v3861, %v3921
        %v3931 = vmul.f32 %v3862, %v3921
        %v3932 = vmul.f32 %v3863, %v3921
        %v3933 = vmul.f32 %v3864, %v3921
        %v3934 = vmul.f32 %v3865, %v3921
        %v3935 = vmul.f32 %v3866, %v3921
        %v3936 = vmul.f32 %v3867, %v3921
        %v3937 = vmul.f32 %v3868, %v3921
        %v3938 = vmul.f32 %v3869, %v3921
        %v3939 = vmul.f32 %v3870, %v3921
        %v3940 = vmul.f32 %v3871, %v3921
        %v3941 = vmul.f32 %v3872, %v3921
        %v3942 = vmul.f32 %v3873, %v3921
        %v3943 = vmul.f32 %v3874, %v3921
        %v3944 = vmul.f32 %v3875, %v3921
        %v3945 = vmul.f32 %v3876, %v3921
        %v3946 = vmul.f32 %v3877, %v3921
        %v3947 = vmul.f32 %v3878, %v3921
        %v3948 = vmul.f32 %v3879, %v3921
        %v3949 = vmul.f32 %v3880, %v3921
        %v3950 = vmul.f32 %v3881, %v3921
        %v3951 = vmul.f32 %v3882, %v3921
        %v3952 = vmul.f32 %v3883, %v3921
        %v3953 = vmul.f32 %v3884, %v3921
        %v3954 = vmul.f32 %v3885, %v3921
        %v3955 = vmul.f32 %v3886, %v3921
        %v3956 = vmul.f32 %v3887, %v3921
        %v3957 = vmul.f32 %v3888, %v3921
        %v3958 = vmul.f32 %v3889, %v3921
        %v3959 = vmul.f32 %v3890, %v3921
        %v3960 = vmul.f32 %v3891, %v3921
        %v3961 = vmul.f32 %v3892, %v3921
        %v3962 = vmul.f32 %v3893, %v3921
        %v3963 = vmul.f32 %v3894, %v3921
        %v3964 = vmul.f32 %v3895, %v3921
        %v3965 = vmul.f32 %v3896, %v3921
        %v3966 = vmul.f32 %v3897, %v3921
        %v3967 = vmul.f32 %v3898, %v3921
        %v3968 = vmul.f32 %v3899, %v3921
        %v3969 = vmul.f32 %v3900, %v3921
        %v3970 = vmul.f32 %v3901, %v3921
        %v3971 = vmul.f32 %v3902, %v3921
        %v3972 = vmul.f32 %v3903, %v3921
        %v3973 = vmul.f32 %v3904, %v3921
        %v3974 = vmul.f32 %v3905, %v3921
        %v3975 = vmul.f32 %v3906, %v3921
        %v3976 = vmul.f32 %v3907, %v3921
        %v3977 = vmul.f32 %v3908, %v3921
        %v3978 = vmul.f32 %v3909, %v3921
        %v3979 = vmul.f32 %v3910, %v3921
        %v3980 = vmul.f32 %v3911, %v3921
        %v3981 = vmul.f32 %v3912, %v3921
        %v3982 = vmul.f32 %v3913, %v3921
        %v3983 = vmul.f32 %v3914, %v3921
        %v3984 = vmul.f32 %v3915, %v3921
        %v3985 = vld [vmem:[%s3] sm:$0x1]
        %v3987 = vlaneseq
        %v3988 = vshrl.u32 %v3987, 7
        %v3989 = vsub.s32 0, %v3988
        %v3990 = vrot.slane %v3985, %v3989
        %v3992 = vadd.f32 %v3923, %v3990
        %v3993 = vadd.f32 %v3924, %v3990
        %v3994 = vadd.f32 %v3925, %v3990
        %v3995 = vadd.f32 %v3926, %v3990
        %v3996 = vadd.f32 %v3927, %v3990
        %v3997 = vadd.f32 %v3928, %v3990
        %v3998 = vadd.f32 %v3929, %v3990
        %v3999 = vadd.f32 %v3930, %v3990
        %v4000 = vadd.f32 %v3931, %v3990
        %v4001 = vadd.f32 %v3932, %v3990
        %v4002 = vadd.f32 %v3933, %v3990
        %v4003 = vadd.f32 %v3934, %v3990
        %v4004 = vadd.f32 %v3935, %v3990
        %v4005 = vadd.f32 %v3936, %v3990
        %v4006 = vadd.f32 %v3937, %v3990
        %v4007 = vadd.f32 %v3938, %v3990
        %v4008 = vadd.f32 %v3939, %v3990
        %v4009 = vadd.f32 %v3940, %v3990
        %v4010 = vadd.f32 %v3941, %v3990
        %v4011 = vadd.f32 %v3942, %v3990
        %v4012 = vadd.f32 %v3943, %v3990
        %v4013 = vadd.f32 %v3944, %v3990
        %v4014 = vadd.f32 %v3945, %v3990
        %v4015 = vadd.f32 %v3946, %v3990
        %v4016 = vadd.f32 %v3947, %v3990
        %v4017 = vadd.f32 %v3948, %v3990
        %v4018 = vadd.f32 %v3949, %v3990
        %v4019 = vadd.f32 %v3950, %v3990
        %v4020 = vadd.f32 %v3951, %v3990
        %v4021 = vadd.f32 %v3952, %v3990
        %v4022 = vadd.f32 %v3953, %v3990
        %v4023 = vadd.f32 %v3954, %v3990
        %v4024 = vadd.f32 %v3955, %v3990
        %v4025 = vadd.f32 %v3956, %v3990
        %v4026 = vadd.f32 %v3957, %v3990
        %v4027 = vadd.f32 %v3958, %v3990
        %v4028 = vadd.f32 %v3959, %v3990
        %v4029 = vadd.f32 %v3960, %v3990
        %v4030 = vadd.f32 %v3961, %v3990
        %v4031 = vadd.f32 %v3962, %v3990
        %v4032 = vadd.f32 %v3963, %v3990
        %v4033 = vadd.f32 %v3964, %v3990
        %v4034 = vadd.f32 %v3965, %v3990
        %v4035 = vadd.f32 %v3966, %v3990
        %v4036 = vadd.f32 %v3967, %v3990
        %v4037 = vadd.f32 %v3968, %v3990
        %v4038 = vadd.f32 %v3969, %v3990
        %v4039 = vadd.f32 %v3970, %v3990
        %v4040 = vadd.f32 %v3971, %v3990
        %v4041 = vadd.f32 %v3972, %v3990
        %v4042 = vadd.f32 %v3973, %v3990
        %v4043 = vadd.f32 %v3974, %v3990
        %v4044 = vadd.f32 %v3975, %v3990
        %v4045 = vadd.f32 %v3976, %v3990
        %v4046 = vadd.f32 %v3977, %v3990
        %v4047 = vadd.f32 %v3978, %v3990
        %v4048 = vadd.f32 %v3979, %v3990
        %v4049 = vadd.f32 %v3980, %v3990
        %v4050 = vadd.f32 %v3981, %v3990
        %v4051 = vadd.f32 %v3982, %v3990
        %v4052 = vadd.f32 %v3983, %v3990
        %v4053 = vadd.f32 %v3984, %v3990
        %v4054 = vmax.f32 %v3992, 0.0
        %v4055 = vmax.f32 %v3993, 0.0
        %v4056 = vmax.f32 %v3994, 0.0
        %v4057 = vmax.f32 %v3995, 0.0
        %v4058 = vmax.f32 %v3996, 0.0
        %v4059 = vmax.f32 %v3997, 0.0
        %v4060 = vmax.f32 %v3998, 0.0
        %v4061 = vmax.f32 %v3999, 0.0
        %v4062 = vmax.f32 %v4000, 0.0
        %v4063 = vmax.f32 %v4001, 0.0
        %v4064 = vmax.f32 %v4002, 0.0
        %v4065 = vmax.f32 %v4003, 0.0
        %v4066 = vmax.f32 %v4004, 0.0
        %v4067 = vmax.f32 %v4005, 0.0
        %v4068 = vmax.f32 %v4006, 0.0
        %v4069 = vmax.f32 %v4007, 0.0
        %v4070 = vmax.f32 %v4008, 0.0
        %v4071 = vmax.f32 %v4009, 0.0
        %v4072 = vmax.f32 %v4010, 0.0
        %v4073 = vmax.f32 %v4011, 0.0
        %v4074 = vmax.f32 %v4012, 0.0
        %v4075 = vmax.f32 %v4013, 0.0
        %v4076 = vmax.f32 %v4014, 0.0
        %v4077 = vmax.f32 %v4015, 0.0
        %v4078 = vmax.f32 %v4016, 0.0
        %v4079 = vmax.f32 %v4017, 0.0
        %v4080 = vmax.f32 %v4018, 0.0
        %v4081 = vmax.f32 %v4019, 0.0
        %v4082 = vmax.f32 %v4020, 0.0
        %v4083 = vmax.f32 %v4021, 0.0
        %v4084 = vmax.f32 %v4022, 0.0
        %v4085 = vmax.f32 %v4023, 0.0
        %v4086 = vmax.f32 %v4024, 0.0
        %v4087 = vmax.f32 %v4025, 0.0
        %v4088 = vmax.f32 %v4026, 0.0
        %v4089 = vmax.f32 %v4027, 0.0
        %v4090 = vmax.f32 %v4028, 0.0
        %v4091 = vmax.f32 %v4029, 0.0
        %v4092 = vmax.f32 %v4030, 0.0
        %v4093 = vmax.f32 %v4031, 0.0
        %v4094 = vmax.f32 %v4032, 0.0
        %v4095 = vmax.f32 %v4033, 0.0
        %v4096 = vmax.f32 %v4034, 0.0
        %v4097 = vmax.f32 %v4035, 0.0
        %v4098 = vmax.f32 %v4036, 0.0
        %v4099 = vmax.f32 %v4037, 0.0
        %v4100 = vmax.f32 %v4038, 0.0
        %v4101 = vmax.f32 %v4039, 0.0
        %v4102 = vmax.f32 %v4040, 0.0
        %v4103 = vmax.f32 %v4041, 0.0
        %v4104 = vmax.f32 %v4042, 0.0
        %v4105 = vmax.f32 %v4043, 0.0
        %v4106 = vmax.f32 %v4044, 0.0
        %v4107 = vmax.f32 %v4045, 0.0
        %v4108 = vmax.f32 %v4046, 0.0
        %v4109 = vmax.f32 %v4047, 0.0
        %v4110 = vmax.f32 %v4048, 0.0
        %v4111 = vmax.f32 %v4049, 0.0
        %v4112 = vmax.f32 %v4050, 0.0
        %v4113 = vmax.f32 %v4051, 0.0
        %v4114 = vmax.f32 %v4052, 0.0
        %v4115 = vmax.f32 %v4053, 0.0
        %vm4116 = vcmask 261120
        %4117 = vst.msk [vmem:[#allocation2] sm:$0xff] %vm4116, %v4054
        %4118 = vst.msk [vmem:[#allocation2 + $0x8] sm:$0xff] %vm4116, %v4055
        %4119 = vst.msk [vmem:[#allocation2 + $0x10] sm:$0xff] %vm4116, %v4056
        %4120 = vst.msk [vmem:[#allocation2 + $0x18] sm:$0xff] %vm4116, %v4057
        %4121 = vst.msk [vmem:[#allocation2 + $0x20] sm:$0xff] %vm4116, %v4058
        %4122 = vst.msk [vmem:[#allocation2 + $0x28] sm:$0xff] %vm4116, %v4059
        %4123 = vst.msk [vmem:[#allocation2 + $0x30] sm:$0xff] %vm4116, %v4060
        %4124 = vst.msk [vmem:[#allocation2 + $0x38] sm:$0xff] %vm4116, %v4061
        %4125 = vst.msk [vmem:[#allocation2 + $0x40] sm:$0xff] %vm4116, %v4062
        %4126 = vst.msk [vmem:[#allocation2 + $0x48] sm:$0xff] %vm4116, %v4063
        %4127 = vst.msk [vmem:[#allocation2 + $0x50] sm:$0xff] %vm4116, %v4064
        %4128 = vst.msk [vmem:[#allocation2 + $0x58] sm:$0xff] %vm4116, %v4065
        %4129 = vst.msk [vmem:[#allocation2 + $0x60] sm:$0xff] %vm4116, %v4066
        %4130 = vst.msk [vmem:[#allocation2 + $0x68] sm:$0xff] %vm4116, %v4067
        %4131 = vst.msk [vmem:[#allocation2 + $0x70] sm:$0xff] %vm4116, %v4068
        %4132 = vst.msk [vmem:[#allocation2 + $0x78] sm:$0xff] %vm4116, %v4069
        %4133 = vst.msk [vmem:[#allocation2 + $0x80] sm:$0xff] %vm4116, %v4070
        %4134 = vst.msk [vmem:[#allocation2 + $0x88] sm:$0xff] %vm4116, %v4071
        %4135 = vst.msk [vmem:[#allocation2 + $0x90] sm:$0xff] %vm4116, %v4072
        %4136 = vst.msk [vmem:[#allocation2 + $0x98] sm:$0xff] %vm4116, %v4073
        %4137 = vst.msk [vmem:[#allocation2 + $0xa0] sm:$0xff] %vm4116, %v4074
        %4138 = vst.msk [vmem:[#allocation2 + $0xa8] sm:$0xff] %vm4116, %v4075
        %4139 = vst.msk [vmem:[#allocation2 + $0xb0] sm:$0xff] %vm4116, %v4076
        %4140 = vst.msk [vmem:[#allocation2 + $0xb8] sm:$0xff] %vm4116, %v4077
        %4141 = vst.msk [vmem:[#allocation2 + $0xc0] sm:$0xff] %vm4116, %v4078
        %4142 = vst.msk [vmem:[#allocation2 + $0xc8] sm:$0xff] %vm4116, %v4079
        %4143 = vst.msk [vmem:[#allocation2 + $0xd0] sm:$0xff] %vm4116, %v4080
        %4144 = vst.msk [vmem:[#allocation2 + $0xd8] sm:$0xff] %vm4116, %v4081
        %4145 = vst.msk [vmem:[#allocation2 + $0xe0] sm:$0xff] %vm4116, %v4082
        %4146 = vst.msk [vmem:[#allocation2 + $0xe8] sm:$0xff] %vm4116, %v4083
        %4147 = vst.msk [vmem:[#allocation2 + $0xf0] sm:$0xff] %vm4116, %v4084
        %4148 = vst.msk [vmem:[#allocation2 + $0xf8] sm:$0xff] %vm4116, %v4085
        %4149 = vst.msk [vmem:[#allocation2 + $0x100] sm:$0xff] %vm4116, %v4086
        %4150 = vst.msk [vmem:[#allocation2 + $0x108] sm:$0xff] %vm4116, %v4087
        %4151 = vst.msk [vmem:[#allocation2 + $0x110] sm:$0xff] %vm4116, %v4088
        %4152 = vst.msk [vmem:[#allocation2 + $0x118] sm:$0xff] %vm4116, %v4089
        %4153 = vst.msk [vmem:[#allocation2 + $0x120] sm:$0xff] %vm4116, %v4090
        %4154 = vst.msk [vmem:[#allocation2 + $0x128] sm:$0xff] %vm4116, %v4091
        %4155 = vst.msk [vmem:[#allocation2 + $0x130] sm:$0xff] %vm4116, %v4092
        %4156 = vst.msk [vmem:[#allocation2 + $0x138] sm:$0xff] %vm4116, %v4093
        %4157 = vst.msk [vmem:[#allocation2 + $0x140] sm:$0xff] %vm4116, %v4094
        %4158 = vst.msk [vmem:[#allocation2 + $0x148] sm:$0xff] %vm4116, %v4095
        %4159 = vst.msk [vmem:[#allocation2 + $0x150] sm:$0xff] %vm4116, %v4096
        %4160 = vst.msk [vmem:[#allocation2 + $0x158] sm:$0xff] %vm4116, %v4097
        %4161 = vst.msk [vmem:[#allocation2 + $0x160] sm:$0xff] %vm4116, %v4098
        %4162 = vst.msk [vmem:[#allocation2 + $0x168] sm:$0xff] %vm4116, %v4099
        %4163 = vst.msk [vmem:[#allocation2 + $0x170] sm:$0xff] %vm4116, %v4100
        %4164 = vst.msk [vmem:[#allocation2 + $0x178] sm:$0xff] %vm4116, %v4101
        %4165 = vst.msk [vmem:[#allocation2 + $0x180] sm:$0xff] %vm4116, %v4102
        %4166 = vst.msk [vmem:[#allocation2 + $0x188] sm:$0xff] %vm4116, %v4103
        %4167 = vst.msk [vmem:[#allocation2 + $0x190] sm:$0xff] %vm4116, %v4104
        %4168 = vst.msk [vmem:[#allocation2 + $0x198] sm:$0xff] %vm4116, %v4105
        %4169 = vst.msk [vmem:[#allocation2 + $0x1a0] sm:$0xff] %vm4116, %v4106
        %4170 = vst.msk [vmem:[#allocation2 + $0x1a8] sm:$0xff] %vm4116, %v4107
        %4171 = vst.msk [vmem:[#allocation2 + $0x1b0] sm:$0xff] %vm4116, %v4108
        %4172 = vst.msk [vmem:[#allocation2 + $0x1b8] sm:$0xff] %vm4116, %v4109
        %4173 = vst.msk [vmem:[#allocation2 + $0x1c0] sm:$0xff] %vm4116, %v4110
        %4174 = vst.msk [vmem:[#allocation2 + $0x1c8] sm:$0xff] %vm4116, %v4111
        %4175 = vst.msk [vmem:[#allocation2 + $0x1d0] sm:$0xff] %vm4116, %v4112
        %4176 = vst.msk [vmem:[#allocation2 + $0x1d8] sm:$0xff] %vm4116, %v4113
        %4177 = vst.msk [vmem:[#allocation2 + $0x1e0] sm:$0xff] %vm4116, %v4114
        %4178 = vst.msk [vmem:[#allocation2 + $0x1e8] sm:$0xff] %vm4116, %v4115
        %v4179 = vld [vmem:[#allocation2] sm:$0xff]
        %v4180 = vld [vmem:[#allocation2 + $0x8] sm:$0xff]
        %v4181 = vld [vmem:[#allocation2 + $0x10] sm:$0xff]
        %v4182 = vld [vmem:[#allocation2 + $0x18] sm:$0xff]
        %v4183 = vld [vmem:[#allocation2 + $0x20] sm:$0xff]
        %v4184 = vld [vmem:[#allocation2 + $0x28] sm:$0xff]
        %v4185 = vld [vmem:[#allocation2 + $0x30] sm:$0xff]
        %v4186 = vld [vmem:[#allocation2 + $0x38] sm:$0xff]
        %v4187 = vld [vmem:[#allocation2 + $0x40] sm:$0xff]
        %v4188 = vld [vmem:[#allocation2 + $0x48] sm:$0xff]
        %v4189 = vld [vmem:[#allocation2 + $0x50] sm:$0xff]
        %v4190 = vld [vmem:[#allocation2 + $0x58] sm:$0xff]
        %v4191 = vld [vmem:[#allocation2 + $0x60] sm:$0xff]
        %v4192 = vld [vmem:[#allocation2 + $0x68] sm:$0xff]
        %v4193 = vld [vmem:[#allocation2 + $0x70] sm:$0xff]
        %v4194 = vld [vmem:[#allocation2 + $0x78] sm:$0xff]
        %v4195 = vld [vmem:[#allocation2 + $0x80] sm:$0xff]
        %v4196 = vld [vmem:[#allocation2 + $0x88] sm:$0xff]
        %v4197 = vld [vmem:[#allocation2 + $0x90] sm:$0xff]
        %v4198 = vld [vmem:[#allocation2 + $0x98] sm:$0xff]
        %v4199 = vld [vmem:[#allocation2 + $0xa0] sm:$0xff]
        %v4200 = vld [vmem:[#allocation2 + $0xa8] sm:$0xff]
        %v4201 = vld [vmem:[#allocation2 + $0xb0] sm:$0xff]
        %v4202 = vld [vmem:[#allocation2 + $0xb8] sm:$0xff]
        %v4203 = vld [vmem:[#allocation2 + $0xc0] sm:$0xff]
        %v4204 = vld [vmem:[#allocation2 + $0xc8] sm:$0xff]
        %v4205 = vld [vmem:[#allocation2 + $0xd0] sm:$0xff]
        %v4206 = vld [vmem:[#allocation2 + $0xd8] sm:$0xff]
        %v4207 = vld [vmem:[#allocation2 + $0xe0] sm:$0xff]
        %v4208 = vld [vmem:[#allocation2 + $0xe8] sm:$0xff]
        %v4209 = vld [vmem:[#allocation2 + $0xf0] sm:$0xff]
        %v4210 = vld [vmem:[#allocation2 + $0xf8] sm:$0xff]
        %v4211 = vld [vmem:[#allocation2 + $0x100] sm:$0xff]
        %v4212 = vld [vmem:[#allocation2 + $0x108] sm:$0xff]
        %v4213 = vld [vmem:[#allocation2 + $0x110] sm:$0xff]
        %v4214 = vld [vmem:[#allocation2 + $0x118] sm:$0xff]
        %v4215 = vld [vmem:[#allocation2 + $0x120] sm:$0xff]
        %v4216 = vld [vmem:[#allocation2 + $0x128] sm:$0xff]
        %v4217 = vld [vmem:[#allocation2 + $0x130] sm:$0xff]
        %v4218 = vld [vmem:[#allocation2 + $0x138] sm:$0xff]
        %v4219 = vld [vmem:[#allocation2 + $0x140] sm:$0xff]
        %v4220 = vld [vmem:[#allocation2 + $0x148] sm:$0xff]
        %v4221 = vld [vmem:[#allocation2 + $0x150] sm:$0xff]
        %v4222 = vld [vmem:[#allocation2 + $0x158] sm:$0xff]
        %v4223 = vld [vmem:[#allocation2 + $0x160] sm:$0xff]
        %v4224 = vld [vmem:[#allocation2 + $0x168] sm:$0xff]
        %v4225 = vld [vmem:[#allocation2 + $0x170] sm:$0xff]
        %v4226 = vld [vmem:[#allocation2 + $0x178] sm:$0xff]
        %v4227 = vld [vmem:[#allocation2 + $0x180] sm:$0xff]
        %v4228 = vld [vmem:[#allocation2 + $0x188] sm:$0xff]
        %v4229 = vld [vmem:[#allocation2 + $0x190] sm:$0xff]
        %v4230 = vld [vmem:[#allocation2 + $0x198] sm:$0xff]
        %v4231 = vld [vmem:[#allocation2 + $0x1a0] sm:$0xff]
        %v4232 = vld [vmem:[#allocation2 + $0x1a8] sm:$0xff]
        %v4233 = vld [vmem:[#allocation2 + $0x1b0] sm:$0xff]
        %v4234 = vld [vmem:[#allocation2 + $0x1b8] sm:$0xff]
        %v4235 = vld [vmem:[#allocation2 + $0x1c0] sm:$0xff]
        %v4236 = vld [vmem:[#allocation2 + $0x1c8] sm:$0xff]
        %v4237 = vld [vmem:[#allocation2 + $0x1d0] sm:$0xff]
        %v4238 = vld [vmem:[#allocation2 + $0x1d8] sm:$0xff]
        %v4239 = vld [vmem:[#allocation2 + $0x1e0] sm:$0xff]
        %v4240 = vld [vmem:[#allocation2 + $0x1e8] sm:$0x1f]
        %v4241 = vld [vmem:[#allocation2 + $0x1] sm:$0xff]
        %v4242 = vld [vmem:[#allocation2 + $0x9] sm:$0xff]
        %v4243 = vld [vmem:[#allocation2 + $0x11] sm:$0xff]
        %v4244 = vld [vmem:[#allocation2 + $0x19] sm:$0xff]
        %v4245 = vld [vmem:[#allocation2 + $0x21] sm:$0xff]
        %v4246 = vld [vmem:[#allocation2 + $0x29] sm:$0xff]
        %v4247 = vld [vmem:[#allocation2 + $0x31] sm:$0xff]
        %v4248 = vld [vmem:[#allocation2 + $0x39] sm:$0xff]
        %v4249 = vld [vmem:[#allocation2 + $0x41] sm:$0xff]
        %v4250 = vld [vmem:[#allocation2 + $0x49] sm:$0xff]
        %v4251 = vld [vmem:[#allocation2 + $0x51] sm:$0xff]
        %v4252 = vld [vmem:[#allocation2 + $0x59] sm:$0xff]
        %v4253 = vld [vmem:[#allocation2 + $0x61] sm:$0xff]
        %v4254 = vld [vmem:[#allocation2 + $0x69] sm:$0xff]
        %v4255 = vld [vmem:[#allocation2 + $0x71] sm:$0xff]
        %v4256 = vld [vmem:[#allocation2 + $0x79] sm:$0xff]
        %v4257 = vld [vmem:[#allocation2 + $0x81] sm:$0xff]
        %v4258 = vld [vmem:[#allocation2 + $0x89] sm:$0xff]
        %v4259 = vld [vmem:[#allocation2 + $0x91] sm:$0xff]
        %v4260 = vld [vmem:[#allocation2 + $0x99] sm:$0xff]
        %v4261 = vld [vmem:[#allocation2 + $0xa1] sm:$0xff]
        %v4262 = vld [vmem:[#allocation2 + $0xa9] sm:$0xff]
        %v4263 = vld [vmem:[#allocation2 + $0xb1] sm:$0xff]
        %v4264 = vld [vmem:[#allocation2 + $0xb9] sm:$0xff]
        %v4265 = vld [vmem:[#allocation2 + $0xc1] sm:$0xff]
        %v4266 = vld [vmem:[#allocation2 + $0xc9] sm:$0xff]
        %v4267 = vld [vmem:[#allocation2 + $0xd1] sm:$0xff]
        %v4268 = vld [vmem:[#allocation2 + $0xd9] sm:$0xff]
        %v4269 = vld [vmem:[#allocation2 + $0xe1] sm:$0xff]
        %v4270 = vld [vmem:[#allocation2 + $0xe9] sm:$0xff]
        %v4271 = vld [vmem:[#allocation2 + $0xf1] sm:$0xff]
        %v4272 = vld [vmem:[#allocation2 + $0xf9] sm:$0xff]
        %v4273 = vld [vmem:[#allocation2 + $0x101] sm:$0xff]
        %v4274 = vld [vmem:[#allocation2 + $0x109] sm:$0xff]
        %v4275 = vld [vmem:[#allocation2 + $0x111] sm:$0xff]
        %v4276 = vld [vmem:[#allocation2 + $0x119] sm:$0xff]
        %v4277 = vld [vmem:[#allocation2 + $0x121] sm:$0xff]
        %v4278 = vld [vmem:[#allocation2 + $0x129] sm:$0xff]
        %v4279 = vld [vmem:[#allocation2 + $0x131] sm:$0xff]
        %v4280 = vld [vmem:[#allocation2 + $0x139] sm:$0xff]
        %v4281 = vld [vmem:[#allocation2 + $0x141] sm:$0xff]
        %v4282 = vld [vmem:[#allocation2 + $0x149] sm:$0xff]
        %v4283 = vld [vmem:[#allocation2 + $0x151] sm:$0xff]
        %v4284 = vld [vmem:[#allocation2 + $0x159] sm:$0xff]
        %v4285 = vld [vmem:[#allocation2 + $0x161] sm:$0xff]
        %v4286 = vld [vmem:[#allocation2 + $0x169] sm:$0xff]
        %v4287 = vld [vmem:[#allocation2 + $0x171] sm:$0xff]
        %v4288 = vld [vmem:[#allocation2 + $0x179] sm:$0xff]
        %v4289 = vld [vmem:[#allocation2 + $0x181] sm:$0xff]
        %v4290 = vld [vmem:[#allocation2 + $0x189] sm:$0xff]
        %v4291 = vld [vmem:[#allocation2 + $0x191] sm:$0xff]
        %v4292 = vld [vmem:[#allocation2 + $0x199] sm:$0xff]
        %v4293 = vld [vmem:[#allocation2 + $0x1a1] sm:$0xff]
        %v4294 = vld [vmem:[#allocation2 + $0x1a9] sm:$0xff]
        %v4295 = vld [vmem:[#allocation2 + $0x1b1] sm:$0xff]
        %v4296 = vld [vmem:[#allocation2 + $0x1b9] sm:$0xff]
        %v4297 = vld [vmem:[#allocation2 + $0x1c1] sm:$0xff]
        %v4298 = vld [vmem:[#allocation2 + $0x1c9] sm:$0xff]
        %v4299 = vld [vmem:[#allocation2 + $0x1d1] sm:$0xff]
        %v4300 = vld [vmem:[#allocation2 + $0x1d9] sm:$0xff]
        %v4301 = vld [vmem:[#allocation2 + $0x1e1] sm:$0xff]
        %v4302 = vld [vmem:[#allocation2 + $0x1e9] sm:$0x1f]
        %v4303 = vmax.f32 %v4179, %v4241
        %v4304 = vmax.f32 %v4180, %v4242
        %v4305 = vmax.f32 %v4181, %v4243
        %v4306 = vmax.f32 %v4182, %v4244
        %v4307 = vmax.f32 %v4183, %v4245
        %v4308 = vmax.f32 %v4184, %v4246
        %v4309 = vmax.f32 %v4185, %v4247
        %v4310 = vmax.f32 %v4186, %v4248
        %v4311 = vmax.f32 %v4187, %v4249
        %v4312 = vmax.f32 %v4188, %v4250
        %v4313 = vmax.f32 %v4189, %v4251
        %v4314 = vmax.f32 %v4190, %v4252
        %v4315 = vmax.f32 %v4191, %v4253
        %v4316 = vmax.f32 %v4192, %v4254
        %v4317 = vmax.f32 %v4193, %v4255
        %v4318 = vmax.f32 %v4194, %v4256
        %v4319 = vmax.f32 %v4195, %v4257
        %v4320 = vmax.f32 %v4196, %v4258
        %v4321 = vmax.f32 %v4197, %v4259
        %v4322 = vmax.f32 %v4198, %v4260
        %v4323 = vmax.f32 %v4199, %v4261
        %v4324 = vmax.f32 %v4200, %v4262
        %v4325 = vmax.f32 %v4201, %v4263
        %v4326 = vmax.f32 %v4202, %v4264
        %v4327 = vmax.f32 %v4203, %v4265
        %v4328 = vmax.f32 %v4204, %v4266
        %v4329 = vmax.f32 %v4205, %v4267
        %v4330 = vmax.f32 %v4206, %v4268
        %v4331 = vmax.f32 %v4207, %v4269
        %v4332 = vmax.f32 %v4208, %v4270
        %v4333 = vmax.f32 %v4209, %v4271
        %v4334 = vmax.f32 %v4210, %v4272
        %v4335 = vmax.f32 %v4211, %v4273
        %v4336 = vmax.f32 %v4212, %v4274
        %v4337 = vmax.f32 %v4213, %v4275
        %v4338 = vmax.f32 %v4214, %v4276
        %v4339 = vmax.f32 %v4215, %v4277
        %v4340 = vmax.f32 %v4216, %v4278
        %v4341 = vmax.f32 %v4217, %v4279
        %v4342 = vmax.f32 %v4218, %v4280
        %v4343 = vmax.f32 %v4219, %v4281
        %v4344 = vmax.f32 %v4220, %v4282
        %v4345 = vmax.f32 %v4221, %v4283
        %v4346 = vmax.f32 %v4222, %v4284
        %v4347 = vmax.f32 %v4223, %v4285
        %v4348 = vmax.f32 %v4224, %v4286
        %v4349 = vmax.f32 %v4225, %v4287
        %v4350 = vmax.f32 %v4226, %v4288
        %v4351 = vmax.f32 %v4227, %v4289
        %v4352 = vmax.f32 %v4228, %v4290
        %v4353 = vmax.f32 %v4229, %v4291
        %v4354 = vmax.f32 %v4230, %v4292
        %v4355 = vmax.f32 %v4231, %v4293
        %v4356 = vmax.f32 %v4232, %v4294
        %v4357 = vmax.f32 %v4233, %v4295
        %v4358 = vmax.f32 %v4234, %v4296
        %v4359 = vmax.f32 %v4235, %v4297
        %v4360 = vmax.f32 %v4236, %v4298
        %v4361 = vmax.f32 %v4237, %v4299
        %v4362 = vmax.f32 %v4238, %v4300
        %v4363 = vmax.f32 %v4239, %v4301
        %v4364 = vmax.f32 %v4240, %v4302
        %v4365 = vld [vmem:[#allocation2 + $0x2] sm:$0xff]
        %v4366 = vld [vmem:[#allocation2 + $0xa] sm:$0xff]
        %v4367 = vld [vmem:[#allocation2 + $0x12] sm:$0xff]
        %v4368 = vld [vmem:[#allocation2 + $0x1a] sm:$0xff]
        %v4369 = vld [vmem:[#allocation2 + $0x22] sm:$0xff]
        %v4370 = vld [vmem:[#allocation2 + $0x2a] sm:$0xff]
        %v4371 = vld [vmem:[#allocation2 + $0x32] sm:$0xff]
        %v4372 = vld [vmem:[#allocation2 + $0x3a] sm:$0xff]
        %v4373 = vld [vmem:[#allocation2 + $0x42] sm:$0xff]
        %v4374 = vld [vmem:[#allocation2 + $0x4a] sm:$0xff]
        %v4375 = vld [vmem:[#allocation2 + $0x52] sm:$0xff]
        %v4376 = vld [vmem:[#allocation2 + $0x5a] sm:$0xff]
        %v4377 = vld [vmem:[#allocation2 + $0x62] sm:$0xff]
        %v4378 = vld [vmem:[#allocation2 + $0x6a] sm:$0xff]
        %v4379 = vld [vmem:[#allocation2 + $0x72] sm:$0xff]
        %v4380 = vld [vmem:[#allocation2 + $0x7a] sm:$0xff]
        %v4381 = vld [vmem:[#allocation2 + $0x82] sm:$0xff]
        %v4382 = vld [vmem:[#allocation2 + $0x8a] sm:$0xff]
        %v4383 = vld [vmem:[#allocation2 + $0x92] sm:$0xff]
        %v4384 = vld [vmem:[#allocation2 + $0x9a] sm:$0xff]
        %v4385 = vld [vmem:[#allocation2 + $0xa2] sm:$0xff]
        %v4386 = vld [vmem:[#allocation2 + $0xaa] sm:$0xff]
        %v4387 = vld [vmem:[#allocation2 + $0xb2] sm:$0xff]
        %v4388 = vld [vmem:[#allocation2 + $0xba] sm:$0xff]
        %v4389 = vld [vmem:[#allocation2 + $0xc2] sm:$0xff]
        %v4390 = vld [vmem:[#allocation2 + $0xca] sm:$0xff]
        %v4391 = vld [vmem:[#allocation2 + $0xd2] sm:$0xff]
        %v4392 = vld [vmem:[#allocation2 + $0xda] sm:$0xff]
        %v4393 = vld [vmem:[#allocation2 + $0xe2] sm:$0xff]
        %v4394 = vld [vmem:[#allocation2 + $0xea] sm:$0xff]
        %v4395 = vld [vmem:[#allocation2 + $0xf2] sm:$0xff]
        %v4396 = vld [vmem:[#allocation2 + $0xfa] sm:$0xff]
        %v4397 = vld [vmem:[#allocation2 + $0x102] sm:$0xff]
        %v4398 = vld [vmem:[#allocation2 + $0x10a] sm:$0xff]
        %v4399 = vld [vmem:[#allocation2 + $0x112] sm:$0xff]
        %v4400 = vld [vmem:[#allocation2 + $0x11a] sm:$0xff]
        %v4401 = vld [vmem:[#allocation2 + $0x122] sm:$0xff]
        %v4402 = vld [vmem:[#allocation2 + $0x12a] sm:$0xff]
        %v4403 = vld [vmem:[#allocation2 + $0x132] sm:$0xff]
        %v4404 = vld [vmem:[#allocation2 + $0x13a] sm:$0xff]
        %v4405 = vld [vmem:[#allocation2 + $0x142] sm:$0xff]
        %v4406 = vld [vmem:[#allocation2 + $0x14a] sm:$0xff]
        %v4407 = vld [vmem:[#allocation2 + $0x152] sm:$0xff]
        %v4408 = vld [vmem:[#allocation2 + $0x15a] sm:$0xff]
        %v4409 = vld [vmem:[#allocation2 + $0x162] sm:$0xff]
        %v4410 = vld [vmem:[#allocation2 + $0x16a] sm:$0xff]
        %v4411 = vld [vmem:[#allocation2 + $0x172] sm:$0xff]
        %v4412 = vld [vmem:[#allocation2 + $0x17a] sm:$0xff]
        %v4413 = vld [vmem:[#allocation2 + $0x182] sm:$0xff]
        %v4414 = vld [vmem:[#allocation2 + $0x18a] sm:$0xff]
        %v4415 = vld [vmem:[#allocation2 + $0x192] sm:$0xff]
        %v4416 = vld [vmem:[#allocation2 + $0x19a] sm:$0xff]
        %v4417 = vld [vmem:[#allocation2 + $0x1a2] sm:$0xff]
        %v4418 = vld [vmem:[#allocation2 + $0x1aa] sm:$0xff]
        %v4419 = vld [vmem:[#allocation2 + $0x1b2] sm:$0xff]
        %v4420 = vld [vmem:[#allocation2 + $0x1ba] sm:$0xff]
        %v4421 = vld [vmem:[#allocation2 + $0x1c2] sm:$0xff]
        %v4422 = vld [vmem:[#allocation2 + $0x1ca] sm:$0xff]
        %v4423 = vld [vmem:[#allocation2 + $0x1d2] sm:$0xff]
        %v4424 = vld [vmem:[#allocation2 + $0x1da] sm:$0xff]
        %v4425 = vld [vmem:[#allocation2 + $0x1e2] sm:$0xff]
        %v4426 = vld [vmem:[#allocation2 + $0x1ea] sm:$0x1f]
        %v4427 = vld [vmem:[#allocation2 + $0x3] sm:$0xff]
        %v4428 = vld [vmem:[#allocation2 + $0xb] sm:$0xff]
        %v4429 = vld [vmem:[#allocation2 + $0x13] sm:$0xff]
        %v4430 = vld [vmem:[#allocation2 + $0x1b] sm:$0xff]
        %v4431 = vld [vmem:[#allocation2 + $0x23] sm:$0xff]
        %v4432 = vld [vmem:[#allocation2 + $0x2b] sm:$0xff]
        %v4433 = vld [vmem:[#allocation2 + $0x33] sm:$0xff]
        %v4434 = vld [vmem:[#allocation2 + $0x3b] sm:$0xff]
        %v4435 = vld [vmem:[#allocation2 + $0x43] sm:$0xff]
        %v4436 = vld [vmem:[#allocation2 + $0x4b] sm:$0xff]
        %v4437 = vld [vmem:[#allocation2 + $0x53] sm:$0xff]
        %v4438 = vld [vmem:[#allocation2 + $0x5b] sm:$0xff]
        %v4439 = vld [vmem:[#allocation2 + $0x63] sm:$0xff]
        %v4440 = vld [vmem:[#allocation2 + $0x6b] sm:$0xff]
        %v4441 = vld [vmem:[#allocation2 + $0x73] sm:$0xff]
        %v4442 = vld [vmem:[#allocation2 + $0x7b] sm:$0xff]
        %v4443 = vld [vmem:[#allocation2 + $0x83] sm:$0xff]
        %v4444 = vld [vmem:[#allocation2 + $0x8b] sm:$0xff]
        %v4445 = vld [vmem:[#allocation2 + $0x93] sm:$0xff]
        %v4446 = vld [vmem:[#allocation2 + $0x9b] sm:$0xff]
        %v4447 = vld [vmem:[#allocation2 + $0xa3] sm:$0xff]
        %v4448 = vld [vmem:[#allocation2 + $0xab] sm:$0xff]
        %v4449 = vld [vmem:[#allocation2 + $0xb3] sm:$0xff]
        %v4450 = vld [vmem:[#allocation2 + $0xbb] sm:$0xff]
        %v4451 = vld [vmem:[#allocation2 + $0xc3] sm:$0xff]
        %v4452 = vld [vmem:[#allocation2 + $0xcb] sm:$0xff]
        %v4453 = vld [vmem:[#allocation2 + $0xd3] sm:$0xff]
        %v4454 = vld [vmem:[#allocation2 + $0xdb] sm:$0xff]
        %v4455 = vld [vmem:[#allocation2 + $0xe3] sm:$0xff]
        %v4456 = vld [vmem:[#allocation2 + $0xeb] sm:$0xff]
        %v4457 = vld [vmem:[#allocation2 + $0xf3] sm:$0xff]
        %v4458 = vld [vmem:[#allocation2 + $0xfb] sm:$0xff]
        %v4459 = vld [vmem:[#allocation2 + $0x103] sm:$0xff]
        %v4460 = vld [vmem:[#allocation2 + $0x10b] sm:$0xff]
        %v4461 = vld [vmem:[#allocation2 + $0x113] sm:$0xff]
        %v4462 = vld [vmem:[#allocation2 + $0x11b] sm:$0xff]
        %v4463 = vld [vmem:[#allocation2 + $0x123] sm:$0xff]
        %v4464 = vld [vmem:[#allocation2 + $0x12b] sm:$0xff]
        %v4465 = vld [vmem:[#allocation2 + $0x133] sm:$0xff]
        %v4466 = vld [vmem:[#allocation2 + $0x13b] sm:$0xff]
        %v4467 = vld [vmem:[#allocation2 + $0x143] sm:$0xff]
        %v4468 = vld [vmem:[#allocation2 + $0x14b] sm:$0xff]
        %v4469 = vld [vmem:[#allocation2 + $0x153] sm:$0xff]
        %v4470 = vld [vmem:[#allocation2 + $0x15b] sm:$0xff]
        %v4471 = vld [vmem:[#allocation2 + $0x163] sm:$0xff]
        %v4472 = vld [vmem:[#allocation2 + $0x16b] sm:$0xff]
        %v4473 = vld [vmem:[#allocation2 + $0x173] sm:$0xff]
        %v4474 = vld [vmem:[#allocation2 + $0x17b] sm:$0xff]
        %v4475 = vld [vmem:[#allocation2 + $0x183] sm:$0xff]
        %v4476 = vld [vmem:[#allocation2 + $0x18b] sm:$0xff]
        %v4477 = vld [vmem:[#allocation2 + $0x193] sm:$0xff]
        %v4478 = vld [vmem:[#allocation2 + $0x19b] sm:$0xff]
        %v4479 = vld [vmem:[#allocation2 + $0x1a3] sm:$0xff]
        %v4480 = vld [vmem:[#allocation2 + $0x1ab] sm:$0xff]
        %v4481 = vld [vmem:[#allocation2 + $0x1b3] sm:$0xff]
        %v4482 = vld [vmem:[#allocation2 + $0x1bb] sm:$0xff]
        %v4483 = vld [vmem:[#allocation2 + $0x1c3] sm:$0xff]
        %v4484 = vld [vmem:[#allocation2 + $0x1cb] sm:$0xff]
        %v4485 = vld [vmem:[#allocation2 + $0x1d3] sm:$0xff]
        %v4486 = vld [vmem:[#allocation2 + $0x1db] sm:$0xff]
        %v4487 = vld [vmem:[#allocation2 + $0x1e3] sm:$0xff]
        %v4488 = vld [vmem:[#allocation2 + $0x1eb] sm:$0x1f]
        %v4489 = vmax.f32 %v4365, %v4427
        %v4490 = vmax.f32 %v4366, %v4428
        %v4491 = vmax.f32 %v4367, %v4429
        %v4492 = vmax.f32 %v4368, %v4430
        %v4493 = vmax.f32 %v4369, %v4431
        %v4494 = vmax.f32 %v4370, %v4432
        %v4495 = vmax.f32 %v4371, %v4433
        %v4496 = vmax.f32 %v4372, %v4434
        %v4497 = vmax.f32 %v4373, %v4435
        %v4498 = vmax.f32 %v4374, %v4436
        %v4499 = vmax.f32 %v4375, %v4437
        %v4500 = vmax.f32 %v4376, %v4438
        %v4501 = vmax.f32 %v4377, %v4439
        %v4502 = vmax.f32 %v4378, %v4440
        %v4503 = vmax.f32 %v4379, %v4441
        %v4504 = vmax.f32 %v4380, %v4442
        %v4505 = vmax.f32 %v4381, %v4443
        %v4506 = vmax.f32 %v4382, %v4444
        %v4507 = vmax.f32 %v4383, %v4445
        %v4508 = vmax.f32 %v4384, %v4446
        %v4509 = vmax.f32 %v4385, %v4447
        %v4510 = vmax.f32 %v4386, %v4448
        %v4511 = vmax.f32 %v4387, %v4449
        %v4512 = vmax.f32 %v4388, %v4450
        %v4513 = vmax.f32 %v4389, %v4451
        %v4514 = vmax.f32 %v4390, %v4452
        %v4515 = vmax.f32 %v4391, %v4453
        %v4516 = vmax.f32 %v4392, %v4454
        %v4517 = vmax.f32 %v4393, %v4455
        %v4518 = vmax.f32 %v4394, %v4456
        %v4519 = vmax.f32 %v4395, %v4457
        %v4520 = vmax.f32 %v4396, %v4458
        %v4521 = vmax.f32 %v4397, %v4459
        %v4522 = vmax.f32 %v4398, %v4460
        %v4523 = vmax.f32 %v4399, %v4461
        %v4524 = vmax.f32 %v4400, %v4462
        %v4525 = vmax.f32 %v4401, %v4463
        %v4526 = vmax.f32 %v4402, %v4464
        %v4527 = vmax.f32 %v4403, %v4465
        %v4528 = vmax.f32 %v4404, %v4466
        %v4529 = vmax.f32 %v4405, %v4467
        %v4530 = vmax.f32 %v4406, %v4468
        %v4531 = vmax.f32 %v4407, %v4469
        %v4532 = vmax.f32 %v4408, %v4470
        %v4533 = vmax.f32 %v4409, %v4471
        %v4534 = vmax.f32 %v4410, %v4472
        %v4535 = vmax.f32 %v4411, %v4473
        %v4536 = vmax.f32 %v4412, %v4474
        %v4537 = vmax.f32 %v4413, %v4475
        %v4538 = vmax.f32 %v4414, %v4476
        %v4539 = vmax.f32 %v4415, %v4477
        %v4540 = vmax.f32 %v4416, %v4478
        %v4541 = vmax.f32 %v4417, %v4479
        %v4542 = vmax.f32 %v4418, %v4480
        %v4543 = vmax.f32 %v4419, %v4481
        %v4544 = vmax.f32 %v4420, %v4482
        %v4545 = vmax.f32 %v4421, %v4483
        %v4546 = vmax.f32 %v4422, %v4484
        %v4547 = vmax.f32 %v4423, %v4485
        %v4548 = vmax.f32 %v4424, %v4486
        %v4549 = vmax.f32 %v4425, %v4487
        %v4550 = vmax.f32 %v4426, %v4488
        %v4551 = vmax.f32 %v4303, %v4489
        %v4552 = vmax.f32 %v4304, %v4490
        %v4553 = vmax.f32 %v4305, %v4491
        %v4554 = vmax.f32 %v4306, %v4492
        %v4555 = vmax.f32 %v4307, %v4493
        %v4556 = vmax.f32 %v4308, %v4494
        %v4557 = vmax.f32 %v4309, %v4495
        %v4558 = vmax.f32 %v4310, %v4496
        %v4559 = vmax.f32 %v4311, %v4497
        %v4560 = vmax.f32 %v4312, %v4498
        %v4561 = vmax.f32 %v4313, %v4499
        %v4562 = vmax.f32 %v4314, %v4500
        %v4563 = vmax.f32 %v4315, %v4501
        %v4564 = vmax.f32 %v4316, %v4502
        %v4565 = vmax.f32 %v4317, %v4503
        %v4566 = vmax.f32 %v4318, %v4504
        %v4567 = vmax.f32 %v4319, %v4505
        %v4568 = vmax.f32 %v4320, %v4506
        %v4569 = vmax.f32 %v4321, %v4507
        %v4570 = vmax.f32 %v4322, %v4508
        %v4571 = vmax.f32 %v4323, %v4509
        %v4572 = vmax.f32 %v4324, %v4510
        %v4573 = vmax.f32 %v4325, %v4511
        %v4574 = vmax.f32 %v4326, %v4512
        %v4575 = vmax.f32 %v4327, %v4513
        %v4576 = vmax.f32 %v4328, %v4514
        %v4577 = vmax.f32 %v4329, %v4515
        %v4578 = vmax.f32 %v4330, %v4516
        %v4579 = vmax.f32 %v4331, %v4517
        %v4580 = vmax.f32 %v4332, %v4518
        %v4581 = vmax.f32 %v4333, %v4519
        %v4582 = vmax.f32 %v4334, %v4520
        %v4583 = vmax.f32 %v4335, %v4521
        %v4584 = vmax.f32 %v4336, %v4522
        %v4585 = vmax.f32 %v4337, %v4523
        %v4586 = vmax.f32 %v4338, %v4524
        %v4587 = vmax.f32 %v4339, %v4525
        %v4588 = vmax.f32 %v4340, %v4526
        %v4589 = vmax.f32 %v4341, %v4527
        %v4590 = vmax.f32 %v4342, %v4528
        %v4591 = vmax.f32 %v4343, %v4529
        %v4592 = vmax.f32 %v4344, %v4530
        %v4593 = vmax.f32 %v4345, %v4531
        %v4594 = vmax.f32 %v4346, %v4532
        %v4595 = vmax.f32 %v4347, %v4533
        %v4596 = vmax.f32 %v4348, %v4534
        %v4597 = vmax.f32 %v4349, %v4535
        %v4598 = vmax.f32 %v4350, %v4536
        %v4599 = vmax.f32 %v4351, %v4537
        %v4600 = vmax.f32 %v4352, %v4538
        %v4601 = vmax.f32 %v4353, %v4539
        %v4602 = vmax.f32 %v4354, %v4540
        %v4603 = vmax.f32 %v4355, %v4541
        %v4604 = vmax.f32 %v4356, %v4542
        %v4605 = vmax.f32 %v4357, %v4543
        %v4606 = vmax.f32 %v4358, %v4544
        %v4607 = vmax.f32 %v4359, %v4545
        %v4608 = vmax.f32 %v4360, %v4546
        %v4609 = vmax.f32 %v4361, %v4547
        %v4610 = vmax.f32 %v4362, %v4548
        %v4611 = vmax.f32 %v4363, %v4549
        %v4612 = vmax.f32 %v4364, %v4550
        %v4613 = vld [vmem:[%s4] sm:$0xff]
        %v4614 = vld [vmem:[%s4 + $0x8] sm:$0xff]
        %v4615 = vld [vmem:[%s4 + $0x10] sm:$0xff]
        %v4616 = vld [vmem:[%s4 + $0x18] sm:$0xff]
        %v4617 = vld [vmem:[%s4 + $0x20] sm:$0xff]
        %v4618 = vld [vmem:[%s4 + $0x28] sm:$0xff]
        %v4619 = vld [vmem:[%s4 + $0x30] sm:$0xff]
        %v4620 = vld [vmem:[%s4 + $0x38] sm:$0xff]
        %v4621 = vld [vmem:[%s4 + $0x40] sm:$0xff]
        %v4622 = vld [vmem:[%s4 + $0x48] sm:$0xff]
        %v4623 = vld [vmem:[%s4 + $0x50] sm:$0xff]
        %v4624 = vld [vmem:[%s4 + $0x58] sm:$0xff]
        %v4625 = vld [vmem:[%s4 + $0x60] sm:$0xff]
        %v4626 = vld [vmem:[%s4 + $0x68] sm:$0xff]
        %v4627 = vld [vmem:[%s4 + $0x70] sm:$0xff]
        %v4628 = vld [vmem:[%s4 + $0x78] sm:$0xff]
        %v4629 = vld [vmem:[%s4 + $0x80] sm:$0xff]
        %v4630 = vld [vmem:[%s4 + $0x88] sm:$0xff]
        %v4631 = vld [vmem:[%s4 + $0x90] sm:$0xff]
        %v4632 = vld [vmem:[%s4 + $0x98] sm:$0xff]
        %v4633 = vld [vmem:[%s4 + $0xa0] sm:$0xff]
        %v4634 = vld [vmem:[%s4 + $0xa8] sm:$0xff]
        %v4635 = vld [vmem:[%s4 + $0xb0] sm:$0xff]
        %v4636 = vld [vmem:[%s4 + $0xb8] sm:$0xff]
        %v4637 = vld [vmem:[%s4 + $0xc0] sm:$0xff]
        %v4638 = vld [vmem:[%s4 + $0xc8] sm:$0xff]
        %v4639 = vld [vmem:[%s4 + $0xd0] sm:$0xff]
        %v4640 = vld [vmem:[%s4 + $0xd8] sm:$0xff]
        %v4641 = vld [vmem:[%s4 + $0xe0] sm:$0xff]
        %v4642 = vld [vmem:[%s4 + $0xe8] sm:$0xff]
        %v4643 = vld [vmem:[%s4 + $0xf0] sm:$0xff]
        %v4644 = vld [vmem:[%s4 + $0xf8] sm:$0xff]
        %v4645 = vld [vmem:[%s4 + $0x100] sm:$0xff]
        %v4646 = vld [vmem:[%s4 + $0x108] sm:$0xff]
        %v4647 = vld [vmem:[%s4 + $0x110] sm:$0xff]
        %v4648 = vld [vmem:[%s4 + $0x118] sm:$0xff]
        %v4649 = vld [vmem:[%s4 + $0x120] sm:$0xff]
        %v4650 = vld [vmem:[%s4 + $0x128] sm:$0xff]
        %v4651 = vld [vmem:[%s4 + $0x130] sm:$0xff]
        %v4652 = vld [vmem:[%s4 + $0x138] sm:$0xff]
        %v4653 = vld [vmem:[%s4 + $0x140] sm:$0xff]
        %v4654 = vld [vmem:[%s4 + $0x148] sm:$0xff]
        %v4655 = vld [vmem:[%s4 + $0x150] sm:$0xff]
        %v4656 = vld [vmem:[%s4 + $0x158] sm:$0xff]
        %v4657 = vld [vmem:[%s4 + $0x160] sm:$0xff]
        %v4658 = vld [vmem:[%s4 + $0x168] sm:$0xff]
        %v4659 = vld [vmem:[%s4 + $0x170] sm:$0xff]
        %v4660 = vld [vmem:[%s4 + $0x178] sm:$0xff]
        %v4661 = vld [vmem:[%s4 + $0x180] sm:$0xff]
        %v4662 = vld [vmem:[%s4 + $0x188] sm:$0xff]
        %v4663 = vld [vmem:[%s4 + $0x190] sm:$0xff]
        %v4664 = vld [vmem:[%s4 + $0x198] sm:$0xff]
        %v4665 = vld [vmem:[%s4 + $0x1a0] sm:$0xff]
        %v4666 = vld [vmem:[%s4 + $0x1a8] sm:$0xff]
        %v4667 = vld [vmem:[%s4 + $0x1b0] sm:$0xff]
        %v4668 = vld [vmem:[%s4 + $0x1b8] sm:$0xff]
        %v4669 = vld [vmem:[%s4 + $0x1c0] sm:$0xff]
        %v4670 = vld [vmem:[%s4 + $0x1c8] sm:$0xff]
        %v4671 = vld [vmem:[%s4 + $0x1d0] sm:$0xff]
        %v4672 = vld [vmem:[%s4 + $0x1d8] sm:$0xff]
        %v4673 = vld [vmem:[%s4 + $0x1e0] sm:$0xf]
        %v4674 = vld [vmem:[%s4 + $0x1e8] sm:$0xf]
        %v4675 = vld [vmem:[%s4 + $0x1f0] sm:$0xf]
        %v4676 = vld [vmem:[%s4 + $0x1f8] sm:$0xf]
        %vm4677 = vcmask 891904
        %v4679 = vsel %vm4677, %v4616, 0
        %v4682 = vsel %vm4677, %v4620, 0
        %v4685 = vsel %vm4677, %v4624, 0
        %v4688 = vsel %vm4677, %v4628, 0
        %v4691 = vsel %vm4677, %v4632, 0
        %v4694 = vsel %vm4677, %v4636, 0
        %v4697 = vsel %vm4677, %v4640, 0
        %v4700 = vsel %vm4677, %v4644, 0
        %v4703 = vsel %vm4677, %v4648, 0
        %v4706 = vsel %vm4677, %v4652, 0
        %v4709 = vsel %vm4677, %v4656, 0
        %v4712 = vsel %vm4677, %v4660, 0
        %v4715 = vsel %vm4677, %v4664, 0
        %v4718 = vsel %vm4677, %v4668, 0
        %v4721 = vsel %vm4677, %v4672, 0
        %v4724 = vsel %vm4677, %v4676, 0
        %vm4726 = vcmask 1044480
        %v4728 = vsel %vm4726, %v4612, 0
        %4730 = vmatprep.subr.mxu0 0.0
        %4731 = vmatpush1.msra.mxu0 %v4551
        %4732 = vmatprep.subr.mxu0 0.0
        %4733 = vmatpush1.msra.mxu0 %v4552
        %4734 = vmatprep.subr.mxu0 0.0
        %4735 = vmatpush1.msra.mxu0 %v4553
        %4736 = vmatprep.subr.mxu0 0.0
        %4737 = vmatpush1.msra.mxu0 %v4554
        %4738 = vmatprep.subr.mxu0 0.0
        %4739 = vmatpush1.msra.mxu0 %v4555
        %4740 = vmatprep.subr.mxu0 0.0
        %4741 = vmatpush1.msra.mxu0 %v4556
        %4742 = vmatprep.subr.mxu0 0.0
        %4743 = vmatpush1.msra.mxu0 %v4557
        %4744 = vmatprep.subr.mxu0 0.0
        %4745 = vmatpush1.msra.mxu0 %v4558
        %4746 = vmatprep.subr.mxu0 0.0
        %4747 = vmatpush1.msra.mxu0 %v4559
        %4748 = vmatprep.subr.mxu0 0.0
        %4749 = vmatpush1.msra.mxu0 %v4560
        %4750 = vmatprep.subr.mxu0 0.0
        %4751 = vmatpush1.msra.mxu0 %v4561
        %4752 = vmatprep.subr.mxu0 0.0
        %4753 = vmatpush1.msra.mxu0 %v4562
        %4754 = vmatprep.subr.mxu0 0.0
        %4755 = vmatpush1.msra.mxu0 %v4563
        %4756 = vmatprep.subr.mxu0 0.0
        %4757 = vmatpush1.msra.mxu0 %v4564
        %4758 = vmatprep.subr.mxu0 0.0
        %4759 = vmatpush1.msra.mxu0 %v4565
        %4760 = vmatprep.subr.mxu0 0.0
        %4761 = vmatpush1.msra.mxu0 %v4566
        %4762 = vmatprep.subr.mxu0 0.0
        %4763 = vmatpush1.msra.mxu0 %v4567
        %4764 = vmatprep.subr.mxu0 0.0
        %4765 = vmatpush1.msra.mxu0 %v4568
        %4766 = vmatprep.subr.mxu0 0.0
        %4767 = vmatpush1.msra.mxu0 %v4569
        %4768 = vmatprep.subr.mxu0 0.0
        %4769 = vmatpush1.msra.mxu0 %v4570
        %4770 = vmatprep.subr.mxu0 0.0
        %4771 = vmatpush1.msra.mxu0 %v4571
        %4772 = vmatprep.subr.mxu0 0.0
        %4773 = vmatpush1.msra.mxu0 %v4572
        %4774 = vmatprep.subr.mxu0 0.0
        %4775 = vmatpush1.msra.mxu0 %v4573
        %4776 = vmatprep.subr.mxu0 0.0
        %4777 = vmatpush1.msra.mxu0 %v4574
        %4778 = vmatprep.subr.mxu0 0.0
        %4779 = vmatpush1.msra.mxu0 %v4575
        %4780 = vmatprep.subr.mxu0 0.0
        %4781 = vmatpush1.msra.mxu0 %v4576
        %4782 = vmatprep.subr.mxu0 0.0
        %4783 = vmatpush1.msra.mxu0 %v4577
        %4784 = vmatprep.subr.mxu0 0.0
        %4785 = vmatpush1.msra.mxu0 %v4578
        %4786 = vmatprep.subr.mxu0 0.0
        %4787 = vmatpush1.msra.mxu0 %v4579
        %4788 = vmatprep.subr.mxu0 0.0
        %4789 = vmatpush1.msra.mxu0 %v4580
        %4790 = vmatprep.subr.mxu0 0.0
        %4791 = vmatpush1.msra.mxu0 %v4581
        %4792 = vmatprep.subr.mxu0 0.0
        %4793 = vmatpush1.msra.mxu0 %v4582
        %4794 = vmatprep.mubr.f32.mxu0 %v4614
        %4795 = vmatmul.mubr.f32.gmra.mrb[0].mxu0 %v4613
        %v4796 = vpop.f32.mrb[0].mxu0
        %v4797 = vadd.f32 0.0, %v4796
        %v4798 = vpop.f32.mrb[0].mxu0
        %4799 = vmatprep.mubr.f32.mxu0 %v4618
        %4800 = vmatmul.mubr.f32.gmra.mrb[0].mxu0 %v4617
        %v4801 = vpop.f32.mrb[0].mxu0
        %v4802 = vadd.f32 0.0, %v4801
        %v4803 = vpop.f32.mrb[0].mxu0
        %4804 = vmatprep.mubr.f32.mxu0 %v4622
        %4805 = vmatmul.mubr.f32.gmra.mrb[0].mxu0 %v4621
        %v4806 = vpop.f32.mrb[0].mxu0
        %v4807 = vadd.f32 0.0, %v4806
        %v4808 = vpop.f32.mrb[0].mxu0
        %4809 = vmatprep.mubr.f32.mxu0 %v4626
        %4810 = vmatmul.mubr.f32.gmra.mrb[0].mxu0 %v4625
        %v4811 = vpop.f32.mrb[0].mxu0
        %v4812 = vadd.f32 0.0, %v4811
        %v4813 = vpop.f32.mrb[0].mxu0
        %4814 = vmatprep.mubr.f32.mxu0 %v4630
        %4815 = vmatmul.mubr.f32.gmra.mrb[0].mxu0 %v4629
        %v4816 = vpop.f32.mrb[0].mxu0
        %v4817 = vadd.f32 0.0, %v4816
        %v4818 = vpop.f32.mrb[0].mxu0
        %4819 = vmatprep.mubr.f32.mxu0 %v4634
        %4820 = vmatmul.mubr.f32.gmra.mrb[0].mxu0 %v4633
        %v4821 = vpop.f32.mrb[0].mxu0
        %v4822 = vadd.f32 0.0, %v4821
        %v4823 = vpop.f32.mrb[0].mxu0
        %4824 = vmatprep.mubr.f32.mxu0 %v4638
        %4825 = vmatmul.mubr.f32.gmra.mrb[0].mxu0 %v4637
        %v4826 = vpop.f32.mrb[0].mxu0
        %v4827 = vadd.f32 0.0, %v4826
        %v4828 = vpop.f32.mrb[0].mxu0
        %4829 = vmatprep.mubr.f32.mxu0 %v4642
        %4830 = vmatmul.mubr.f32.gmra.mrb[0].mxu0 %v4641
        %v4831 = vpop.f32.mrb[0].mxu0
        %v4832 = vadd.f32 0.0, %v4831
        %v4833 = vpop.f32.mrb[0].mxu0
        %4834 = vmatprep.mubr.f32.mxu0 %v4646
        %4835 = vmatmul.mubr.f32.gmra.mrb[0].mxu0 %v4645
        %v4836 = vpop.f32.mrb[0].mxu0
        %v4837 = vadd.f32 0.0, %v4836
        %v4838 = vpop.f32.mrb[0].mxu0
        %4839 = vmatprep.mubr.f32.mxu0 %v4650
        %4840 = vmatmul.mubr.f32.gmra.mrb[0].mxu0 %v4649
        %v4841 = vpop.f32.mrb[0].mxu0
        %v4842 = vadd.f32 0.0, %v4841
        %v4843 = vpop.f32.mrb[0].mxu0
        %4844 = vmatprep.mubr.f32.mxu0 %v4654
        %4845 = vmatmul.mubr.f32.gmra.mrb[0].mxu0 %v4653
        %v4846 = vpop.f32.mrb[0].mxu0
        %v4847 = vadd.f32 0.0, %v4846
        %v4848 = vpop.f32.mrb[0].mxu0
        %4849 = vmatprep.mubr.f32.mxu0 %v4658
        %4850 = vmatmul.mubr.f32.gmra.mrb[0].mxu0 %v4657
        %v4851 = vpop.f32.mrb[0].mxu0
        %v4852 = vadd.f32 0.0, %v4851
        %v4853 = vpop.f32.mrb[0].mxu0
        %4854 = vmatprep.mubr.f32.mxu0 %v4662
        %4855 = vmatmul.mubr.f32.gmra.mrb[0].mxu0 %v4661
        %v4856 = vpop.f32.mrb[0].mxu0
        %v4857 = vadd.f32 0.0, %v4856
        %v4858 = vpop.f32.mrb[0].mxu0
        %4859 = vmatprep.mubr.f32.mxu0 %v4666
        %4860 = vmatmul.mubr.f32.gmra.mrb[0].mxu0 %v4665
        %v4861 = vpop.f32.mrb[0].mxu0
        %v4862 = vadd.f32 0.0, %v4861
        %v4863 = vpop.f32.mrb[0].mxu0
        %4864 = vmatprep.mubr.f32.mxu0 %v4670
        %4865 = vmatmul.mubr.f32.gmra.mrb[0].mxu0 %v4669
        %v4866 = vpop.f32.mrb[0].mxu0
        %v4867 = vadd.f32 0.0, %v4866
        %v4868 = vpop.f32.mrb[0].mxu0
        %4869 = vmatprep.mubr.f32.mxu0 %v4674
        %4870 = vmatmul.mubr.f32.gmra.mrb[0].mxu0 %v4673
        %v4871 = vpop.f32.mrb[0].mxu0
        %v4872 = vadd.f32 0.0, %v4871
        %v4873 = vpop.f32.mrb[0].mxu0
        %4874 = vdwg.mxu0
        %4875 = vmatprep.subr.mxu0 0.0
        %4876 = vmatpush1.msra.mxu0 %v4583
        %4877 = vmatprep.subr.mxu0 0.0
        %4878 = vmatpush1.msra.mxu0 %v4584
        %4879 = vmatprep.subr.mxu0 0.0
        %4880 = vmatpush1.msra.mxu0 %v4585
        %4881 = vmatprep.subr.mxu0 0.0
        %4882 = vmatpush1.msra.mxu0 %v4586
        %4883 = vmatprep.subr.mxu0 0.0
        %4884 = vmatpush1.msra.mxu0 %v4587
        %4885 = vmatprep.subr.mxu0 0.0
        %4886 = vmatpush1.msra.mxu0 %v4588
        %4887 = vmatprep.subr.mxu0 0.0
        %4888 = vmatpush1.msra.mxu0 %v4589
        %4889 = vmatprep.subr.mxu0 0.0
        %4890 = vmatpush1.msra.mxu0 %v4590
        %4891 = vmatprep.subr.mxu0 0.0
        %4892 = vmatpush1.msra.mxu0 %v4591
        %4893 = vmatprep.subr.mxu0 0.0
        %4894 = vmatpush1.msra.mxu0 %v4592
        %4895 = vmatprep.subr.mxu0 0.0
        %4896 = vmatpush1.msra.mxu0 %v4593
        %4897 = vmatprep.subr.mxu0 0.0
        %4898 = vmatpush1.msra.mxu0 %v4594
        %4899 = vmatprep.subr.mxu0 0.0
        %4900 = vmatpush1.msra.mxu0 %v4595
        %4901 = vmatprep.subr.mxu0 0.0
        %4902 = vmatpush1.msra.mxu0 %v4596
        %4903 = vmatprep.subr.mxu0 0.0
        %4904 = vmatpush1.msra.mxu0 %v4597
        %4905 = vmatprep.subr.mxu0 0.0
        %4906 = vmatpush1.msra.mxu0 %v4598
        %4907 = vmatprep.subr.mxu0 0.0
        %4908 = vmatpush1.msra.mxu0 %v4599
        %4909 = vmatprep.subr.mxu0 0.0
        %4910 = vmatpush1.msra.mxu0 %v4600
        %4911 = vmatprep.subr.mxu0 0.0
        %4912 = vmatpush1.msra.mxu0 %v4601
        %4913 = vmatprep.subr.mxu0 0.0
        %4914 = vmatpush1.msra.mxu0 %v4602
        %4915 = vmatprep.subr.mxu0 0.0
        %4916 = vmatpush1.msra.mxu0 %v4603
        %4917 = vmatprep.subr.mxu0 0.0
        %4918 = vmatpush1.msra.mxu0 %v4604
        %4919 = vmatprep.subr.mxu0 0.0
        %4920 = vmatpush1.msra.mxu0 %v4605
        %4921 = vmatprep.subr.mxu0 0.0
        %4922 = vmatpush1.msra.mxu0 %v4606
        %4923 = vmatprep.subr.mxu0 0.0
        %4924 = vmatpush1.msra.mxu0 %v4607
        %4925 = vmatprep.subr.mxu0 0.0
        %4926 = vmatpush1.msra.mxu0 %v4608
        %4927 = vmatprep.subr.mxu0 0.0
        %4928 = vmatpush1.msra.mxu0 %v4609
        %4929 = vmatprep.subr.mxu0 0.0
        %4930 = vmatpush1.msra.mxu0 %v4610
        %4931 = vmatprep.subr.mxu0 0.0
        %4932 = vmatpush1.msra.mxu0 %v4611
        %4933 = vmatprep.subr.mxu0 0.0
        %4934 = vmatpush1.msra.mxu0 %v4728
        %4935 = vmatprep.subr.mxu0 0.0
        %4936 = vmatpush1.msra.mxu0 0.0
        %4937 = vmatprep.subr.mxu0 0.0
        %4938 = vmatpush1.msra.mxu0 0.0
        %4939 = vmatprep.mubr.f32.mxu0 %v4679
        %4940 = vmatmul.mubr.f32.gmra.mrb[0].mxu0 %v4615
        %v4941 = vpop.f32.mrb[0].mxu0
        %v4942 = vadd.f32 %v4797, %v4941
        %v4943 = vpop.f32.mrb[0].mxu0
        %4944 = vmatprep.mubr.f32.mxu0 %v4682
        %4945 = vmatmul.mubr.f32.gmra.mrb[0].mxu0 %v4619
        %v4946 = vpop.f32.mrb[0].mxu0
        %v4947 = vadd.f32 %v4802, %v4946
        %v4948 = vpop.f32.mrb[0].mxu0
        %4949 = vmatprep.mubr.f32.mxu0 %v4685
        %4950 = vmatmul.mubr.f32.gmra.mrb[0].mxu0 %v4623
        %v4951 = vpop.f32.mrb[0].mxu0
        %v4952 = vadd.f32 %v4807, %v4951
        %v4953 = vpop.f32.mrb[0].mxu0
        %4954 = vmatprep.mubr.f32.mxu0 %v4688
        %4955 = vmatmul.mubr.f32.gmra.mrb[0].mxu0 %v4627
        %v4956 = vpop.f32.mrb[0].mxu0
        %v4957 = vadd.f32 %v4812, %v4956
        %v4958 = vpop.f32.mrb[0].mxu0
        %4959 = vmatprep.mubr.f32.mxu0 %v4691
        %4960 = vmatmul.mubr.f32.gmra.mrb[0].mxu0 %v4631
        %v4961 = vpop.f32.mrb[0].mxu0
        %v4962 = vadd.f32 %v4817, %v4961
        %v4963 = vpop.f32.mrb[0].mxu0
        %4964 = vmatprep.mubr.f32.mxu0 %v4694
        %4965 = vmatmul.mubr.f32.gmra.mrb[0].mxu0 %v4635
        %v4966 = vpop.f32.mrb[0].mxu0
        %v4967 = vadd.f32 %v4822, %v4966
        %v4968 = vpop.f32.mrb[0].mxu0
        %4969 = vmatprep.mubr.f32.mxu0 %v4697
        %4970 = vmatmul.mubr.f32.gmra.mrb[0].mxu0 %v4639
        %v4971 = vpop.f32.mrb[0].mxu0
        %v4972 = vadd.f32 %v4827, %v4971
        %v4973 = vpop.f32.mrb[0].mxu0
        %4974 = vmatprep.mubr.f32.mxu0 %v4700
        %4975 = vmatmul.mubr.f32.gmra.mrb[0].mxu0 %v4643
        %v4976 = vpop.f32.mrb[0].mxu0
        %v4977 = vadd.f32 %v4832, %v4976
        %v4978 = vpop.f32.mrb[0].mxu0
        %4979 = vmatprep.mubr.f32.mxu0 %v4703
        %4980 = vmatmul.mubr.f32.gmra.mrb[0].mxu0 %v4647
        %v4981 = vpop.f32.mrb[0].mxu0
        %v4982 = vadd.f32 %v4837, %v4981
        %v4983 = vpop.f32.mrb[0].mxu0
        %4984 = vmatprep.mubr.f32.mxu0 %v4706
        %4985 = vmatmul.mubr.f32.gmra.mrb[0].mxu0 %v4651
        %v4986 = vpop.f32.mrb[0].mxu0
        %v4987 = vadd.f32 %v4842, %v4986
        %v4988 = vpop.f32.mrb[0].mxu0
        %4989 = vmatprep.mubr.f32.mxu0 %v4709
        %4990 = vmatmul.mubr.f32.gmra.mrb[0].mxu0 %v4655
        %v4991 = vpop.f32.mrb[0].mxu0
        %v4992 = vadd.f32 %v4847, %v4991
        %v4993 = vpop.f32.mrb[0].mxu0
        %4994 = vmatprep.mubr.f32.mxu0 %v4712
        %4995 = vmatmul.mubr.f32.gmra.mrb[0].mxu0 %v4659
        %v4996 = vpop.f32.mrb[0].mxu0
        %v4997 = vadd.f32 %v4852, %v4996
        %v4998 = vpop.f32.mrb[0].mxu0
        %4999 = vmatprep.mubr.f32.mxu0 %v4715
        %5000 = vmatmul.mubr.f32.gmra.mrb[0].mxu0 %v4663
        %v5001 = vpop.f32.mrb[0].mxu0
        %v5002 = vadd.f32 %v4857, %v5001
        %v5003 = vpop.f32.mrb[0].mxu0
        %5004 = vmatprep.mubr.f32.mxu0 %v4718
        %5005 = vmatmul.mubr.f32.gmra.mrb[0].mxu0 %v4667
        %v5006 = vpop.f32.mrb[0].mxu0
        %v5007 = vadd.f32 %v4862, %v5006
        %v5008 = vpop.f32.mrb[0].mxu0
        %5009 = vmatprep.mubr.f32.mxu0 %v4721
        %5010 = vmatmul.mubr.f32.gmra.mrb[0].mxu0 %v4671
        %v5011 = vpop.f32.mrb[0].mxu0
        %v5012 = vadd.f32 %v4867, %v5011
        %v5013 = vpop.f32.mrb[0].mxu0
        %5014 = vmatprep.mubr.f32.mxu0 %v4724
        %5015 = vmatmul.mubr.f32.gmra.mrb[0].mxu0 %v4675
        %v5016 = vpop.f32.mrb[0].mxu0
        %v5017 = vadd.f32 %v4872, %v5016
        %v5018 = vpop.f32.mrb[0].mxu0
        %5019 = vdwg.mxu0
        %5020 = vst.msk [vmem:[#allocation6] sm:$0xff] %vm4116, %v4942
        %5021 = vst.msk [vmem:[#allocation6 + $0x8] sm:$0xff] %vm4116, %v4947
        %5022 = vst.msk [vmem:[#allocation6 + $0x10] sm:$0xff] %vm4116, %v4952
        %5023 = vst.msk [vmem:[#allocation6 + $0x18] sm:$0xff] %vm4116, %v4957
        %5024 = vst.msk [vmem:[#allocation6 + $0x20] sm:$0xff] %vm4116, %v4962
        %5025 = vst.msk [vmem:[#allocation6 + $0x28] sm:$0xff] %vm4116, %v4967
        %5026 = vst.msk [vmem:[#allocation6 + $0x30] sm:$0xff] %vm4116, %v4972
        %5027 = vst.msk [vmem:[#allocation6 + $0x38] sm:$0xff] %vm4116, %v4977
        %5028 = vst.msk [vmem:[#allocation6 + $0x40] sm:$0xff] %vm4116, %v4982
        %5029 = vst.msk [vmem:[#allocation6 + $0x48] sm:$0xff] %vm4116, %v4987
        %5030 = vst.msk [vmem:[#allocation6 + $0x50] sm:$0xff] %vm4116, %v4992
        %5031 = vst.msk [vmem:[#allocation6 + $0x58] sm:$0xff] %vm4116, %v4997
        %5032 = vst.msk [vmem:[#allocation6 + $0x60] sm:$0xff] %vm4116, %v5002
        %5033 = vst.msk [vmem:[#allocation6 + $0x68] sm:$0xff] %vm4116, %v5007
        %5034 = vst.msk [vmem:[#allocation6 + $0x70] sm:$0xff] %vm4116, %v5012
        %vm5035 = vcmask 257024
        %5036 = vst.msk [vmem:[#allocation6 + $0x78] sm:$0xf] %vm5035, %v5017
        %v5037 = vld [vmem:[#allocation6] sm:$0xff]
        %v5038 = vld [vmem:[#allocation6 + $0x8] sm:$0xff]
        %v5039 = vld [vmem:[#allocation6 + $0x10] sm:$0xff]
        %v5040 = vld [vmem:[#allocation6 + $0x18] sm:$0xff]
        %v5041 = vld [vmem:[#allocation6 + $0x20] sm:$0xff]
        %v5042 = vld [vmem:[#allocation6 + $0x28] sm:$0xff]
        %v5043 = vld [vmem:[#allocation6 + $0x30] sm:$0xff]
        %v5044 = vld [vmem:[#allocation6 + $0x38] sm:$0xff]
        %v5045 = vld [vmem:[#allocation6 + $0x40] sm:$0xff]
        %v5046 = vld [vmem:[#allocation6 + $0x48] sm:$0xff]
        %v5047 = vld [vmem:[#allocation6 + $0x50] sm:$0xff]
        %v5048 = vld [vmem:[#allocation6 + $0x58] sm:$0xff]
        %v5049 = vld [vmem:[#allocation6 + $0x60] sm:$0xff]
        %v5050 = vld [vmem:[#allocation6 + $0x68] sm:$0xff]
        %v5051 = vld [vmem:[#allocation6 + $0x70] sm:$0xff]
        %v5052 = vld [vmem:[#allocation6 + $0x78] sm:$0x3]
        %v5053 = vld [vmem:[%s5] sm:$0xff]
        %v5054 = vld [vmem:[%s5 + $0x8] sm:$0xff]
        %v5055 = vld [vmem:[%s5 + $0x10] sm:$0xff]
        %v5056 = vld [vmem:[%s5 + $0x18] sm:$0xff]
        %v5057 = vld [vmem:[#allocation6 + $0x1] sm:$0xff]
        %v5058 = vld [vmem:[#allocation6 + $0x9] sm:$0xff]
        %v5059 = vld [vmem:[#allocation6 + $0x11] sm:$0xff]
        %v5060 = vld [vmem:[#allocation6 + $0x19] sm:$0xff]
        %v5061 = vld [vmem:[#allocation6 + $0x21] sm:$0xff]
        %v5062 = vld [vmem:[#allocation6 + $0x29] sm:$0xff]
        %v5063 = vld [vmem:[#allocation6 + $0x31] sm:$0xff]
        %v5064 = vld [vmem:[#allocation6 + $0x39] sm:$0xff]
        %v5065 = vld [vmem:[#allocation6 + $0x41] sm:$0xff]
        %v5066 = vld [vmem:[#allocation6 + $0x49] sm:$0xff]
        %v5067 = vld [vmem:[#allocation6 + $0x51] sm:$0xff]
        %v5068 = vld [vmem:[#allocation6 + $0x59] sm:$0xff]
        %v5069 = vld [vmem:[#allocation6 + $0x61] sm:$0xff]
        %v5070 = vld [vmem:[#allocation6 + $0x69] sm:$0xff]
        %v5071 = vld [vmem:[#allocation6 + $0x71] sm:$0xff]
        %v5072 = vld [vmem:[#allocation6 + $0x79] sm:$0x3]
        %s5073 = scalar_lea.vmem %s5, 32
        %v5074 = vld [vmem:[%s5073] sm:$0xff]
        %v5075 = vld [vmem:[%s5073 + $0x8] sm:$0xff]
        %v5076 = vld [vmem:[%s5073 + $0x10] sm:$0xff]
        %v5077 = vld [vmem:[%s5073 + $0x18] sm:$0xff]
        %v5079 = vsel %vm4116, %v5057, 0
        %v5082 = vsel %vm4116, %v5058, 0
        %v5085 = vsel %vm4116, %v5059, 0
        %v5088 = vsel %vm4116, %v5060, 0
        %v5091 = vsel %vm4116, %v5061, 0
        %v5094 = vsel %vm4116, %v5062, 0
        %v5097 = vsel %vm4116, %v5063, 0
        %v5100 = vsel %vm4116, %v5064, 0
        %v5103 = vsel %vm4116, %v5065, 0
        %v5106 = vsel %vm4116, %v5066, 0
        %v5109 = vsel %vm4116, %v5067, 0
        %v5112 = vsel %vm4116, %v5068, 0
        %v5115 = vsel %vm4116, %v5069, 0
        %v5118 = vsel %vm4116, %v5070, 0
        %v5121 = vsel %vm4116, %v5071, 0
        %v5124 = vsel %vm4116, %v5072, 0
        %5126 = vmatprep.subr.mxu0 0.0
        %5127 = vmatpush1.msra.mxu0 %v5074
        %5128 = vmatprep.subr.mxu0 0.0
        %5129 = vmatpush1.msra.mxu0 %v5075
        %5130 = vmatprep.subr.mxu0 0.0
        %5131 = vmatpush1.msra.mxu0 %v5076
        %5132 = vmatprep.subr.mxu0 0.0
        %5133 = vmatpush1.msra.mxu0 %v5077
        %5134 = vmatprep.subr.mxu0 0.0
        %5135 = vmatpush1.msra.mxu0 0.0
        %5136 = vmatprep.subr.mxu0 0.0
        %5137 = vmatpush1.msra.mxu0 0.0
        %5138 = vmatprep.subr.mxu0 0.0
        %5139 = vmatpush1.msra.mxu0 0.0
        %5140 = vmatprep.subr.mxu0 0.0
        %5141 = vmatpush1.msra.mxu0 0.0
        %5142 = vmatprep.subr.mxu0 0.0
        %5143 = vmatpush1.msra.mxu0 0.0
        %5144 = vmatprep.subr.mxu0 0.0
        %5145 = vmatpush1.msra.mxu0 0.0
        %5146 = vmatprep.subr.mxu0 0.0
        %5147 = vmatpush1.msra.mxu0 0.0
        %5148 = vmatprep.subr.mxu0 0.0
        %5149 = vmatpush1.msra.mxu0 0.0
        %5150 = vmatprep.subr.mxu0 0.0
        %5151 = vmatpush1.msra.mxu0 0.0
        %5152 = vmatprep.subr.mxu0 0.0
        %5153 = vmatpush1.msra.mxu0 0.0
        %5154 = vmatprep.subr.mxu0 0.0
        %5155 = vmatpush1.msra.mxu0 0.0
        %5156 = vmatprep.subr.mxu0 0.0
        %5157 = vmatpush1.msra.mxu0 0.0
        %5158 = vmatprep.subr.mxu0 0.0
        %5159 = vmatpush1.msra.mxu0 0.0
        %5160 = vmatprep.subr.mxu0 0.0
        %5161 = vmatpush1.msra.mxu0 0.0
        %5162 = vmatprep.subr.mxu0 0.0
        %5163 = vmatpush1.msra.mxu0 0.0
        %5164 = vmatprep.subr.mxu0 0.0
        %5165 = vmatpush1.msra.mxu0 0.0
        %5166 = vmatprep.subr.mxu0 0.0
        %5167 = vmatpush1.msra.mxu0 0.0
        %5168 = vmatprep.subr.mxu0 0.0
        %5169 = vmatpush1.msra.mxu0 0.0
        %5170 = vmatprep.subr.mxu0 0.0
        %5171 = vmatpush1.msra.mxu0 0.0
        %5172 = vmatprep.subr.mxu0 0.0
        %5173 = vmatpush1.msra.mxu0 0.0
        %5174 = vmatprep.subr.mxu0 0.0
        %5175 = vmatpush1.msra.mxu0 0.0
        %5176 = vmatprep.subr.mxu0 0.0
        %5177 = vmatpush1.msra.mxu0 0.0
        %5178 = vmatprep.subr.mxu0 0.0
        %5179 = vmatpush1.msra.mxu0 0.0
        %5180 = vmatprep.subr.mxu0 0.0
        %5181 = vmatpush1.msra.mxu0 0.0
        %5182 = vmatprep.subr.mxu0 0.0
        %5183 = vmatpush1.msra.mxu0 0.0
        %5184 = vmatprep.subr.mxu0 0.0
        %5185 = vmatpush1.msra.mxu0 0.0
        %5186 = vmatprep.subr.mxu0 0.0
        %5187 = vmatpush1.msra.mxu0 0.0
        %5188 = vmatprep.subr.mxu0 0.0
        %5189 = vmatpush1.msra.mxu0 0.0
        %5190 = vmatprep.mubr.f32.mxu0 0.0
        %5191 = vmatmul.mubr.f32.gmra.mrb[0].mxu0 %v5079
        %v5192 = vpop.f32.mrb[0].mxu0
        %v5193 = vadd.f32 0.0, %v5192
        %v5194 = vpop.f32.mrb[0].mxu0
        %5195 = vmatprep.mubr.f32.mxu0 0.0
        %5196 = vmatmul.mubr.f32.gmra.mrb[0].mxu0 %v5082
        %v5197 = vpop.f32.mrb[0].mxu0
        %v5198 = vadd.f32 0.0, %v5197
        %v5199 = vpop.f32.mrb[0].mxu0
        %5200 = vmatprep.mubr.f32.mxu0 0.0
        %5201 = vmatmul.mubr.f32.gmra.mrb[0].mxu0 %v5085
        %v5202 = vpop.f32.mrb[0].mxu0
        %v5203 = vadd.f32 0.0, %v5202
        %v5204 = vpop.f32.mrb[0].mxu0
        %5205 = vmatprep.mubr.f32.mxu0 0.0
        %5206 = vmatmul.mubr.f32.gmra.mrb[0].mxu0 %v5088
        %v5207 = vpop.f32.mrb[0].mxu0
        %v5208 = vadd.f32 0.0, %v5207
        %v5209 = vpop.f32.mrb[0].mxu0
        %5210 = vmatprep.mubr.f32.mxu0 0.0
        %5211 = vmatmul.mubr.f32.gmra.mrb[0].mxu0 %v5091
        %v5212 = vpop.f32.mrb[0].mxu0
        %v5213 = vadd.f32 0.0, %v5212
        %v5214 = vpop.f32.mrb[0].mxu0
        %5215 = vmatprep.mubr.f32.mxu0 0.0
        %5216 = vmatmul.mubr.f32.gmra.mrb[0].mxu0 %v5094
        %v5217 = vpop.f32.mrb[0].mxu0
        %v5218 = vadd.f32 0.0, %v5217
        %v5219 = vpop.f32.mrb[0].mxu0
        %5220 = vmatprep.mubr.f32.mxu0 0.0
        %5221 = vmatmul.mubr.f32.gmra.mrb[0].mxu0 %v5097
        %v5222 = vpop.f32.mrb[0].mxu0
        %v5223 = vadd.f32 0.0, %v5222
        %v5224 = vpop.f32.mrb[0].mxu0
        %5225 = vmatprep.mubr.f32.mxu0 0.0
        %5226 = vmatmul.mubr.f32.gmra.mrb[0].mxu0 %v5100
        %v5227 = vpop.f32.mrb[0].mxu0
        %v5228 = vadd.f32 0.0, %v5227
        %v5229 = vpop.f32.mrb[0].mxu0
        %5230 = vmatprep.mubr.f32.mxu0 0.0
        %5231 = vmatmul.mubr.f32.gmra.mrb[0].mxu0 %v5103
        %v5232 = vpop.f32.mrb[0].mxu0
        %v5233 = vadd.f32 0.0, %v5232
        %v5234 = vpop.f32.mrb[0].mxu0
        %5235 = vmatprep.mubr.f32.mxu0 0.0
        %5236 = vmatmul.mubr.f32.gmra.mrb[0].mxu0 %v5106
        %v5237 = vpop.f32.mrb[0].mxu0
        %v5238 = vadd.f32 0.0, %v5237
        %v5239 = vpop.f32.mrb[0].mxu0
        %5240 = vmatprep.mubr.f32.mxu0 0.0
        %5241 = vmatmul.mubr.f32.gmra.mrb[0].mxu0 %v5109
        %v5242 = vpop.f32.mrb[0].mxu0
        %v5243 = vadd.f32 0.0, %v5242
        %v5244 = vpop.f32.mrb[0].mxu0
        %5245 = vmatprep.mubr.f32.mxu0 0.0
        %5246 = vmatmul.mubr.f32.gmra.mrb[0].mxu0 %v5112
        %v5247 = vpop.f32.mrb[0].mxu0
        %v5248 = vadd.f32 0.0, %v5247
        %v5249 = vpop.f32.mrb[0].mxu0
        %5250 = vmatprep.mubr.f32.mxu0 0.0
        %5251 = vmatmul.mubr.f32.gmra.mrb[0].mxu0 %v5115
        %v5252 = vpop.f32.mrb[0].mxu0
        %v5253 = vadd.f32 0.0, %v5252
        %v5254 = vpop.f32.mrb[0].mxu0
        %5255 = vmatprep.mubr.f32.mxu0 0.0
        %5256 = vmatmul.mubr.f32.gmra.mrb[0].mxu0 %v5118
        %v5257 = vpop.f32.mrb[0].mxu0
        %v5258 = vadd.f32 0.0, %v5257
        %v5259 = vpop.f32.mrb[0].mxu0
        %5260 = vmatprep.mubr.f32.mxu0 0.0
        %5261 = vmatmul.mubr.f32.gmra.mrb[0].mxu0 %v5121
        %v5262 = vpop.f32.mrb[0].mxu0
        %v5263 = vadd.f32 0.0, %v5262
        %v5264 = vpop.f32.mrb[0].mxu0
        %5265 = vmatprep.mubr.f32.mxu0 0.0
        %5266 = vmatmul.mubr.f32.gmra.mrb[0].mxu0 %v5124
        %v5267 = vpop.f32.mrb[0].mxu0
        %v5268 = vadd.f32 0.0, %v5267
        %v5269 = vpop.f32.mrb[0].mxu0
        %5270 = vdwg.mxu0
        %v5272 = vsel %vm4116, %v5037, 0
        %v5275 = vsel %vm4116, %v5038, 0
        %v5278 = vsel %vm4116, %v5039, 0
        %v5281 = vsel %vm4116, %v5040, 0
        %v5284 = vsel %vm4116, %v5041, 0
        %v5287 = vsel %vm4116, %v5042, 0
        %v5290 = vsel %vm4116, %v5043, 0
        %v5293 = vsel %vm4116, %v5044, 0
        %v5296 = vsel %vm4116, %v5045, 0
        %v5299 = vsel %vm4116, %v5046, 0
        %v5302 = vsel %vm4116, %v5047, 0
        %v5305 = vsel %vm4116, %v5048, 0
        %v5308 = vsel %vm4116, %v5049, 0
        %v5311 = vsel %vm4116, %v5050, 0
        %v5314 = vsel %vm4116, %v5051, 0
        %v5317 = vsel %vm4116, %v5052, 0
        %5319 = vmatprep.subr.mxu0 0.0
        %5320 = vmatpush1.msra.mxu0 %v5053
        %5321 = vmatprep.subr.mxu0 0.0
        %5322 = vmatpush1.msra.mxu0 %v5054
        %5323 = vmatprep.subr.mxu0 0.0
        %5324 = vmatpush1.msra.mxu0 %v5055
        %5325 = vmatprep.subr.mxu0 0.0
        %5326 = vmatpush1.msra.mxu0 %v5056
        %5327 = vmatprep.subr.mxu0 0.0
        %5328 = vmatpush1.msra.mxu0 0.0
        %5329 = vmatprep.subr.mxu0 0.0
        %5330 = vmatpush1.msra.mxu0 0.0
        %5331 = vmatprep.subr.mxu0 0.0
        %5332 = vmatpush1.msra.mxu0 0.0
        %5333 = vmatprep.subr.mxu0 0.0
        %5334 = vmatpush1.msra.mxu0 0.0
        %5335 = vmatprep.subr.mxu0 0.0
        %5336 = vmatpush1.msra.mxu0 0.0
        %5337 = vmatprep.subr.mxu0 0.0
        %5338 = vmatpush1.msra.mxu0 0.0
        %5339 = vmatprep.subr.mxu0 0.0
        %5340 = vmatpush1.msra.mxu0 0.0
        %5341 = vmatprep.subr.mxu0 0.0
        %5342 = vmatpush1.msra.mxu0 0.0
        %5343 = vmatprep.subr.mxu0 0.0
        %5344 = vmatpush1.msra.mxu0 0.0
        %5345 = vmatprep.subr.mxu0 0.0
        %5346 = vmatpush1.msra.mxu0 0.0
        %5347 = vmatprep.subr.mxu0 0.0
        %5348 = vmatpush1.msra.mxu0 0.0
        %5349 = vmatprep.subr.mxu0 0.0
        %5350 = vmatpush1.msra.mxu0 0.0
        %5351 = vmatprep.subr.mxu0 0.0
        %5352 = vmatpush1.msra.mxu0 0.0
        %5353 = vmatprep.subr.mxu0 0.0
        %5354 = vmatpush1.msra.mxu0 0.0
        %5355 = vmatprep.subr.mxu0 0.0
        %5356 = vmatpush1.msra.mxu0 0.0
        %5357 = vmatprep.subr.mxu0 0.0
        %5358 = vmatpush1.msra.mxu0 0.0
        %5359 = vmatprep.subr.mxu0 0.0
        %5360 = vmatpush1.msra.mxu0 0.0
        %5361 = vmatprep.subr.mxu0 0.0
        %5362 = vmatpush1.msra.mxu0 0.0
        %5363 = vmatprep.subr.mxu0 0.0
        %5364 = vmatpush1.msra.mxu0 0.0
        %5365 = vmatprep.subr.mxu0 0.0
        %5366 = vmatpush1.msra.mxu0 0.0
        %5367 = vmatprep.subr.mxu0 0.0
        %5368 = vmatpush1.msra.mxu0 0.0
        %5369 = vmatprep.subr.mxu0 0.0
        %5370 = vmatpush1.msra.mxu0 0.0
        %5371 = vmatprep.subr.mxu0 0.0
        %5372 = vmatpush1.msra.mxu0 0.0
        %5373 = vmatprep.subr.mxu0 0.0
        %5374 = vmatpush1.msra.mxu0 0.0
        %5375 = vmatprep.subr.mxu0 0.0
        %5376 = vmatpush1.msra.mxu0 0.0
        %5377 = vmatprep.subr.mxu0 0.0
        %5378 = vmatpush1.msra.mxu0 0.0
        %5379 = vmatprep.subr.mxu0 0.0
        %5380 = vmatpush1.msra.mxu0 0.0
        %5381 = vmatprep.subr.mxu0 0.0
        %5382 = vmatpush1.msra.mxu0 0.0
        %5383 = vmatprep.mubr.f32.mxu0 0.0
        %5384 = vmatmul.mubr.f32.gmra.mrb[0].mxu0 %v5272
        %v5385 = vpop.f32.mrb[0].mxu0
        %v5386 = vadd.f32 %v5193, %v5385
        %v5387 = vpop.f32.mrb[0].mxu0
        %5388 = vmatprep.mubr.f32.mxu0 0.0
        %5389 = vmatmul.mubr.f32.gmra.mrb[0].mxu0 %v5275
        %v5390 = vpop.f32.mrb[0].mxu0
        %v5391 = vadd.f32 %v5198, %v5390
        %v5392 = vpop.f32.mrb[0].mxu0
        %5393 = vmatprep.mubr.f32.mxu0 0.0
        %5394 = vmatmul.mubr.f32.gmra.mrb[0].mxu0 %v5278
        %v5395 = vpop.f32.mrb[0].mxu0
        %v5396 = vadd.f32 %v5203, %v5395
        %v5397 = vpop.f32.mrb[0].mxu0
        %5398 = vmatprep.mubr.f32.mxu0 0.0
        %5399 = vmatmul.mubr.f32.gmra.mrb[0].mxu0 %v5281
        %v5400 = vpop.f32.mrb[0].mxu0
        %v5401 = vadd.f32 %v5208, %v5400
        %v5402 = vpop.f32.mrb[0].mxu0
        %5403 = vmatprep.mubr.f32.mxu0 0.0
        %5404 = vmatmul.mubr.f32.gmra.mrb[0].mxu0 %v5284
        %v5405 = vpop.f32.mrb[0].mxu0
        %v5406 = vadd.f32 %v5213, %v5405
        %v5407 = vpop.f32.mrb[0].mxu0
        %5408 = vmatprep.mubr.f32.mxu0 0.0
        %5409 = vmatmul.mubr.f32.gmra.mrb[0].mxu0 %v5287
        %v5410 = vpop.f32.mrb[0].mxu0
        %v5411 = vadd.f32 %v5218, %v5410
        %v5412 = vpop.f32.mrb[0].mxu0
        %5413 = vmatprep.mubr.f32.mxu0 0.0
        %5414 = vmatmul.mubr.f32.gmra.mrb[0].mxu0 %v5290
        %v5415 = vpop.f32.mrb[0].mxu0
        %v5416 = vadd.f32 %v5223, %v5415
        %v5417 = vpop.f32.mrb[0].mxu0
        %5418 = vmatprep.mubr.f32.mxu0 0.0
        %5419 = vmatmul.mubr.f32.gmra.mrb[0].mxu0 %v5293
        %v5420 = vpop.f32.mrb[0].mxu0
        %v5421 = vadd.f32 %v5228, %v5420
        %v5422 = vpop.f32.mrb[0].mxu0
        %5423 = vmatprep.mubr.f32.mxu0 0.0
        %5424 = vmatmul.mubr.f32.gmra.mrb[0].mxu0 %v5296
        %v5425 = vpop.f32.mrb[0].mxu0
        %v5426 = vadd.f32 %v5233, %v5425
        %v5427 = vpop.f32.mrb[0].mxu0
        %5428 = vmatprep.mubr.f32.mxu0 0.0
        %5429 = vmatmul.mubr.f32.gmra.mrb[0].mxu0 %v5299
        %v5430 = vpop.f32.mrb[0].mxu0
        %v5431 = vadd.f32 %v5238, %v5430
        %v5432 = vpop.f32.mrb[0].mxu0
        %5433 = vmatprep.mubr.f32.mxu0 0.0
        %5434 = vmatmul.mubr.f32.gmra.mrb[0].mxu0 %v5302
        %v5435 = vpop.f32.mrb[0].mxu0
        %v5436 = vadd.f32 %v5243, %v5435
        %v5437 = vpop.f32.mrb[0].mxu0
        %5438 = vmatprep.mubr.f32.mxu0 0.0
        %5439 = vmatmul.mubr.f32.gmra.mrb[0].mxu0 %v5305
        %v5440 = vpop.f32.mrb[0].mxu0
        %v5441 = vadd.f32 %v5248, %v5440
        %v5442 = vpop.f32.mrb[0].mxu0
        %5443 = vmatprep.mubr.f32.mxu0 0.0
        %5444 = vmatmul.mubr.f32.gmra.mrb[0].mxu0 %v5308
        %v5445 = vpop.f32.mrb[0].mxu0
        %v5446 = vadd.f32 %v5253, %v5445
        %v5447 = vpop.f32.mrb[0].mxu0
        %5448 = vmatprep.mubr.f32.mxu0 0.0
        %5449 = vmatmul.mubr.f32.gmra.mrb[0].mxu0 %v5311
        %v5450 = vpop.f32.mrb[0].mxu0
        %v5451 = vadd.f32 %v5258, %v5450
        %v5452 = vpop.f32.mrb[0].mxu0
        %5453 = vmatprep.mubr.f32.mxu0 0.0
        %5454 = vmatmul.mubr.f32.gmra.mrb[0].mxu0 %v5314
        %v5455 = vpop.f32.mrb[0].mxu0
        %v5456 = vadd.f32 %v5263, %v5455
        %v5457 = vpop.f32.mrb[0].mxu0
        %5458 = vmatprep.mubr.f32.mxu0 0.0
        %5459 = vmatmul.mubr.f32.gmra.mrb[0].mxu0 %v5317
        %v5460 = vpop.f32.mrb[0].mxu0
        %v5461 = vadd.f32 %v5268, %v5460
        %v5462 = vpop.f32.mrb[0].mxu0
        %5463 = vdwg.mxu0
        %v5464 = vld [vmem:[#allocation6 + $0x2] sm:$0xff]
        %v5465 = vld [vmem:[#allocation6 + $0xa] sm:$0xff]
        %v5466 = vld [vmem:[#allocation6 + $0x12] sm:$0xff]
        %v5467 = vld [vmem:[#allocation6 + $0x1a] sm:$0xff]
        %v5468 = vld [vmem:[#allocation6 + $0x22] sm:$0xff]
        %v5469 = vld [vmem:[#allocation6 + $0x2a] sm:$0xff]
        %v5470 = vld [vmem:[#allocation6 + $0x32] sm:$0xff]
        %v5471 = vld [vmem:[#allocation6 + $0x3a] sm:$0xff]
        %v5472 = vld [vmem:[#allocation6 + $0x42] sm:$0xff]
        %v5473 = vld [vmem:[#allocation6 + $0x4a] sm:$0xff]
        %v5474 = vld [vmem:[#allocation6 + $0x52] sm:$0xff]
        %v5475 = vld [vmem:[#allocation6 + $0x5a] sm:$0xff]
        %v5476 = vld [vmem:[#allocation6 + $0x62] sm:$0xff]
        %v5477 = vld [vmem:[#allocation6 + $0x6a] sm:$0xff]
        %v5478 = vld [vmem:[#allocation6 + $0x72] sm:$0xff]
        %v5479 = vld [vmem:[#allocation6 + $0x7a] sm:$0x3]
        %s5480 = scalar_lea.vmem %s5, 64
        %v5481 = vld [vmem:[%s5480] sm:$0xff]
        %v5482 = vld [vmem:[%s5480 + $0x8] sm:$0xff]
        %v5483 = vld [vmem:[%s5480 + $0x10] sm:$0xff]
        %v5484 = vld [vmem:[%s5480 + $0x18] sm:$0xff]
        %v5486 = vsel %vm4116, %v5464, 0
        %v5489 = vsel %vm4116, %v5465, 0
        %v5492 = vsel %vm4116, %v5466, 0
        %v5495 = vsel %vm4116, %v5467, 0
        %v5498 = vsel %vm4116, %v5468, 0
        %v5501 = vsel %vm4116, %v5469, 0
        %v5504 = vsel %vm4116, %v5470, 0
        %v5507 = vsel %vm4116, %v5471, 0
        %v5510 = vsel %vm4116, %v5472, 0
        %v5513 = vsel %vm4116, %v5473, 0
        %v5516 = vsel %vm4116, %v5474, 0
        %v5519 = vsel %vm4116, %v5475, 0
        %v5522 = vsel %vm4116, %v5476, 0
        %v5525 = vsel %vm4116, %v5477, 0
        %v5528 = vsel %vm4116, %v5478, 0
        %v5531 = vsel %vm4116, %v5479, 0
        %5533 = vmatprep.subr.mxu0 0.0
        %5534 = vmatpush1.msra.mxu0 %v5481
        %5535 = vmatprep.subr.mxu0 0.0
        %5536 = vmatpush1.msra.mxu0 %v5482
        %5537 = vmatprep.subr.mxu0 0.0
        %5538 = vmatpush1.msra.mxu0 %v5483
        %5539 = vmatprep.subr.mxu0 0.0
        %5540 = vmatpush1.msra.mxu0 %v5484
        %5541 = vmatprep.subr.mxu0 0.0
        %5542 = vmatpush1.msra.mxu0 0.0
        %5543 = vmatprep.subr.mxu0 0.0
        %5544 = vmatpush1.msra.mxu0 0.0
        %5545 = vmatprep.subr.mxu0 0.0
        %5546 = vmatpush1.msra.mxu0 0.0
        %5547 = vmatprep.subr.mxu0 0.0
        %5548 = vmatpush1.msra.mxu0 0.0
        %5549 = vmatprep.subr.mxu0 0.0
        %5550 = vmatpush1.msra.mxu0 0.0
        %5551 = vmatprep.subr.mxu0 0.0
        %5552 = vmatpush1.msra.mxu0 0.0
        %5553 = vmatprep.subr.mxu0 0.0
        %5554 = vmatpush1.msra.mxu0 0.0
        %5555 = vmatprep.subr.mxu0 0.0
        %5556 = vmatpush1.msra.mxu0 0.0
        %5557 = vmatprep.subr.mxu0 0.0
        %5558 = vmatpush1.msra.mxu0 0.0
        %5559 = vmatprep.subr.mxu0 0.0
        %5560 = vmatpush1.msra.mxu0 0.0
        %5561 = vmatprep.subr.mxu0 0.0
        %5562 = vmatpush1.msra.mxu0 0.0
        %5563 = vmatprep.subr.mxu0 0.0
        %5564 = vmatpush1.msra.mxu0 0.0
        %5565 = vmatprep.subr.mxu0 0.0
        %5566 = vmatpush1.msra.mxu0 0.0
        %5567 = vmatprep.subr.mxu0 0.0
        %5568 = vmatpush1.msra.mxu0 0.0
        %5569 = vmatprep.subr.mxu0 0.0
        %5570 = vmatpush1.msra.mxu0 0.0
        %5571 = vmatprep.subr.mxu0 0.0
        %5572 = vmatpush1.msra.mxu0 0.0
        %5573 = vmatprep.subr.mxu0 0.0
        %5574 = vmatpush1.msra.mxu0 0.0
        %5575 = vmatprep.subr.mxu0 0.0
        %5576 = vmatpush1.msra.mxu0 0.0
        %5577 = vmatprep.subr.mxu0 0.0
        %5578 = vmatpush1.msra.mxu0 0.0
        %5579 = vmatprep.subr.mxu0 0.0
        %5580 = vmatpush1.msra.mxu0 0.0
        %5581 = vmatprep.subr.mxu0 0.0
        %5582 = vmatpush1.msra.mxu0 0.0
        %5583 = vmatprep.subr.mxu0 0.0
        %5584 = vmatpush1.msra.mxu0 0.0
        %5585 = vmatprep.subr.mxu0 0.0
        %5586 = vmatpush1.msra.mxu0 0.0
        %5587 = vmatprep.subr.mxu0 0.0
        %5588 = vmatpush1.msra.mxu0 0.0
        %5589 = vmatprep.subr.mxu0 0.0
        %5590 = vmatpush1.msra.mxu0 0.0
        %5591 = vmatprep.subr.mxu0 0.0
        %5592 = vmatpush1.msra.mxu0 0.0
        %5593 = vmatprep.subr.mxu0 0.0
        %5594 = vmatpush1.msra.mxu0 0.0
        %5595 = vmatprep.subr.mxu0 0.0
        %5596 = vmatpush1.msra.mxu0 0.0
        %5597 = vmatprep.mubr.f32.mxu0 0.0
        %5598 = vmatmul.mubr.f32.gmra.mrb[0].mxu0 %v5486
        %v5599 = vpop.f32.mrb[0].mxu0
        %v5600 = vadd.f32 0.0, %v5599
        %v5601 = vpop.f32.mrb[0].mxu0
        %5602 = vmatprep.mubr.f32.mxu0 0.0
        %5603 = vmatmul.mubr.f32.gmra.mrb[0].mxu0 %v5489
        %v5604 = vpop.f32.mrb[0].mxu0
        %v5605 = vadd.f32 0.0, %v5604
        %v5606 = vpop.f32.mrb[0].mxu0
        %5607 = vmatprep.mubr.f32.mxu0 0.0
        %5608 = vmatmul.mubr.f32.gmra.mrb[0].mxu0 %v5492
        %v5609 = vpop.f32.mrb[0].mxu0
        %v5610 = vadd.f32 0.0, %v5609
        %v5611 = vpop.f32.mrb[0].mxu0
        %5612 = vmatprep.mubr.f32.mxu0 0.0
        %5613 = vmatmul.mubr.f32.gmra.mrb[0].mxu0 %v5495
        %v5614 = vpop.f32.mrb[0].mxu0
        %v5615 = vadd.f32 0.0, %v5614
        %v5616 = vpop.f32.mrb[0].mxu0
        %5617 = vmatprep.mubr.f32.mxu0 0.0
        %5618 = vmatmul.mubr.f32.gmra.mrb[0].mxu0 %v5498
        %v5619 = vpop.f32.mrb[0].mxu0
        %v5620 = vadd.f32 0.0, %v5619
        %v5621 = vpop.f32.mrb[0].mxu0
        %5622 = vmatprep.mubr.f32.mxu0 0.0
        %5623 = vmatmul.mubr.f32.gmra.mrb[0].mxu0 %v5501
        %v5624 = vpop.f32.mrb[0].mxu0
        %v5625 = vadd.f32 0.0, %v5624
        %v5626 = vpop.f32.mrb[0].mxu0
        %5627 = vmatprep.mubr.f32.mxu0 0.0
        %5628 = vmatmul.mubr.f32.gmra.mrb[0].mxu0 %v5504
        %v5629 = vpop.f32.mrb[0].mxu0
        %v5630 = vadd.f32 0.0, %v5629
        %v5631 = vpop.f32.mrb[0].mxu0
        %5632 = vmatprep.mubr.f32.mxu0 0.0
        %5633 = vmatmul.mubr.f32.gmra.mrb[0].mxu0 %v5507
        %v5634 = vpop.f32.mrb[0].mxu0
        %v5635 = vadd.f32 0.0, %v5634
        %v5636 = vpop.f32.mrb[0].mxu0
        %5637 = vmatprep.mubr.f32.mxu0 0.0
        %5638 = vmatmul.mubr.f32.gmra.mrb[0].mxu0 %v5510
        %v5639 = vpop.f32.mrb[0].mxu0
        %v5640 = vadd.f32 0.0, %v5639
        %v5641 = vpop.f32.mrb[0].mxu0
        %5642 = vmatprep.mubr.f32.mxu0 0.0
        %5643 = vmatmul.mubr.f32.gmra.mrb[0].mxu0 %v5513
        %v5644 = vpop.f32.mrb[0].mxu0
        %v5645 = vadd.f32 0.0, %v5644
        %v5646 = vpop.f32.mrb[0].mxu0
        %5647 = vmatprep.mubr.f32.mxu0 0.0
        %5648 = vmatmul.mubr.f32.gmra.mrb[0].mxu0 %v5516
        %v5649 = vpop.f32.mrb[0].mxu0
        %v5650 = vadd.f32 0.0, %v5649
        %v5651 = vpop.f32.mrb[0].mxu0
        %5652 = vmatprep.mubr.f32.mxu0 0.0
        %5653 = vmatmul.mubr.f32.gmra.mrb[0].mxu0 %v5519
        %v5654 = vpop.f32.mrb[0].mxu0
        %v5655 = vadd.f32 0.0, %v5654
        %v5656 = vpop.f32.mrb[0].mxu0
        %5657 = vmatprep.mubr.f32.mxu0 0.0
        %5658 = vmatmul.mubr.f32.gmra.mrb[0].mxu0 %v5522
        %v5659 = vpop.f32.mrb[0].mxu0
        %v5660 = vadd.f32 0.0, %v5659
        %v5661 = vpop.f32.mrb[0].mxu0
        %5662 = vmatprep.mubr.f32.mxu0 0.0
        %5663 = vmatmul.mubr.f32.gmra.mrb[0].mxu0 %v5525
        %v5664 = vpop.f32.mrb[0].mxu0
        %v5665 = vadd.f32 0.0, %v5664
        %v5666 = vpop.f32.mrb[0].mxu0
        %5667 = vmatprep.mubr.f32.mxu0 0.0
        %5668 = vmatmul.mubr.f32.gmra.mrb[0].mxu0 %v5528
        %v5669 = vpop.f32.mrb[0].mxu0
        %v5670 = vadd.f32 0.0, %v5669
        %v5671 = vpop.f32.mrb[0].mxu0
        %5672 = vmatprep.mubr.f32.mxu0 0.0
        %5673 = vmatmul.mubr.f32.gmra.mrb[0].mxu0 %v5531
        %v5674 = vpop.f32.mrb[0].mxu0
        %v5675 = vadd.f32 0.0, %v5674
        %v5676 = vpop.f32.mrb[0].mxu0
        %5677 = vdwg.mxu0
        %v5678 = vadd.f32 %v5386, %v5600
        %v5679 = vadd.f32 %v5391, %v5605
        %v5680 = vadd.f32 %v5396, %v5610
        %v5681 = vadd.f32 %v5401, %v5615
        %v5682 = vadd.f32 %v5406, %v5620
        %v5683 = vadd.f32 %v5411, %v5625
        %v5684 = vadd.f32 %v5416, %v5630
        %v5685 = vadd.f32 %v5421, %v5635
        %v5686 = vadd.f32 %v5426, %v5640
        %v5687 = vadd.f32 %v5431, %v5645
        %v5688 = vadd.f32 %v5436, %v5650
        %v5689 = vadd.f32 %v5441, %v5655
        %v5690 = vadd.f32 %v5446, %v5660
        %v5691 = vadd.f32 %v5451, %v5665
        %v5692 = vadd.f32 %v5456, %v5670
        %v5693 = vadd.f32 %v5461, %v5675
        %v5694 = vld [vmem:[%s6] sm:$0x1]
        %v5696 = vlaneseq
        %v5697 = vshrl.u32 %v5696, 7
        %v5698 = vsub.s32 0, %v5697
        %v5699 = vrot.slane %v5694, %v5698
        %v5701 = vmul.f32 %v5678, %v5699
        %v5702 = vmul.f32 %v5679, %v5699
        %v5703 = vmul.f32 %v5680, %v5699
        %v5704 = vmul.f32 %v5681, %v5699
        %v5705 = vmul.f32 %v5682, %v5699
        %v5706 = vmul.f32 %v5683, %v5699
        %v5707 = vmul.f32 %v5684, %v5699
        %v5708 = vmul.f32 %v5685, %v5699
        %v5709 = vmul.f32 %v5686, %v5699
        %v5710 = vmul.f32 %v5687, %v5699
        %v5711 = vmul.f32 %v5688, %v5699
        %v5712 = vmul.f32 %v5689, %v5699
        %v5713 = vmul.f32 %v5690, %v5699
        %v5714 = vmul.f32 %v5691, %v5699
        %v5715 = vmul.f32 %v5692, %v5699
        %v5716 = vmul.f32 %v5693, %v5699
        %v5717 = vld [vmem:[%s7] sm:$0x1]
        %v5719 = vlaneseq
        %v5720 = vshrl.u32 %v5719, 7
        %v5721 = vsub.s32 0, %v5720
        %v5722 = vrot.slane %v5717, %v5721
        %v5724 = vadd.f32 %v5701, %v5722
        %v5725 = vadd.f32 %v5702, %v5722
        %v5726 = vadd.f32 %v5703, %v5722
        %v5727 = vadd.f32 %v5704, %v5722
        %v5728 = vadd.f32 %v5705, %v5722
        %v5729 = vadd.f32 %v5706, %v5722
        %v5730 = vadd.f32 %v5707, %v5722
        %v5731 = vadd.f32 %v5708, %v5722
        %v5732 = vadd.f32 %v5709, %v5722
        %v5733 = vadd.f32 %v5710, %v5722
        %v5734 = vadd.f32 %v5711, %v5722
        %v5735 = vadd.f32 %v5712, %v5722
        %v5736 = vadd.f32 %v5713, %v5722
        %v5737 = vadd.f32 %v5714, %v5722
        %v5738 = vadd.f32 %v5715, %v5722
        %v5739 = vadd.f32 %v5716, %v5722
        %v5740 = vmax.f32 %v5724, 0.0
        %v5741 = vmax.f32 %v5725, 0.0
        %v5742 = vmax.f32 %v5726, 0.0
        %v5743 = vmax.f32 %v5727, 0.0
        %v5744 = vmax.f32 %v5728, 0.0
        %v5745 = vmax.f32 %v5729, 0.0
        %v5746 = vmax.f32 %v5730, 0.0
        %v5747 = vmax.f32 %v5731, 0.0
        %v5748 = vmax.f32 %v5732, 0.0
        %v5749 = vmax.f32 %v5733, 0.0
        %v5750 = vmax.f32 %v5734, 0.0
        %v5751 = vmax.f32 %v5735, 0.0
        %v5752 = vmax.f32 %v5736, 0.0
        %v5753 = vmax.f32 %v5737, 0.0
        %v5754 = vmax.f32 %v5738, 0.0
        %v5755 = vmax.f32 %v5739, 0.0
        %5756 = vst.msk [vmem:[#allocation3] sm:$0xff] %vm4116, %v5740
        %5757 = vst.msk [vmem:[#allocation3 + $0x8] sm:$0xff] %vm4116, %v5741
        %5758 = vst.msk [vmem:[#allocation3 + $0x10] sm:$0xff] %vm4116, %v5742
        %5759 = vst.msk [vmem:[#allocation3 + $0x18] sm:$0xff] %vm4116, %v5743
        %5760 = vst.msk [vmem:[#allocation3 + $0x20] sm:$0xff] %vm4116, %v5744
        %5761 = vst.msk [vmem:[#allocation3 + $0x28] sm:$0xff] %vm4116, %v5745
        %5762 = vst.msk [vmem:[#allocation3 + $0x30] sm:$0xff] %vm4116, %v5746
        %5763 = vst.msk [vmem:[#allocation3 + $0x38] sm:$0xff] %vm4116, %v5747
        %5764 = vst.msk [vmem:[#allocation3 + $0x40] sm:$0xff] %vm4116, %v5748
        %5765 = vst.msk [vmem:[#allocation3 + $0x48] sm:$0xff] %vm4116, %v5749
        %5766 = vst.msk [vmem:[#allocation3 + $0x50] sm:$0xff] %vm4116, %v5750
        %5767 = vst.msk [vmem:[#allocation3 + $0x58] sm:$0xff] %vm4116, %v5751
        %5768 = vst.msk [vmem:[#allocation3 + $0x60] sm:$0xff] %vm4116, %v5752
        %5769 = vst.msk [vmem:[#allocation3 + $0x68] sm:$0xff] %vm4116, %v5753
        %5770 = vst.msk [vmem:[#allocation3 + $0x70] sm:$0xff] %vm4116, %v5754
        %vm5771 = vcmask 254976
        %5772 = vst.msk [vmem:[#allocation3 + $0x78] sm:$0x3] %vm5771, %v5755
        %v5773 = vld [vmem:[#allocation3] sm:$0xff]
        %v5774 = vld [vmem:[#allocation3 + $0x8] sm:$0xff]
        %v5775 = vld [vmem:[#allocation3 + $0x10] sm:$0xff]
        %v5776 = vld [vmem:[#allocation3 + $0x18] sm:$0xff]
        %v5777 = vld [vmem:[#allocation3 + $0x20] sm:$0xff]
        %v5778 = vld [vmem:[#allocation3 + $0x28] sm:$0xff]
        %v5779 = vld [vmem:[#allocation3 + $0x30] sm:$0xff]
        %v5780 = vld [vmem:[#allocation3 + $0x38] sm:$0xff]
        %v5781 = vld [vmem:[#allocation3 + $0x40] sm:$0xff]
        %v5782 = vld [vmem:[#allocation3 + $0x48] sm:$0xff]
        %v5783 = vld [vmem:[#allocation3 + $0x50] sm:$0xff]
        %v5784 = vld [vmem:[#allocation3 + $0x58] sm:$0xff]
        %v5785 = vld [vmem:[#allocation3 + $0x60] sm:$0xff]
        %v5786 = vld [vmem:[#allocation3 + $0x68] sm:$0xff]
        %v5787 = vld [vmem:[#allocation3 + $0x70] sm:$0x7f]
        %v5788 = vld [vmem:[#allocation3 + $0x1] sm:$0xff]
        %v5789 = vld [vmem:[#allocation3 + $0x9] sm:$0xff]
        %v5790 = vld [vmem:[#allocation3 + $0x11] sm:$0xff]
        %v5791 = vld [vmem:[#allocation3 + $0x19] sm:$0xff]
        %v5792 = vld [vmem:[#allocation3 + $0x21] sm:$0xff]
        %v5793 = vld [vmem:[#allocation3 + $0x29] sm:$0xff]
        %v5794 = vld [vmem:[#allocation3 + $0x31] sm:$0xff]
        %v5795 = vld [vmem:[#allocation3 + $0x39] sm:$0xff]
        %v5796 = vld [vmem:[#allocation3 + $0x41] sm:$0xff]
        %v5797 = vld [vmem:[#allocation3 + $0x49] sm:$0xff]
        %v5798 = vld [vmem:[#allocation3 + $0x51] sm:$0xff]
        %v5799 = vld [vmem:[#allocation3 + $0x59] sm:$0xff]
        %v5800 = vld [vmem:[#allocation3 + $0x61] sm:$0xff]
        %v5801 = vld [vmem:[#allocation3 + $0x69] sm:$0xff]
        %v5802 = vld [vmem:[#allocation3 + $0x71] sm:$0x7f]
        %v5803 = vmax.f32 %v5773, %v5788
        %v5804 = vmax.f32 %v5774, %v5789
        %v5805 = vmax.f32 %v5775, %v5790
        %v5806 = vmax.f32 %v5776, %v5791
        %v5807 = vmax.f32 %v5777, %v5792
        %v5808 = vmax.f32 %v5778, %v5793
        %v5809 = vmax.f32 %v5779, %v5794
        %v5810 = vmax.f32 %v5780, %v5795
        %v5811 = vmax.f32 %v5781, %v5796
        %v5812 = vmax.f32 %v5782, %v5797
        %v5813 = vmax.f32 %v5783, %v5798
        %v5814 = vmax.f32 %v5784, %v5799
        %v5815 = vmax.f32 %v5785, %v5800
        %v5816 = vmax.f32 %v5786, %v5801
        %v5817 = vmax.f32 %v5787, %v5802
        %v5818 = vld [vmem:[#allocation3 + $0x2] sm:$0xff]
        %v5819 = vld [vmem:[#allocation3 + $0xa] sm:$0xff]
        %v5820 = vld [vmem:[#allocation3 + $0x12] sm:$0xff]
        %v5821 = vld [vmem:[#allocation3 + $0x1a] sm:$0xff]
        %v5822 = vld [vmem:[#allocation3 + $0x22] sm:$0xff]
        %v5823 = vld [vmem:[#allocation3 + $0x2a] sm:$0xff]
        %v5824 = vld [vmem:[#allocation3 + $0x32] sm:$0xff]
        %v5825 = vld [vmem:[#allocation3 + $0x3a] sm:$0xff]
        %v5826 = vld [vmem:[#allocation3 + $0x42] sm:$0xff]
        %v5827 = vld [vmem:[#allocation3 + $0x4a] sm:$0xff]
        %v5828 = vld [vmem:[#allocation3 + $0x52] sm:$0xff]
        %v5829 = vld [vmem:[#allocation3 + $0x5a] sm:$0xff]
        %v5830 = vld [vmem:[#allocation3 + $0x62] sm:$0xff]
        %v5831 = vld [vmem:[#allocation3 + $0x6a] sm:$0xff]
        %v5832 = vld [vmem:[#allocation3 + $0x72] sm:$0x7f]
        %v5833 = vld [vmem:[#allocation3 + $0x3] sm:$0xff]
        %v5834 = vld [vmem:[#allocation3 + $0xb] sm:$0xff]
        %v5835 = vld [vmem:[#allocation3 + $0x13] sm:$0xff]
        %v5836 = vld [vmem:[#allocation3 + $0x1b] sm:$0xff]
        %v5837 = vld [vmem:[#allocation3 + $0x23] sm:$0xff]
        %v5838 = vld [vmem:[#allocation3 + $0x2b] sm:$0xff]
        %v5839 = vld [vmem:[#allocation3 + $0x33] sm:$0xff]
        %v5840 = vld [vmem:[#allocation3 + $0x3b] sm:$0xff]
        %v5841 = vld [vmem:[#allocation3 + $0x43] sm:$0xff]
        %v5842 = vld [vmem:[#allocation3 + $0x4b] sm:$0xff]
        %v5843 = vld [vmem:[#allocation3 + $0x53] sm:$0xff]
        %v5844 = vld [vmem:[#allocation3 + $0x5b] sm:$0xff]
        %v5845 = vld [vmem:[#allocation3 + $0x63] sm:$0xff]
        %v5846 = vld [vmem:[#allocation3 + $0x6b] sm:$0xff]
        %v5847 = vld [vmem:[#allocation3 + $0x73] sm:$0x7f]
        %v5848 = vmax.f32 %v5818, %v5833
        %v5849 = vmax.f32 %v5819, %v5834
        %v5850 = vmax.f32 %v5820, %v5835
        %v5851 = vmax.f32 %v5821, %v5836
        %v5852 = vmax.f32 %v5822, %v5837
        %v5853 = vmax.f32 %v5823, %v5838
        %v5854 = vmax.f32 %v5824, %v5839
        %v5855 = vmax.f32 %v5825, %v5840
        %v5856 = vmax.f32 %v5826, %v5841
        %v5857 = vmax.f32 %v5827, %v5842
        %v5858 = vmax.f32 %v5828, %v5843
        %v5859 = vmax.f32 %v5829, %v5844
        %v5860 = vmax.f32 %v5830, %v5845
        %v5861 = vmax.f32 %v5831, %v5846
        %v5862 = vmax.f32 %v5832, %v5847
        %v5863 = vmax.f32 %v5803, %v5848
        %v5864 = vmax.f32 %v5804, %v5849
        %v5865 = vmax.f32 %v5805, %v5850
        %v5866 = vmax.f32 %v5806, %v5851
        %v5867 = vmax.f32 %v5807, %v5852
        %v5868 = vmax.f32 %v5808, %v5853
        %v5869 = vmax.f32 %v5809, %v5854
        %v5870 = vmax.f32 %v5810, %v5855
        %v5871 = vmax.f32 %v5811, %v5856
        %v5872 = vmax.f32 %v5812, %v5857
        %v5873 = vmax.f32 %v5813, %v5858
        %v5874 = vmax.f32 %v5814, %v5859
        %v5875 = vmax.f32 %v5815, %v5860
        %v5876 = vmax.f32 %v5816, %v5861
        %v5877 = vmax.f32 %v5817, %v5862
        %v5878 = vld [vmem:[%s8] sm:$0xff]
        %v5879 = vld [vmem:[%s8 + $0x8] sm:$0xff]
        %v5880 = vld [vmem:[%s8 + $0x10] sm:$0xff]
        %v5881 = vld [vmem:[%s8 + $0x18] sm:$0x3f]
        %vm5882 = vcmask 973824
        %v5884 = vsel %vm5882, %v5878, 0
        %v5887 = vsel %vm5882, %v5879, 0
        %v5890 = vsel %vm5882, %v5880, 0
        %v5893 = vsel %vm5882, %v5881, 0
        %vm5895 = vcmask 1046528
        %v5897 = vsel %vm5895, %v5877, 0
        %5899 = vmatprep.subr.mxu0 0.0
        %5900 = vmatpush1.msra.mxu0 %v5863
        %5901 = vmatprep.subr.mxu0 0.0
        %5902 = vmatpush1.msra.mxu0 %v5864
        %5903 = vmatprep.subr.mxu0 0.0
        %5904 = vmatpush1.msra.mxu0 %v5865
        %5905 = vmatprep.subr.mxu0 0.0
        %5906 = vmatpush1.msra.mxu0 %v5866
        %5907 = vmatprep.subr.mxu0 0.0
        %5908 = vmatpush1.msra.mxu0 %v5867
        %5909 = vmatprep.subr.mxu0 0.0
        %5910 = vmatpush1.msra.mxu0 %v5868
        %5911 = vmatprep.subr.mxu0 0.0
        %5912 = vmatpush1.msra.mxu0 %v5869
        %5913 = vmatprep.subr.mxu0 0.0
        %5914 = vmatpush1.msra.mxu0 %v5870
        %5915 = vmatprep.subr.mxu0 0.0
        %5916 = vmatpush1.msra.mxu0 %v5871
        %5917 = vmatprep.subr.mxu0 0.0
        %5918 = vmatpush1.msra.mxu0 %v5872
        %5919 = vmatprep.subr.mxu0 0.0
        %5920 = vmatpush1.msra.mxu0 %v5873
        %5921 = vmatprep.subr.mxu0 0.0
        %5922 = vmatpush1.msra.mxu0 %v5874
        %5923 = vmatprep.subr.mxu0 0.0
        %5924 = vmatpush1.msra.mxu0 %v5875
        %5925 = vmatprep.subr.mxu0 0.0
        %5926 = vmatpush1.msra.mxu0 %v5876
        %5927 = vmatprep.subr.mxu0 0.0
        %5928 = vmatpush1.msra.mxu0 %v5897
        %5929 = vmatprep.subr.mxu0 0.0
        %5930 = vmatpush1.msra.mxu0 0.0
        %5931 = vmatprep.subr.mxu0 0.0
        %5932 = vmatpush1.msra.mxu0 0.0
        %5933 = vmatprep.subr.mxu0 0.0
        %5934 = vmatpush1.msra.mxu0 0.0
        %5935 = vmatprep.subr.mxu0 0.0
        %5936 = vmatpush1.msra.mxu0 0.0
        %5937 = vmatprep.subr.mxu0 0.0
        %5938 = vmatpush1.msra.mxu0 0.0
        %5939 = vmatprep.subr.mxu0 0.0
        %5940 = vmatpush1.msra.mxu0 0.0
        %5941 = vmatprep.subr.mxu0 0.0
        %5942 = vmatpush1.msra.mxu0 0.0
        %5943 = vmatprep.subr.mxu0 0.0
        %5944 = vmatpush1.msra.mxu0 0.0
        %5945 = vmatprep.subr.mxu0 0.0
        %5946 = vmatpush1.msra.mxu0 0.0
        %5947 = vmatprep.subr.mxu0 0.0
        %5948 = vmatpush1.msra.mxu0 0.0
        %5949 = vmatprep.subr.mxu0 0.0
        %5950 = vmatpush1.msra.mxu0 0.0
        %5951 = vmatprep.subr.mxu0 0.0
        %5952 = vmatpush1.msra.mxu0 0.0
        %5953 = vmatprep.subr.mxu0 0.0
        %5954 = vmatpush1.msra.mxu0 0.0
        %5955 = vmatprep.subr.mxu0 0.0
        %5956 = vmatpush1.msra.mxu0 0.0
        %5957 = vmatprep.subr.mxu0 0.0
        %5958 = vmatpush1.msra.mxu0 0.0
        %5959 = vmatprep.subr.mxu0 0.0
        %5960 = vmatpush1.msra.mxu0 0.0
        %5961 = vmatprep.subr.mxu0 0.0
        %5962 = vmatpush1.msra.mxu0 0.0
        %5963 = vmatprep.mubr.f32.mxu0 0.0
        %5964 = vmatmul.mubr.f32.gmra.mrb[0].mxu0 %v5884
        %v5965 = vpop.f32.mrb[0].mxu0
        %v5966 = vadd.f32 0.0, %v5965
        %v5967 = vpop.f32.mrb[0].mxu0
        %5968 = vmatprep.mubr.f32.mxu0 0.0
        %5969 = vmatmul.mubr.f32.gmra.mrb[0].mxu0 %v5887
        %v5970 = vpop.f32.mrb[0].mxu0
        %v5971 = vadd.f32 0.0, %v5970
        %v5972 = vpop.f32.mrb[0].mxu0
        %5973 = vmatprep.mubr.f32.mxu0 0.0
        %5974 = vmatmul.mubr.f32.gmra.mrb[0].mxu0 %v5890
        %v5975 = vpop.f32.mrb[0].mxu0
        %v5976 = vadd.f32 0.0, %v5975
        %v5977 = vpop.f32.mrb[0].mxu0
        %5978 = vmatprep.mubr.f32.mxu0 0.0
        %5979 = vmatmul.mubr.f32.gmra.mrb[0].mxu0 %v5893
        %v5980 = vpop.f32.mrb[0].mxu0
        %v5981 = vadd.f32 0.0, %v5980
        %v5982 = vpop.f32.mrb[0].mxu0
        %5983 = vdwg.mxu0
        %5984 = vst.msk [vmem:[#allocation7] sm:$0xff] %vm4116, %v5966
        %5985 = vst.msk [vmem:[#allocation7 + $0x8] sm:$0xff] %vm4116, %v5971
        %5986 = vst.msk [vmem:[#allocation7 + $0x10] sm:$0xff] %vm4116, %v5976
        %vm5987 = vcmask 259072
        %5988 = vst.msk [vmem:[#allocation7 + $0x18] sm:$0x3f] %vm5987, %v5981
        %v5989 = vld [vmem:[#allocation7] sm:$0xff]
        %v5990 = vld [vmem:[#allocation7 + $0x8] sm:$0xff]
        %v5991 = vld [vmem:[#allocation7 + $0x10] sm:$0xff]
        %v5992 = vld [vmem:[#allocation7 + $0x18] sm:$0xf]
        %v5993 = vld [vmem:[%s9] sm:$0xff]
        %v5994 = vld [vmem:[%s9 + $0x8] sm:$0xff]
        %v5995 = vld [vmem:[%s9 + $0x10] sm:$0xff]
        %v5996 = vld [vmem:[%s9 + $0x18] sm:$0xff]
        %v5997 = vld [vmem:[#allocation7 + $0x1] sm:$0xff]
        %v5998 = vld [vmem:[#allocation7 + $0x9] sm:$0xff]
        %v5999 = vld [vmem:[#allocation7 + $0x11] sm:$0xff]
        %v6000 = vld [vmem:[#allocation7 + $0x19] sm:$0xf]
        %s6001 = scalar_lea.vmem %s9, 32
        %v6002 = vld [vmem:[%s6001] sm:$0xff]
        %v6003 = vld [vmem:[%s6001 + $0x8] sm:$0xff]
        %v6004 = vld [vmem:[%s6001 + $0x10] sm:$0xff]
        %v6005 = vld [vmem:[%s6001 + $0x18] sm:$0xff]
        %v6007 = vsel %vm4116, %v5997, 0
        %v6010 = vsel %vm4116, %v5998, 0
        %v6013 = vsel %vm4116, %v5999, 0
        %v6016 = vsel %vm4116, %v6000, 0
        %6018 = vmatprep.subr.mxu0 0.0
        %6019 = vmatpush1.msra.mxu0 %v6002
        %6020 = vmatprep.subr.mxu0 0.0
        %6021 = vmatpush1.msra.mxu0 %v6003
        %6022 = vmatprep.subr.mxu0 0.0
        %6023 = vmatpush1.msra.mxu0 %v6004
        %6024 = vmatprep.subr.mxu0 0.0
        %6025 = vmatpush1.msra.mxu0 %v6005
        %6026 = vmatprep.subr.mxu0 0.0
        %6027 = vmatpush1.msra.mxu0 0.0
        %6028 = vmatprep.subr.mxu0 0.0
        %6029 = vmatpush1.msra.mxu0 0.0
        %6030 = vmatprep.subr.mxu0 0.0
        %6031 = vmatpush1.msra.mxu0 0.0
        %6032 = vmatprep.subr.mxu0 0.0
        %6033 = vmatpush1.msra.mxu0 0.0
        %6034 = vmatprep.subr.mxu0 0.0
        %6035 = vmatpush1.msra.mxu0 0.0
        %6036 = vmatprep.subr.mxu0 0.0
        %6037 = vmatpush1.msra.mxu0 0.0
        %6038 = vmatprep.subr.mxu0 0.0
        %6039 = vmatpush1.msra.mxu0 0.0
        %6040 = vmatprep.subr.mxu0 0.0
        %6041 = vmatpush1.msra.mxu0 0.0
        %6042 = vmatprep.subr.mxu0 0.0
        %6043 = vmatpush1.msra.mxu0 0.0
        %6044 = vmatprep.subr.mxu0 0.0
        %6045 = vmatpush1.msra.mxu0 0.0
        %6046 = vmatprep.subr.mxu0 0.0
        %6047 = vmatpush1.msra.mxu0 0.0
        %6048 = vmatprep.subr.mxu0 0.0
        %6049 = vmatpush1.msra.mxu0 0.0
        %6050 = vmatprep.subr.mxu0 0.0
        %6051 = vmatpush1.msra.mxu0 0.0
        %6052 = vmatprep.subr.mxu0 0.0
        %6053 = vmatpush1.msra.mxu0 0.0
        %6054 = vmatprep.subr.mxu0 0.0
        %6055 = vmatpush1.msra.mxu0 0.0
        %6056 = vmatprep.subr.mxu0 0.0
        %6057 = vmatpush1.msra.mxu0 0.0
        %6058 = vmatprep.subr.mxu0 0.0
        %6059 = vmatpush1.msra.mxu0 0.0
        %6060 = vmatprep.subr.mxu0 0.0
        %6061 = vmatpush1.msra.mxu0 0.0
        %6062 = vmatprep.subr.mxu0 0.0
        %6063 = vmatpush1.msra.mxu0 0.0
        %6064 = vmatprep.subr.mxu0 0.0
        %6065 = vmatpush1.msra.mxu0 0.0
        %6066 = vmatprep.subr.mxu0 0.0
        %6067 = vmatpush1.msra.mxu0 0.0
        %6068 = vmatprep.subr.mxu0 0.0
        %6069 = vmatpush1.msra.mxu0 0.0
        %6070 = vmatprep.subr.mxu0 0.0
        %6071 = vmatpush1.msra.mxu0 0.0
        %6072 = vmatprep.subr.mxu0 0.0
        %6073 = vmatpush1.msra.mxu0 0.0
        %6074 = vmatprep.subr.mxu0 0.0
        %6075 = vmatpush1.msra.mxu0 0.0
        %6076 = vmatprep.subr.mxu0 0.0
        %6077 = vmatpush1.msra.mxu0 0.0
        %6078 = vmatprep.subr.mxu0 0.0
        %6079 = vmatpush1.msra.mxu0 0.0
        %6080 = vmatprep.subr.mxu0 0.0
        %6081 = vmatpush1.msra.mxu0 0.0
        %6082 = vmatprep.mubr.f32.mxu0 0.0
        %6083 = vmatmul.mubr.f32.gmra.mrb[0].mxu0 %v6007
        %v6084 = vpop.f32.mrb[0].mxu0
        %v6085 = vadd.f32 0.0, %v6084
        %v6086 = vpop.f32.mrb[0].mxu0
        %6087 = vmatprep.mubr.f32.mxu0 0.0
        %6088 = vmatmul.mubr.f32.gmra.mrb[0].mxu0 %v6010
        %v6089 = vpop.f32.mrb[0].mxu0
        %v6090 = vadd.f32 0.0, %v6089
        %v6091 = vpop.f32.mrb[0].mxu0
        %6092 = vmatprep.mubr.f32.mxu0 0.0
        %6093 = vmatmul.mubr.f32.gmra.mrb[0].mxu0 %v6013
        %v6094 = vpop.f32.mrb[0].mxu0
        %v6095 = vadd.f32 0.0, %v6094
        %v6096 = vpop.f32.mrb[0].mxu0
        %6097 = vmatprep.mubr.f32.mxu0 0.0
        %6098 = vmatmul.mubr.f32.gmra.mrb[0].mxu0 %v6016
        %v6099 = vpop.f32.mrb[0].mxu0
        %v6100 = vadd.f32 0.0, %v6099
        %v6101 = vpop.f32.mrb[0].mxu0
        %6102 = vdwg.mxu0
        %v6104 = vsel %vm4116, %v5989, 0
        %v6107 = vsel %vm4116, %v5990, 0
        %v6110 = vsel %vm4116, %v5991, 0
        %v6113 = vsel %vm4116, %v5992, 0
        %6115 = vmatprep.subr.mxu0 0.0
        %6116 = vmatpush1.msra.mxu0 %v5993
        %6117 = vmatprep.subr.mxu0 0.0
        %6118 = vmatpush1.msra.mxu0 %v5994
        %6119 = vmatprep.subr.mxu0 0.0
        %6120 = vmatpush1.msra.mxu0 %v5995
        %6121 = vmatprep.subr.mxu0 0.0
        %6122 = vmatpush1.msra.mxu0 %v5996
        %6123 = vmatprep.subr.mxu0 0.0
        %6124 = vmatpush1.msra.mxu0 0.0
        %6125 = vmatprep.subr.mxu0 0.0
        %6126 = vmatpush1.msra.mxu0 0.0
        %6127 = vmatprep.subr.mxu0 0.0
        %6128 = vmatpush1.msra.mxu0 0.0
        %6129 = vmatprep.subr.mxu0 0.0
        %6130 = vmatpush1.msra.mxu0 0.0
        %6131 = vmatprep.subr.mxu0 0.0
        %6132 = vmatpush1.msra.mxu0 0.0
        %6133 = vmatprep.subr.mxu0 0.0
        %6134 = vmatpush1.msra.mxu0 0.0
        %6135 = vmatprep.subr.mxu0 0.0
        %6136 = vmatpush1.msra.mxu0 0.0
        %6137 = vmatprep.subr.mxu0 0.0
        %6138 = vmatpush1.msra.mxu0 0.0
        %6139 = vmatprep.subr.mxu0 0.0
        %6140 = vmatpush1.msra.mxu0 0.0
        %6141 = vmatprep.subr.mxu0 0.0
        %6142 = vmatpush1.msra.mxu0 0.0
        %6143 = vmatprep.subr.mxu0 0.0
        %6144 = vmatpush1.msra.mxu0 0.0
        %6145 = vmatprep.subr.mxu0 0.0
        %6146 = vmatpush1.msra.mxu0 0.0
        %6147 = vmatprep.subr.mxu0 0.0
        %6148 = vmatpush1.msra.mxu0 0.0
        %6149 = vmatprep.subr.mxu0 0.0
        %6150 = vmatpush1.msra.mxu0 0.0
        %6151 = vmatprep.subr.mxu0 0.0
        %6152 = vmatpush1.msra.mxu0 0.0
        %6153 = vmatprep.subr.mxu0 0.0
        %6154 = vmatpush1.msra.mxu0 0.0
        %6155 = vmatprep.subr.mxu0 0.0
        %6156 = vmatpush1.msra.mxu0 0.0
        %6157 = vmatprep.subr.mxu0 0.0
        %6158 = vmatpush1.msra.mxu0 0.0
        %6159 = vmatprep.subr.mxu0 0.0
        %6160 = vmatpush1.msra.mxu0 0.0
        %6161 = vmatprep.subr.mxu0 0.0
        %6162 = vmatpush1.msra.mxu0 0.0
        %6163 = vmatprep.subr.mxu0 0.0
        %6164 = vmatpush1.msra.mxu0 0.0
        %6165 = vmatprep.subr.mxu0 0.0
        %6166 = vmatpush1.msra.mxu0 0.0
        %6167 = vmatprep.subr.mxu0 0.0
        %6168 = vmatpush1.msra.mxu0 0.0
        %6169 = vmatprep.subr.mxu0 0.0
        %6170 = vmatpush1.msra.mxu0 0.0
        %6171 = vmatprep.subr.mxu0 0.0
        %6172 = vmatpush1.msra.mxu0 0.0
        %6173 = vmatprep.subr.mxu0 0.0
        %6174 = vmatpush1.msra.mxu0 0.0
        %6175 = vmatprep.subr.mxu0 0.0
        %6176 = vmatpush1.msra.mxu0 0.0
        %6177 = vmatprep.subr.mxu0 0.0
        %6178 = vmatpush1.msra.mxu0 0.0
        %6179 = vmatprep.mubr.f32.mxu0 0.0
        %6180 = vmatmul.mubr.f32.gmra.mrb[0].mxu0 %v6104
        %v6181 = vpop.f32.mrb[0].mxu0
        %v6182 = vadd.f32 %v6085, %v6181
        %v6183 = vpop.f32.mrb[0].mxu0
        %6184 = vmatprep.mubr.f32.mxu0 0.0
        %6185 = vmatmul.mubr.f32.gmra.mrb[0].mxu0 %v6107
        %v6186 = vpop.f32.mrb[0].mxu0
        %v6187 = vadd.f32 %v6090, %v6186
        %v6188 = vpop.f32.mrb[0].mxu0
        %6189 = vmatprep.mubr.f32.mxu0 0.0
        %6190 = vmatmul.mubr.f32.gmra.mrb[0].mxu0 %v6110
        %v6191 = vpop.f32.mrb[0].mxu0
        %v6192 = vadd.f32 %v6095, %v6191
        %v6193 = vpop.f32.mrb[0].mxu0
        %6194 = vmatprep.mubr.f32.mxu0 0.0
        %6195 = vmatmul.mubr.f32.gmra.mrb[0].mxu0 %v6113
        %v6196 = vpop.f32.mrb[0].mxu0
        %v6197 = vadd.f32 %v6100, %v6196
        %v6198 = vpop.f32.mrb[0].mxu0
        %6199 = vdwg.mxu0
        %v6200 = vld [vmem:[#allocation7 + $0x2] sm:$0xff]
        %v6201 = vld [vmem:[#allocation7 + $0xa] sm:$0xff]
        %v6202 = vld [vmem:[#allocation7 + $0x12] sm:$0xff]
        %v6203 = vld [vmem:[#allocation7 + $0x1a] sm:$0xf]
        %s6204 = scalar_lea.vmem %s9, 64
        %v6205 = vld [vmem:[%s6204] sm:$0xff]
        %v6206 = vld [vmem:[%s6204 + $0x8] sm:$0xff]
        %v6207 = vld [vmem:[%s6204 + $0x10] sm:$0xff]
        %v6208 = vld [vmem:[%s6204 + $0x18] sm:$0xff]
        %v6210 = vsel %vm4116, %v6200, 0
        %v6213 = vsel %vm4116, %v6201, 0
        %v6216 = vsel %vm4116, %v6202, 0
        %v6219 = vsel %vm4116, %v6203, 0
        %6221 = vmatprep.subr.mxu0 0.0
        %6222 = vmatpush1.msra.mxu0 %v6205
        %6223 = vmatprep.subr.mxu0 0.0
        %6224 = vmatpush1.msra.mxu0 %v6206
        %6225 = vmatprep.subr.mxu0 0.0
        %6226 = vmatpush1.msra.mxu0 %v6207
        %6227 = vmatprep.subr.mxu0 0.0
        %6228 = vmatpush1.msra.mxu0 %v6208
        %6229 = vmatprep.subr.mxu0 0.0
        %6230 = vmatpush1.msra.mxu0 0.0
        %6231 = vmatprep.subr.mxu0 0.0
        %6232 = vmatpush1.msra.mxu0 0.0
        %6233 = vmatprep.subr.mxu0 0.0
        %6234 = vmatpush1.msra.mxu0 0.0
        %6235 = vmatprep.subr.mxu0 0.0
        %6236 = vmatpush1.msra.mxu0 0.0
        %6237 = vmatprep.subr.mxu0 0.0
        %6238 = vmatpush1.msra.mxu0 0.0
        %6239 = vmatprep.subr.mxu0 0.0
        %6240 = vmatpush1.msra.mxu0 0.0
        %6241 = vmatprep.subr.mxu0 0.0
        %6242 = vmatpush1.msra.mxu0 0.0
        %6243 = vmatprep.subr.mxu0 0.0
        %6244 = vmatpush1.msra.mxu0 0.0
        %6245 = vmatprep.subr.mxu0 0.0
        %6246 = vmatpush1.msra.mxu0 0.0
        %6247 = vmatprep.subr.mxu0 0.0
        %6248 = vmatpush1.msra.mxu0 0.0
        %6249 = vmatprep.subr.mxu0 0.0
        %6250 = vmatpush1.msra.mxu0 0.0
        %6251 = vmatprep.subr.mxu0 0.0
        %6252 = vmatpush1.msra.mxu0 0.0
        %6253 = vmatprep.subr.mxu0 0.0
        %6254 = vmatpush1.msra.mxu0 0.0
        %6255 = vmatprep.subr.mxu0 0.0
        %6256 = vmatpush1.msra.mxu0 0.0
        %6257 = vmatprep.subr.mxu0 0.0
        %6258 = vmatpush1.msra.mxu0 0.0
        %6259 = vmatprep.subr.mxu0 0.0
        %6260 = vmatpush1.msra.mxu0 0.0
        %6261 = vmatprep.subr.mxu0 0.0
        %6262 = vmatpush1.msra.mxu0 0.0
        %6263 = vmatprep.subr.mxu0 0.0
        %6264 = vmatpush1.msra.mxu0 0.0
        %6265 = vmatprep.subr.mxu0 0.0
        %6266 = vmatpush1.msra.mxu0 0.0
        %6267 = vmatprep.subr.mxu0 0.0
        %6268 = vmatpush1.msra.mxu0 0.0
        %6269 = vmatprep.subr.mxu0 0.0
        %6270 = vmatpush1.msra.mxu0 0.0
        %6271 = vmatprep.subr.mxu0 0.0
        %6272 = vmatpush1.msra.mxu0 0.0
        %6273 = vmatprep.subr.mxu0 0.0
        %6274 = vmatpush1.msra.mxu0 0.0
        %6275 = vmatprep.subr.mxu0 0.0
        %6276 = vmatpush1.msra.mxu0 0.0
        %6277 = vmatprep.subr.mxu0 0.0
        %6278 = vmatpush1.msra.mxu0 0.0
        %6279 = vmatprep.subr.mxu0 0.0
        %6280 = vmatpush1.msra.mxu0 0.0
        %6281 = vmatprep.subr.mxu0 0.0
        %6282 = vmatpush1.msra.mxu0 0.0
        %6283 = vmatprep.subr.mxu0 0.0
        %6284 = vmatpush1.msra.mxu0 0.0
        %6285 = vmatprep.mubr.f32.mxu0 0.0
        %6286 = vmatmul.mubr.f32.gmra.mrb[0].mxu0 %v6210
        %v6287 = vpop.f32.mrb[0].mxu0
        %v6288 = vadd.f32 0.0, %v6287
        %v6289 = vpop.f32.mrb[0].mxu0
        %6290 = vmatprep.mubr.f32.mxu0 0.0
        %6291 = vmatmul.mubr.f32.gmra.mrb[0].mxu0 %v6213
        %v6292 = vpop.f32.mrb[0].mxu0
        %v6293 = vadd.f32 0.0, %v6292
        %v6294 = vpop.f32.mrb[0].mxu0
        %6295 = vmatprep.mubr.f32.mxu0 0.0
        %6296 = vmatmul.mubr.f32.gmra.mrb[0].mxu0 %v6216
        %v6297 = vpop.f32.mrb[0].mxu0
        %v6298 = vadd.f32 0.0, %v6297
        %v6299 = vpop.f32.mrb[0].mxu0
        %6300 = vmatprep.mubr.f32.mxu0 0.0
        %6301 = vmatmul.mubr.f32.gmra.mrb[0].mxu0 %v6219
        %v6302 = vpop.f32.mrb[0].mxu0
        %v6303 = vadd.f32 0.0, %v6302
        %v6304 = vpop.f32.mrb[0].mxu0
        %6305 = vdwg.mxu0
        %v6306 = vadd.f32 %v6182, %v6288
        %v6307 = vadd.f32 %v6187, %v6293
        %v6308 = vadd.f32 %v6192, %v6298
        %v6309 = vadd.f32 %v6197, %v6303
        %v6310 = vld [vmem:[%s10] sm:$0x1]
        %v6312 = vlaneseq
        %v6313 = vshrl.u32 %v6312, 7
        %v6314 = vsub.s32 0, %v6313
        %v6315 = vrot.slane %v6310, %v6314
        %v6317 = vmul.f32 %v6306, %v6315
        %v6318 = vmul.f32 %v6307, %v6315
        %v6319 = vmul.f32 %v6308, %v6315
        %v6320 = vmul.f32 %v6309, %v6315
        %v6321 = vld [vmem:[%s11] sm:$0x1]
        %v6323 = vlaneseq
        %v6324 = vshrl.u32 %v6323, 7
        %v6325 = vsub.s32 0, %v6324
        %v6326 = vrot.slane %v6321, %v6325
        %v6328 = vadd.f32 %v6317, %v6326
        %v6329 = vadd.f32 %v6318, %v6326
        %v6330 = vadd.f32 %v6319, %v6326
        %v6331 = vadd.f32 %v6320, %v6326
        %v6332 = vmax.f32 %v6328, 0.0
        %v6333 = vmax.f32 %v6329, 0.0
        %v6334 = vmax.f32 %v6330, 0.0
        %v6335 = vmax.f32 %v6331, 0.0
        %vm6336 = vcmask 523264
        %6337 = vst.msk [vmem:[#allocation4] sm:$0xff] %vm6336, %v6332
        %6338 = vst.msk [vmem:[#allocation4 + $0x8] sm:$0xff] %vm6336, %v6333
        %6339 = vst.msk [vmem:[#allocation4 + $0x10] sm:$0xff] %vm6336, %v6334
        %vm6340 = vcmask 519168
        %6341 = vst.msk [vmem:[#allocation4 + $0x18] sm:$0xf] %vm6340, %v6335
        %v6342 = vld [vmem:[#allocation4] sm:$0xff]
        %v6343 = vld [vmem:[#allocation4 + $0x8] sm:$0xff]
        %v6344 = vld [vmem:[#allocation4 + $0x10] sm:$0xff]
        %v6345 = vld [vmem:[#allocation4 + $0x18] sm:$0x1]
        %v6346 = vld [vmem:[#allocation4 + $0x1] sm:$0xff]
        %v6347 = vld [vmem:[#allocation4 + $0x9] sm:$0xff]
        %v6348 = vld [vmem:[#allocation4 + $0x11] sm:$0xff]
        %v6349 = vld [vmem:[#allocation4 + $0x19] sm:$0x1]
        %v6350 = vmax.f32 %v6342, %v6346
        %v6351 = vmax.f32 %v6343, %v6347
        %v6352 = vmax.f32 %v6344, %v6348
        %v6353 = vmax.f32 %v6345, %v6349
        %v6354 = vld [vmem:[#allocation4 + $0x2] sm:$0xff]
        %v6355 = vld [vmem:[#allocation4 + $0xa] sm:$0xff]
        %v6356 = vld [vmem:[#allocation4 + $0x12] sm:$0xff]
        %v6357 = vld [vmem:[#allocation4 + $0x1a] sm:$0x1]
        %v6358 = vld [vmem:[#allocation4 + $0x3] sm:$0xff]
        %v6359 = vld [vmem:[#allocation4 + $0xb] sm:$0xff]
        %v6360 = vld [vmem:[#allocation4 + $0x13] sm:$0xff]
        %v6361 = vld [vmem:[#allocation4 + $0x1b] sm:$0x1]
        %v6362 = vmax.f32 %v6354, %v6358
        %v6363 = vmax.f32 %v6355, %v6359
        %v6364 = vmax.f32 %v6356, %v6360
        %v6365 = vmax.f32 %v6357, %v6361
        %v6366 = vmax.f32 %v6350, %v6362
        %v6367 = vmax.f32 %v6351, %v6363
        %v6368 = vmax.f32 %v6352, %v6364
        %v6369 = vmax.f32 %v6353, %v6365
        %v6370 = vld [vmem:[%s12] sm:$0x7f]
        %vm6371 = vcmask 203776
        %v6373 = vsel %vm6371, %v6370, 0
        %vm6375 = vcmask 1040384
        %v6377 = vsel %vm6375, %v6369, 0
        %6379 = vmatprep.subr.mxu0 0.0
        %6380 = vmatpush1.msra.mxu0 %v6366
        %6381 = vmatprep.subr.mxu0 0.0
        %6382 = vmatpush1.msra.mxu0 %v6367
        %6383 = vmatprep.subr.mxu0 0.0
        %6384 = vmatpush1.msra.mxu0 %v6368
        %6385 = vmatprep.subr.mxu0 0.0
        %6386 = vmatpush1.msra.mxu0 %v6377
        %6387 = vmatprep.subr.mxu0 0.0
        %6388 = vmatpush1.msra.mxu0 0.0
        %6389 = vmatprep.subr.mxu0 0.0
        %6390 = vmatpush1.msra.mxu0 0.0
        %6391 = vmatprep.subr.mxu0 0.0
        %6392 = vmatpush1.msra.mxu0 0.0
        %6393 = vmatprep.subr.mxu0 0.0
        %6394 = vmatpush1.msra.mxu0 0.0
        %6395 = vmatprep.subr.mxu0 0.0
        %6396 = vmatpush1.msra.mxu0 0.0
        %6397 = vmatprep.subr.mxu0 0.0
        %6398 = vmatpush1.msra.mxu0 0.0
        %6399 = vmatprep.subr.mxu0 0.0
        %6400 = vmatpush1.msra.mxu0 0.0
        %6401 = vmatprep.subr.mxu0 0.0
        %6402 = vmatpush1.msra.mxu0 0.0
        %6403 = vmatprep.subr.mxu0 0.0
        %6404 = vmatpush1.msra.mxu0 0.0
        %6405 = vmatprep.subr.mxu0 0.0
        %6406 = vmatpush1.msra.mxu0 0.0
        %6407 = vmatprep.subr.mxu0 0.0
        %6408 = vmatpush1.msra.mxu0 0.0
        %6409 = vmatprep.subr.mxu0 0.0
        %6410 = vmatpush1.msra.mxu0 0.0
        %6411 = vmatprep.subr.mxu0 0.0
        %6412 = vmatpush1.msra.mxu0 0.0
        %6413 = vmatprep.subr.mxu0 0.0
        %6414 = vmatpush1.msra.mxu0 0.0
        %6415 = vmatprep.subr.mxu0 0.0
        %6416 = vmatpush1.msra.mxu0 0.0
        %6417 = vmatprep.subr.mxu0 0.0
        %6418 = vmatpush1.msra.mxu0 0.0
        %6419 = vmatprep.subr.mxu0 0.0
        %6420 = vmatpush1.msra.mxu0 0.0
        %6421 = vmatprep.subr.mxu0 0.0
        %6422 = vmatpush1.msra.mxu0 0.0
        %6423 = vmatprep.subr.mxu0 0.0
        %6424 = vmatpush1.msra.mxu0 0.0
        %6425 = vmatprep.subr.mxu0 0.0
        %6426 = vmatpush1.msra.mxu0 0.0
        %6427 = vmatprep.subr.mxu0 0.0
        %6428 = vmatpush1.msra.mxu0 0.0
        %6429 = vmatprep.subr.mxu0 0.0
        %6430 = vmatpush1.msra.mxu0 0.0
        %6431 = vmatprep.subr.mxu0 0.0
        %6432 = vmatpush1.msra.mxu0 0.0
        %6433 = vmatprep.subr.mxu0 0.0
        %6434 = vmatpush1.msra.mxu0 0.0
        %6435 = vmatprep.subr.mxu0 0.0
        %6436 = vmatpush1.msra.mxu0 0.0
        %6437 = vmatprep.subr.mxu0 0.0
        %6438 = vmatpush1.msra.mxu0 0.0
        %6439 = vmatprep.subr.mxu0 0.0
        %6440 = vmatpush1.msra.mxu0 0.0
        %6441 = vmatprep.subr.mxu0 0.0
        %6442 = vmatpush1.msra.mxu0 0.0
        %6443 = vmatprep.mubr.f32.mxu0 0.0
        %6444 = vmatmul.mubr.f32.gmra.mrb[0].mxu0 %v6373
        %v6445 = vpop.f32.mrb[0].mxu0
        %v6446 = vadd.f32 0.0, %v6445
        %v6447 = vpop.f32.mrb[0].mxu0
        %6448 = vdwg.mxu0
        %vm6449 = vcmask 522240
        %6450 = vst.msk [vmem:[#allocation8] sm:$0x7f] %vm6449, %v6446
        %v6451 = vld [vmem:[#allocation8] sm:$0x1f]
        %v6452 = vld [vmem:[%s13] sm:$0xff]
        %v6453 = vld [vmem:[%s13 + $0x8] sm:$0xff]
        %v6454 = vld [vmem:[%s13 + $0x10] sm:$0xff]
        %v6455 = vld [vmem:[%s13 + $0x18] sm:$0xff]
        %v6456 = vld [vmem:[%s13 + $0x20] sm:$0xff]
        %v6457 = vld [vmem:[%s13 + $0x28] sm:$0xff]
        %v6458 = vld [vmem:[%s13 + $0x30] sm:$0xff]
        %v6459 = vld [vmem:[%s13 + $0x38] sm:$0xff]
        %v6460 = vld [vmem:[#allocation8 + $0x1] sm:$0x1f]
        %s6461 = scalar_lea.vmem %s13, 64
        %v6462 = vld [vmem:[%s6461] sm:$0xff]
        %v6463 = vld [vmem:[%s6461 + $0x8] sm:$0xff]
        %v6464 = vld [vmem:[%s6461 + $0x10] sm:$0xff]
        %v6465 = vld [vmem:[%s6461 + $0x18] sm:$0xff]
        %v6466 = vld [vmem:[%s6461 + $0x20] sm:$0xff]
        %v6467 = vld [vmem:[%s6461 + $0x28] sm:$0xff]
        %v6468 = vld [vmem:[%s6461 + $0x30] sm:$0xff]
        %v6469 = vld [vmem:[%s6461 + $0x38] sm:$0xff]
        %v6471 = vsel %vm6336, %v6460, 0
        %6473 = vmatprep.subr.mxu0 0.0
        %6474 = vmatpush1.msra.mxu0 %v6462
        %6475 = vmatprep.subr.mxu0 0.0
        %6476 = vmatpush1.msra.mxu0 %v6463
        %6477 = vmatprep.subr.mxu0 0.0
        %6478 = vmatpush1.msra.mxu0 %v6464
        %6479 = vmatprep.subr.mxu0 0.0
        %6480 = vmatpush1.msra.mxu0 %v6465
        %6481 = vmatprep.subr.mxu0 0.0
        %6482 = vmatpush1.msra.mxu0 %v6466
        %6483 = vmatprep.subr.mxu0 0.0
        %6484 = vmatpush1.msra.mxu0 %v6467
        %6485 = vmatprep.subr.mxu0 0.0
        %6486 = vmatpush1.msra.mxu0 %v6468
        %6487 = vmatprep.subr.mxu0 0.0
        %6488 = vmatpush1.msra.mxu0 %v6469
        %6489 = vmatprep.subr.mxu0 0.0
        %6490 = vmatpush1.msra.mxu0 0.0
        %6491 = vmatprep.subr.mxu0 0.0
        %6492 = vmatpush1.msra.mxu0 0.0
        %6493 = vmatprep.subr.mxu0 0.0
        %6494 = vmatpush1.msra.mxu0 0.0
        %6495 = vmatprep.subr.mxu0 0.0
        %6496 = vmatpush1.msra.mxu0 0.0
        %6497 = vmatprep.subr.mxu0 0.0
        %6498 = vmatpush1.msra.mxu0 0.0
        %6499 = vmatprep.subr.mxu0 0.0
        %6500 = vmatpush1.msra.mxu0 0.0
        %6501 = vmatprep.subr.mxu0 0.0
        %6502 = vmatpush1.msra.mxu0 0.0
        %6503 = vmatprep.subr.mxu0 0.0
        %6504 = vmatpush1.msra.mxu0 0.0
        %6505 = vmatprep.subr.mxu0 0.0
        %6506 = vmatpush1.msra.mxu0 0.0
        %6507 = vmatprep.subr.mxu0 0.0
        %6508 = vmatpush1.msra.mxu0 0.0
        %6509 = vmatprep.subr.mxu0 0.0
        %6510 = vmatpush1.msra.mxu0 0.0
        %6511 = vmatprep.subr.mxu0 0.0
        %6512 = vmatpush1.msra.mxu0 0.0
        %6513 = vmatprep.subr.mxu0 0.0
        %6514 = vmatpush1.msra.mxu0 0.0
        %6515 = vmatprep.subr.mxu0 0.0
        %6516 = vmatpush1.msra.mxu0 0.0
        %6517 = vmatprep.subr.mxu0 0.0
        %6518 = vmatpush1.msra.mxu0 0.0
        %6519 = vmatprep.subr.mxu0 0.0
        %6520 = vmatpush1.msra.mxu0 0.0
        %6521 = vmatprep.subr.mxu0 0.0
        %6522 = vmatpush1.msra.mxu0 0.0
        %6523 = vmatprep.subr.mxu0 0.0
        %6524 = vmatpush1.msra.mxu0 0.0
        %6525 = vmatprep.subr.mxu0 0.0
        %6526 = vmatpush1.msra.mxu0 0.0
        %6527 = vmatprep.subr.mxu0 0.0
        %6528 = vmatpush1.msra.mxu0 0.0
        %6529 = vmatprep.subr.mxu0 0.0
        %6530 = vmatpush1.msra.mxu0 0.0
        %6531 = vmatprep.subr.mxu0 0.0
        %6532 = vmatpush1.msra.mxu0 0.0
        %6533 = vmatprep.subr.mxu0 0.0
        %6534 = vmatpush1.msra.mxu0 0.0
        %6535 = vmatprep.subr.mxu0 0.0
        %6536 = vmatpush1.msra.mxu0 0.0
        %6537 = vmatprep.mubr.f32.mxu0 0.0
        %6538 = vmatmul.mubr.f32.gmra.mrb[0].mxu0 %v6471
        %v6539 = vpop.f32.mrb[0].mxu0
        %v6540 = vadd.f32 0.0, %v6539
        %v6541 = vpop.f32.mrb[0].mxu0
        %6542 = vdwg.mxu0
        %v6544 = vsel %vm6336, %v6451, 0
        %6546 = vmatprep.subr.mxu0 0.0
        %6547 = vmatpush1.msra.mxu0 %v6452
        %6548 = vmatprep.subr.mxu0 0.0
        %6549 = vmatpush1.msra.mxu0 %v6453
        %6550 = vmatprep.subr.mxu0 0.0
        %6551 = vmatpush1.msra.mxu0 %v6454
        %6552 = vmatprep.subr.mxu0 0.0
        %6553 = vmatpush1.msra.mxu0 %v6455
        %6554 = vmatprep.subr.mxu0 0.0
        %6555 = vmatpush1.msra.mxu0 %v6456
        %6556 = vmatprep.subr.mxu0 0.0
        %6557 = vmatpush1.msra.mxu0 %v6457
        %6558 = vmatprep.subr.mxu0 0.0
        %6559 = vmatpush1.msra.mxu0 %v6458
        %6560 = vmatprep.subr.mxu0 0.0
        %6561 = vmatpush1.msra.mxu0 %v6459
        %6562 = vmatprep.subr.mxu0 0.0
        %6563 = vmatpush1.msra.mxu0 0.0
        %6564 = vmatprep.subr.mxu0 0.0
        %6565 = vmatpush1.msra.mxu0 0.0
        %6566 = vmatprep.subr.mxu0 0.0
        %6567 = vmatpush1.msra.mxu0 0.0
        %6568 = vmatprep.subr.mxu0 0.0
        %6569 = vmatpush1.msra.mxu0 0.0
        %6570 = vmatprep.subr.mxu0 0.0
        %6571 = vmatpush1.msra.mxu0 0.0
        %6572 = vmatprep.subr.mxu0 0.0
        %6573 = vmatpush1.msra.mxu0 0.0
        %6574 = vmatprep.subr.mxu0 0.0
        %6575 = vmatpush1.msra.mxu0 0.0
        %6576 = vmatprep.subr.mxu0 0.0
        %6577 = vmatpush1.msra.mxu0 0.0
        %6578 = vmatprep.subr.mxu0 0.0
        %6579 = vmatpush1.msra.mxu0 0.0
        %6580 = vmatprep.subr.mxu0 0.0
        %6581 = vmatpush1.msra.mxu0 0.0
        %6582 = vmatprep.subr.mxu0 0.0
        %6583 = vmatpush1.msra.mxu0 0.0
        %6584 = vmatprep.subr.mxu0 0.0
        %6585 = vmatpush1.msra.mxu0 0.0
        %6586 = vmatprep.subr.mxu0 0.0
        %6587 = vmatpush1.msra.mxu0 0.0
        %6588 = vmatprep.subr.mxu0 0.0
        %6589 = vmatpush1.msra.mxu0 0.0
        %6590 = vmatprep.subr.mxu0 0.0
        %6591 = vmatpush1.msra.mxu0 0.0
        %6592 = vmatprep.subr.mxu0 0.0
        %6593 = vmatpush1.msra.mxu0 0.0
        %6594 = vmatprep.subr.mxu0 0.0
        %6595 = vmatpush1.msra.mxu0 0.0
        %6596 = vmatprep.subr.mxu0 0.0
        %6597 = vmatpush1.msra.mxu0 0.0
        %6598 = vmatprep.subr.mxu0 0.0
        %6599 = vmatpush1.msra.mxu0 0.0
        %6600 = vmatprep.subr.mxu0 0.0
        %6601 = vmatpush1.msra.mxu0 0.0
        %6602 = vmatprep.subr.mxu0 0.0
        %6603 = vmatpush1.msra.mxu0 0.0
        %6604 = vmatprep.subr.mxu0 0.0
        %6605 = vmatpush1.msra.mxu0 0.0
        %6606 = vmatprep.subr.mxu0 0.0
        %6607 = vmatpush1.msra.mxu0 0.0
        %6608 = vmatprep.subr.mxu0 0.0
        %6609 = vmatpush1.msra.mxu0 0.0
        %6610 = vmatprep.mubr.f32.mxu0 0.0
        %6611 = vmatmul.mubr.f32.gmra.mrb[0].mxu0 %v6544
        %v6612 = vpop.f32.mrb[0].mxu0
        %v6613 = vadd.f32 %v6540, %v6612
        %v6614 = vpop.f32.mrb[0].mxu0
        %6615 = vdwg.mxu0
        %v6616 = vld [vmem:[#allocation8 + $0x2] sm:$0x1f]
        %s6617 = scalar_lea.vmem %s13, 128
        %v6618 = vld [vmem:[%s6617] sm:$0xff]
        %v6619 = vld [vmem:[%s6617 + $0x8] sm:$0xff]
        %v6620 = vld [vmem:[%s6617 + $0x10] sm:$0xff]
        %v6621 = vld [vmem:[%s6617 + $0x18] sm:$0xff]
        %v6622 = vld [vmem:[%s6617 + $0x20] sm:$0xff]
        %v6623 = vld [vmem:[%s6617 + $0x28] sm:$0xff]
        %v6624 = vld [vmem:[%s6617 + $0x30] sm:$0xff]
        %v6625 = vld [vmem:[%s6617 + $0x38] sm:$0xff]
        %v6627 = vsel %vm6336, %v6616, 0
        %6629 = vmatprep.subr.mxu0 0.0
        %6630 = vmatpush1.msra.mxu0 %v6618
        %6631 = vmatprep.subr.mxu0 0.0
        %6632 = vmatpush1.msra.mxu0 %v6619
        %6633 = vmatprep.subr.mxu0 0.0
        %6634 = vmatpush1.msra.mxu0 %v6620
        %6635 = vmatprep.subr.mxu0 0.0
        %6636 = vmatpush1.msra.mxu0 %v6621
        %6637 = vmatprep.subr.mxu0 0.0
        %6638 = vmatpush1.msra.mxu0 %v6622
        %6639 = vmatprep.subr.mxu0 0.0
        %6640 = vmatpush1.msra.mxu0 %v6623
        %6641 = vmatprep.subr.mxu0 0.0
        %6642 = vmatpush1.msra.mxu0 %v6624
        %6643 = vmatprep.subr.mxu0 0.0
        %6644 = vmatpush1.msra.mxu0 %v6625
        %6645 = vmatprep.subr.mxu0 0.0
        %6646 = vmatpush1.msra.mxu0 0.0
        %6647 = vmatprep.subr.mxu0 0.0
        %6648 = vmatpush1.msra.mxu0 0.0
        %6649 = vmatprep.subr.mxu0 0.0
        %6650 = vmatpush1.msra.mxu0 0.0
        %6651 = vmatprep.subr.mxu0 0.0
        %6652 = vmatpush1.msra.mxu0 0.0
        %6653 = vmatprep.subr.mxu0 0.0
        %6654 = vmatpush1.msra.mxu0 0.0
        %6655 = vmatprep.subr.mxu0 0.0
        %6656 = vmatpush1.msra.mxu0 0.0
        %6657 = vmatprep.subr.mxu0 0.0
        %6658 = vmatpush1.msra.mxu0 0.0
        %6659 = vmatprep.subr.mxu0 0.0
        %6660 = vmatpush1.msra.mxu0 0.0
        %6661 = vmatprep.subr.mxu0 0.0
        %6662 = vmatpush1.msra.mxu0 0.0
        %6663 = vmatprep.subr.mxu0 0.0
        %6664 = vmatpush1.msra.mxu0 0.0
        %6665 = vmatprep.subr.mxu0 0.0
        %6666 = vmatpush1.msra.mxu0 0.0
        %6667 = vmatprep.subr.mxu0 0.0
        %6668 = vmatpush1.msra.mxu0 0.0
        %6669 = vmatprep.subr.mxu0 0.0
        %6670 = vmatpush1.msra.mxu0 0.0
        %6671 = vmatprep.subr.mxu0 0.0
        %6672 = vmatpush1.msra.mxu0 0.0
        %6673 = vmatprep.subr.mxu0 0.0
        %6674 = vmatpush1.msra.mxu0 0.0
        %6675 = vmatprep.subr.mxu0 0.0
        %6676 = vmatpush1.msra.mxu0 0.0
        %6677 = vmatprep.subr.mxu0 0.0
        %6678 = vmatpush1.msra.mxu0 0.0
        %6679 = vmatprep.subr.mxu0 0.0
        %6680 = vmatpush1.msra.mxu0 0.0
        %6681 = vmatprep.subr.mxu0 0.0
        %6682 = vmatpush1.msra.mxu0 0.0
        %6683 = vmatprep.subr.mxu0 0.0
        %6684 = vmatpush1.msra.mxu0 0.0
        %6685 = vmatprep.subr.mxu0 0.0
        %6686 = vmatpush1.msra.mxu0 0.0
        %6687 = vmatprep.subr.mxu0 0.0
        %6688 = vmatpush1.msra.mxu0 0.0
        %6689 = vmatprep.subr.mxu0 0.0
        %6690 = vmatpush1.msra.mxu0 0.0
        %6691 = vmatprep.subr.mxu0 0.0
        %6692 = vmatpush1.msra.mxu0 0.0
        %6693 = vmatprep.mubr.f32.mxu0 0.0
        %6694 = vmatmul.mubr.f32.gmra.mrb[0].mxu0 %v6627
        %v6695 = vpop.f32.mrb[0].mxu0
        %v6696 = vadd.f32 0.0, %v6695
        %v6697 = vpop.f32.mrb[0].mxu0
        %6698 = vdwg.mxu0
        %v6699 = vadd.f32 %v6613, %v6696
        %v6700 = vld [vmem:[%s14] sm:$0x1]
        %v6702 = vlaneseq
        %v6703 = vshrl.u32 %v6702, 7
        %v6704 = vsub.s32 0, %v6703
        %v6705 = vrot.slane %v6700, %v6704
        %v6707 = vmul.f32 %v6699, %v6705
        %v6708 = vld [vmem:[%s15] sm:$0x1]
        %v6710 = vlaneseq
        %v6711 = vshrl.u32 %v6710, 7
        %v6712 = vsub.s32 0, %v6711
        %v6713 = vrot.slane %v6708, %v6712
        %v6715 = vadd.f32 %v6707, %v6713
        %v6716 = vmax.f32 %v6715, 0.0
        %vm6717 = vcmask 520192
        %6718 = vst.msk [vmem:[#allocation5] sm:$0x1f] %vm6717, %v6716
        %v6719 = vld [vmem:[#allocation5] sm:$0x3]
        %v6720 = vld [vmem:[#allocation5 + $0x1] sm:$0x3]
        %v6721 = vmax.f32 %v6719, %v6720
        %v6722 = vld [vmem:[#allocation5 + $0x2] sm:$0x3]
        %v6723 = vld [vmem:[#allocation5 + $0x3] sm:$0x3]
        %v6724 = vmax.f32 %v6722, %v6723
        %v6725 = vmax.f32 %v6721, %v6724
        %v6726 = vld [vmem:[%s16] sm:$0x1]
        %vm6727 = vcmask 15360
        %v6729 = vsel %vm6727, %v6726, 0
        %vm6731 = vcmask 1041408
        %v6733 = vsel %vm6731, %v6725, 0
        %6735 = vmatprep.subr.mxu0 0.0
        %6736 = vmatpush1.msra.mxu0 %v6733
        %6737 = vmatprep.subr.mxu0 0.0
        %6738 = vmatpush1.msra.mxu0 0.0
        %6739 = vmatprep.subr.mxu0 0.0
        %6740 = vmatpush1.msra.mxu0 0.0
        %6741 = vmatprep.subr.mxu0 0.0
        %6742 = vmatpush1.msra.mxu0 0.0
        %6743 = vmatprep.subr.mxu0 0.0
        %6744 = vmatpush1.msra.mxu0 0.0
        %6745 = vmatprep.subr.mxu0 0.0
        %6746 = vmatpush1.msra.mxu0 0.0
        %6747 = vmatprep.subr.mxu0 0.0
        %6748 = vmatpush1.msra.mxu0 0.0
        %6749 = vmatprep.subr.mxu0 0.0
        %6750 = vmatpush1.msra.mxu0 0.0
        %6751 = vmatprep.subr.mxu0 0.0
        %6752 = vmatpush1.msra.mxu0 0.0
        %6753 = vmatprep.subr.mxu0 0.0
        %6754 = vmatpush1.msra.mxu0 0.0
        %6755 = vmatprep.subr.mxu0 0.0
        %6756 = vmatpush1.msra.mxu0 0.0
        %6757 = vmatprep.subr.mxu0 0.0
        %6758 = vmatpush1.msra.mxu0 0.0
        %6759 = vmatprep.subr.mxu0 0.0
        %6760 = vmatpush1.msra.mxu0 0.0
        %6761 = vmatprep.subr.mxu0 0.0
        %6762 = vmatpush1.msra.mxu0 0.0
        %6763 = vmatprep.subr.mxu0 0.0
        %6764 = vmatpush1.msra.mxu0 0.0
        %6765 = vmatprep.subr.mxu0 0.0
        %6766 = vmatpush1.msra.mxu0 0.0
        %6767 = vmatprep.subr.mxu0 0.0
        %6768 = vmatpush1.msra.mxu0 0.0
        %6769 = vmatprep.subr.mxu0 0.0
        %6770 = vmatpush1.msra.mxu0 0.0
        %6771 = vmatprep.subr.mxu0 0.0
        %6772 = vmatpush1.msra.mxu0 0.0
        %6773 = vmatprep.subr.mxu0 0.0
        %6774 = vmatpush1.msra.mxu0 0.0
        %6775 = vmatprep.subr.mxu0 0.0
        %6776 = vmatpush1.msra.mxu0 0.0
        %6777 = vmatprep.subr.mxu0 0.0
        %6778 = vmatpush1.msra.mxu0 0.0
        %6779 = vmatprep.subr.mxu0 0.0
        %6780 = vmatpush1.msra.mxu0 0.0
        %6781 = vmatprep.subr.mxu0 0.0
        %6782 = vmatpush1.msra.mxu0 0.0
        %6783 = vmatprep.subr.mxu0 0.0
        %6784 = vmatpush1.msra.mxu0 0.0
        %6785 = vmatprep.subr.mxu0 0.0
        %6786 = vmatpush1.msra.mxu0 0.0
        %6787 = vmatprep.subr.mxu0 0.0
        %6788 = vmatpush1.msra.mxu0 0.0
        %6789 = vmatprep.subr.mxu0 0.0
        %6790 = vmatpush1.msra.mxu0 0.0
        %6791 = vmatprep.subr.mxu0 0.0
        %6792 = vmatpush1.msra.mxu0 0.0
        %6793 = vmatprep.subr.mxu0 0.0
        %6794 = vmatpush1.msra.mxu0 0.0
        %6795 = vmatprep.subr.mxu0 0.0
        %6796 = vmatpush1.msra.mxu0 0.0
        %6797 = vmatprep.subr.mxu0 0.0
        %6798 = vmatpush1.msra.mxu0 0.0
        %6799 = vmatprep.mubr.f32.mxu0 0.0
        %6800 = vmatmul.mubr.f32.gmra.mrb[0].mxu0 %v6729
        %v6801 = vpop.f32.mrb[0].mxu0
        %v6802 = vadd.f32 0.0, %v6801
        %v6803 = vpop.f32.mrb[0].mxu0
        %6804 = vdwg.mxu0
        %v6805 = vadd.f32 %v6802, 0.0
        %v6806 = vld [vmem:[%s17] sm:$0xff]
        %v6807 = vld [vmem:[%s17 + $0x8] sm:$0xff]
        %v6808 = vld [vmem:[%s17 + $0x10] sm:$0xff]
        %v6809 = vld [vmem:[%s17 + $0x18] sm:$0xff]
        %v6810 = vld [vmem:[%s17 + $0x20] sm:$0xff]
        %v6811 = vld [vmem:[%s17 + $0x28] sm:$0xff]
        %v6812 = vld [vmem:[%s17 + $0x30] sm:$0xff]
        %v6813 = vld [vmem:[%s17 + $0x38] sm:$0xff]
        %v6814 = vld [vmem:[%s18] sm:$0x1]
        %v6816 = vsel %vm6336, %v6805, 0
        %6818 = vmatprep.subr.mxu0 0.0
        %6819 = vmatpush1.msra.mxu0 %v6806
        %6820 = vmatprep.subr.mxu0 0.0
        %6821 = vmatpush1.msra.mxu0 %v6807
        %6822 = vmatprep.subr.mxu0 0.0
        %6823 = vmatpush1.msra.mxu0 %v6808
        %6824 = vmatprep.subr.mxu0 0.0
        %6825 = vmatpush1.msra.mxu0 %v6809
        %6826 = vmatprep.subr.mxu0 0.0
        %6827 = vmatpush1.msra.mxu0 %v6810
        %6828 = vmatprep.subr.mxu0 0.0
        %6829 = vmatpush1.msra.mxu0 %v6811
        %6830 = vmatprep.subr.mxu0 0.0
        %6831 = vmatpush1.msra.mxu0 %v6812
        %6832 = vmatprep.subr.mxu0 0.0
        %6833 = vmatpush1.msra.mxu0 %v6813
        %6834 = vmatprep.subr.mxu0 0.0
        %6835 = vmatpush1.msra.mxu0 0.0
        %6836 = vmatprep.subr.mxu0 0.0
        %6837 = vmatpush1.msra.mxu0 0.0
        %6838 = vmatprep.subr.mxu0 0.0
        %6839 = vmatpush1.msra.mxu0 0.0
        %6840 = vmatprep.subr.mxu0 0.0
        %6841 = vmatpush1.msra.mxu0 0.0
        %6842 = vmatprep.subr.mxu0 0.0
        %6843 = vmatpush1.msra.mxu0 0.0
        %6844 = vmatprep.subr.mxu0 0.0
        %6845 = vmatpush1.msra.mxu0 0.0
        %6846 = vmatprep.subr.mxu0 0.0
        %6847 = vmatpush1.msra.mxu0 0.0
        %6848 = vmatprep.subr.mxu0 0.0
        %6849 = vmatpush1.msra.mxu0 0.0
        %6850 = vmatprep.subr.mxu0 0.0
        %6851 = vmatpush1.msra.mxu0 0.0
        %6852 = vmatprep.subr.mxu0 0.0
        %6853 = vmatpush1.msra.mxu0 0.0
        %6854 = vmatprep.subr.mxu0 0.0
        %6855 = vmatpush1.msra.mxu0 0.0
        %6856 = vmatprep.subr.mxu0 0.0
        %6857 = vmatpush1.msra.mxu0 0.0
        %6858 = vmatprep.subr.mxu0 0.0
        %6859 = vmatpush1.msra.mxu0 0.0
        %6860 = vmatprep.subr.mxu0 0.0
        %6861 = vmatpush1.msra.mxu0 0.0
        %6862 = vmatprep.subr.mxu0 0.0
        %6863 = vmatpush1.msra.mxu0 0.0
        %6864 = vmatprep.subr.mxu0 0.0
        %6865 = vmatpush1.msra.mxu0 0.0
        %6866 = vmatprep.subr.mxu0 0.0
        %6867 = vmatpush1.msra.mxu0 0.0
        %6868 = vmatprep.subr.mxu0 0.0
        %6869 = vmatpush1.msra.mxu0 0.0
        %6870 = vmatprep.subr.mxu0 0.0
        %6871 = vmatpush1.msra.mxu0 0.0
        %6872 = vmatprep.subr.mxu0 0.0
        %6873 = vmatpush1.msra.mxu0 0.0
        %6874 = vmatprep.subr.mxu0 0.0
        %6875 = vmatpush1.msra.mxu0 0.0
        %6876 = vmatprep.subr.mxu0 0.0
        %6877 = vmatpush1.msra.mxu0 0.0
        %6878 = vmatprep.subr.mxu0 0.0
        %6879 = vmatpush1.msra.mxu0 0.0
        %6880 = vmatprep.subr.mxu0 0.0
        %6881 = vmatpush1.msra.mxu0 0.0
        %6882 = vmatprep.mubr.f32.mxu0 0.0
        %6883 = vmatmul.mubr.f32.gmra.mrb[0].mxu0 %v6816
        %v6884 = vpop.f32.mrb[0].mxu0
        %v6885 = vadd.f32 %v6814, %v6884
        %v6886 = vpop.f32.mrb[0].mxu0
        %6887 = vdwg.mxu0
        %vm6888 = vcmask 278528
        %v6889 = vsel %vm6888, %v6885, -inf
        %6890 = vmax.xlane.f32.xlu0 %v6889
        %v6891 = vpop.xlane.xlu0 %6890
        %v6892 = vsub.f32 %v6885, %v6891
        %v6893 = vmul.f32 %v6892, 1.442695
        %v6894 = vpow.pop %v6893
        %v6895 = vsel %vm6888, %v6894, 0.0
        %6896 = vadd.xlane.f32.xlu0 %v6895
        %v6897 = vpop.xlane.xlu0 %6896
        %v6898 = vlog2.pop %v6897
        %v6899 = vmul.f32 %v6898, 0.6931472
        %v6900 = vsub.f32 %v6892, %v6899
        %6901 = vst.msk [vmem:[%s594] sm:$0x1] %vm6888, %v6900
        %s6902 = sand.u32 %s445, 1
        %s6903 = scalar_lea.sflag [#allocation10], %s6902
        %s6904 = sand.u32 %s445, 1
        %s6905 = scalar_lea.vmem [#allocation9], %s6904
        // Predicated region
        $region97: #{m5_forward.1} parent=95 // pred_check
          %p6906 = pneg %p455
        $region98: #{m5_forward.1} parent=95 // pred_check_branch
          %6908 = sbr.rel (%p6906) target = $region100
        $region99: #{m5_forward.1} parent=95 // pred_region
          %s6910 = ssub.s32 16, 16
          %6911 = vsyncadd %s6903, %s6910
          %s6912 = smul.addr %s33, 16
          %s6913 = scalar_lea.hbm %s19, %s6912
          %s6915 = sshll.u32 %s6905, 4
          %s6916 = int_to_ptr.vmem [resolvable:$true] %s6915
          %6918 = dma.vmem_to_hbm [thread:$0]  %s6916, 16, %s6913, %s6903
        $region100: #{m5_forward.1} parent=95 // pred_fallthru
          _
      $region96: #{m5_forward.1} parent=5 // pred_fallthru
        _
      %p6919 = scmp.le.s32.totalorder 2, %s28
      // Predicated region
      $region101: #{m5_forward.1} parent=5 // pred_check
        %p6920 = pneg %p6919
      $region102: #{m5_forward.1} parent=5 // pred_check_branch
        %6922 = sbr.rel (%p6920) target = $region104
      $region103: #{m5_forward.1} parent=5 // pred_region
        %s6923 = ssub.s32 %s28, 2
        // Predicated region
        $region105: #{m5_forward.1} parent=103 // pred_check
          %p6924 = pneg %p461
        $region106: #{m5_forward.1} parent=103 // pred_check_branch
          %6926 = sbr.rel (%p6924) target = $region108
        $region107: #{m5_forward.1} parent=103 // pred_region
          %s6927 = sand.u32 %s446, 1
          %s6928 = scalar_lea.sflag [#allocation10], %s6927
          %s6929 = sand.u32 %s446, 1
          %s6930 = scalar_lea.vmem [#allocation9], %s6929
          %6931 = dma.done %s6928, 16
        $region108: #{m5_forward.1} parent=103 // pred_fallthru
          _
      $region104: #{m5_forward.1} parent=5 // pred_fallthru
        _
    $region6: #{m5_forward.1} parent=1 // loop_footer
      %s32 = sadd.s32 1, %s28
    $region7: #{m5_forward.1} parent=1 // loop_footer_branch
      %27 = sbr.rel target = $region3
    $region8: #{m5_forward.1} parent=1 // loop_exit
      _
    %6932 = vsyncpa [#allocation10], 1
    %s6933 = scalar_lea.sflag [#allocation10], 1
    %6934 = vsyncpa %s6933, 1

</llo_original>
